<compile_context>
chip_gen: v7x
topology: tpu7x:2x2x1
jax: 0.10.0
libtpu: 0.0.40
codegen_flags: <defaults>
</compile_context>

<pallas_src>
import functools

import jax
import jax.numpy as jnp
from jax.experimental import pallas as pl
from jax.experimental.pallas import tpu as pltpu

HIDDEN = 512


def _round_up(v, m):
    return ((v + m - 1) // m) * m


def _device_kind():
    try:
        return jax.devices()[0].device_kind.lower()
    except Exception:
        return ""


def _is_v5e():
    k = _device_kind()
    return ("v5 lite" in k) or ("v5e" in k) or ("v5litepod" in k)


def _dqn_kernel(x_ref,
                w1_ref, b1_ref,
                w2v_ref, b2v_ref,
                w2a_ref, b2a_ref,
                w3_ref, b3_ref,
                out_ref, *, act_dtype):
    """One batch tile: fused layer-1, per-branch layer-2, single packed dueling head."""
    x = x_ref[...].astype(act_dtype)                      # [TB, obs_len]

    # Layer 1 (both branches fused): [TB, obs] @ [obs, 1024] -> [TB, 1024]
    h1 = jnp.dot(x, w1_ref[...], preferred_element_type=jnp.float32) + b1_ref[...]
    h1 = jnp.maximum(h1, 0.0)
    hv = h1[:, :HIDDEN].astype(act_dtype)                 # value-branch hidden
    ha = h1[:, HIDDEN:].astype(act_dtype)                 # advantage-branch hidden

    # Layer 2, per branch: [TB, 512] @ [512, 512], f32 accumulate + ReLU.
    hv2 = jnp.maximum(
        jnp.dot(hv, w2v_ref[...], preferred_element_type=jnp.float32) + b2v_ref[...], 0.0)
    ha2 = jnp.maximum(
        jnp.dot(ha, w2a_ref[...], preferred_element_type=jnp.float32) + b2a_ref[...], 0.0)

    # Single packed dueling head (K=1024): the combine val + (adv - mean(adv))
    # is linear, so it is folded into one [1024, a_pad] weight (value rows
    # broadcast across action columns, advantage rows mean-centered) + bias.
    # One MXU pass, one result drain, lane-dense [TB, 128] output block.
    h2 = jnp.concatenate([hv2.astype(act_dtype), ha2.astype(act_dtype)], axis=-1)
    out = jnp.dot(h2, w3_ref[...], preferred_element_type=jnp.float32) + b3_ref[...]
    out_ref[...] = out.astype(out_ref.dtype)


def pack_params(params, dtype=jnp.bfloat16):
    """Fuse layer-1, fold the dueling combine into one lane-padded head weight.

    `dtype` is the matmul-operand (weight) precision; bf16 is the default
    because this kernel is weight-DMA bound at realistic DQN batch sizes.
    Biases and MXU accumulation stay f32.
    """
    wv3, bv3 = params["wv3"], params["bv3"]               # [512, 1], [1, 1]
    wa3, ba3 = params["wa3"], params["ba3"]               # [512, A], [1, A]
    actions_n = wa3.shape[1]
    a_pad = 128 * pl.cdiv(actions_n, 128)                 # lane-dense head width

    # Fused first layer: both branches share the input x.
    w1 = jnp.concatenate([params["wv1"], params["wa1"]], axis=1)   # [obs, 1024]
    b1 = jnp.concatenate([params["bv1"], params["ba1"]], axis=1)   # [1, 1024]

    # Dueling combine is linear -> fold it into the head weights (exact in f32).
    wa3_c = wa3 - wa3.mean(axis=1, keepdims=True)                  # [512, A]
    b3_c = bv3 + (ba3 - ba3.mean(axis=1, keepdims=True))           # [1, A]

    # Single stacked head: rows [0:512] are the value branch (wv3 broadcast
    # across action columns), rows [512:1024] the centered advantage branch.
    w3 = jnp.zeros((2 * HIDDEN, a_pad), jnp.float32)
    w3 = w3.at[:HIDDEN, :actions_n].set(jnp.broadcast_to(wv3, (HIDDEN, actions_n)))
    w3 = w3.at[HIDDEN:, :actions_n].set(wa3_c)
    b3 = jnp.zeros((1, a_pad), jnp.float32).at[:, :actions_n].set(b3_c)

    # TODO(synk): optional int8 quantization of w2v/w2a (per-channel scales folded
    # into the post-matmul bias path) for v5e/v6e; NOT drop-in on v7x (no int8 MXU).
    return {
        "w1": w1.astype(dtype), "b1": b1.astype(jnp.float32),
        "w2v": params["wv2"].astype(dtype), "b2v": params["bv2"].astype(jnp.float32),
        "w2a": params["wa2"].astype(dtype), "b2a": params["ba2"].astype(jnp.float32),
        "w3": w3.astype(dtype), "b3": b3,
        "actions_n": actions_n,
    }


def simple_ffdqn_forward(x, packed, *, tb=None, out_dtype=jnp.float32):
    """x: [B, obs_len] f32.  packed: output of pack_params().  Returns [B, actions_n]."""
    B, obs_len = x.shape
    actions_n = packed["actions_n"]
    a_pad = packed["w3"].shape[1]
    w_dtype = packed["w1"].dtype

    # Activation precision: bf16 feeds the wide bf16 MXU on v6e/v7x; v5e's VPU
    # has no bf16 path, so keep activations f32 there (bf16 weights still halve
    # the HBM weight stream, which is the v5e win).
    act_dtype = jnp.float32 if (w_dtype == jnp.bfloat16 and _is_v5e()) else w_dtype

    # Batch tile: multiple of 8 sublanes, up to 512 rows (per-grid-step overhead
    # ~0.35us dominates small tiles; ~85% of roofline at 512).  Cap at ceil(B/2)
    # so the grid keeps >= 2 steps and both v7x TensorCores get work
    # (negligible cost on single-TC v5e/v6e).
    if tb is None:
        tb = min(512, _round_up(B, 8))
        if B > 8:
            tb = min(tb, _round_up(pl.cdiv(B, 2), 8))
    b_pad = tb * pl.cdiv(B, tb)
    if b_pad != B:
        x = jnp.pad(x, ((0, b_pad - B), (0, 0)))

    weight_args = (packed["w1"], packed["b1"],
                   packed["w2v"], packed["b2v"],
                   packed["w2a"], packed["b2a"],
                   packed["w3"], packed["b3"])

    kernel_fn = functools.partial(_dqn_kernel, act_dtype=act_dtype)

    flops = 2 * b_pad * (obs_len * 2 * HIDDEN           # fused layer 1
                         + 2 * HIDDEN * HIDDEN          # layer 2, both branches
                         + 2 * HIDDEN * a_pad)          # packed head (K=1024)
    bytes_accessed = (x.size * x.dtype.itemsize
                      + sum(a.size * a.dtype.itemsize for a in weight_args)
                      + b_pad * a_pad * jnp.dtype(out_dtype).itemsize)

    def run(single_buffer_weights):
        def resident(a):
            # Constant block index -> fetched once, stays resident across the grid.
            if single_buffer_weights:
                # A block that never changes needs no second pipeline buffer.
                return pl.BlockSpec(a.shape, lambda i: (0, 0),
                                    pipeline_mode=pl.Buffered(1))
            return pl.BlockSpec(a.shape, lambda i: (0, 0))

        in_specs = ([pl.BlockSpec((tb, obs_len), lambda i: (i, 0))]
                    + [resident(a) for a in weight_args])
        out_specs = pl.BlockSpec((tb, a_pad), lambda i: (i, 0))

        return pl.pallas_call(
            kernel_fn,
            grid=(b_pad // tb,),
            out_shape=jax.ShapeDtypeStruct((b_pad, a_pad), out_dtype),
            in_specs=in_specs,
            out_specs=out_specs,
            compiler_params=pltpu.CompilerParams(
                # TODO(synk): if plain "parallel" does not shard the batch grid
                # across v7x's two TensorCores, switch to pltpu.CORE_PARALLEL.
                dimension_semantics=("parallel",),
                vmem_limit_bytes=32 * 1024 * 1024),
            cost_estimate=pl.CostEstimate(flops=flops, transcendentals=0,
                                          bytes_accessed=bytes_accessed),
        )(x, *weight_args)

    try:
        out_pad = run(single_buffer_weights=True)
    except Exception:
        # pl.Buffered(1) unsupported on this jax/libtpu combo -> default 2-deep buffering.
        out_pad = run(single_buffer_weights=False)

    # TODO(synk): for the small-batch act loop, prefetch the weight HBM->VMEM DMA
    # in a preceding pallas_call and consume it as a cross-call future (P10).

    # Slice away batch padding and padded output lanes.
    return out_pad[:B, :actions_n]


def init_params(key, obs_len, actions_n):
    """PyTorch-Linear-style init (uniform +-1/sqrt(fan_in)); weights stored [in, out]."""
    dims = {
        "v1": (obs_len, HIDDEN), "v2": (HIDDEN, HIDDEN), "v3": (HIDDEN, 1),
        "a1": (obs_len, HIDDEN), "a2": (HIDDEN, HIDDEN), "a3": (HIDDEN, actions_n),
    }
    params = {}
    keys = jax.random.split(key, 2 * len(dims))
    for i, (name, (fan_in, fan_out)) in enumerate(dims.items()):
        bound = 1.0 / jnp.sqrt(jnp.float32(fan_in))
        params["w" + name] = jax.random.uniform(
            keys[2 * i], (fan_in, fan_out), jnp.float32, -bound, bound)
        params["b" + name] = jax.random.uniform(
            keys[2 * i + 1], (1, fan_out), jnp.float32, -bound, bound)
    return params


def reference_forward(x, params):
    """Plain-JAX reference (mirrors the PyTorch module exactly)."""
    def linear(h, w, b):
        return h @ w + b
    hv = jax.nn.relu(linear(x, params["wv1"], params["bv1"]))
    hv = jax.nn.relu(linear(hv, params["wv2"], params["bv2"]))
    val = linear(hv, params["wv3"], params["bv3"])
    ha = jax.nn.relu(linear(x, params["wa1"], params["ba1"]))
    ha = jax.nn.relu(linear(ha, params["wa2"], params["ba2"]))
    adv = linear(ha, params["wa3"], params["ba3"])
    return val + (adv - adv.mean(axis=1, keepdims=True))


if __name__ == "__main__":
    # B deliberately not a multiple of the batch tile to exercise padding + >=2 grid steps.
    B, OBS_LEN, ACTIONS_N = 300, 32, 8

    key = jax.random.PRNGKey(0)
    k_x, k_p = jax.random.split(key)
    x = jax.random.normal(k_x, (B, OBS_LEN), dtype=jnp.float32)
    params = init_params(k_p, OBS_LEN, ACTIONS_N)

    ref = reference_forward(x, params)

    # f32 path (tight correctness check).
    packed_f32 = pack_params(params, dtype=jnp.float32)
    out = jax.block_until_ready(simple_ffdqn_forward(x, packed_f32))
    assert out.shape == (B, ACTIONS_N)
    assert jnp.allclose(out, ref, atol=1e-4, rtol=1e-4), "f32 mismatch vs reference"

    # Default packing: bf16 weights (f32 biases / accumulation).
    packed_bf16 = pack_params(params)
    out_bf16 = jax.block_until_ready(simple_ffdqn_forward(x, packed_bf16))
    assert out_bf16.shape == (B, ACTIONS_N)
    assert jnp.allclose(out_bf16, ref, atol=5e-2, rtol=5e-2), "bf16 mismatch vs reference"

    print("KERNEL_OK")
</pallas_src>

<mosaic_0001>
module attributes {stable_mosaic.version = 11 : i64} {
  func.func @_dqn_kernel(%arg0: i32, %arg1: memref<152x32xf32, #tpu.memory_space<vmem>>, %arg2: memref<32x1024xf32, #tpu.memory_space<vmem>>, %arg3: memref<1x1024xf32, #tpu.memory_space<vmem>>, %arg4: memref<512x512xf32, #tpu.memory_space<vmem>>, %arg5: memref<1x512xf32, #tpu.memory_space<vmem>>, %arg6: memref<512x512xf32, #tpu.memory_space<vmem>>, %arg7: memref<1x512xf32, #tpu.memory_space<vmem>>, %arg8: memref<1024x128xf32, #tpu.memory_space<vmem>>, %arg9: memref<1x128xf32, #tpu.memory_space<vmem>>, %arg10: memref<152x128xf32, #tpu.memory_space<vmem>>) attributes {dimension_semantics = [#tpu.dimension_semantics<parallel>], iteration_bounds = array<i64: 2>, scalar_prefetch = 0 : i64, scratch_operands = 0 : i64, tpu.core_type = #tpu.core_type<tc>, window_params = [{transform_indices = @transform_0, window_bounds = array<i64: 152, 32>}, {pipeline_mode = #tpu.pipeline_mode<synchronous>, transform_indices = @transform_1, window_bounds = array<i64: 32, 1024>}, {pipeline_mode = #tpu.pipeline_mode<synchronous>, transform_indices = @transform_2, window_bounds = array<i64: 1, 1024>}, {pipeline_mode = #tpu.pipeline_mode<synchronous>, transform_indices = @transform_3, window_bounds = array<i64: 512, 512>}, {pipeline_mode = #tpu.pipeline_mode<synchronous>, transform_indices = @transform_4, window_bounds = array<i64: 1, 512>}, {pipeline_mode = #tpu.pipeline_mode<synchronous>, transform_indices = @transform_5, window_bounds = array<i64: 512, 512>}, {pipeline_mode = #tpu.pipeline_mode<synchronous>, transform_indices = @transform_6, window_bounds = array<i64: 1, 512>}, {pipeline_mode = #tpu.pipeline_mode<synchronous>, transform_indices = @transform_7, window_bounds = array<i64: 1024, 128>}, {pipeline_mode = #tpu.pipeline_mode<synchronous>, transform_indices = @transform_8, window_bounds = array<i64: 1, 128>}, {transform_indices = @transform_9, window_bounds = array<i64: 152, 128>}]} {
    %c0 = arith.constant 0 : index
    %c0_0 = arith.constant 0 : index
    %0 = vector.load %arg1[%c0, %c0_0] : memref<152x32xf32, #tpu.memory_space<vmem>>, vector<152x32xf32>
    %c0_1 = arith.constant 0 : index
    %c0_2 = arith.constant 0 : index
    %1 = vector.load %arg2[%c0_1, %c0_2] : memref<32x1024xf32, #tpu.memory_space<vmem>>, vector<32x1024xf32>
    %cst = arith.constant dense<0.000000e+00> : vector<152x1024xf32>
    %2 = tpu.matmul %0, %1, %cst {dimension_numbers = #tpu.dot_dimension_numbers<[1], [0], [0], [1], [0, 0, 1, 1], [], []>} : vector<152x32xf32>, vector<32x1024xf32>, vector<152x1024xf32> -> vector<152x1024xf32>
    %c0_3 = arith.constant 0 : index
    %c0_4 = arith.constant 0 : index
    %3 = vector.load %arg3[%c0_3, %c0_4] : memref<1x1024xf32, #tpu.memory_space<vmem>>, vector<1x1024xf32>
    %4 = vector.broadcast %3 : vector<1x1024xf32> to vector<152x1024xf32>
    %5 = arith.addf %2, %4 : vector<152x1024xf32>
    %cst_5 = arith.constant 0.000000e+00 : f32
    %6 = vector.broadcast %cst_5 : f32 to vector<152x1024xf32>
    %7 = arith.maximumf %5, %6 : vector<152x1024xf32>
    %8 = vector.extract_strided_slice %7 {offsets = [0, 0], sizes = [152, 512], strides = [1, 1]} : vector<152x1024xf32> to vector<152x512xf32>
    %9 = vector.extract_strided_slice %7 {offsets = [0, 512], sizes = [152, 512], strides = [1, 1]} : vector<152x1024xf32> to vector<152x512xf32>
    %c0_6 = arith.constant 0 : index
    %c0_7 = arith.constant 0 : index
    %10 = vector.load %arg4[%c0_6, %c0_7] : memref<512x512xf32, #tpu.memory_space<vmem>>, vector<512x512xf32>
    %cst_8 = arith.constant dense<0.000000e+00> : vector<152x512xf32>
    %11 = tpu.matmul %8, %10, %cst_8 {dimension_numbers = #tpu.dot_dimension_numbers<[1], [0], [0], [1], [0, 0, 1, 1], [], []>} : vector<152x512xf32>, vector<512x512xf32>, vector<152x512xf32> -> vector<152x512xf32>
    %c0_9 = arith.constant 0 : index
    %c0_10 = arith.constant 0 : index
    %12 = vector.load %arg5[%c0_9, %c0_10] : memref<1x512xf32, #tpu.memory_space<vmem>>, vector<1x512xf32>
    %13 = vector.broadcast %12 : vector<1x512xf32> to vector<152x512xf32>
    %14 = arith.addf %11, %13 : vector<152x512xf32>
    %cst_11 = arith.constant 0.000000e+00 : f32
    %15 = vector.broadcast %cst_11 : f32 to vector<152x512xf32>
    %16 = arith.maximumf %14, %15 : vector<152x512xf32>
    %c0_12 = arith.constant 0 : index
    %c0_13 = arith.constant 0 : index
    %17 = vector.load %arg6[%c0_12, %c0_13] : memref<512x512xf32, #tpu.memory_space<vmem>>, vector<512x512xf32>
    %cst_14 = arith.constant dense<0.000000e+00> : vector<152x512xf32>
    %18 = tpu.matmul %9, %17, %cst_14 {dimension_numbers = #tpu.dot_dimension_numbers<[1], [0], [0], [1], [0, 0, 1, 1], [], []>} : vector<152x512xf32>, vector<512x512xf32>, vector<152x512xf32> -> vector<152x512xf32>
    %c0_15 = arith.constant 0 : index
    %c0_16 = arith.constant 0 : index
    %19 = vector.load %arg7[%c0_15, %c0_16] : memref<1x512xf32, #tpu.memory_space<vmem>>, vector<1x512xf32>
    %20 = vector.broadcast %19 : vector<1x512xf32> to vector<152x512xf32>
    %21 = arith.addf %18, %20 : vector<152x512xf32>
    %cst_17 = arith.constant 0.000000e+00 : f32
    %22 = vector.broadcast %cst_17 : f32 to vector<152x512xf32>
    %23 = arith.maximumf %21, %22 : vector<152x512xf32>
    %24 = tpu.concatenate %16, %23 in 1 : vector<152x512xf32>, vector<152x512xf32> -> vector<152x1024xf32>
    %c0_18 = arith.constant 0 : index
    %c0_19 = arith.constant 0 : index
    %25 = vector.load %arg8[%c0_18, %c0_19] : memref<1024x128xf32, #tpu.memory_space<vmem>>, vector<1024x128xf32>
    %cst_20 = arith.constant dense<0.000000e+00> : vector<152x128xf32>
    %26 = tpu.matmul %24, %25, %cst_20 {dimension_numbers = #tpu.dot_dimension_numbers<[1], [0], [0], [1], [0, 0, 1, 1], [], []>} : vector<152x1024xf32>, vector<1024x128xf32>, vector<152x128xf32> -> vector<152x128xf32>
    %c0_21 = arith.constant 0 : index
    %c0_22 = arith.constant 0 : index
    %27 = vector.load %arg9[%c0_21, %c0_22] : memref<1x128xf32, #tpu.memory_space<vmem>>, vector<1x128xf32>
    %28 = vector.broadcast %27 : vector<1x128xf32> to vector<152x128xf32>
    %29 = arith.addf %26, %28 : vector<152x128xf32>
    %c0_23 = arith.constant 0 : index
    %c0_24 = arith.constant 0 : index
    %30 = vector.load %arg10[%c0_23, %c0_24] : memref<152x128xf32, #tpu.memory_space<vmem>>, vector<152x128xf32>
    tpu.vector_store %arg10[%c0_23, %c0_24], %29 {strides = array<i32>} : memref<152x128xf32, #tpu.memory_space<vmem>>, vector<152x128xf32>,
    return
  }
  func.func @transform_0(%arg0: i32) -> (i32, i32) {
    %c0_i32 = arith.constant 0 : i32
    %c0_i32_0 = arith.constant 0 : i32
    return %arg0, %c0_i32 : i32, i32
  }
  func.func @transform_1(%arg0: i32) -> (i32, i32) {
    %c0_i32 = arith.constant 0 : i32
    %c0_i32_0 = arith.constant 0 : i32
    %c0_i32_1 = arith.constant 0 : i32
    return %c0_i32, %c0_i32_0 : i32, i32
  }
  func.func @transform_2(%arg0: i32) -> (i32, i32) {
    %c0_i32 = arith.constant 0 : i32
    %c0_i32_0 = arith.constant 0 : i32
    %c0_i32_1 = arith.constant 0 : i32
    return %c0_i32, %c0_i32_0 : i32, i32
  }
  func.func @transform_3(%arg0: i32) -> (i32, i32) {
    %c0_i32 = arith.constant 0 : i32
    %c0_i32_0 = arith.constant 0 : i32
    %c0_i32_1 = arith.constant 0 : i32
    return %c0_i32, %c0_i32_0 : i32, i32
  }
  func.func @transform_4(%arg0: i32) -> (i32, i32) {
    %c0_i32 = arith.constant 0 : i32
    %c0_i32_0 = arith.constant 0 : i32
    %c0_i32_1 = arith.constant 0 : i32
    return %c0_i32, %c0_i32_0 : i32, i32
  }
  func.func @transform_5(%arg0: i32) -> (i32, i32) {
    %c0_i32 = arith.constant 0 : i32
    %c0_i32_0 = arith.constant 0 : i32
    %c0_i32_1 = arith.constant 0 : i32
    return %c0_i32, %c0_i32_0 : i32, i32
  }
  func.func @transform_6(%arg0: i32) -> (i32, i32) {
    %c0_i32 = arith.constant 0 : i32
    %c0_i32_0 = arith.constant 0 : i32
    %c0_i32_1 = arith.constant 0 : i32
    return %c0_i32, %c0_i32_0 : i32, i32
  }
  func.func @transform_7(%arg0: i32) -> (i32, i32) {
    %c0_i32 = arith.constant 0 : i32
    %c0_i32_0 = arith.constant 0 : i32
    %c0_i32_1 = arith.constant 0 : i32
    return %c0_i32, %c0_i32_0 : i32, i32
  }
  func.func @transform_8(%arg0: i32) -> (i32, i32) {
    %c0_i32 = arith.constant 0 : i32
    %c0_i32_0 = arith.constant 0 : i32
    %c0_i32_1 = arith.constant 0 : i32
    return %c0_i32, %c0_i32_0 : i32, i32
  }
  func.func @transform_9(%arg0: i32) -> (i32, i32) {
    %c0_i32 = arith.constant 0 : i32
    %c0_i32_0 = arith.constant 0 : i32
    return %arg0, %c0_i32 : i32, i32
  }
}

module attributes {stable_mosaic.version = 11 : i64} {
  func.func @_dqn_kernel(%arg0: i32, %arg1: memref<152x32xf32, #tpu.memory_space<vmem>>, %arg2: memref<32x1024xf32, #tpu.memory_space<vmem>>, %arg3: memref<1x1024xf32, #tpu.memory_space<vmem>>, %arg4: memref<512x512xf32, #tpu.memory_space<vmem>>, %arg5: memref<1x512xf32, #tpu.memory_space<vmem>>, %arg6: memref<512x512xf32, #tpu.memory_space<vmem>>, %arg7: memref<1x512xf32, #tpu.memory_space<vmem>>, %arg8: memref<1024x128xf32, #tpu.memory_space<vmem>>, %arg9: memref<1x128xf32, #tpu.memory_space<vmem>>, %arg10: memref<152x128xf32, #tpu.memory_space<vmem>>) attributes {dimension_semantics = [#tpu.dimension_semantics<parallel>], iteration_bounds = array<i64: 2>, scalar_prefetch = 0 : i64, scratch_operands = 0 : i64, tpu.core_type = #tpu.core_type<tc>, window_params = [{transform_indices = @transform_0, window_bounds = array<i64: 152, 32>}, {pipeline_mode = #tpu.pipeline_mode<synchronous>, transform_indices = @transform_1, window_bounds = array<i64: 32, 1024>}, {pipeline_mode = #tpu.pipeline_mode<synchronous>, transform_indices = @transform_2, window_bounds = array<i64: 1, 1024>}, {pipeline_mode = #tpu.pipeline_mode<synchronous>, transform_indices = @transform_3, window_bounds = array<i64: 512, 512>}, {pipeline_mode = #tpu.pipeline_mode<synchronous>, transform_indices = @transform_4, window_bounds = array<i64: 1, 512>}, {pipeline_mode = #tpu.pipeline_mode<synchronous>, transform_indices = @transform_5, window_bounds = array<i64: 512, 512>}, {pipeline_mode = #tpu.pipeline_mode<synchronous>, transform_indices = @transform_6, window_bounds = array<i64: 1, 512>}, {pipeline_mode = #tpu.pipeline_mode<synchronous>, transform_indices = @transform_7, window_bounds = array<i64: 1024, 128>}, {pipeline_mode = #tpu.pipeline_mode<synchronous>, transform_indices = @transform_8, window_bounds = array<i64: 1, 128>}, {transform_indices = @transform_9, window_bounds = array<i64: 152, 128>}]} {
    %c0 = arith.constant 0 : index
    %c0_0 = arith.constant 0 : index
    %0 = vector.load %arg1[%c0, %c0_0] : memref<152x32xf32, #tpu.memory_space<vmem>>, vector<152x32xf32>
    %c0_1 = arith.constant 0 : index
    %c0_2 = arith.constant 0 : index
    %1 = vector.load %arg2[%c0_1, %c0_2] : memref<32x1024xf32, #tpu.memory_space<vmem>>, vector<32x1024xf32>
    %cst = arith.constant dense<0.000000e+00> : vector<152x1024xf32>
    %2 = tpu.matmul %0, %1, %cst {dimension_numbers = #tpu.dot_dimension_numbers<[1], [0], [0], [1], [0, 0, 1, 1], [], []>} : vector<152x32xf32>, vector<32x1024xf32>, vector<152x1024xf32> -> vector<152x1024xf32>
    %c0_3 = arith.constant 0 : index
    %c0_4 = arith.constant 0 : index
    %3 = vector.load %arg3[%c0_3, %c0_4] : memref<1x1024xf32, #tpu.memory_space<vmem>>, vector<1x1024xf32>
    %4 = vector.broadcast %3 : vector<1x1024xf32> to vector<152x1024xf32>
    %5 = arith.addf %2, %4 : vector<152x1024xf32>
    %cst_5 = arith.constant 0.000000e+00 : f32
    %6 = vector.broadcast %cst_5 : f32 to vector<152x1024xf32>
    %7 = arith.maximumf %5, %6 : vector<152x1024xf32>
    %8 = vector.extract_strided_slice %7 {offsets = [0, 0], sizes = [152, 512], strides = [1, 1]} : vector<152x1024xf32> to vector<152x512xf32>
    %9 = vector.extract_strided_slice %7 {offsets = [0, 512], sizes = [152, 512], strides = [1, 1]} : vector<152x1024xf32> to vector<152x512xf32>
    %c0_6 = arith.constant 0 : index
    %c0_7 = arith.constant 0 : index
    %10 = vector.load %arg4[%c0_6, %c0_7] : memref<512x512xf32, #tpu.memory_space<vmem>>, vector<512x512xf32>
    %cst_8 = arith.constant dense<0.000000e+00> : vector<152x512xf32>
    %11 = tpu.matmul %8, %10, %cst_8 {dimension_numbers = #tpu.dot_dimension_numbers<[1], [0], [0], [1], [0, 0, 1, 1], [], []>} : vector<152x512xf32>, vector<512x512xf32>, vector<152x512xf32> -> vector<152x512xf32>
    %c0_9 = arith.constant 0 : index
    %c0_10 = arith.constant 0 : index
    %12 = vector.load %arg5[%c0_9, %c0_10] : memref<1x512xf32, #tpu.memory_space<vmem>>, vector<1x512xf32>
    %13 = vector.broadcast %12 : vector<1x512xf32> to vector<152x512xf32>
    %14 = arith.addf %11, %13 : vector<152x512xf32>
    %cst_11 = arith.constant 0.000000e+00 : f32
    %15 = vector.broadcast %cst_11 : f32 to vector<152x512xf32>
    %16 = arith.maximumf %14, %15 : vector<152x512xf32>
    %c0_12 = arith.constant 0 : index
    %c0_13 = arith.constant 0 : index
    %17 = vector.load %arg6[%c0_12, %c0_13] : memref<512x512xf32, #tpu.memory_space<vmem>>, vector<512x512xf32>
    %cst_14 = arith.constant dense<0.000000e+00> : vector<152x512xf32>
    %18 = tpu.matmul %9, %17, %cst_14 {dimension_numbers = #tpu.dot_dimension_numbers<[1], [0], [0], [1], [0, 0, 1, 1], [], []>} : vector<152x512xf32>, vector<512x512xf32>, vector<152x512xf32> -> vector<152x512xf32>
    %c0_15 = arith.constant 0 : index
    %c0_16 = arith.constant 0 : index
    %19 = vector.load %arg7[%c0_15, %c0_16] : memref<1x512xf32, #tpu.memory_space<vmem>>, vector<1x512xf32>
    %20 = vector.broadcast %19 : vector<1x512xf32> to vector<152x512xf32>
    %21 = arith.addf %18, %20 : vector<152x512xf32>
    %cst_17 = arith.constant 0.000000e+00 : f32
    %22 = vector.broadcast %cst_17 : f32 to vector<152x512xf32>
    %23 = arith.maximumf %21, %22 : vector<152x512xf32>
    %24 = tpu.concatenate %16, %23 in 1 : vector<152x512xf32>, vector<152x512xf32> -> vector<152x1024xf32>
    %c0_18 = arith.constant 0 : index
    %c0_19 = arith.constant 0 : index
    %25 = vector.load %arg8[%c0_18, %c0_19] : memref<1024x128xf32, #tpu.memory_space<vmem>>, vector<1024x128xf32>
    %cst_20 = arith.constant dense<0.000000e+00> : vector<152x128xf32>
    %26 = tpu.matmul %24, %25, %cst_20 {dimension_numbers = #tpu.dot_dimension_numbers<[1], [0], [0], [1], [0, 0, 1, 1], [], []>} : vector<152x1024xf32>, vector<1024x128xf32>, vector<152x128xf32> -> vector<152x128xf32>
    %c0_21 = arith.constant 0 : index
    %c0_22 = arith.constant 0 : index
    %27 = vector.load %arg9[%c0_21, %c0_22] : memref<1x128xf32, #tpu.memory_space<vmem>>, vector<1x128xf32>
    %28 = vector.broadcast %27 : vector<1x128xf32> to vector<152x128xf32>
    %29 = arith.addf %26, %28 : vector<152x128xf32>
    %c0_23 = arith.constant 0 : index
    %c0_24 = arith.constant 0 : index
    %30 = vector.load %arg10[%c0_23, %c0_24] : memref<152x128xf32, #tpu.memory_space<vmem>>, vector<152x128xf32>
    tpu.vector_store %arg10[%c0_23, %c0_24], %29 {strides = array<i32>} : memref<152x128xf32, #tpu.memory_space<vmem>>, vector<152x128xf32>,
    return
  }
  func.func @transform_0(%arg0: i32) -> (i32, i32) {
    %c0_i32 = arith.constant 0 : i32
    %c0_i32_0 = arith.constant 0 : i32
    return %arg0, %c0_i32 : i32, i32
  }
  func.func @transform_1(%arg0: i32) -> (i32, i32) {
    %c0_i32 = arith.constant 0 : i32
    %c0_i32_0 = arith.constant 0 : i32
    %c0_i32_1 = arith.constant 0 : i32
    return %c0_i32, %c0_i32_0 : i32, i32
  }
  func.func @transform_2(%arg0: i32) -> (i32, i32) {
    %c0_i32 = arith.constant 0 : i32
    %c0_i32_0 = arith.constant 0 : i32
    %c0_i32_1 = arith.constant 0 : i32
    return %c0_i32, %c0_i32_0 : i32, i32
  }
  func.func @transform_3(%arg0: i32) -> (i32, i32) {
    %c0_i32 = arith.constant 0 : i32
    %c0_i32_0 = arith.constant 0 : i32
    %c0_i32_1 = arith.constant 0 : i32
    return %c0_i32, %c0_i32_0 : i32, i32
  }
  func.func @transform_4(%arg0: i32) -> (i32, i32) {
    %c0_i32 = arith.constant 0 : i32
    %c0_i32_0 = arith.constant 0 : i32
    %c0_i32_1 = arith.constant 0 : i32
    return %c0_i32, %c0_i32_0 : i32, i32
  }
  func.func @transform_5(%arg0: i32) -> (i32, i32) {
    %c0_i32 = arith.constant 0 : i32
    %c0_i32_0 = arith.constant 0 : i32
    %c0_i32_1 = arith.constant 0 : i32
    return %c0_i32, %c0_i32_0 : i32, i32
  }
  func.func @transform_6(%arg0: i32) -> (i32, i32) {
    %c0_i32 = arith.constant 0 : i32
    %c0_i32_0 = arith.constant 0 : i32
    %c0_i32_1 = arith.constant 0 : i32
    return %c0_i32, %c0_i32_0 : i32, i32
  }
  func.func @transform_7(%arg0: i32) -> (i32, i32) {
    %c0_i32 = arith.constant 0 : i32
    %c0_i32_0 = arith.constant 0 : i32
    %c0_i32_1 = arith.constant 0 : i32
    return %c0_i32, %c0_i32_0 : i32, i32
  }
  func.func @transform_8(%arg0: i32) -> (i32, i32) {
    %c0_i32 = arith.constant 0 : i32
    %c0_i32_0 = arith.constant 0 : i32
    %c0_i32_1 = arith.constant 0 : i32
    return %c0_i32, %c0_i32_0 : i32, i32
  }
  func.func @transform_9(%arg0: i32) -> (i32, i32) {
    %c0_i32 = arith.constant 0 : i32
    %c0_i32_0 = arith.constant 0 : i32
    return %arg0, %c0_i32 : i32, i32
  }
}

</mosaic_0001>

<llo_original>
// kernel: tpu_custom_call.1
$region0: #{tpu_custom_call.1}
  #allocation0 [shape = 'u32[]', space=smem, size = 0x4, offset = 0x4, fixed_abs, tag = 'smem constant byte address 0x4 - core index']
  #allocation1 [shape = 'u32[144,128]{1,0:T(1,128)}', space=vmem, size = 0x12000, scoped, tag = 'internal scratch']
  %s0 = inlined_call_operand.vmem [shape: f32[304,32], index: 0, kind: input, shape index: {}]
  %s1 = inlined_call_operand.vmem [shape: f32[32,1024], index: 1, kind: input, shape index: {}]
  %s2 = inlined_call_operand.vmem [shape: f32[1,1024], index: 2, kind: input, shape index: {}]
  %s3 = inlined_call_operand.hbm [shape: f32[512,512], index: 3, kind: input, shape index: {}]
  %s4 = inlined_call_operand.vmem [shape: f32[1,512], index: 4, kind: input, shape index: {}]
  %s5 = inlined_call_operand.hbm [shape: f32[512,512], index: 5, kind: input, shape index: {}]
  %s6 = inlined_call_operand.vmem [shape: f32[1,512], index: 6, kind: input, shape index: {}]
  %s7 = inlined_call_operand.hbm [shape: f32[1024,128], index: 7, kind: input, shape index: {}]
  %s8 = inlined_call_operand.vmem [shape: f32[1,128], index: 8, kind: input, shape index: {}]
  %s9 = inlined_call_operand.hbm [shape: f32[304,128], index: 9, kind: output, shape index: {}]
  %s10 = sld [smem:[#allocation0]]
  $region81: #{tpu_custom_call.1} parent=0
    _
  %s12 = ssub.s32 1, %s10
  %s13 = scalar_select 0, %s12, %s10
  $region1: #{tpu_custom_call.1} parent=0
    #allocation2 [shape = 'u8[1048576]{0}', space=vmem, size = 0x100000, scoped, tag = 'input window, operand 3, single buffered']
    #allocation3 [shape = 's32[2]{0}', space=sflag, size = 0x8, scoped, tag = 'scoped memory for tpu_custom_call.1']
    #allocation4 [shape = 's32[2]{0}', space=sflag, size = 0x8, scoped, tag = 'scoped memory for tpu_custom_call.1']
    #allocation5 [shape = 'u8[1048576]{0}', space=vmem, size = 0x100000, scoped, tag = 'input window, operand 5, single buffered']
    #allocation6 [shape = 's32[1]{0}', space=sflag, size = 0x4, scoped, tag = 'scoped memory for tpu_custom_call.1']
    #allocation7 [shape = 'u8[524288]{0}', space=vmem, size = 0x80000, scoped, tag = 'input window, operand 7, single buffered']
    #allocation8 [shape = 'u8[155648]{0}', space=vmem, size = 0x26000, scoped, tag = 'output window, operand 0']
    %14 = vsyncpa [#allocation3], 0
    %15 = vsyncpa [#allocation6], 0
    %16 = vsyncpa [#allocation4], 0
    %s17 = scalar_lea.sflag [#allocation4], 1
    %18 = vsyncpa %s17, 0
    loop: start=0, step=1, limit=4
    $region2: #{tpu_custom_call.1} parent=1 // loop_pre_header
      _
    $region3: #{tpu_custom_call.1} parent=1 // loop_header
      %s20 = sphi 0, %s24
      %p21 = scmp.ge.s32.totalorder %s20, 4
      %s30 = sphi 0, %s32
      %s33 = sphi 0, %s30
      %s34 = sphi 0, %s33
      %s50 = sphi 0, %s34
      %s54 = sphi 0, %s54
      %s56 = sphi 0, %s54
      %s57 = sphi 0, %s56
      %s71 = sphi 0, %s57
      %s75 = sphi 0, %s75
      %s77 = sphi 0, %s75
      %s78 = sphi 0, %s77
      %s92 = sphi 0, %s78
      %s96 = sphi 0, %s96
      %s98 = sphi 0, %s96
      %s99 = sphi 0, %s98
      %s113 = sphi 0, %s99
      %s117 = sphi 0, %s117
      %s119 = sphi 0, %s117
      %s120 = sphi 0, %s119
      %s134 = sphi 0, %s120
      %s138 = sphi 0, %s138
      %s140 = sphi 0, %s138
      %s141 = sphi 0, %s140
      %s155 = sphi 0, %s141
      %s159 = sphi 0, %s159
      %s161 = sphi 0, %s159
      %s162 = sphi 0, %s161
      %s176 = sphi 0, %s162
      %s180 = sphi 0, %s180
      %s182 = sphi 0, %s180
      %s183 = sphi 0, %s182
      %s197 = sphi 0, %s183
      %s201 = sphi 0, %s201
      %s203 = sphi 0, %s201
      %s204 = sphi 0, %s203
      %s218 = sphi 0, %s204
      %s224 = sphi 0, %s226
      %s227 = sphi 0, %s224
      %s228 = sphi 0, %s227
      %s244 = sphi 0, %s228
    $region4: #{tpu_custom_call.1} parent=1 // loop_header_branch
      %23 = sbr.rel (%p21) target = $region8
    $region5: #{tpu_custom_call.1} parent=1 // loop_body
      %s25 = ssub.s32 %s20, 1
      %s26 = ssub.s32 %s20, 2
      %s27 = sadd.s32 %s20, 1
      %s28 = ssub.s32 %s20, %s27
      %p29 = scmp.eq.s32.totalorder %s28, 0
      %s31 = sadd.s32 %s30, 1
      %s32 = scalar_select %p29, %s30, %s31
      %p35 = pneg %p29
      %p36 = scmp.eq.s32.totalorder %s20, 1
      %p37 = por %p35, %p36
      %p38 = scmp.ne.s32.totalorder %s30, %s33
      %p39 = scmp.eq.s32.totalorder %s20, 0
      %p40 = por %p38, %p39
      %p41 = scmp.ne.s32.totalorder %s30, %s33
      %p42 = scmp.eq.s32.totalorder %s25, 1
      %p43 = por %p41, %p42
      %p44 = scmp.ne.s32.totalorder %s33, %s34
      %p45 = scmp.eq.s32.totalorder %s25, 0
      %p46 = por %p44, %p45
      %p47 = scmp.ne.s32.totalorder %s33, %s34
      %p48 = scmp.eq.s32.totalorder %s26, 1
      %p49 = por %p47, %p48
      %p51 = scmp.ne.s32.totalorder %s34, %s50
      %p52 = scmp.eq.s32.totalorder %s26, 0
      %p53 = por %p51, %p52
      %s55 = sadd.s32 %s54, 1
      %p58 = scmp.eq.s32.totalorder %s20, 1
      %p59 = scmp.ne.s32.totalorder %s54, %s56
      %p60 = scmp.eq.s32.totalorder %s20, 0
      %p61 = por %p59, %p60
      %p62 = scmp.ne.s32.totalorder %s54, %s56
      %p63 = scmp.eq.s32.totalorder %s25, 1
      %p64 = por %p62, %p63
      %p65 = scmp.ne.s32.totalorder %s56, %s57
      %p66 = scmp.eq.s32.totalorder %s25, 0
      %p67 = por %p65, %p66
      %p68 = scmp.ne.s32.totalorder %s56, %s57
      %p69 = scmp.eq.s32.totalorder %s26, 1
      %p70 = por %p68, %p69
      %p72 = scmp.ne.s32.totalorder %s57, %s71
      %p73 = scmp.eq.s32.totalorder %s26, 0
      %p74 = por %p72, %p73
      %s76 = sadd.s32 %s75, 1
      %p79 = scmp.eq.s32.totalorder %s20, 1
      %p80 = scmp.ne.s32.totalorder %s75, %s77
      %p81 = scmp.eq.s32.totalorder %s20, 0
      %p82 = por %p80, %p81
      %p83 = scmp.ne.s32.totalorder %s75, %s77
      %p84 = scmp.eq.s32.totalorder %s25, 1
      %p85 = por %p83, %p84
      %p86 = scmp.ne.s32.totalorder %s77, %s78
      %p87 = scmp.eq.s32.totalorder %s25, 0
      %p88 = por %p86, %p87
      %p89 = scmp.ne.s32.totalorder %s77, %s78
      %p90 = scmp.eq.s32.totalorder %s26, 1
      %p91 = por %p89, %p90
      %p93 = scmp.ne.s32.totalorder %s78, %s92
      %p94 = scmp.eq.s32.totalorder %s26, 0
      %p95 = por %p93, %p94
      %s97 = sadd.s32 %s96, 1
      %p100 = scmp.eq.s32.totalorder %s20, 1
      %p101 = scmp.ne.s32.totalorder %s96, %s98
      %p102 = scmp.eq.s32.totalorder %s20, 0
      %p103 = por %p101, %p102
      %p104 = scmp.ne.s32.totalorder %s96, %s98
      %p105 = scmp.eq.s32.totalorder %s25, 1
      %p106 = por %p104, %p105
      %p107 = scmp.ne.s32.totalorder %s98, %s99
      %p108 = scmp.eq.s32.totalorder %s25, 0
      %p109 = por %p107, %p108
      %p110 = scmp.ne.s32.totalorder %s98, %s99
      %p111 = scmp.eq.s32.totalorder %s26, 1
      %p112 = por %p110, %p111
      %p114 = scmp.ne.s32.totalorder %s99, %s113
      %p115 = scmp.eq.s32.totalorder %s26, 0
      %p116 = por %p114, %p115
      %s118 = sadd.s32 %s117, 1
      %p121 = scmp.eq.s32.totalorder %s20, 1
      %p122 = scmp.ne.s32.totalorder %s117, %s119
      %p123 = scmp.eq.s32.totalorder %s20, 0
      %p124 = por %p122, %p123
      %p125 = scmp.ne.s32.totalorder %s117, %s119
      %p126 = scmp.eq.s32.totalorder %s25, 1
      %p127 = por %p125, %p126
      %p128 = scmp.ne.s32.totalorder %s119, %s120
      %p129 = scmp.eq.s32.totalorder %s25, 0
      %p130 = por %p128, %p129
      %p131 = scmp.ne.s32.totalorder %s119, %s120
      %p132 = scmp.eq.s32.totalorder %s26, 1
      %p133 = por %p131, %p132
      %p135 = scmp.ne.s32.totalorder %s120, %s134
      %p136 = scmp.eq.s32.totalorder %s26, 0
      %p137 = por %p135, %p136
      %s139 = sadd.s32 %s138, 1
      %p142 = scmp.eq.s32.totalorder %s20, 1
      %p143 = scmp.ne.s32.totalorder %s138, %s140
      %p144 = scmp.eq.s32.totalorder %s20, 0
      %p145 = por %p143, %p144
      %p146 = scmp.ne.s32.totalorder %s138, %s140
      %p147 = scmp.eq.s32.totalorder %s25, 1
      %p148 = por %p146, %p147
      %p149 = scmp.ne.s32.totalorder %s140, %s141
      %p150 = scmp.eq.s32.totalorder %s25, 0
      %p151 = por %p149, %p150
      %p152 = scmp.ne.s32.totalorder %s140, %s141
      %p153 = scmp.eq.s32.totalorder %s26, 1
      %p154 = por %p152, %p153
      %p156 = scmp.ne.s32.totalorder %s141, %s155
      %p157 = scmp.eq.s32.totalorder %s26, 0
      %p158 = por %p156, %p157
      %s160 = sadd.s32 %s159, 1
      %p163 = scmp.eq.s32.totalorder %s20, 1
      %p164 = scmp.ne.s32.totalorder %s159, %s161
      %p165 = scmp.eq.s32.totalorder %s20, 0
      %p166 = por %p164, %p165
      %p167 = scmp.ne.s32.totalorder %s159, %s161
      %p168 = scmp.eq.s32.totalorder %s25, 1
      %p169 = por %p167, %p168
      %p170 = scmp.ne.s32.totalorder %s161, %s162
      %p171 = scmp.eq.s32.totalorder %s25, 0
      %p172 = por %p170, %p171
      %p173 = scmp.ne.s32.totalorder %s161, %s162
      %p174 = scmp.eq.s32.totalorder %s26, 1
      %p175 = por %p173, %p174
      %p177 = scmp.ne.s32.totalorder %s162, %s176
      %p178 = scmp.eq.s32.totalorder %s26, 0
      %p179 = por %p177, %p178
      %s181 = sadd.s32 %s180, 1
      %p184 = scmp.eq.s32.totalorder %s20, 1
      %p185 = scmp.ne.s32.totalorder %s180, %s182
      %p186 = scmp.eq.s32.totalorder %s20, 0
      %p187 = por %p185, %p186
      %p188 = scmp.ne.s32.totalorder %s180, %s182
      %p189 = scmp.eq.s32.totalorder %s25, 1
      %p190 = por %p188, %p189
      %p191 = scmp.ne.s32.totalorder %s182, %s183
      %p192 = scmp.eq.s32.totalorder %s25, 0
      %p193 = por %p191, %p192
      %p194 = scmp.ne.s32.totalorder %s182, %s183
      %p195 = scmp.eq.s32.totalorder %s26, 1
      %p196 = por %p194, %p195
      %p198 = scmp.ne.s32.totalorder %s183, %s197
      %p199 = scmp.eq.s32.totalorder %s26, 0
      %p200 = por %p198, %p199
      %s202 = sadd.s32 %s201, 1
      %p205 = scmp.eq.s32.totalorder %s20, 1
      %p206 = scmp.ne.s32.totalorder %s201, %s203
      %p207 = scmp.eq.s32.totalorder %s20, 0
      %p208 = por %p206, %p207
      %p209 = scmp.ne.s32.totalorder %s201, %s203
      %p210 = scmp.eq.s32.totalorder %s25, 1
      %p211 = por %p209, %p210
      %p212 = scmp.ne.s32.totalorder %s203, %s204
      %p213 = scmp.eq.s32.totalorder %s25, 0
      %p214 = por %p212, %p213
      %p215 = scmp.ne.s32.totalorder %s203, %s204
      %p216 = scmp.eq.s32.totalorder %s26, 1
      %p217 = por %p215, %p216
      %p219 = scmp.ne.s32.totalorder %s204, %s218
      %p220 = scmp.eq.s32.totalorder %s26, 0
      %p221 = por %p219, %p220
      %s222 = ssub.s32 %s20, %s27
      %p223 = scmp.eq.s32.totalorder %s222, 0
      %s225 = sadd.s32 %s224, 1
      %s226 = scalar_select %p223, %s224, %s225
      %p229 = pneg %p223
      %p230 = scmp.eq.s32.totalorder %s20, 1
      %p231 = por %p229, %p230
      %p232 = scmp.ne.s32.totalorder %s224, %s227
      %p233 = scmp.eq.s32.totalorder %s20, 0
      %p234 = por %p232, %p233
      %p235 = scmp.ne.s32.totalorder %s224, %s227
      %p236 = scmp.eq.s32.totalorder %s25, 1
      %p237 = por %p235, %p236
      %p238 = scmp.ne.s32.totalorder %s227, %s228
      %p239 = scmp.eq.s32.totalorder %s25, 0
      %p240 = por %p238, %p239
      %p241 = scmp.ne.s32.totalorder %s227, %s228
      %p242 = scmp.eq.s32.totalorder %s26, 1
      %p243 = por %p241, %p242
      %p245 = scmp.ne.s32.totalorder %s228, %s244
      %p246 = scmp.eq.s32.totalorder %s26, 0
      %p247 = por %p245, %p246
      %p248 = scmp.le.s32.totalorder 1, %s20
      %p249 = scmp.lt.s32.totalorder %s20, 3
      %p250 = pnand %p248, %p249
      %p251 = pneg %p250
      // Predicated region
      $region9: #{tpu_custom_call.1} parent=5 // pred_check
        _
      $region10: #{tpu_custom_call.1} parent=5 // pred_check_branch
        %253 = sbr.rel (%p250) target = $region12
      $region11: #{tpu_custom_call.1} parent=5 // pred_region
        %s254 = ssub.s32 %s20, 1
        // Predicated region
        $region13: #{tpu_custom_call.1} parent=11 // pred_check
          %p255 = pneg %p67
        $region14: #{tpu_custom_call.1} parent=11 // pred_check_branch
          %257 = sbr.rel (%p255) target = $region16
        $region15: #{tpu_custom_call.1} parent=11 // pred_region
          _
        $region16: #{tpu_custom_call.1} parent=11 // pred_fallthru
          _
        // Predicated region
        $region17: #{tpu_custom_call.1} parent=11 // pred_check
          %p258 = pneg %p88
        $region18: #{tpu_custom_call.1} parent=11 // pred_check_branch
          %260 = sbr.rel (%p258) target = $region20
        $region19: #{tpu_custom_call.1} parent=11 // pred_region
          _
        $region20: #{tpu_custom_call.1} parent=11 // pred_fallthru
          _
        // Predicated region
        $region21: #{tpu_custom_call.1} parent=11 // pred_check
          %p261 = pneg %p109
        $region22: #{tpu_custom_call.1} parent=11 // pred_check_branch
          %263 = sbr.rel (%p261) target = $region24
        $region23: #{tpu_custom_call.1} parent=11 // pred_region
          %s265 = ssub.s32 32768, 32768
          %266 = vsyncadd [#allocation3], %s265
          %s267 = sshll.u32 [#allocation2], 4
          %s268 = int_to_ptr.vmem [resolvable:$true] %s267
          %273 = dma.hbm_to_vmem [thread:$0]  %s3, 32768, %s268, [#allocation3], 512, 512, 32
        $region24: #{tpu_custom_call.1} parent=11 // pred_fallthru
          _
        // Predicated region
        $region25: #{tpu_custom_call.1} parent=11 // pred_check
          %p274 = pneg %p130
        $region26: #{tpu_custom_call.1} parent=11 // pred_check_branch
          %276 = sbr.rel (%p274) target = $region28
        $region27: #{tpu_custom_call.1} parent=11 // pred_region
          _
        $region28: #{tpu_custom_call.1} parent=11 // pred_fallthru
          _
        // Predicated region
        $region29: #{tpu_custom_call.1} parent=11 // pred_check
          %p277 = pneg %p151
        $region30: #{tpu_custom_call.1} parent=11 // pred_check_branch
          %279 = sbr.rel (%p277) target = $region32
        $region31: #{tpu_custom_call.1} parent=11 // pred_region
          %s281 = ssub.s32 32768, 32768
          %282 = vsyncadd [#allocation6], %s281
          %s283 = sshll.u32 [#allocation5], 4
          %s284 = int_to_ptr.vmem [resolvable:$true] %s283
          %289 = dma.hbm_to_vmem [thread:$0]  %s5, 32768, %s284, [#allocation6], 512, 512, 32
        $region32: #{tpu_custom_call.1} parent=11 // pred_fallthru
          _
        // Predicated region
        $region33: #{tpu_custom_call.1} parent=11 // pred_check
          %p290 = pneg %p172
        $region34: #{tpu_custom_call.1} parent=11 // pred_check_branch
          %292 = sbr.rel (%p290) target = $region36
        $region35: #{tpu_custom_call.1} parent=11 // pred_region
          _
        $region36: #{tpu_custom_call.1} parent=11 // pred_fallthru
          _
        // Predicated region
        $region37: #{tpu_custom_call.1} parent=11 // pred_check
          %p293 = pneg %p193
        $region38: #{tpu_custom_call.1} parent=11 // pred_check_branch
          %295 = sbr.rel (%p293) target = $region40
        $region39: #{tpu_custom_call.1} parent=11 // pred_region
          %s297 = ssub.s32 16384, 16384
          %298 = vsyncadd [#allocation6], %s297
          %s299 = sshll.u32 [#allocation7], 4
          %s300 = int_to_ptr.vmem [resolvable:$true] %s299
          %305 = dma.hbm_to_vmem [thread:$0]  %s7, 16384, %s300, [#allocation6], 128, 128, 8
        $region40: #{tpu_custom_call.1} parent=11 // pred_fallthru
          _
        // Predicated region
        $region41: #{tpu_custom_call.1} parent=11 // pred_check
          %p306 = pneg %p214
        $region42: #{tpu_custom_call.1} parent=11 // pred_check_branch
          %308 = sbr.rel (%p306) target = $region44
        $region43: #{tpu_custom_call.1} parent=11 // pred_region
          _
        $region44: #{tpu_custom_call.1} parent=11 // pred_fallthru
          _
      $region12: #{tpu_custom_call.1} parent=5 // pred_fallthru
        _
      %p309 = scmp.lt.s32.totalorder %s20, 2
      // Predicated region
      $region45: #{tpu_custom_call.1} parent=5 // pred_check
        %p310 = pneg %p309
      $region46: #{tpu_custom_call.1} parent=5 // pred_check_branch
        %312 = sbr.rel (%p310) target = $region48
      $region47: #{tpu_custom_call.1} parent=5 // pred_region
        // Predicated region
        $region49: #{tpu_custom_call.1} parent=47 // pred_check
          %p313 = pneg %p40
        $region50: #{tpu_custom_call.1} parent=47 // pred_check_branch
          %315 = sbr.rel (%p313) target = $region52
        $region51: #{tpu_custom_call.1} parent=47 // pred_region
          %s316 = smul.u32 19, %s20
          %p317 = scmp.lt.s32.totalorder %s316, 37
          %s318 = scalar_select %p317, %s316, 37
          %s319 = smul.addr %s318, 8
          %s320 = scalar_lea.vmem %s0, %s319
          %s321 = smul.u32 19, %s20
        $region52: #{tpu_custom_call.1} parent=47 // pred_fallthru
          _
      $region48: #{tpu_custom_call.1} parent=5 // pred_fallthru
        _
      %p322 = scmp.le.s32.totalorder 1, %s20
      %p323 = scmp.lt.s32.totalorder %s20, 3
      %p324 = pnand %p322, %p323
      %p325 = pneg %p324
      // Predicated region
      $region53: #{tpu_custom_call.1} parent=5 // pred_check
        _
      $region54: #{tpu_custom_call.1} parent=5 // pred_check_branch
        %327 = sbr.rel (%p324) target = $region56
      $region55: #{tpu_custom_call.1} parent=5 // pred_region
        %s328 = ssub.s32 %s20, 1
        // Predicated region
        $region57: #{tpu_custom_call.1} parent=55 // pred_check
          %p329 = pneg %p109
        $region58: #{tpu_custom_call.1} parent=55 // pred_check_branch
          %331 = sbr.rel (%p329) target = $region60
        $region59: #{tpu_custom_call.1} parent=55 // pred_region
          %332 = dma.done [#allocation3], 32768
        $region60: #{tpu_custom_call.1} parent=55 // pred_fallthru
          _
        // Predicated region
        $region61: #{tpu_custom_call.1} parent=55 // pred_check
          %p333 = pneg %p151
        $region62: #{tpu_custom_call.1} parent=55 // pred_check_branch
          %335 = sbr.rel (%p333) target = $region64
        $region63: #{tpu_custom_call.1} parent=55 // pred_region
          %336 = dma.done [#allocation6], 32768
        $region64: #{tpu_custom_call.1} parent=55 // pred_fallthru
          _
        // Predicated region
        $region65: #{tpu_custom_call.1} parent=55 // pred_check
          %p337 = pneg %p193
        $region66: #{tpu_custom_call.1} parent=55 // pred_check_branch
          %339 = sbr.rel (%p337) target = $region68
        $region67: #{tpu_custom_call.1} parent=55 // pred_region
          %340 = dma.done [#allocation6], 16384
        $region68: #{tpu_custom_call.1} parent=55 // pred_fallthru
          _
        %s341 = smul.u32 19, %s25
        %p342 = scmp.lt.s32.totalorder %s341, 37
        %s343 = scalar_select %p342, %s341, 37
        %s344 = smul.addr %s343, 8
        %s345 = scalar_lea.vmem %s0, %s344
        %p346 = pneg %p46
        %p347 = pneg %p43
        %p348 = pneg %p67
        %p349 = pneg %p64
        %p350 = pneg %p88
        %p351 = pneg %p85
        %p352 = pneg %p109
        %p353 = pneg %p106
        %p354 = pneg %p130
        %p355 = pneg %p127
        %p356 = pneg %p151
        %p357 = pneg %p148
        %p358 = pneg %p172
        %p359 = pneg %p169
        %p360 = pneg %p193
        %p361 = pneg %p190
        %p362 = pneg %p214
        %p363 = pneg %p211
        %p364 = pneg %p240
        %p365 = pneg %p237
        %s366 = sand.u32 %s227, 1
        %s367 = scalar_lea.sflag [#allocation4], %s366
        %s368 = sand.u32 %s227, 1
        %s369 = smul.addr %s368, 152
        %s370 = scalar_lea.vmem [#allocation8], %s369
        %s371 = smul.u32 19, %s25
        %p372 = scmp.lt.s32.totalorder %s371, 37
        %s373 = scalar_select %p372, %s371, 37
        %s374 = smul.addr %s373, 8
        %s375 = scalar_lea.vmem %s0, %s374
        %s376 = smul.u32 19, %s25
        %s377 = smul.u32 19, %s25
        %v378 = vld [vmem:[%s375] sm:$0xff]
        %v379 = vld [vmem:[%s375 + $0x8] sm:$0xff]
        %v380 = vld [vmem:[%s375 + $0x10] sm:$0xff]
        %v381 = vld [vmem:[%s375 + $0x18] sm:$0xff]
        %v382 = vld [vmem:[%s375 + $0x20] sm:$0xff]
        %v383 = vld [vmem:[%s375 + $0x28] sm:$0xff]
        %v384 = vld [vmem:[%s375 + $0x30] sm:$0xff]
        %v385 = vld [vmem:[%s375 + $0x38] sm:$0xff]
        %v386 = vld [vmem:[%s375 + $0x40] sm:$0xff]
        %v387 = vld [vmem:[%s375 + $0x48] sm:$0xff]
        %v388 = vld [vmem:[%s375 + $0x50] sm:$0xff]
        %v389 = vld [vmem:[%s375 + $0x58] sm:$0xff]
        %v390 = vld [vmem:[%s375 + $0x60] sm:$0xff]
        %v391 = vld [vmem:[%s375 + $0x68] sm:$0xff]
        %v392 = vld [vmem:[%s375 + $0x70] sm:$0xff]
        %v393 = vld [vmem:[%s375 + $0x78] sm:$0xff]
        %v394 = vld [vmem:[%s375 + $0x80] sm:$0xff]
        %v395 = vld [vmem:[%s375 + $0x88] sm:$0xff]
        %v396 = vld [vmem:[%s375 + $0x90] sm:$0xff]
        %v397 = vld [vmem:[%s1] sm:$0xff]
        %v398 = vld [vmem:[%s1 + $0x8] sm:$0xff]
        %v399 = vld [vmem:[%s1 + $0x10] sm:$0xff]
        %v400 = vld [vmem:[%s1 + $0x18] sm:$0xff]
        %v401 = vld [vmem:[%s1 + $0x20] sm:$0xff]
        %v402 = vld [vmem:[%s1 + $0x28] sm:$0xff]
        %v403 = vld [vmem:[%s1 + $0x30] sm:$0xff]
        %v404 = vld [vmem:[%s1 + $0x38] sm:$0xff]
        %v405 = vld [vmem:[%s1 + $0x40] sm:$0xff]
        %v406 = vld [vmem:[%s1 + $0x48] sm:$0xff]
        %v407 = vld [vmem:[%s1 + $0x50] sm:$0xff]
        %v408 = vld [vmem:[%s1 + $0x58] sm:$0xff]
        %v409 = vld [vmem:[%s1 + $0x60] sm:$0xff]
        %v410 = vld [vmem:[%s1 + $0x68] sm:$0xff]
        %v411 = vld [vmem:[%s1 + $0x70] sm:$0xff]
        %v412 = vld [vmem:[%s1 + $0x78] sm:$0xff]
        %v413 = vld [vmem:[%s1 + $0x80] sm:$0xff]
        %v414 = vld [vmem:[%s1 + $0x88] sm:$0xff]
        %v415 = vld [vmem:[%s1 + $0x90] sm:$0xff]
        %v416 = vld [vmem:[%s1 + $0x98] sm:$0xff]
        %v417 = vld [vmem:[%s1 + $0xa0] sm:$0xff]
        %v418 = vld [vmem:[%s1 + $0xa8] sm:$0xff]
        %v419 = vld [vmem:[%s1 + $0xb0] sm:$0xff]
        %v420 = vld [vmem:[%s1 + $0xb8] sm:$0xff]
        %v421 = vld [vmem:[%s1 + $0xc0] sm:$0xff]
        %v422 = vld [vmem:[%s1 + $0xc8] sm:$0xff]
        %v423 = vld [vmem:[%s1 + $0xd0] sm:$0xff]
        %v424 = vld [vmem:[%s1 + $0xd8] sm:$0xff]
        %v425 = vld [vmem:[%s1 + $0xe0] sm:$0xff]
        %v426 = vld [vmem:[%s1 + $0xe8] sm:$0xff]
        %v427 = vld [vmem:[%s1 + $0xf0] sm:$0xff]
        %v428 = vld [vmem:[%s1 + $0xf8] sm:$0xff]
        %v429 = vld [vmem:[%s2] sm:$0xff]
        %v431 = vlaneseq
        %v432 = vshrl.u32 %v431, 7
        %v433 = vsub.s32 0, %v432
        %v434 = vrot.slane %v429, %v433
        %v435 = vlaneseq
        %v436 = vshrl.u32 %v435, 7
        %v437 = vsub.s32 1, %v436
        %v438 = vrot.slane %v429, %v437
        %v439 = vlaneseq
        %v440 = vshrl.u32 %v439, 7
        %v441 = vsub.s32 2, %v440
        %v442 = vrot.slane %v429, %v441
        %v443 = vlaneseq
        %v444 = vshrl.u32 %v443, 7
        %v445 = vsub.s32 3, %v444
        %v446 = vrot.slane %v429, %v445
        %v447 = vlaneseq
        %v448 = vshrl.u32 %v447, 7
        %v449 = vsub.s32 4, %v448
        %v450 = vrot.slane %v429, %v449
        %v451 = vlaneseq
        %v452 = vshrl.u32 %v451, 7
        %v453 = vsub.s32 5, %v452
        %v454 = vrot.slane %v429, %v453
        %v455 = vlaneseq
        %v456 = vshrl.u32 %v455, 7
        %v457 = vsub.s32 6, %v456
        %v458 = vrot.slane %v429, %v457
        %v459 = vlaneseq
        %v460 = vshrl.u32 %v459, 7
        %v461 = vsub.s32 7, %v460
        %v462 = vrot.slane %v429, %v461
        %vm471 = vcmask 261120
        %v473 = vsel %vm471, %v378, 0
        %v476 = vsel %vm471, %v379, 0
        %v479 = vsel %vm471, %v380, 0
        %v482 = vsel %vm471, %v381, 0
        %v485 = vsel %vm471, %v382, 0
        %v488 = vsel %vm471, %v383, 0
        %v491 = vsel %vm471, %v384, 0
        %v494 = vsel %vm471, %v385, 0
        %v497 = vsel %vm471, %v386, 0
        %v500 = vsel %vm471, %v387, 0
        %v503 = vsel %vm471, %v388, 0
        %v506 = vsel %vm471, %v389, 0
        %v509 = vsel %vm471, %v390, 0
        %v512 = vsel %vm471, %v391, 0
        %v515 = vsel %vm471, %v392, 0
        %v518 = vsel %vm471, %v393, 0
        %v521 = vsel %vm471, %v394, 0
        %v524 = vsel %vm471, %v395, 0
        %v527 = vsel %vm471, %v396, 0
        %529 = vmatprep.subr.mxu0 %v398
        %530 = vmatpush1.msra.mxu0 %v397
        %531 = vmatprep.subr.mxu0 %v406
        %532 = vmatpush1.msra.mxu0 %v405
        %533 = vmatprep.subr.mxu0 %v414
        %534 = vmatpush1.msra.mxu0 %v413
        %535 = vmatprep.subr.mxu0 %v422
        %536 = vmatpush1.msra.mxu0 %v421
        %537 = vmatprep.subr.mxu0 0.0
        %538 = vmatpush1.msra.mxu0 0.0
        %539 = vmatprep.subr.mxu0 0.0
        %540 = vmatpush1.msra.mxu0 0.0
        %541 = vmatprep.subr.mxu0 0.0
        %542 = vmatpush1.msra.mxu0 0.0
        %543 = vmatprep.subr.mxu0 0.0
        %544 = vmatpush1.msra.mxu0 0.0
        %545 = vmatprep.subr.mxu0 0.0
        %546 = vmatpush1.msra.mxu0 0.0
        %547 = vmatprep.subr.mxu0 0.0
        %548 = vmatpush1.msra.mxu0 0.0
        %549 = vmatprep.subr.mxu0 0.0
        %550 = vmatpush1.msra.mxu0 0.0
        %551 = vmatprep.subr.mxu0 0.0
        %552 = vmatpush1.msra.mxu0 0.0
        %553 = vmatprep.subr.mxu0 0.0
        %554 = vmatpush1.msra.mxu0 0.0
        %555 = vmatprep.subr.mxu0 0.0
        %556 = vmatpush1.msra.mxu0 0.0
        %557 = vmatprep.subr.mxu0 0.0
        %558 = vmatpush1.msra.mxu0 0.0
        %559 = vmatprep.subr.mxu0 0.0
        %560 = vmatpush1.msra.mxu0 0.0
        %561 = vmatprep.subr.mxu0 0.0
        %562 = vmatpush1.msra.mxu0 0.0
        %563 = vmatprep.subr.mxu0 0.0
        %564 = vmatpush1.msra.mxu0 0.0
        %565 = vmatprep.subr.mxu0 0.0
        %566 = vmatpush1.msra.mxu0 0.0
        %567 = vmatprep.subr.mxu0 0.0
        %568 = vmatpush1.msra.mxu0 0.0
        %569 = vmatprep.subr.mxu0 0.0
        %570 = vmatpush1.msra.mxu0 0.0
        %571 = vmatprep.subr.mxu0 0.0
        %572 = vmatpush1.msra.mxu0 0.0
        %573 = vmatprep.subr.mxu0 0.0
        %574 = vmatpush1.msra.mxu0 0.0
        %575 = vmatprep.subr.mxu0 0.0
        %576 = vmatpush1.msra.mxu0 0.0
        %577 = vmatprep.subr.mxu0 0.0
        %578 = vmatpush1.msra.mxu0 0.0
        %579 = vmatprep.subr.mxu0 0.0
        %580 = vmatpush1.msra.mxu0 0.0
        %581 = vmatprep.subr.mxu0 0.0
        %582 = vmatpush1.msra.mxu0 0.0
        %583 = vmatprep.subr.mxu0 0.0
        %584 = vmatpush1.msra.mxu0 0.0
        %585 = vmatprep.subr.mxu0 0.0
        %586 = vmatpush1.msra.mxu0 0.0
        %587 = vmatprep.subr.mxu0 0.0
        %588 = vmatpush1.msra.mxu0 0.0
        %589 = vmatprep.subr.mxu0 0.0
        %590 = vmatpush1.msra.mxu0 0.0
        %591 = vmatprep.subr.mxu0 0.0
        %592 = vmatpush1.msra.mxu0 0.0
        %593 = vmatprep.mubr.f32.mxu0 0.0
        %594 = vmatmul.mubr.f32.gmra.mrb[0].mxu0 %v473
        %v595 = vpop.f32.mrb[0].mxu0
        %v596 = vadd.f32 %v434, %v595
        %v597 = vpop.f32.mrb[0].mxu0
        %v598 = vadd.f32 %v438, %v597
        %599 = vmatprep.mubr.f32.mxu0 0.0
        %600 = vmatmul.mubr.f32.gmra.mrb[0].mxu0 %v476
        %v601 = vpop.f32.mrb[0].mxu0
        %v602 = vadd.f32 %v434, %v601
        %v603 = vpop.f32.mrb[0].mxu0
        %v604 = vadd.f32 %v438, %v603
        %605 = vmatprep.mubr.f32.mxu0 0.0
        %606 = vmatmul.mubr.f32.gmra.mrb[0].mxu0 %v479
        %v607 = vpop.f32.mrb[0].mxu0
        %v608 = vadd.f32 %v434, %v607
        %v609 = vpop.f32.mrb[0].mxu0
        %v610 = vadd.f32 %v438, %v609
        %611 = vmatprep.mubr.f32.mxu0 0.0
        %612 = vmatmul.mubr.f32.gmra.mrb[0].mxu0 %v482
        %v613 = vpop.f32.mrb[0].mxu0
        %v614 = vadd.f32 %v434, %v613
        %v615 = vpop.f32.mrb[0].mxu0
        %v616 = vadd.f32 %v438, %v615
        %617 = vmatprep.mubr.f32.mxu0 0.0
        %618 = vmatmul.mubr.f32.gmra.mrb[0].mxu0 %v485
        %v619 = vpop.f32.mrb[0].mxu0
        %v620 = vadd.f32 %v434, %v619
        %v621 = vpop.f32.mrb[0].mxu0
        %v622 = vadd.f32 %v438, %v621
        %623 = vmatprep.mubr.f32.mxu0 0.0
        %624 = vmatmul.mubr.f32.gmra.mrb[0].mxu0 %v488
        %v625 = vpop.f32.mrb[0].mxu0
        %v626 = vadd.f32 %v434, %v625
        %v627 = vpop.f32.mrb[0].mxu0
        %v628 = vadd.f32 %v438, %v627
        %629 = vmatprep.mubr.f32.mxu0 0.0
        %630 = vmatmul.mubr.f32.gmra.mrb[0].mxu0 %v491
        %v631 = vpop.f32.mrb[0].mxu0
        %v632 = vadd.f32 %v434, %v631
        %v633 = vpop.f32.mrb[0].mxu0
        %v634 = vadd.f32 %v438, %v633
        %635 = vmatprep.mubr.f32.mxu0 0.0
        %636 = vmatmul.mubr.f32.gmra.mrb[0].mxu0 %v494
        %v637 = vpop.f32.mrb[0].mxu0
        %v638 = vadd.f32 %v434, %v637
        %v639 = vpop.f32.mrb[0].mxu0
        %v640 = vadd.f32 %v438, %v639
        %641 = vmatprep.mubr.f32.mxu0 0.0
        %642 = vmatmul.mubr.f32.gmra.mrb[0].mxu0 %v497
        %v643 = vpop.f32.mrb[0].mxu0
        %v644 = vadd.f32 %v434, %v643
        %v645 = vpop.f32.mrb[0].mxu0
        %v646 = vadd.f32 %v438, %v645
        %647 = vmatprep.mubr.f32.mxu0 0.0
        %648 = vmatmul.mubr.f32.gmra.mrb[0].mxu0 %v500
        %v649 = vpop.f32.mrb[0].mxu0
        %v650 = vadd.f32 %v434, %v649
        %v651 = vpop.f32.mrb[0].mxu0
        %v652 = vadd.f32 %v438, %v651
        %653 = vmatprep.mubr.f32.mxu0 0.0
        %654 = vmatmul.mubr.f32.gmra.mrb[0].mxu0 %v503
        %v655 = vpop.f32.mrb[0].mxu0
        %v656 = vadd.f32 %v434, %v655
        %v657 = vpop.f32.mrb[0].mxu0
        %v658 = vadd.f32 %v438, %v657
        %659 = vmatprep.mubr.f32.mxu0 0.0
        %660 = vmatmul.mubr.f32.gmra.mrb[0].mxu0 %v506
        %v661 = vpop.f32.mrb[0].mxu0
        %v662 = vadd.f32 %v434, %v661
        %v663 = vpop.f32.mrb[0].mxu0
        %v664 = vadd.f32 %v438, %v663
        %665 = vmatprep.mubr.f32.mxu0 0.0
        %666 = vmatmul.mubr.f32.gmra.mrb[0].mxu0 %v509
        %v667 = vpop.f32.mrb[0].mxu0
        %v668 = vadd.f32 %v434, %v667
        %v669 = vpop.f32.mrb[0].mxu0
        %v670 = vadd.f32 %v438, %v669
        %671 = vmatprep.mubr.f32.mxu0 0.0
        %672 = vmatmul.mubr.f32.gmra.mrb[0].mxu0 %v512
        %v673 = vpop.f32.mrb[0].mxu0
        %v674 = vadd.f32 %v434, %v673
        %v675 = vpop.f32.mrb[0].mxu0
        %v676 = vadd.f32 %v438, %v675
        %677 = vmatprep.mubr.f32.mxu0 0.0
        %678 = vmatmul.mubr.f32.gmra.mrb[0].mxu0 %v515
        %v679 = vpop.f32.mrb[0].mxu0
        %v680 = vadd.f32 %v434, %v679
        %v681 = vpop.f32.mrb[0].mxu0
        %v682 = vadd.f32 %v438, %v681
        %683 = vmatprep.mubr.f32.mxu0 0.0
        %684 = vmatmul.mubr.f32.gmra.mrb[0].mxu0 %v518
        %v685 = vpop.f32.mrb[0].mxu0
        %v686 = vadd.f32 %v434, %v685
        %v687 = vpop.f32.mrb[0].mxu0
        %v688 = vadd.f32 %v438, %v687
        %689 = vmatprep.mubr.f32.mxu0 0.0
        %690 = vmatmul.mubr.f32.gmra.mrb[0].mxu0 %v521
        %v691 = vpop.f32.mrb[0].mxu0
        %v692 = vadd.f32 %v434, %v691
        %v693 = vpop.f32.mrb[0].mxu0
        %v694 = vadd.f32 %v438, %v693
        %695 = vmatprep.mubr.f32.mxu0 0.0
        %696 = vmatmul.mubr.f32.gmra.mrb[0].mxu0 %v524
        %v697 = vpop.f32.mrb[0].mxu0
        %v698 = vadd.f32 %v434, %v697
        %v699 = vpop.f32.mrb[0].mxu0
        %v700 = vadd.f32 %v438, %v699
        %701 = vmatprep.mubr.f32.mxu0 0.0
        %702 = vmatmul.mubr.f32.gmra.mrb[0].mxu0 %v527
        %v703 = vpop.f32.mrb[0].mxu0
        %v704 = vadd.f32 %v434, %v703
        %v705 = vpop.f32.mrb[0].mxu0
        %v706 = vadd.f32 %v438, %v705
        %707 = vdwg.mxu0
        %708 = vmatprep.subr.mxu0 %v400
        %709 = vmatpush1.msra.mxu0 %v399
        %710 = vmatprep.subr.mxu0 %v408
        %711 = vmatpush1.msra.mxu0 %v407
        %712 = vmatprep.subr.mxu0 %v416
        %713 = vmatpush1.msra.mxu0 %v415
        %714 = vmatprep.subr.mxu0 %v424
        %715 = vmatpush1.msra.mxu0 %v423
        %716 = vmatprep.subr.mxu0 0.0
        %717 = vmatpush1.msra.mxu0 0.0
        %718 = vmatprep.subr.mxu0 0.0
        %719 = vmatpush1.msra.mxu0 0.0
        %720 = vmatprep.subr.mxu0 0.0
        %721 = vmatpush1.msra.mxu0 0.0
        %722 = vmatprep.subr.mxu0 0.0
        %723 = vmatpush1.msra.mxu0 0.0
        %724 = vmatprep.subr.mxu0 0.0
        %725 = vmatpush1.msra.mxu0 0.0
        %726 = vmatprep.subr.mxu0 0.0
        %727 = vmatpush1.msra.mxu0 0.0
        %728 = vmatprep.subr.mxu0 0.0
        %729 = vmatpush1.msra.mxu0 0.0
        %730 = vmatprep.subr.mxu0 0.0
        %731 = vmatpush1.msra.mxu0 0.0
        %732 = vmatprep.subr.mxu0 0.0
        %733 = vmatpush1.msra.mxu0 0.0
        %734 = vmatprep.subr.mxu0 0.0
        %735 = vmatpush1.msra.mxu0 0.0
        %736 = vmatprep.subr.mxu0 0.0
        %737 = vmatpush1.msra.mxu0 0.0
        %738 = vmatprep.subr.mxu0 0.0
        %739 = vmatpush1.msra.mxu0 0.0
        %740 = vmatprep.subr.mxu0 0.0
        %741 = vmatpush1.msra.mxu0 0.0
        %742 = vmatprep.subr.mxu0 0.0
        %743 = vmatpush1.msra.mxu0 0.0
        %744 = vmatprep.subr.mxu0 0.0
        %745 = vmatpush1.msra.mxu0 0.0
        %746 = vmatprep.subr.mxu0 0.0
        %747 = vmatpush1.msra.mxu0 0.0
        %748 = vmatprep.subr.mxu0 0.0
        %749 = vmatpush1.msra.mxu0 0.0
        %750 = vmatprep.subr.mxu0 0.0
        %751 = vmatpush1.msra.mxu0 0.0
        %752 = vmatprep.subr.mxu0 0.0
        %753 = vmatpush1.msra.mxu0 0.0
        %754 = vmatprep.subr.mxu0 0.0
        %755 = vmatpush1.msra.mxu0 0.0
        %756 = vmatprep.subr.mxu0 0.0
        %757 = vmatpush1.msra.mxu0 0.0
        %758 = vmatprep.subr.mxu0 0.0
        %759 = vmatpush1.msra.mxu0 0.0
        %760 = vmatprep.subr.mxu0 0.0
        %761 = vmatpush1.msra.mxu0 0.0
        %762 = vmatprep.subr.mxu0 0.0
        %763 = vmatpush1.msra.mxu0 0.0
        %764 = vmatprep.subr.mxu0 0.0
        %765 = vmatpush1.msra.mxu0 0.0
        %766 = vmatprep.subr.mxu0 0.0
        %767 = vmatpush1.msra.mxu0 0.0
        %768 = vmatprep.subr.mxu0 0.0
        %769 = vmatpush1.msra.mxu0 0.0
        %770 = vmatprep.subr.mxu0 0.0
        %771 = vmatpush1.msra.mxu0 0.0
        %772 = vmatprep.mubr.f32.mxu0 0.0
        %773 = vmatmul.mubr.f32.gmra.mrb[0].mxu0 %v473
        %v774 = vpop.f32.mrb[0].mxu0
        %v775 = vadd.f32 %v442, %v774
        %v776 = vpop.f32.mrb[0].mxu0
        %v777 = vadd.f32 %v446, %v776
        %778 = vmatprep.mubr.f32.mxu0 0.0
        %779 = vmatmul.mubr.f32.gmra.mrb[0].mxu0 %v476
        %v780 = vpop.f32.mrb[0].mxu0
        %v781 = vadd.f32 %v442, %v780
        %v782 = vpop.f32.mrb[0].mxu0
        %v783 = vadd.f32 %v446, %v782
        %784 = vmatprep.mubr.f32.mxu0 0.0
        %785 = vmatmul.mubr.f32.gmra.mrb[0].mxu0 %v479
        %v786 = vpop.f32.mrb[0].mxu0
        %v787 = vadd.f32 %v442, %v786
        %v788 = vpop.f32.mrb[0].mxu0
        %v789 = vadd.f32 %v446, %v788
        %790 = vmatprep.mubr.f32.mxu0 0.0
        %791 = vmatmul.mubr.f32.gmra.mrb[0].mxu0 %v482
        %v792 = vpop.f32.mrb[0].mxu0
        %v793 = vadd.f32 %v442, %v792
        %v794 = vpop.f32.mrb[0].mxu0
        %v795 = vadd.f32 %v446, %v794
        %796 = vmatprep.mubr.f32.mxu0 0.0
        %797 = vmatmul.mubr.f32.gmra.mrb[0].mxu0 %v485
        %v798 = vpop.f32.mrb[0].mxu0
        %v799 = vadd.f32 %v442, %v798
        %v800 = vpop.f32.mrb[0].mxu0
        %v801 = vadd.f32 %v446, %v800
        %802 = vmatprep.mubr.f32.mxu0 0.0
        %803 = vmatmul.mubr.f32.gmra.mrb[0].mxu0 %v488
        %v804 = vpop.f32.mrb[0].mxu0
        %v805 = vadd.f32 %v442, %v804
        %v806 = vpop.f32.mrb[0].mxu0
        %v807 = vadd.f32 %v446, %v806
        %808 = vmatprep.mubr.f32.mxu0 0.0
        %809 = vmatmul.mubr.f32.gmra.mrb[0].mxu0 %v491
        %v810 = vpop.f32.mrb[0].mxu0
        %v811 = vadd.f32 %v442, %v810
        %v812 = vpop.f32.mrb[0].mxu0
        %v813 = vadd.f32 %v446, %v812
        %814 = vmatprep.mubr.f32.mxu0 0.0
        %815 = vmatmul.mubr.f32.gmra.mrb[0].mxu0 %v494
        %v816 = vpop.f32.mrb[0].mxu0
        %v817 = vadd.f32 %v442, %v816
        %v818 = vpop.f32.mrb[0].mxu0
        %v819 = vadd.f32 %v446, %v818
        %820 = vmatprep.mubr.f32.mxu0 0.0
        %821 = vmatmul.mubr.f32.gmra.mrb[0].mxu0 %v497
        %v822 = vpop.f32.mrb[0].mxu0
        %v823 = vadd.f32 %v442, %v822
        %v824 = vpop.f32.mrb[0].mxu0
        %v825 = vadd.f32 %v446, %v824
        %826 = vmatprep.mubr.f32.mxu0 0.0
        %827 = vmatmul.mubr.f32.gmra.mrb[0].mxu0 %v500
        %v828 = vpop.f32.mrb[0].mxu0
        %v829 = vadd.f32 %v442, %v828
        %v830 = vpop.f32.mrb[0].mxu0
        %v831 = vadd.f32 %v446, %v830
        %832 = vmatprep.mubr.f32.mxu0 0.0
        %833 = vmatmul.mubr.f32.gmra.mrb[0].mxu0 %v503
        %v834 = vpop.f32.mrb[0].mxu0
        %v835 = vadd.f32 %v442, %v834
        %v836 = vpop.f32.mrb[0].mxu0
        %v837 = vadd.f32 %v446, %v836
        %838 = vmatprep.mubr.f32.mxu0 0.0
        %839 = vmatmul.mubr.f32.gmra.mrb[0].mxu0 %v506
        %v840 = vpop.f32.mrb[0].mxu0
        %v841 = vadd.f32 %v442, %v840
        %v842 = vpop.f32.mrb[0].mxu0
        %v843 = vadd.f32 %v446, %v842
        %844 = vmatprep.mubr.f32.mxu0 0.0
        %845 = vmatmul.mubr.f32.gmra.mrb[0].mxu0 %v509
        %v846 = vpop.f32.mrb[0].mxu0
        %v847 = vadd.f32 %v442, %v846
        %v848 = vpop.f32.mrb[0].mxu0
        %v849 = vadd.f32 %v446, %v848
        %850 = vmatprep.mubr.f32.mxu0 0.0
        %851 = vmatmul.mubr.f32.gmra.mrb[0].mxu0 %v512
        %v852 = vpop.f32.mrb[0].mxu0
        %v853 = vadd.f32 %v442, %v852
        %v854 = vpop.f32.mrb[0].mxu0
        %v855 = vadd.f32 %v446, %v854
        %856 = vmatprep.mubr.f32.mxu0 0.0
        %857 = vmatmul.mubr.f32.gmra.mrb[0].mxu0 %v515
        %v858 = vpop.f32.mrb[0].mxu0
        %v859 = vadd.f32 %v442, %v858
        %v860 = vpop.f32.mrb[0].mxu0
        %v861 = vadd.f32 %v446, %v860
        %862 = vmatprep.mubr.f32.mxu0 0.0
        %863 = vmatmul.mubr.f32.gmra.mrb[0].mxu0 %v518
        %v864 = vpop.f32.mrb[0].mxu0
        %v865 = vadd.f32 %v442, %v864
        %v866 = vpop.f32.mrb[0].mxu0
        %v867 = vadd.f32 %v446, %v866
        %868 = vmatprep.mubr.f32.mxu0 0.0
        %869 = vmatmul.mubr.f32.gmra.mrb[0].mxu0 %v521
        %v870 = vpop.f32.mrb[0].mxu0
        %v871 = vadd.f32 %v442, %v870
        %v872 = vpop.f32.mrb[0].mxu0
        %v873 = vadd.f32 %v446, %v872
        %874 = vmatprep.mubr.f32.mxu0 0.0
        %875 = vmatmul.mubr.f32.gmra.mrb[0].mxu0 %v524
        %v876 = vpop.f32.mrb[0].mxu0
        %v877 = vadd.f32 %v442, %v876
        %v878 = vpop.f32.mrb[0].mxu0
        %v879 = vadd.f32 %v446, %v878
        %880 = vmatprep.mubr.f32.mxu0 0.0
        %881 = vmatmul.mubr.f32.gmra.mrb[0].mxu0 %v527
        %v882 = vpop.f32.mrb[0].mxu0
        %v883 = vadd.f32 %v442, %v882
        %v884 = vpop.f32.mrb[0].mxu0
        %v885 = vadd.f32 %v446, %v884
        %886 = vdwg.mxu0
        %887 = vmatprep.subr.mxu0 %v402
        %888 = vmatpush1.msra.mxu0 %v401
        %889 = vmatprep.subr.mxu0 %v410
        %890 = vmatpush1.msra.mxu0 %v409
        %891 = vmatprep.subr.mxu0 %v418
        %892 = vmatpush1.msra.mxu0 %v417
        %893 = vmatprep.subr.mxu0 %v426
        %894 = vmatpush1.msra.mxu0 %v425
        %895 = vmatprep.subr.mxu0 0.0
        %896 = vmatpush1.msra.mxu0 0.0
        %897 = vmatprep.subr.mxu0 0.0
        %898 = vmatpush1.msra.mxu0 0.0
        %899 = vmatprep.subr.mxu0 0.0
        %900 = vmatpush1.msra.mxu0 0.0
        %901 = vmatprep.subr.mxu0 0.0
        %902 = vmatpush1.msra.mxu0 0.0
        %903 = vmatprep.subr.mxu0 0.0
        %904 = vmatpush1.msra.mxu0 0.0
        %905 = vmatprep.subr.mxu0 0.0
        %906 = vmatpush1.msra.mxu0 0.0
        %907 = vmatprep.subr.mxu0 0.0
        %908 = vmatpush1.msra.mxu0 0.0
        %909 = vmatprep.subr.mxu0 0.0
        %910 = vmatpush1.msra.mxu0 0.0
        %911 = vmatprep.subr.mxu0 0.0
        %912 = vmatpush1.msra.mxu0 0.0
        %913 = vmatprep.subr.mxu0 0.0
        %914 = vmatpush1.msra.mxu0 0.0
        %915 = vmatprep.subr.mxu0 0.0
        %916 = vmatpush1.msra.mxu0 0.0
        %917 = vmatprep.subr.mxu0 0.0
        %918 = vmatpush1.msra.mxu0 0.0
        %919 = vmatprep.subr.mxu0 0.0
        %920 = vmatpush1.msra.mxu0 0.0
        %921 = vmatprep.subr.mxu0 0.0
        %922 = vmatpush1.msra.mxu0 0.0
        %923 = vmatprep.subr.mxu0 0.0
        %924 = vmatpush1.msra.mxu0 0.0
        %925 = vmatprep.subr.mxu0 0.0
        %926 = vmatpush1.msra.mxu0 0.0
        %927 = vmatprep.subr.mxu0 0.0
        %928 = vmatpush1.msra.mxu0 0.0
        %929 = vmatprep.subr.mxu0 0.0
        %930 = vmatpush1.msra.mxu0 0.0
        %931 = vmatprep.subr.mxu0 0.0
        %932 = vmatpush1.msra.mxu0 0.0
        %933 = vmatprep.subr.mxu0 0.0
        %934 = vmatpush1.msra.mxu0 0.0
        %935 = vmatprep.subr.mxu0 0.0
        %936 = vmatpush1.msra.mxu0 0.0
        %937 = vmatprep.subr.mxu0 0.0
        %938 = vmatpush1.msra.mxu0 0.0
        %939 = vmatprep.subr.mxu0 0.0
        %940 = vmatpush1.msra.mxu0 0.0
        %941 = vmatprep.subr.mxu0 0.0
        %942 = vmatpush1.msra.mxu0 0.0
        %943 = vmatprep.subr.mxu0 0.0
        %944 = vmatpush1.msra.mxu0 0.0
        %945 = vmatprep.subr.mxu0 0.0
        %946 = vmatpush1.msra.mxu0 0.0
        %947 = vmatprep.subr.mxu0 0.0
        %948 = vmatpush1.msra.mxu0 0.0
        %949 = vmatprep.subr.mxu0 0.0
        %950 = vmatpush1.msra.mxu0 0.0
        %951 = vmatprep.mubr.f32.mxu0 0.0
        %952 = vmatmul.mubr.f32.gmra.mrb[0].mxu0 %v473
        %v953 = vpop.f32.mrb[0].mxu0
        %v954 = vadd.f32 %v450, %v953
        %v955 = vpop.f32.mrb[0].mxu0
        %v956 = vadd.f32 %v454, %v955
        %957 = vmatprep.mubr.f32.mxu0 0.0
        %958 = vmatmul.mubr.f32.gmra.mrb[0].mxu0 %v476
        %v959 = vpop.f32.mrb[0].mxu0
        %v960 = vadd.f32 %v450, %v959
        %v961 = vpop.f32.mrb[0].mxu0
        %v962 = vadd.f32 %v454, %v961
        %963 = vmatprep.mubr.f32.mxu0 0.0
        %964 = vmatmul.mubr.f32.gmra.mrb[0].mxu0 %v479
        %v965 = vpop.f32.mrb[0].mxu0
        %v966 = vadd.f32 %v450, %v965
        %v967 = vpop.f32.mrb[0].mxu0
        %v968 = vadd.f32 %v454, %v967
        %969 = vmatprep.mubr.f32.mxu0 0.0
        %970 = vmatmul.mubr.f32.gmra.mrb[0].mxu0 %v482
        %v971 = vpop.f32.mrb[0].mxu0
        %v972 = vadd.f32 %v450, %v971
        %v973 = vpop.f32.mrb[0].mxu0
        %v974 = vadd.f32 %v454, %v973
        %975 = vmatprep.mubr.f32.mxu0 0.0
        %976 = vmatmul.mubr.f32.gmra.mrb[0].mxu0 %v485
        %v977 = vpop.f32.mrb[0].mxu0
        %v978 = vadd.f32 %v450, %v977
        %v979 = vpop.f32.mrb[0].mxu0
        %v980 = vadd.f32 %v454, %v979
        %981 = vmatprep.mubr.f32.mxu0 0.0
        %982 = vmatmul.mubr.f32.gmra.mrb[0].mxu0 %v488
        %v983 = vpop.f32.mrb[0].mxu0
        %v984 = vadd.f32 %v450, %v983
        %v985 = vpop.f32.mrb[0].mxu0
        %v986 = vadd.f32 %v454, %v985
        %987 = vmatprep.mubr.f32.mxu0 0.0
        %988 = vmatmul.mubr.f32.gmra.mrb[0].mxu0 %v491
        %v989 = vpop.f32.mrb[0].mxu0
        %v990 = vadd.f32 %v450, %v989
        %v991 = vpop.f32.mrb[0].mxu0
        %v992 = vadd.f32 %v454, %v991
        %993 = vmatprep.mubr.f32.mxu0 0.0
        %994 = vmatmul.mubr.f32.gmra.mrb[0].mxu0 %v494
        %v995 = vpop.f32.mrb[0].mxu0
        %v996 = vadd.f32 %v450, %v995
        %v997 = vpop.f32.mrb[0].mxu0
        %v998 = vadd.f32 %v454, %v997
        %999 = vmatprep.mubr.f32.mxu0 0.0
        %1000 = vmatmul.mubr.f32.gmra.mrb[0].mxu0 %v497
        %v1001 = vpop.f32.mrb[0].mxu0
        %v1002 = vadd.f32 %v450, %v1001
        %v1003 = vpop.f32.mrb[0].mxu0
        %v1004 = vadd.f32 %v454, %v1003
        %1005 = vmatprep.mubr.f32.mxu0 0.0
        %1006 = vmatmul.mubr.f32.gmra.mrb[0].mxu0 %v500
        %v1007 = vpop.f32.mrb[0].mxu0
        %v1008 = vadd.f32 %v450, %v1007
        %v1009 = vpop.f32.mrb[0].mxu0
        %v1010 = vadd.f32 %v454, %v1009
        %1011 = vmatprep.mubr.f32.mxu0 0.0
        %1012 = vmatmul.mubr.f32.gmra.mrb[0].mxu0 %v503
        %v1013 = vpop.f32.mrb[0].mxu0
        %v1014 = vadd.f32 %v450, %v1013
        %v1015 = vpop.f32.mrb[0].mxu0
        %v1016 = vadd.f32 %v454, %v1015
        %1017 = vmatprep.mubr.f32.mxu0 0.0
        %1018 = vmatmul.mubr.f32.gmra.mrb[0].mxu0 %v506
        %v1019 = vpop.f32.mrb[0].mxu0
        %v1020 = vadd.f32 %v450, %v1019
        %v1021 = vpop.f32.mrb[0].mxu0
        %v1022 = vadd.f32 %v454, %v1021
        %1023 = vmatprep.mubr.f32.mxu0 0.0
        %1024 = vmatmul.mubr.f32.gmra.mrb[0].mxu0 %v509
        %v1025 = vpop.f32.mrb[0].mxu0
        %v1026 = vadd.f32 %v450, %v1025
        %v1027 = vpop.f32.mrb[0].mxu0
        %v1028 = vadd.f32 %v454, %v1027
        %1029 = vmatprep.mubr.f32.mxu0 0.0
        %1030 = vmatmul.mubr.f32.gmra.mrb[0].mxu0 %v512
        %v1031 = vpop.f32.mrb[0].mxu0
        %v1032 = vadd.f32 %v450, %v1031
        %v1033 = vpop.f32.mrb[0].mxu0
        %v1034 = vadd.f32 %v454, %v1033
        %1035 = vmatprep.mubr.f32.mxu0 0.0
        %1036 = vmatmul.mubr.f32.gmra.mrb[0].mxu0 %v515
        %v1037 = vpop.f32.mrb[0].mxu0
        %v1038 = vadd.f32 %v450, %v1037
        %v1039 = vpop.f32.mrb[0].mxu0
        %v1040 = vadd.f32 %v454, %v1039
        %1041 = vmatprep.mubr.f32.mxu0 0.0
        %1042 = vmatmul.mubr.f32.gmra.mrb[0].mxu0 %v518
        %v1043 = vpop.f32.mrb[0].mxu0
        %v1044 = vadd.f32 %v450, %v1043
        %v1045 = vpop.f32.mrb[0].mxu0
        %v1046 = vadd.f32 %v454, %v1045
        %1047 = vmatprep.mubr.f32.mxu0 0.0
        %1048 = vmatmul.mubr.f32.gmra.mrb[0].mxu0 %v521
        %v1049 = vpop.f32.mrb[0].mxu0
        %v1050 = vadd.f32 %v450, %v1049
        %v1051 = vpop.f32.mrb[0].mxu0
        %v1052 = vadd.f32 %v454, %v1051
        %1053 = vmatprep.mubr.f32.mxu0 0.0
        %1054 = vmatmul.mubr.f32.gmra.mrb[0].mxu0 %v524
        %v1055 = vpop.f32.mrb[0].mxu0
        %v1056 = vadd.f32 %v450, %v1055
        %v1057 = vpop.f32.mrb[0].mxu0
        %v1058 = vadd.f32 %v454, %v1057
        %1059 = vmatprep.mubr.f32.mxu0 0.0
        %1060 = vmatmul.mubr.f32.gmra.mrb[0].mxu0 %v527
        %v1061 = vpop.f32.mrb[0].mxu0
        %v1062 = vadd.f32 %v450, %v1061
        %v1063 = vpop.f32.mrb[0].mxu0
        %v1064 = vadd.f32 %v454, %v1063
        %1065 = vdwg.mxu0
        %1066 = vmatprep.subr.mxu0 %v404
        %1067 = vmatpush1.msra.mxu0 %v403
        %1068 = vmatprep.subr.mxu0 %v412
        %1069 = vmatpush1.msra.mxu0 %v411
        %1070 = vmatprep.subr.mxu0 %v420
        %1071 = vmatpush1.msra.mxu0 %v419
        %1072 = vmatprep.subr.mxu0 %v428
        %1073 = vmatpush1.msra.mxu0 %v427
        %1074 = vmatprep.subr.mxu0 0.0
        %1075 = vmatpush1.msra.mxu0 0.0
        %1076 = vmatprep.subr.mxu0 0.0
        %1077 = vmatpush1.msra.mxu0 0.0
        %1078 = vmatprep.subr.mxu0 0.0
        %1079 = vmatpush1.msra.mxu0 0.0
        %1080 = vmatprep.subr.mxu0 0.0
        %1081 = vmatpush1.msra.mxu0 0.0
        %1082 = vmatprep.subr.mxu0 0.0
        %1083 = vmatpush1.msra.mxu0 0.0
        %1084 = vmatprep.subr.mxu0 0.0
        %1085 = vmatpush1.msra.mxu0 0.0
        %1086 = vmatprep.subr.mxu0 0.0
        %1087 = vmatpush1.msra.mxu0 0.0
        %1088 = vmatprep.subr.mxu0 0.0
        %1089 = vmatpush1.msra.mxu0 0.0
        %1090 = vmatprep.subr.mxu0 0.0
        %1091 = vmatpush1.msra.mxu0 0.0
        %1092 = vmatprep.subr.mxu0 0.0
        %1093 = vmatpush1.msra.mxu0 0.0
        %1094 = vmatprep.subr.mxu0 0.0
        %1095 = vmatpush1.msra.mxu0 0.0
        %1096 = vmatprep.subr.mxu0 0.0
        %1097 = vmatpush1.msra.mxu0 0.0
        %1098 = vmatprep.subr.mxu0 0.0
        %1099 = vmatpush1.msra.mxu0 0.0
        %1100 = vmatprep.subr.mxu0 0.0
        %1101 = vmatpush1.msra.mxu0 0.0
        %1102 = vmatprep.subr.mxu0 0.0
        %1103 = vmatpush1.msra.mxu0 0.0
        %1104 = vmatprep.subr.mxu0 0.0
        %1105 = vmatpush1.msra.mxu0 0.0
        %1106 = vmatprep.subr.mxu0 0.0
        %1107 = vmatpush1.msra.mxu0 0.0
        %1108 = vmatprep.subr.mxu0 0.0
        %1109 = vmatpush1.msra.mxu0 0.0
        %1110 = vmatprep.subr.mxu0 0.0
        %1111 = vmatpush1.msra.mxu0 0.0
        %1112 = vmatprep.subr.mxu0 0.0
        %1113 = vmatpush1.msra.mxu0 0.0
        %1114 = vmatprep.subr.mxu0 0.0
        %1115 = vmatpush1.msra.mxu0 0.0
        %1116 = vmatprep.subr.mxu0 0.0
        %1117 = vmatpush1.msra.mxu0 0.0
        %1118 = vmatprep.subr.mxu0 0.0
        %1119 = vmatpush1.msra.mxu0 0.0
        %1120 = vmatprep.subr.mxu0 0.0
        %1121 = vmatpush1.msra.mxu0 0.0
        %1122 = vmatprep.subr.mxu0 0.0
        %1123 = vmatpush1.msra.mxu0 0.0
        %1124 = vmatprep.subr.mxu0 0.0
        %1125 = vmatpush1.msra.mxu0 0.0
        %1126 = vmatprep.subr.mxu0 0.0
        %1127 = vmatpush1.msra.mxu0 0.0
        %1128 = vmatprep.subr.mxu0 0.0
        %1129 = vmatpush1.msra.mxu0 0.0
        %1130 = vmatprep.mubr.f32.mxu0 0.0
        %1131 = vmatmul.mubr.f32.gmra.mrb[0].mxu0 %v473
        %v1132 = vpop.f32.mrb[0].mxu0
        %v1133 = vadd.f32 %v458, %v1132
        %v1134 = vpop.f32.mrb[0].mxu0
        %v1135 = vadd.f32 %v462, %v1134
        %1136 = vmatprep.mubr.f32.mxu0 0.0
        %1137 = vmatmul.mubr.f32.gmra.mrb[0].mxu0 %v476
        %v1138 = vpop.f32.mrb[0].mxu0
        %v1139 = vadd.f32 %v458, %v1138
        %v1140 = vpop.f32.mrb[0].mxu0
        %v1141 = vadd.f32 %v462, %v1140
        %1142 = vmatprep.mubr.f32.mxu0 0.0
        %1143 = vmatmul.mubr.f32.gmra.mrb[0].mxu0 %v479
        %v1144 = vpop.f32.mrb[0].mxu0
        %v1145 = vadd.f32 %v458, %v1144
        %v1146 = vpop.f32.mrb[0].mxu0
        %v1147 = vadd.f32 %v462, %v1146
        %1148 = vmatprep.mubr.f32.mxu0 0.0
        %1149 = vmatmul.mubr.f32.gmra.mrb[0].mxu0 %v482
        %v1150 = vpop.f32.mrb[0].mxu0
        %v1151 = vadd.f32 %v458, %v1150
        %v1152 = vpop.f32.mrb[0].mxu0
        %v1153 = vadd.f32 %v462, %v1152
        %1154 = vmatprep.mubr.f32.mxu0 0.0
        %1155 = vmatmul.mubr.f32.gmra.mrb[0].mxu0 %v485
        %v1156 = vpop.f32.mrb[0].mxu0
        %v1157 = vadd.f32 %v458, %v1156
        %v1158 = vpop.f32.mrb[0].mxu0
        %v1159 = vadd.f32 %v462, %v1158
        %1160 = vmatprep.mubr.f32.mxu0 0.0
        %1161 = vmatmul.mubr.f32.gmra.mrb[0].mxu0 %v488
        %v1162 = vpop.f32.mrb[0].mxu0
        %v1163 = vadd.f32 %v458, %v1162
        %v1164 = vpop.f32.mrb[0].mxu0
        %v1165 = vadd.f32 %v462, %v1164
        %1166 = vmatprep.mubr.f32.mxu0 0.0
        %1167 = vmatmul.mubr.f32.gmra.mrb[0].mxu0 %v491
        %v1168 = vpop.f32.mrb[0].mxu0
        %v1169 = vadd.f32 %v458, %v1168
        %v1170 = vpop.f32.mrb[0].mxu0
        %v1171 = vadd.f32 %v462, %v1170
        %1172 = vmatprep.mubr.f32.mxu0 0.0
        %1173 = vmatmul.mubr.f32.gmra.mrb[0].mxu0 %v494
        %v1174 = vpop.f32.mrb[0].mxu0
        %v1175 = vadd.f32 %v458, %v1174
        %v1176 = vpop.f32.mrb[0].mxu0
        %v1177 = vadd.f32 %v462, %v1176
        %1178 = vmatprep.mubr.f32.mxu0 0.0
        %1179 = vmatmul.mubr.f32.gmra.mrb[0].mxu0 %v497
        %v1180 = vpop.f32.mrb[0].mxu0
        %v1181 = vadd.f32 %v458, %v1180
        %v1182 = vpop.f32.mrb[0].mxu0
        %v1183 = vadd.f32 %v462, %v1182
        %1184 = vmatprep.mubr.f32.mxu0 0.0
        %1185 = vmatmul.mubr.f32.gmra.mrb[0].mxu0 %v500
        %v1186 = vpop.f32.mrb[0].mxu0
        %v1187 = vadd.f32 %v458, %v1186
        %v1188 = vpop.f32.mrb[0].mxu0
        %v1189 = vadd.f32 %v462, %v1188
        %1190 = vmatprep.mubr.f32.mxu0 0.0
        %1191 = vmatmul.mubr.f32.gmra.mrb[0].mxu0 %v503
        %v1192 = vpop.f32.mrb[0].mxu0
        %v1193 = vadd.f32 %v458, %v1192
        %v1194 = vpop.f32.mrb[0].mxu0
        %v1195 = vadd.f32 %v462, %v1194
        %1196 = vmatprep.mubr.f32.mxu0 0.0
        %1197 = vmatmul.mubr.f32.gmra.mrb[0].mxu0 %v506
        %v1198 = vpop.f32.mrb[0].mxu0
        %v1199 = vadd.f32 %v458, %v1198
        %v1200 = vpop.f32.mrb[0].mxu0
        %v1201 = vadd.f32 %v462, %v1200
        %1202 = vmatprep.mubr.f32.mxu0 0.0
        %1203 = vmatmul.mubr.f32.gmra.mrb[0].mxu0 %v509
        %v1204 = vpop.f32.mrb[0].mxu0
        %v1205 = vadd.f32 %v458, %v1204
        %v1206 = vpop.f32.mrb[0].mxu0
        %v1207 = vadd.f32 %v462, %v1206
        %1208 = vmatprep.mubr.f32.mxu0 0.0
        %1209 = vmatmul.mubr.f32.gmra.mrb[0].mxu0 %v512
        %v1210 = vpop.f32.mrb[0].mxu0
        %v1211 = vadd.f32 %v458, %v1210
        %v1212 = vpop.f32.mrb[0].mxu0
        %v1213 = vadd.f32 %v462, %v1212
        %1214 = vmatprep.mubr.f32.mxu0 0.0
        %1215 = vmatmul.mubr.f32.gmra.mrb[0].mxu0 %v515
        %v1216 = vpop.f32.mrb[0].mxu0
        %v1217 = vadd.f32 %v458, %v1216
        %v1218 = vpop.f32.mrb[0].mxu0
        %v1219 = vadd.f32 %v462, %v1218
        %1220 = vmatprep.mubr.f32.mxu0 0.0
        %1221 = vmatmul.mubr.f32.gmra.mrb[0].mxu0 %v518
        %v1222 = vpop.f32.mrb[0].mxu0
        %v1223 = vadd.f32 %v458, %v1222
        %v1224 = vpop.f32.mrb[0].mxu0
        %v1225 = vadd.f32 %v462, %v1224
        %1226 = vmatprep.mubr.f32.mxu0 0.0
        %1227 = vmatmul.mubr.f32.gmra.mrb[0].mxu0 %v521
        %v1228 = vpop.f32.mrb[0].mxu0
        %v1229 = vadd.f32 %v458, %v1228
        %v1230 = vpop.f32.mrb[0].mxu0
        %v1231 = vadd.f32 %v462, %v1230
        %1232 = vmatprep.mubr.f32.mxu0 0.0
        %1233 = vmatmul.mubr.f32.gmra.mrb[0].mxu0 %v524
        %v1234 = vpop.f32.mrb[0].mxu0
        %v1235 = vadd.f32 %v458, %v1234
        %v1236 = vpop.f32.mrb[0].mxu0
        %v1237 = vadd.f32 %v462, %v1236
        %1238 = vmatprep.mubr.f32.mxu0 0.0
        %1239 = vmatmul.mubr.f32.gmra.mrb[0].mxu0 %v527
        %v1240 = vpop.f32.mrb[0].mxu0
        %v1241 = vadd.f32 %v458, %v1240
        %v1242 = vpop.f32.mrb[0].mxu0
        %v1243 = vadd.f32 %v462, %v1242
        %1244 = vdwg.mxu0
        %v1245 = vmax.f32 %v596, 0.0
        %v1246 = vmax.f32 %v598, 0.0
        %v1247 = vmax.f32 %v775, 0.0
        %v1248 = vmax.f32 %v777, 0.0
        %v1249 = vmax.f32 %v954, 0.0
        %v1250 = vmax.f32 %v956, 0.0
        %v1251 = vmax.f32 %v1133, 0.0
        %v1252 = vmax.f32 %v1135, 0.0
        %v1253 = vmax.f32 %v602, 0.0
        %v1254 = vmax.f32 %v604, 0.0
        %v1255 = vmax.f32 %v781, 0.0
        %v1256 = vmax.f32 %v783, 0.0
        %v1257 = vmax.f32 %v960, 0.0
        %v1258 = vmax.f32 %v962, 0.0
        %v1259 = vmax.f32 %v1139, 0.0
        %v1260 = vmax.f32 %v1141, 0.0
        %v1261 = vmax.f32 %v608, 0.0
        %v1262 = vmax.f32 %v610, 0.0
        %v1263 = vmax.f32 %v787, 0.0
        %v1264 = vmax.f32 %v789, 0.0
        %v1265 = vmax.f32 %v966, 0.0
        %v1266 = vmax.f32 %v968, 0.0
        %v1267 = vmax.f32 %v1145, 0.0
        %v1268 = vmax.f32 %v1147, 0.0
        %v1269 = vmax.f32 %v614, 0.0
        %v1270 = vmax.f32 %v616, 0.0
        %v1271 = vmax.f32 %v793, 0.0
        %v1272 = vmax.f32 %v795, 0.0
        %v1273 = vmax.f32 %v972, 0.0
        %v1274 = vmax.f32 %v974, 0.0
        %v1275 = vmax.f32 %v1151, 0.0
        %v1276 = vmax.f32 %v1153, 0.0
        %v1277 = vmax.f32 %v620, 0.0
        %v1278 = vmax.f32 %v622, 0.0
        %v1279 = vmax.f32 %v799, 0.0
        %v1280 = vmax.f32 %v801, 0.0
        %v1281 = vmax.f32 %v978, 0.0
        %v1282 = vmax.f32 %v980, 0.0
        %v1283 = vmax.f32 %v1157, 0.0
        %v1284 = vmax.f32 %v1159, 0.0
        %v1285 = vmax.f32 %v626, 0.0
        %v1286 = vmax.f32 %v628, 0.0
        %v1287 = vmax.f32 %v805, 0.0
        %v1288 = vmax.f32 %v807, 0.0
        %v1289 = vmax.f32 %v984, 0.0
        %v1290 = vmax.f32 %v986, 0.0
        %v1291 = vmax.f32 %v1163, 0.0
        %v1292 = vmax.f32 %v1165, 0.0
        %v1293 = vmax.f32 %v632, 0.0
        %v1294 = vmax.f32 %v634, 0.0
        %v1295 = vmax.f32 %v811, 0.0
        %v1296 = vmax.f32 %v813, 0.0
        %v1297 = vmax.f32 %v990, 0.0
        %v1298 = vmax.f32 %v992, 0.0
        %v1299 = vmax.f32 %v1169, 0.0
        %v1300 = vmax.f32 %v1171, 0.0
        %v1301 = vmax.f32 %v638, 0.0
        %v1302 = vmax.f32 %v640, 0.0
        %v1303 = vmax.f32 %v817, 0.0
        %v1304 = vmax.f32 %v819, 0.0
        %v1305 = vmax.f32 %v996, 0.0
        %v1306 = vmax.f32 %v998, 0.0
        %v1307 = vmax.f32 %v1175, 0.0
        %v1308 = vmax.f32 %v1177, 0.0
        %v1309 = vmax.f32 %v644, 0.0
        %v1310 = vmax.f32 %v646, 0.0
        %v1311 = vmax.f32 %v823, 0.0
        %v1312 = vmax.f32 %v825, 0.0
        %v1313 = vmax.f32 %v1002, 0.0
        %v1314 = vmax.f32 %v1004, 0.0
        %v1315 = vmax.f32 %v1181, 0.0
        %v1316 = vmax.f32 %v1183, 0.0
        %v1317 = vmax.f32 %v650, 0.0
        %v1318 = vmax.f32 %v652, 0.0
        %v1319 = vmax.f32 %v829, 0.0
        %v1320 = vmax.f32 %v831, 0.0
        %v1321 = vmax.f32 %v1008, 0.0
        %v1322 = vmax.f32 %v1010, 0.0
        %v1323 = vmax.f32 %v1187, 0.0
        %v1324 = vmax.f32 %v1189, 0.0
        %v1325 = vmax.f32 %v656, 0.0
        %v1326 = vmax.f32 %v658, 0.0
        %v1327 = vmax.f32 %v835, 0.0
        %v1328 = vmax.f32 %v837, 0.0
        %v1329 = vmax.f32 %v1014, 0.0
        %v1330 = vmax.f32 %v1016, 0.0
        %v1331 = vmax.f32 %v1193, 0.0
        %v1332 = vmax.f32 %v1195, 0.0
        %v1333 = vmax.f32 %v662, 0.0
        %v1334 = vmax.f32 %v664, 0.0
        %v1335 = vmax.f32 %v841, 0.0
        %v1336 = vmax.f32 %v843, 0.0
        %v1337 = vmax.f32 %v1020, 0.0
        %v1338 = vmax.f32 %v1022, 0.0
        %v1339 = vmax.f32 %v1199, 0.0
        %v1340 = vmax.f32 %v1201, 0.0
        %v1341 = vmax.f32 %v668, 0.0
        %v1342 = vmax.f32 %v670, 0.0
        %v1343 = vmax.f32 %v847, 0.0
        %v1344 = vmax.f32 %v849, 0.0
        %v1345 = vmax.f32 %v1026, 0.0
        %v1346 = vmax.f32 %v1028, 0.0
        %v1347 = vmax.f32 %v1205, 0.0
        %v1348 = vmax.f32 %v1207, 0.0
        %v1349 = vmax.f32 %v674, 0.0
        %v1350 = vmax.f32 %v676, 0.0
        %v1351 = vmax.f32 %v853, 0.0
        %v1352 = vmax.f32 %v855, 0.0
        %v1353 = vmax.f32 %v1032, 0.0
        %v1354 = vmax.f32 %v1034, 0.0
        %v1355 = vmax.f32 %v1211, 0.0
        %v1356 = vmax.f32 %v1213, 0.0
        %v1357 = vmax.f32 %v680, 0.0
        %v1358 = vmax.f32 %v682, 0.0
        %v1359 = vmax.f32 %v859, 0.0
        %v1360 = vmax.f32 %v861, 0.0
        %v1361 = vmax.f32 %v1038, 0.0
        %v1362 = vmax.f32 %v1040, 0.0
        %v1363 = vmax.f32 %v1217, 0.0
        %v1364 = vmax.f32 %v1219, 0.0
        %v1365 = vmax.f32 %v686, 0.0
        %v1366 = vmax.f32 %v688, 0.0
        %v1367 = vmax.f32 %v865, 0.0
        %v1368 = vmax.f32 %v867, 0.0
        %v1369 = vmax.f32 %v1044, 0.0
        %v1370 = vmax.f32 %v1046, 0.0
        %v1371 = vmax.f32 %v1223, 0.0
        %v1372 = vmax.f32 %v1225, 0.0
        %v1373 = vmax.f32 %v692, 0.0
        %v1374 = vmax.f32 %v694, 0.0
        %v1375 = vmax.f32 %v871, 0.0
        %v1376 = vmax.f32 %v873, 0.0
        %v1377 = vmax.f32 %v1050, 0.0
        %v1378 = vmax.f32 %v1052, 0.0
        %v1379 = vmax.f32 %v1229, 0.0
        %v1380 = vmax.f32 %v1231, 0.0
        %v1381 = vmax.f32 %v698, 0.0
        %v1382 = vmax.f32 %v700, 0.0
        %v1383 = vmax.f32 %v877, 0.0
        %v1384 = vmax.f32 %v879, 0.0
        %v1385 = vmax.f32 %v1056, 0.0
        %v1386 = vmax.f32 %v1058, 0.0
        %v1387 = vmax.f32 %v1235, 0.0
        %v1388 = vmax.f32 %v1237, 0.0
        %v1389 = vmax.f32 %v704, 0.0
        %v1390 = vmax.f32 %v706, 0.0
        %v1391 = vmax.f32 %v883, 0.0
        %v1392 = vmax.f32 %v885, 0.0
        %v1393 = vmax.f32 %v1062, 0.0
        %v1394 = vmax.f32 %v1064, 0.0
        %v1395 = vmax.f32 %v1241, 0.0
        %v1396 = vmax.f32 %v1243, 0.0
        %v1397 = vld [vmem:[#allocation2] sm:$0xff]
        %v1398 = vld [vmem:[#allocation2 + $0x8] sm:$0xff]
        %v1399 = vld [vmem:[#allocation2 + $0x10] sm:$0xff]
        %v1400 = vld [vmem:[#allocation2 + $0x18] sm:$0xff]
        %v1401 = vld [vmem:[#allocation2 + $0x20] sm:$0xff]
        %v1402 = vld [vmem:[#allocation2 + $0x28] sm:$0xff]
        %v1403 = vld [vmem:[#allocation2 + $0x30] sm:$0xff]
        %v1404 = vld [vmem:[#allocation2 + $0x38] sm:$0xff]
        %v1405 = vld [vmem:[#allocation2 + $0x40] sm:$0xff]
        %v1406 = vld [vmem:[#allocation2 + $0x48] sm:$0xff]
        %v1407 = vld [vmem:[#allocation2 + $0x50] sm:$0xff]
        %v1408 = vld [vmem:[#allocation2 + $0x58] sm:$0xff]
        %v1409 = vld [vmem:[#allocation2 + $0x60] sm:$0xff]
        %v1410 = vld [vmem:[#allocation2 + $0x68] sm:$0xff]
        %v1411 = vld [vmem:[#allocation2 + $0x70] sm:$0xff]
        %v1412 = vld [vmem:[#allocation2 + $0x78] sm:$0xff]
        %v1413 = vld [vmem:[#allocation2 + $0x80] sm:$0xff]
        %v1414 = vld [vmem:[#allocation2 + $0x88] sm:$0xff]
        %v1415 = vld [vmem:[#allocation2 + $0x90] sm:$0xff]
        %v1416 = vld [vmem:[#allocation2 + $0x98] sm:$0xff]
        %v1417 = vld [vmem:[#allocation2 + $0xa0] sm:$0xff]
        %v1418 = vld [vmem:[#allocation2 + $0xa8] sm:$0xff]
        %v1419 = vld [vmem:[#allocation2 + $0xb0] sm:$0xff]
        %v1420 = vld [vmem:[#allocation2 + $0xb8] sm:$0xff]
        %v1421 = vld [vmem:[#allocation2 + $0xc0] sm:$0xff]
        %v1422 = vld [vmem:[#allocation2 + $0xc8] sm:$0xff]
        %v1423 = vld [vmem:[#allocation2 + $0xd0] sm:$0xff]
        %v1424 = vld [vmem:[#allocation2 + $0xd8] sm:$0xff]
        %v1425 = vld [vmem:[#allocation2 + $0xe0] sm:$0xff]
        %v1426 = vld [vmem:[#allocation2 + $0xe8] sm:$0xff]
        %v1427 = vld [vmem:[#allocation2 + $0xf0] sm:$0xff]
        %v1428 = vld [vmem:[#allocation2 + $0xf8] sm:$0xff]
        %v1429 = vld [vmem:[#allocation2 + $0x100] sm:$0xff]
        %v1430 = vld [vmem:[#allocation2 + $0x108] sm:$0xff]
        %v1431 = vld [vmem:[#allocation2 + $0x110] sm:$0xff]
        %v1432 = vld [vmem:[#allocation2 + $0x118] sm:$0xff]
        %v1433 = vld [vmem:[#allocation2 + $0x120] sm:$0xff]
        %v1434 = vld [vmem:[#allocation2 + $0x128] sm:$0xff]
        %v1435 = vld [vmem:[#allocation2 + $0x130] sm:$0xff]
        %v1436 = vld [vmem:[#allocation2 + $0x138] sm:$0xff]
        %v1437 = vld [vmem:[#allocation2 + $0x140] sm:$0xff]
        %v1438 = vld [vmem:[#allocation2 + $0x148] sm:$0xff]
        %v1439 = vld [vmem:[#allocation2 + $0x150] sm:$0xff]
        %v1440 = vld [vmem:[#allocation2 + $0x158] sm:$0xff]
        %v1441 = vld [vmem:[#allocation2 + $0x160] sm:$0xff]
        %v1442 = vld [vmem:[#allocation2 + $0x168] sm:$0xff]
        %v1443 = vld [vmem:[#allocation2 + $0x170] sm:$0xff]
        %v1444 = vld [vmem:[#allocation2 + $0x178] sm:$0xff]
        %v1445 = vld [vmem:[#allocation2 + $0x180] sm:$0xff]
        %v1446 = vld [vmem:[#allocation2 + $0x188] sm:$0xff]
        %v1447 = vld [vmem:[#allocation2 + $0x190] sm:$0xff]
        %v1448 = vld [vmem:[#allocation2 + $0x198] sm:$0xff]
        %v1449 = vld [vmem:[#allocation2 + $0x1a0] sm:$0xff]
        %v1450 = vld [vmem:[#allocation2 + $0x1a8] sm:$0xff]
        %v1451 = vld [vmem:[#allocation2 + $0x1b0] sm:$0xff]
        %v1452 = vld [vmem:[#allocation2 + $0x1b8] sm:$0xff]
        %v1453 = vld [vmem:[#allocation2 + $0x1c0] sm:$0xff]
        %v1454 = vld [vmem:[#allocation2 + $0x1c8] sm:$0xff]
        %v1455 = vld [vmem:[#allocation2 + $0x1d0] sm:$0xff]
        %v1456 = vld [vmem:[#allocation2 + $0x1d8] sm:$0xff]
        %v1457 = vld [vmem:[#allocation2 + $0x1e0] sm:$0xff]
        %v1458 = vld [vmem:[#allocation2 + $0x1e8] sm:$0xff]
        %v1459 = vld [vmem:[#allocation2 + $0x1f0] sm:$0xff]
        %v1460 = vld [vmem:[#allocation2 + $0x1f8] sm:$0xff]
        %v1461 = vld [vmem:[#allocation2 + $0x200] sm:$0xff]
        %v1462 = vld [vmem:[#allocation2 + $0x208] sm:$0xff]
        %v1463 = vld [vmem:[#allocation2 + $0x210] sm:$0xff]
        %v1464 = vld [vmem:[#allocation2 + $0x218] sm:$0xff]
        %v1465 = vld [vmem:[#allocation2 + $0x220] sm:$0xff]
        %v1466 = vld [vmem:[#allocation2 + $0x228] sm:$0xff]
        %v1467 = vld [vmem:[#allocation2 + $0x230] sm:$0xff]
        %v1468 = vld [vmem:[#allocation2 + $0x238] sm:$0xff]
        %v1469 = vld [vmem:[#allocation2 + $0x240] sm:$0xff]
        %v1470 = vld [vmem:[#allocation2 + $0x248] sm:$0xff]
        %v1471 = vld [vmem:[#allocation2 + $0x250] sm:$0xff]
        %v1472 = vld [vmem:[#allocation2 + $0x258] sm:$0xff]
        %v1473 = vld [vmem:[#allocation2 + $0x260] sm:$0xff]
        %v1474 = vld [vmem:[#allocation2 + $0x268] sm:$0xff]
        %v1475 = vld [vmem:[#allocation2 + $0x270] sm:$0xff]
        %v1476 = vld [vmem:[#allocation2 + $0x278] sm:$0xff]
        %v1477 = vld [vmem:[#allocation2 + $0x280] sm:$0xff]
        %v1478 = vld [vmem:[#allocation2 + $0x288] sm:$0xff]
        %v1479 = vld [vmem:[#allocation2 + $0x290] sm:$0xff]
        %v1480 = vld [vmem:[#allocation2 + $0x298] sm:$0xff]
        %v1481 = vld [vmem:[#allocation2 + $0x2a0] sm:$0xff]
        %v1482 = vld [vmem:[#allocation2 + $0x2a8] sm:$0xff]
        %v1483 = vld [vmem:[#allocation2 + $0x2b0] sm:$0xff]
        %v1484 = vld [vmem:[#allocation2 + $0x2b8] sm:$0xff]
        %v1485 = vld [vmem:[#allocation2 + $0x2c0] sm:$0xff]
        %v1486 = vld [vmem:[#allocation2 + $0x2c8] sm:$0xff]
        %v1487 = vld [vmem:[#allocation2 + $0x2d0] sm:$0xff]
        %v1488 = vld [vmem:[#allocation2 + $0x2d8] sm:$0xff]
        %v1489 = vld [vmem:[#allocation2 + $0x2e0] sm:$0xff]
        %v1490 = vld [vmem:[#allocation2 + $0x2e8] sm:$0xff]
        %v1491 = vld [vmem:[#allocation2 + $0x2f0] sm:$0xff]
        %v1492 = vld [vmem:[#allocation2 + $0x2f8] sm:$0xff]
        %v1493 = vld [vmem:[#allocation2 + $0x300] sm:$0xff]
        %v1494 = vld [vmem:[#allocation2 + $0x308] sm:$0xff]
        %v1495 = vld [vmem:[#allocation2 + $0x310] sm:$0xff]
        %v1496 = vld [vmem:[#allocation2 + $0x318] sm:$0xff]
        %v1497 = vld [vmem:[#allocation2 + $0x320] sm:$0xff]
        %v1498 = vld [vmem:[#allocation2 + $0x328] sm:$0xff]
        %v1499 = vld [vmem:[#allocation2 + $0x330] sm:$0xff]
        %v1500 = vld [vmem:[#allocation2 + $0x338] sm:$0xff]
        %v1501 = vld [vmem:[#allocation2 + $0x340] sm:$0xff]
        %v1502 = vld [vmem:[#allocation2 + $0x348] sm:$0xff]
        %v1503 = vld [vmem:[#allocation2 + $0x350] sm:$0xff]
        %v1504 = vld [vmem:[#allocation2 + $0x358] sm:$0xff]
        %v1505 = vld [vmem:[#allocation2 + $0x360] sm:$0xff]
        %v1506 = vld [vmem:[#allocation2 + $0x368] sm:$0xff]
        %v1507 = vld [vmem:[#allocation2 + $0x370] sm:$0xff]
        %v1508 = vld [vmem:[#allocation2 + $0x378] sm:$0xff]
        %v1509 = vld [vmem:[#allocation2 + $0x380] sm:$0xff]
        %v1510 = vld [vmem:[#allocation2 + $0x388] sm:$0xff]
        %v1511 = vld [vmem:[#allocation2 + $0x390] sm:$0xff]
        %v1512 = vld [vmem:[#allocation2 + $0x398] sm:$0xff]
        %v1513 = vld [vmem:[#allocation2 + $0x3a0] sm:$0xff]
        %v1514 = vld [vmem:[#allocation2 + $0x3a8] sm:$0xff]
        %v1515 = vld [vmem:[#allocation2 + $0x3b0] sm:$0xff]
        %v1516 = vld [vmem:[#allocation2 + $0x3b8] sm:$0xff]
        %v1517 = vld [vmem:[#allocation2 + $0x3c0] sm:$0xff]
        %v1518 = vld [vmem:[#allocation2 + $0x3c8] sm:$0xff]
        %v1519 = vld [vmem:[#allocation2 + $0x3d0] sm:$0xff]
        %v1520 = vld [vmem:[#allocation2 + $0x3d8] sm:$0xff]
        %v1521 = vld [vmem:[#allocation2 + $0x3e0] sm:$0xff]
        %v1522 = vld [vmem:[#allocation2 + $0x3e8] sm:$0xff]
        %v1523 = vld [vmem:[#allocation2 + $0x3f0] sm:$0xff]
        %v1524 = vld [vmem:[#allocation2 + $0x3f8] sm:$0xff]
        %v1525 = vld [vmem:[#allocation2 + $0x400] sm:$0xff]
        %v1526 = vld [vmem:[#allocation2 + $0x408] sm:$0xff]
        %v1527 = vld [vmem:[#allocation2 + $0x410] sm:$0xff]
        %v1528 = vld [vmem:[#allocation2 + $0x418] sm:$0xff]
        %v1529 = vld [vmem:[#allocation2 + $0x420] sm:$0xff]
        %v1530 = vld [vmem:[#allocation2 + $0x428] sm:$0xff]
        %v1531 = vld [vmem:[#allocation2 + $0x430] sm:$0xff]
        %v1532 = vld [vmem:[#allocation2 + $0x438] sm:$0xff]
        %v1533 = vld [vmem:[#allocation2 + $0x440] sm:$0xff]
        %v1534 = vld [vmem:[#allocation2 + $0x448] sm:$0xff]
        %v1535 = vld [vmem:[#allocation2 + $0x450] sm:$0xff]
        %v1536 = vld [vmem:[#allocation2 + $0x458] sm:$0xff]
        %v1537 = vld [vmem:[#allocation2 + $0x460] sm:$0xff]
        %v1538 = vld [vmem:[#allocation2 + $0x468] sm:$0xff]
        %v1539 = vld [vmem:[#allocation2 + $0x470] sm:$0xff]
        %v1540 = vld [vmem:[#allocation2 + $0x478] sm:$0xff]
        %v1541 = vld [vmem:[#allocation2 + $0x480] sm:$0xff]
        %v1542 = vld [vmem:[#allocation2 + $0x488] sm:$0xff]
        %v1543 = vld [vmem:[#allocation2 + $0x490] sm:$0xff]
        %v1544 = vld [vmem:[#allocation2 + $0x498] sm:$0xff]
        %v1545 = vld [vmem:[#allocation2 + $0x4a0] sm:$0xff]
        %v1546 = vld [vmem:[#allocation2 + $0x4a8] sm:$0xff]
        %v1547 = vld [vmem:[#allocation2 + $0x4b0] sm:$0xff]
        %v1548 = vld [vmem:[#allocation2 + $0x4b8] sm:$0xff]
        %v1549 = vld [vmem:[#allocation2 + $0x4c0] sm:$0xff]
        %v1550 = vld [vmem:[#allocation2 + $0x4c8] sm:$0xff]
        %v1551 = vld [vmem:[#allocation2 + $0x4d0] sm:$0xff]
        %v1552 = vld [vmem:[#allocation2 + $0x4d8] sm:$0xff]
        %v1553 = vld [vmem:[#allocation2 + $0x4e0] sm:$0xff]
        %v1554 = vld [vmem:[#allocation2 + $0x4e8] sm:$0xff]
        %v1555 = vld [vmem:[#allocation2 + $0x4f0] sm:$0xff]
        %v1556 = vld [vmem:[#allocation2 + $0x4f8] sm:$0xff]
        %v1557 = vld [vmem:[#allocation2 + $0x500] sm:$0xff]
        %v1558 = vld [vmem:[#allocation2 + $0x508] sm:$0xff]
        %v1559 = vld [vmem:[#allocation2 + $0x510] sm:$0xff]
        %v1560 = vld [vmem:[#allocation2 + $0x518] sm:$0xff]
        %v1561 = vld [vmem:[#allocation2 + $0x520] sm:$0xff]
        %v1562 = vld [vmem:[#allocation2 + $0x528] sm:$0xff]
        %v1563 = vld [vmem:[#allocation2 + $0x530] sm:$0xff]
        %v1564 = vld [vmem:[#allocation2 + $0x538] sm:$0xff]
        %v1565 = vld [vmem:[#allocation2 + $0x540] sm:$0xff]
        %v1566 = vld [vmem:[#allocation2 + $0x548] sm:$0xff]
        %v1567 = vld [vmem:[#allocation2 + $0x550] sm:$0xff]
        %v1568 = vld [vmem:[#allocation2 + $0x558] sm:$0xff]
        %v1569 = vld [vmem:[#allocation2 + $0x560] sm:$0xff]
        %v1570 = vld [vmem:[#allocation2 + $0x568] sm:$0xff]
        %v1571 = vld [vmem:[#allocation2 + $0x570] sm:$0xff]
        %v1572 = vld [vmem:[#allocation2 + $0x578] sm:$0xff]
        %v1573 = vld [vmem:[#allocation2 + $0x580] sm:$0xff]
        %v1574 = vld [vmem:[#allocation2 + $0x588] sm:$0xff]
        %v1575 = vld [vmem:[#allocation2 + $0x590] sm:$0xff]
        %v1576 = vld [vmem:[#allocation2 + $0x598] sm:$0xff]
        %v1577 = vld [vmem:[#allocation2 + $0x5a0] sm:$0xff]
        %v1578 = vld [vmem:[#allocation2 + $0x5a8] sm:$0xff]
        %v1579 = vld [vmem:[#allocation2 + $0x5b0] sm:$0xff]
        %v1580 = vld [vmem:[#allocation2 + $0x5b8] sm:$0xff]
        %v1581 = vld [vmem:[#allocation2 + $0x5c0] sm:$0xff]
        %v1582 = vld [vmem:[#allocation2 + $0x5c8] sm:$0xff]
        %v1583 = vld [vmem:[#allocation2 + $0x5d0] sm:$0xff]
        %v1584 = vld [vmem:[#allocation2 + $0x5d8] sm:$0xff]
        %v1585 = vld [vmem:[#allocation2 + $0x5e0] sm:$0xff]
        %v1586 = vld [vmem:[#allocation2 + $0x5e8] sm:$0xff]
        %v1587 = vld [vmem:[#allocation2 + $0x5f0] sm:$0xff]
        %v1588 = vld [vmem:[#allocation2 + $0x5f8] sm:$0xff]
        %v1589 = vld [vmem:[#allocation2 + $0x600] sm:$0xff]
        %v1590 = vld [vmem:[#allocation2 + $0x608] sm:$0xff]
        %v1591 = vld [vmem:[#allocation2 + $0x610] sm:$0xff]
        %v1592 = vld [vmem:[#allocation2 + $0x618] sm:$0xff]
        %v1593 = vld [vmem:[#allocation2 + $0x620] sm:$0xff]
        %v1594 = vld [vmem:[#allocation2 + $0x628] sm:$0xff]
        %v1595 = vld [vmem:[#allocation2 + $0x630] sm:$0xff]
        %v1596 = vld [vmem:[#allocation2 + $0x638] sm:$0xff]
        %v1597 = vld [vmem:[#allocation2 + $0x640] sm:$0xff]
        %v1598 = vld [vmem:[#allocation2 + $0x648] sm:$0xff]
        %v1599 = vld [vmem:[#allocation2 + $0x650] sm:$0xff]
        %v1600 = vld [vmem:[#allocation2 + $0x658] sm:$0xff]
        %v1601 = vld [vmem:[#allocation2 + $0x660] sm:$0xff]
        %v1602 = vld [vmem:[#allocation2 + $0x668] sm:$0xff]
        %v1603 = vld [vmem:[#allocation2 + $0x670] sm:$0xff]
        %v1604 = vld [vmem:[#allocation2 + $0x678] sm:$0xff]
        %v1605 = vld [vmem:[#allocation2 + $0x680] sm:$0xff]
        %v1606 = vld [vmem:[#allocation2 + $0x688] sm:$0xff]
        %v1607 = vld [vmem:[#allocation2 + $0x690] sm:$0xff]
        %v1608 = vld [vmem:[#allocation2 + $0x698] sm:$0xff]
        %v1609 = vld [vmem:[#allocation2 + $0x6a0] sm:$0xff]
        %v1610 = vld [vmem:[#allocation2 + $0x6a8] sm:$0xff]
        %v1611 = vld [vmem:[#allocation2 + $0x6b0] sm:$0xff]
        %v1612 = vld [vmem:[#allocation2 + $0x6b8] sm:$0xff]
        %v1613 = vld [vmem:[#allocation2 + $0x6c0] sm:$0xff]
        %v1614 = vld [vmem:[#allocation2 + $0x6c8] sm:$0xff]
        %v1615 = vld [vmem:[#allocation2 + $0x6d0] sm:$0xff]
        %v1616 = vld [vmem:[#allocation2 + $0x6d8] sm:$0xff]
        %v1617 = vld [vmem:[#allocation2 + $0x6e0] sm:$0xff]
        %v1618 = vld [vmem:[#allocation2 + $0x6e8] sm:$0xff]
        %v1619 = vld [vmem:[#allocation2 + $0x6f0] sm:$0xff]
        %v1620 = vld [vmem:[#allocation2 + $0x6f8] sm:$0xff]
        %v1621 = vld [vmem:[#allocation2 + $0x700] sm:$0xff]
        %v1622 = vld [vmem:[#allocation2 + $0x708] sm:$0xff]
        %v1623 = vld [vmem:[#allocation2 + $0x710] sm:$0xff]
        %v1624 = vld [vmem:[#allocation2 + $0x718] sm:$0xff]
        %v1625 = vld [vmem:[#allocation2 + $0x720] sm:$0xff]
        %v1626 = vld [vmem:[#allocation2 + $0x728] sm:$0xff]
        %v1627 = vld [vmem:[#allocation2 + $0x730] sm:$0xff]
        %v1628 = vld [vmem:[#allocation2 + $0x738] sm:$0xff]
        %v1629 = vld [vmem:[#allocation2 + $0x740] sm:$0xff]
        %v1630 = vld [vmem:[#allocation2 + $0x748] sm:$0xff]
        %v1631 = vld [vmem:[#allocation2 + $0x750] sm:$0xff]
        %v1632 = vld [vmem:[#allocation2 + $0x758] sm:$0xff]
        %v1633 = vld [vmem:[#allocation2 + $0x760] sm:$0xff]
        %v1634 = vld [vmem:[#allocation2 + $0x768] sm:$0xff]
        %v1635 = vld [vmem:[#allocation2 + $0x770] sm:$0xff]
        %v1636 = vld [vmem:[#allocation2 + $0x778] sm:$0xff]
        %v1637 = vld [vmem:[#allocation2 + $0x780] sm:$0xff]
        %v1638 = vld [vmem:[#allocation2 + $0x788] sm:$0xff]
        %v1639 = vld [vmem:[#allocation2 + $0x790] sm:$0xff]
        %v1640 = vld [vmem:[#allocation2 + $0x798] sm:$0xff]
        %v1641 = vld [vmem:[#allocation2 + $0x7a0] sm:$0xff]
        %v1642 = vld [vmem:[#allocation2 + $0x7a8] sm:$0xff]
        %v1643 = vld [vmem:[#allocation2 + $0x7b0] sm:$0xff]
        %v1644 = vld [vmem:[#allocation2 + $0x7b8] sm:$0xff]
        %v1645 = vld [vmem:[#allocation2 + $0x7c0] sm:$0xff]
        %v1646 = vld [vmem:[#allocation2 + $0x7c8] sm:$0xff]
        %v1647 = vld [vmem:[#allocation2 + $0x7d0] sm:$0xff]
        %v1648 = vld [vmem:[#allocation2 + $0x7d8] sm:$0xff]
        %v1649 = vld [vmem:[#allocation2 + $0x7e0] sm:$0xff]
        %v1650 = vld [vmem:[#allocation2 + $0x7e8] sm:$0xff]
        %v1651 = vld [vmem:[#allocation2 + $0x7f0] sm:$0xff]
        %v1652 = vld [vmem:[#allocation2 + $0x7f8] sm:$0xff]
        %v1653 = vld [vmem:[%s4] sm:$0xf]
        %v1655 = vlaneseq
        %v1656 = vshrl.u32 %v1655, 7
        %v1657 = vsub.s32 0, %v1656
        %v1658 = vrot.slane %v1653, %v1657
        %v1659 = vlaneseq
        %v1660 = vshrl.u32 %v1659, 7
        %v1661 = vsub.s32 1, %v1660
        %v1662 = vrot.slane %v1653, %v1661
        %v1663 = vlaneseq
        %v1664 = vshrl.u32 %v1663, 7
        %v1665 = vsub.s32 2, %v1664
        %v1666 = vrot.slane %v1653, %v1665
        %v1667 = vlaneseq
        %v1668 = vshrl.u32 %v1667, 7
        %v1669 = vsub.s32 3, %v1668
        %v1670 = vrot.slane %v1653, %v1669
        %1675 = vmatprep.subr.mxu0 %v1398
        %1676 = vmatpush1.msra.mxu0 %v1397
        %1677 = vmatprep.subr.mxu0 %v1402
        %1678 = vmatpush1.msra.mxu0 %v1401
        %1679 = vmatprep.subr.mxu0 %v1406
        %1680 = vmatpush1.msra.mxu0 %v1405
        %1681 = vmatprep.subr.mxu0 %v1410
        %1682 = vmatpush1.msra.mxu0 %v1409
        %1683 = vmatprep.subr.mxu0 %v1414
        %1684 = vmatpush1.msra.mxu0 %v1413
        %1685 = vmatprep.subr.mxu0 %v1418
        %1686 = vmatpush1.msra.mxu0 %v1417
        %1687 = vmatprep.subr.mxu0 %v1422
        %1688 = vmatpush1.msra.mxu0 %v1421
        %1689 = vmatprep.subr.mxu0 %v1426
        %1690 = vmatpush1.msra.mxu0 %v1425
        %1691 = vmatprep.subr.mxu0 %v1430
        %1692 = vmatpush1.msra.mxu0 %v1429
        %1693 = vmatprep.subr.mxu0 %v1434
        %1694 = vmatpush1.msra.mxu0 %v1433
        %1695 = vmatprep.subr.mxu0 %v1438
        %1696 = vmatpush1.msra.mxu0 %v1437
        %1697 = vmatprep.subr.mxu0 %v1442
        %1698 = vmatpush1.msra.mxu0 %v1441
        %1699 = vmatprep.subr.mxu0 %v1446
        %1700 = vmatpush1.msra.mxu0 %v1445
        %1701 = vmatprep.subr.mxu0 %v1450
        %1702 = vmatpush1.msra.mxu0 %v1449
        %1703 = vmatprep.subr.mxu0 %v1454
        %1704 = vmatpush1.msra.mxu0 %v1453
        %1705 = vmatprep.subr.mxu0 %v1458
        %1706 = vmatpush1.msra.mxu0 %v1457
        %1707 = vmatprep.subr.mxu0 %v1462
        %1708 = vmatpush1.msra.mxu0 %v1461
        %1709 = vmatprep.subr.mxu0 %v1466
        %1710 = vmatpush1.msra.mxu0 %v1465
        %1711 = vmatprep.subr.mxu0 %v1470
        %1712 = vmatpush1.msra.mxu0 %v1469
        %1713 = vmatprep.subr.mxu0 %v1474
        %1714 = vmatpush1.msra.mxu0 %v1473
        %1715 = vmatprep.subr.mxu0 %v1478
        %1716 = vmatpush1.msra.mxu0 %v1477
        %1717 = vmatprep.subr.mxu0 %v1482
        %1718 = vmatpush1.msra.mxu0 %v1481
        %1719 = vmatprep.subr.mxu0 %v1486
        %1720 = vmatpush1.msra.mxu0 %v1485
        %1721 = vmatprep.subr.mxu0 %v1490
        %1722 = vmatpush1.msra.mxu0 %v1489
        %1723 = vmatprep.subr.mxu0 %v1494
        %1724 = vmatpush1.msra.mxu0 %v1493
        %1725 = vmatprep.subr.mxu0 %v1498
        %1726 = vmatpush1.msra.mxu0 %v1497
        %1727 = vmatprep.subr.mxu0 %v1502
        %1728 = vmatpush1.msra.mxu0 %v1501
        %1729 = vmatprep.subr.mxu0 %v1506
        %1730 = vmatpush1.msra.mxu0 %v1505
        %1731 = vmatprep.subr.mxu0 %v1510
        %1732 = vmatpush1.msra.mxu0 %v1509
        %1733 = vmatprep.subr.mxu0 %v1514
        %1734 = vmatpush1.msra.mxu0 %v1513
        %1735 = vmatprep.subr.mxu0 %v1518
        %1736 = vmatpush1.msra.mxu0 %v1517
        %1737 = vmatprep.subr.mxu0 %v1522
        %1738 = vmatpush1.msra.mxu0 %v1521
        %1739 = vmatprep.mubr.f32.mxu0 %v1246
        %1740 = vmatmul.mubr.f32.gmra.mrb[0].mxu0 %v1245
        %v1741 = vpop.f32.mrb[0].mxu0
        %v1742 = vadd.f32 %v1658, %v1741
        %v1743 = vpop.f32.mrb[0].mxu0
        %v1744 = vadd.f32 %v1662, %v1743
        %1745 = vmatprep.mubr.f32.mxu0 %v1254
        %1746 = vmatmul.mubr.f32.gmra.mrb[0].mxu0 %v1253
        %v1747 = vpop.f32.mrb[0].mxu0
        %v1748 = vadd.f32 %v1658, %v1747
        %v1749 = vpop.f32.mrb[0].mxu0
        %v1750 = vadd.f32 %v1662, %v1749
        %1751 = vmatprep.mubr.f32.mxu0 %v1262
        %1752 = vmatmul.mubr.f32.gmra.mrb[0].mxu0 %v1261
        %v1753 = vpop.f32.mrb[0].mxu0
        %v1754 = vadd.f32 %v1658, %v1753
        %v1755 = vpop.f32.mrb[0].mxu0
        %v1756 = vadd.f32 %v1662, %v1755
        %1757 = vmatprep.mubr.f32.mxu0 %v1270
        %1758 = vmatmul.mubr.f32.gmra.mrb[0].mxu0 %v1269
        %v1759 = vpop.f32.mrb[0].mxu0
        %v1760 = vadd.f32 %v1658, %v1759
        %v1761 = vpop.f32.mrb[0].mxu0
        %v1762 = vadd.f32 %v1662, %v1761
        %1763 = vmatprep.mubr.f32.mxu0 %v1278
        %1764 = vmatmul.mubr.f32.gmra.mrb[0].mxu0 %v1277
        %v1765 = vpop.f32.mrb[0].mxu0
        %v1766 = vadd.f32 %v1658, %v1765
        %v1767 = vpop.f32.mrb[0].mxu0
        %v1768 = vadd.f32 %v1662, %v1767
        %1769 = vmatprep.mubr.f32.mxu0 %v1286
        %1770 = vmatmul.mubr.f32.gmra.mrb[0].mxu0 %v1285
        %v1771 = vpop.f32.mrb[0].mxu0
        %v1772 = vadd.f32 %v1658, %v1771
        %v1773 = vpop.f32.mrb[0].mxu0
        %v1774 = vadd.f32 %v1662, %v1773
        %1775 = vmatprep.mubr.f32.mxu0 %v1294
        %1776 = vmatmul.mubr.f32.gmra.mrb[0].mxu0 %v1293
        %v1777 = vpop.f32.mrb[0].mxu0
        %v1778 = vadd.f32 %v1658, %v1777
        %v1779 = vpop.f32.mrb[0].mxu0
        %v1780 = vadd.f32 %v1662, %v1779
        %1781 = vmatprep.mubr.f32.mxu0 %v1302
        %1782 = vmatmul.mubr.f32.gmra.mrb[0].mxu0 %v1301
        %v1783 = vpop.f32.mrb[0].mxu0
        %v1784 = vadd.f32 %v1658, %v1783
        %v1785 = vpop.f32.mrb[0].mxu0
        %v1786 = vadd.f32 %v1662, %v1785
        %1787 = vmatprep.mubr.f32.mxu0 %v1310
        %1788 = vmatmul.mubr.f32.gmra.mrb[0].mxu0 %v1309
        %v1789 = vpop.f32.mrb[0].mxu0
        %v1790 = vadd.f32 %v1658, %v1789
        %v1791 = vpop.f32.mrb[0].mxu0
        %v1792 = vadd.f32 %v1662, %v1791
        %1793 = vmatprep.mubr.f32.mxu0 %v1318
        %1794 = vmatmul.mubr.f32.gmra.mrb[0].mxu0 %v1317
        %v1795 = vpop.f32.mrb[0].mxu0
        %v1796 = vadd.f32 %v1658, %v1795
        %v1797 = vpop.f32.mrb[0].mxu0
        %v1798 = vadd.f32 %v1662, %v1797
        %1799 = vmatprep.mubr.f32.mxu0 %v1326
        %1800 = vmatmul.mubr.f32.gmra.mrb[0].mxu0 %v1325
        %v1801 = vpop.f32.mrb[0].mxu0
        %v1802 = vadd.f32 %v1658, %v1801
        %v1803 = vpop.f32.mrb[0].mxu0
        %v1804 = vadd.f32 %v1662, %v1803
        %1805 = vmatprep.mubr.f32.mxu0 %v1334
        %1806 = vmatmul.mubr.f32.gmra.mrb[0].mxu0 %v1333
        %v1807 = vpop.f32.mrb[0].mxu0
        %v1808 = vadd.f32 %v1658, %v1807
        %v1809 = vpop.f32.mrb[0].mxu0
        %v1810 = vadd.f32 %v1662, %v1809
        %1811 = vmatprep.mubr.f32.mxu0 %v1342
        %1812 = vmatmul.mubr.f32.gmra.mrb[0].mxu0 %v1341
        %v1813 = vpop.f32.mrb[0].mxu0
        %v1814 = vadd.f32 %v1658, %v1813
        %v1815 = vpop.f32.mrb[0].mxu0
        %v1816 = vadd.f32 %v1662, %v1815
        %1817 = vmatprep.mubr.f32.mxu0 %v1350
        %1818 = vmatmul.mubr.f32.gmra.mrb[0].mxu0 %v1349
        %v1819 = vpop.f32.mrb[0].mxu0
        %v1820 = vadd.f32 %v1658, %v1819
        %v1821 = vpop.f32.mrb[0].mxu0
        %v1822 = vadd.f32 %v1662, %v1821
        %1823 = vmatprep.mubr.f32.mxu0 %v1358
        %1824 = vmatmul.mubr.f32.gmra.mrb[0].mxu0 %v1357
        %v1825 = vpop.f32.mrb[0].mxu0
        %v1826 = vadd.f32 %v1658, %v1825
        %v1827 = vpop.f32.mrb[0].mxu0
        %v1828 = vadd.f32 %v1662, %v1827
        %1829 = vmatprep.mubr.f32.mxu0 %v1366
        %1830 = vmatmul.mubr.f32.gmra.mrb[0].mxu0 %v1365
        %v1831 = vpop.f32.mrb[0].mxu0
        %v1832 = vadd.f32 %v1658, %v1831
        %v1833 = vpop.f32.mrb[0].mxu0
        %v1834 = vadd.f32 %v1662, %v1833
        %1835 = vmatprep.mubr.f32.mxu0 %v1374
        %1836 = vmatmul.mubr.f32.gmra.mrb[0].mxu0 %v1373
        %v1837 = vpop.f32.mrb[0].mxu0
        %v1838 = vadd.f32 %v1658, %v1837
        %v1839 = vpop.f32.mrb[0].mxu0
        %v1840 = vadd.f32 %v1662, %v1839
        %1841 = vmatprep.mubr.f32.mxu0 %v1382
        %1842 = vmatmul.mubr.f32.gmra.mrb[0].mxu0 %v1381
        %v1843 = vpop.f32.mrb[0].mxu0
        %v1844 = vadd.f32 %v1658, %v1843
        %v1845 = vpop.f32.mrb[0].mxu0
        %v1846 = vadd.f32 %v1662, %v1845
        %1847 = vmatprep.mubr.f32.mxu0 %v1390
        %1848 = vmatmul.mubr.f32.gmra.mrb[0].mxu0 %v1389
        %v1849 = vpop.f32.mrb[0].mxu0
        %v1850 = vadd.f32 %v1658, %v1849
        %v1851 = vpop.f32.mrb[0].mxu0
        %v1852 = vadd.f32 %v1662, %v1851
        %1853 = vdwg.mxu0
        %1854 = vmatprep.subr.mxu0 %v1526
        %1855 = vmatpush1.msra.mxu0 %v1525
        %1856 = vmatprep.subr.mxu0 %v1530
        %1857 = vmatpush1.msra.mxu0 %v1529
        %1858 = vmatprep.subr.mxu0 %v1534
        %1859 = vmatpush1.msra.mxu0 %v1533
        %1860 = vmatprep.subr.mxu0 %v1538
        %1861 = vmatpush1.msra.mxu0 %v1537
        %1862 = vmatprep.subr.mxu0 %v1542
        %1863 = vmatpush1.msra.mxu0 %v1541
        %1864 = vmatprep.subr.mxu0 %v1546
        %1865 = vmatpush1.msra.mxu0 %v1545
        %1866 = vmatprep.subr.mxu0 %v1550
        %1867 = vmatpush1.msra.mxu0 %v1549
        %1868 = vmatprep.subr.mxu0 %v1554
        %1869 = vmatpush1.msra.mxu0 %v1553
        %1870 = vmatprep.subr.mxu0 %v1558
        %1871 = vmatpush1.msra.mxu0 %v1557
        %1872 = vmatprep.subr.mxu0 %v1562
        %1873 = vmatpush1.msra.mxu0 %v1561
        %1874 = vmatprep.subr.mxu0 %v1566
        %1875 = vmatpush1.msra.mxu0 %v1565
        %1876 = vmatprep.subr.mxu0 %v1570
        %1877 = vmatpush1.msra.mxu0 %v1569
        %1878 = vmatprep.subr.mxu0 %v1574
        %1879 = vmatpush1.msra.mxu0 %v1573
        %1880 = vmatprep.subr.mxu0 %v1578
        %1881 = vmatpush1.msra.mxu0 %v1577
        %1882 = vmatprep.subr.mxu0 %v1582
        %1883 = vmatpush1.msra.mxu0 %v1581
        %1884 = vmatprep.subr.mxu0 %v1586
        %1885 = vmatpush1.msra.mxu0 %v1585
        %1886 = vmatprep.subr.mxu0 %v1590
        %1887 = vmatpush1.msra.mxu0 %v1589
        %1888 = vmatprep.subr.mxu0 %v1594
        %1889 = vmatpush1.msra.mxu0 %v1593
        %1890 = vmatprep.subr.mxu0 %v1598
        %1891 = vmatpush1.msra.mxu0 %v1597
        %1892 = vmatprep.subr.mxu0 %v1602
        %1893 = vmatpush1.msra.mxu0 %v1601
        %1894 = vmatprep.subr.mxu0 %v1606
        %1895 = vmatpush1.msra.mxu0 %v1605
        %1896 = vmatprep.subr.mxu0 %v1610
        %1897 = vmatpush1.msra.mxu0 %v1609
        %1898 = vmatprep.subr.mxu0 %v1614
        %1899 = vmatpush1.msra.mxu0 %v1613
        %1900 = vmatprep.subr.mxu0 %v1618
        %1901 = vmatpush1.msra.mxu0 %v1617
        %1902 = vmatprep.subr.mxu0 %v1622
        %1903 = vmatpush1.msra.mxu0 %v1621
        %1904 = vmatprep.subr.mxu0 %v1626
        %1905 = vmatpush1.msra.mxu0 %v1625
        %1906 = vmatprep.subr.mxu0 %v1630
        %1907 = vmatpush1.msra.mxu0 %v1629
        %1908 = vmatprep.subr.mxu0 %v1634
        %1909 = vmatpush1.msra.mxu0 %v1633
        %1910 = vmatprep.subr.mxu0 %v1638
        %1911 = vmatpush1.msra.mxu0 %v1637
        %1912 = vmatprep.subr.mxu0 %v1642
        %1913 = vmatpush1.msra.mxu0 %v1641
        %1914 = vmatprep.subr.mxu0 %v1646
        %1915 = vmatpush1.msra.mxu0 %v1645
        %1916 = vmatprep.subr.mxu0 %v1650
        %1917 = vmatpush1.msra.mxu0 %v1649
        %1918 = vmatprep.mubr.f32.mxu0 %v1248
        %1919 = vmatmul.mubr.f32.gmra.mrb[0].mxu0 %v1247
        %v1920 = vpop.f32.mrb[0].mxu0
        %v1921 = vadd.f32 %v1742, %v1920
        %v1922 = vpop.f32.mrb[0].mxu0
        %v1923 = vadd.f32 %v1744, %v1922
        %1924 = vmatprep.mubr.f32.mxu0 %v1256
        %1925 = vmatmul.mubr.f32.gmra.mrb[0].mxu0 %v1255
        %v1926 = vpop.f32.mrb[0].mxu0
        %v1927 = vadd.f32 %v1748, %v1926
        %v1928 = vpop.f32.mrb[0].mxu0
        %v1929 = vadd.f32 %v1750, %v1928
        %1930 = vmatprep.mubr.f32.mxu0 %v1264
        %1931 = vmatmul.mubr.f32.gmra.mrb[0].mxu0 %v1263
        %v1932 = vpop.f32.mrb[0].mxu0
        %v1933 = vadd.f32 %v1754, %v1932
        %v1934 = vpop.f32.mrb[0].mxu0
        %v1935 = vadd.f32 %v1756, %v1934
        %1936 = vmatprep.mubr.f32.mxu0 %v1272
        %1937 = vmatmul.mubr.f32.gmra.mrb[0].mxu0 %v1271
        %v1938 = vpop.f32.mrb[0].mxu0
        %v1939 = vadd.f32 %v1760, %v1938
        %v1940 = vpop.f32.mrb[0].mxu0
        %v1941 = vadd.f32 %v1762, %v1940
        %1942 = vmatprep.mubr.f32.mxu0 %v1280
        %1943 = vmatmul.mubr.f32.gmra.mrb[0].mxu0 %v1279
        %v1944 = vpop.f32.mrb[0].mxu0
        %v1945 = vadd.f32 %v1766, %v1944
        %v1946 = vpop.f32.mrb[0].mxu0
        %v1947 = vadd.f32 %v1768, %v1946
        %1948 = vmatprep.mubr.f32.mxu0 %v1288
        %1949 = vmatmul.mubr.f32.gmra.mrb[0].mxu0 %v1287
        %v1950 = vpop.f32.mrb[0].mxu0
        %v1951 = vadd.f32 %v1772, %v1950
        %v1952 = vpop.f32.mrb[0].mxu0
        %v1953 = vadd.f32 %v1774, %v1952
        %1954 = vmatprep.mubr.f32.mxu0 %v1296
        %1955 = vmatmul.mubr.f32.gmra.mrb[0].mxu0 %v1295
        %v1956 = vpop.f32.mrb[0].mxu0
        %v1957 = vadd.f32 %v1778, %v1956
        %v1958 = vpop.f32.mrb[0].mxu0
        %v1959 = vadd.f32 %v1780, %v1958
        %1960 = vmatprep.mubr.f32.mxu0 %v1304
        %1961 = vmatmul.mubr.f32.gmra.mrb[0].mxu0 %v1303
        %v1962 = vpop.f32.mrb[0].mxu0
        %v1963 = vadd.f32 %v1784, %v1962
        %v1964 = vpop.f32.mrb[0].mxu0
        %v1965 = vadd.f32 %v1786, %v1964
        %1966 = vmatprep.mubr.f32.mxu0 %v1312
        %1967 = vmatmul.mubr.f32.gmra.mrb[0].mxu0 %v1311
        %v1968 = vpop.f32.mrb[0].mxu0
        %v1969 = vadd.f32 %v1790, %v1968
        %v1970 = vpop.f32.mrb[0].mxu0
        %v1971 = vadd.f32 %v1792, %v1970
        %1972 = vmatprep.mubr.f32.mxu0 %v1320
        %1973 = vmatmul.mubr.f32.gmra.mrb[0].mxu0 %v1319
        %v1974 = vpop.f32.mrb[0].mxu0
        %v1975 = vadd.f32 %v1796, %v1974
        %v1976 = vpop.f32.mrb[0].mxu0
        %v1977 = vadd.f32 %v1798, %v1976
        %1978 = vmatprep.mubr.f32.mxu0 %v1328
        %1979 = vmatmul.mubr.f32.gmra.mrb[0].mxu0 %v1327
        %v1980 = vpop.f32.mrb[0].mxu0
        %v1981 = vadd.f32 %v1802, %v1980
        %v1982 = vpop.f32.mrb[0].mxu0
        %v1983 = vadd.f32 %v1804, %v1982
        %1984 = vmatprep.mubr.f32.mxu0 %v1336
        %1985 = vmatmul.mubr.f32.gmra.mrb[0].mxu0 %v1335
        %v1986 = vpop.f32.mrb[0].mxu0
        %v1987 = vadd.f32 %v1808, %v1986
        %v1988 = vpop.f32.mrb[0].mxu0
        %v1989 = vadd.f32 %v1810, %v1988
        %1990 = vmatprep.mubr.f32.mxu0 %v1344
        %1991 = vmatmul.mubr.f32.gmra.mrb[0].mxu0 %v1343
        %v1992 = vpop.f32.mrb[0].mxu0
        %v1993 = vadd.f32 %v1814, %v1992
        %v1994 = vpop.f32.mrb[0].mxu0
        %v1995 = vadd.f32 %v1816, %v1994
        %1996 = vmatprep.mubr.f32.mxu0 %v1352
        %1997 = vmatmul.mubr.f32.gmra.mrb[0].mxu0 %v1351
        %v1998 = vpop.f32.mrb[0].mxu0
        %v1999 = vadd.f32 %v1820, %v1998
        %v2000 = vpop.f32.mrb[0].mxu0
        %v2001 = vadd.f32 %v1822, %v2000
        %2002 = vmatprep.mubr.f32.mxu0 %v1360
        %2003 = vmatmul.mubr.f32.gmra.mrb[0].mxu0 %v1359
        %v2004 = vpop.f32.mrb[0].mxu0
        %v2005 = vadd.f32 %v1826, %v2004
        %v2006 = vpop.f32.mrb[0].mxu0
        %v2007 = vadd.f32 %v1828, %v2006
        %2008 = vmatprep.mubr.f32.mxu0 %v1368
        %2009 = vmatmul.mubr.f32.gmra.mrb[0].mxu0 %v1367
        %v2010 = vpop.f32.mrb[0].mxu0
        %v2011 = vadd.f32 %v1832, %v2010
        %v2012 = vpop.f32.mrb[0].mxu0
        %v2013 = vadd.f32 %v1834, %v2012
        %2014 = vmatprep.mubr.f32.mxu0 %v1376
        %2015 = vmatmul.mubr.f32.gmra.mrb[0].mxu0 %v1375
        %v2016 = vpop.f32.mrb[0].mxu0
        %v2017 = vadd.f32 %v1838, %v2016
        %v2018 = vpop.f32.mrb[0].mxu0
        %v2019 = vadd.f32 %v1840, %v2018
        %2020 = vmatprep.mubr.f32.mxu0 %v1384
        %2021 = vmatmul.mubr.f32.gmra.mrb[0].mxu0 %v1383
        %v2022 = vpop.f32.mrb[0].mxu0
        %v2023 = vadd.f32 %v1844, %v2022
        %v2024 = vpop.f32.mrb[0].mxu0
        %v2025 = vadd.f32 %v1846, %v2024
        %2026 = vmatprep.mubr.f32.mxu0 %v1392
        %2027 = vmatmul.mubr.f32.gmra.mrb[0].mxu0 %v1391
        %v2028 = vpop.f32.mrb[0].mxu0
        %v2029 = vadd.f32 %v1850, %v2028
        %v2030 = vpop.f32.mrb[0].mxu0
        %v2031 = vadd.f32 %v1852, %v2030
        %2032 = vdwg.mxu0
        %2033 = vmatprep.subr.mxu0 %v1400
        %2034 = vmatpush1.msra.mxu0 %v1399
        %2035 = vmatprep.subr.mxu0 %v1404
        %2036 = vmatpush1.msra.mxu0 %v1403
        %2037 = vmatprep.subr.mxu0 %v1408
        %2038 = vmatpush1.msra.mxu0 %v1407
        %2039 = vmatprep.subr.mxu0 %v1412
        %2040 = vmatpush1.msra.mxu0 %v1411
        %2041 = vmatprep.subr.mxu0 %v1416
        %2042 = vmatpush1.msra.mxu0 %v1415
        %2043 = vmatprep.subr.mxu0 %v1420
        %2044 = vmatpush1.msra.mxu0 %v1419
        %2045 = vmatprep.subr.mxu0 %v1424
        %2046 = vmatpush1.msra.mxu0 %v1423
        %2047 = vmatprep.subr.mxu0 %v1428
        %2048 = vmatpush1.msra.mxu0 %v1427
        %2049 = vmatprep.subr.mxu0 %v1432
        %2050 = vmatpush1.msra.mxu0 %v1431
        %2051 = vmatprep.subr.mxu0 %v1436
        %2052 = vmatpush1.msra.mxu0 %v1435
        %2053 = vmatprep.subr.mxu0 %v1440
        %2054 = vmatpush1.msra.mxu0 %v1439
        %2055 = vmatprep.subr.mxu0 %v1444
        %2056 = vmatpush1.msra.mxu0 %v1443
        %2057 = vmatprep.subr.mxu0 %v1448
        %2058 = vmatpush1.msra.mxu0 %v1447
        %2059 = vmatprep.subr.mxu0 %v1452
        %2060 = vmatpush1.msra.mxu0 %v1451
        %2061 = vmatprep.subr.mxu0 %v1456
        %2062 = vmatpush1.msra.mxu0 %v1455
        %2063 = vmatprep.subr.mxu0 %v1460
        %2064 = vmatpush1.msra.mxu0 %v1459
        %2065 = vmatprep.subr.mxu0 %v1464
        %2066 = vmatpush1.msra.mxu0 %v1463
        %2067 = vmatprep.subr.mxu0 %v1468
        %2068 = vmatpush1.msra.mxu0 %v1467
        %2069 = vmatprep.subr.mxu0 %v1472
        %2070 = vmatpush1.msra.mxu0 %v1471
        %2071 = vmatprep.subr.mxu0 %v1476
        %2072 = vmatpush1.msra.mxu0 %v1475
        %2073 = vmatprep.subr.mxu0 %v1480
        %2074 = vmatpush1.msra.mxu0 %v1479
        %2075 = vmatprep.subr.mxu0 %v1484
        %2076 = vmatpush1.msra.mxu0 %v1483
        %2077 = vmatprep.subr.mxu0 %v1488
        %2078 = vmatpush1.msra.mxu0 %v1487
        %2079 = vmatprep.subr.mxu0 %v1492
        %2080 = vmatpush1.msra.mxu0 %v1491
        %2081 = vmatprep.subr.mxu0 %v1496
        %2082 = vmatpush1.msra.mxu0 %v1495
        %2083 = vmatprep.subr.mxu0 %v1500
        %2084 = vmatpush1.msra.mxu0 %v1499
        %2085 = vmatprep.subr.mxu0 %v1504
        %2086 = vmatpush1.msra.mxu0 %v1503
        %2087 = vmatprep.subr.mxu0 %v1508
        %2088 = vmatpush1.msra.mxu0 %v1507
        %2089 = vmatprep.subr.mxu0 %v1512
        %2090 = vmatpush1.msra.mxu0 %v1511
        %2091 = vmatprep.subr.mxu0 %v1516
        %2092 = vmatpush1.msra.mxu0 %v1515
        %2093 = vmatprep.subr.mxu0 %v1520
        %2094 = vmatpush1.msra.mxu0 %v1519
        %2095 = vmatprep.subr.mxu0 %v1524
        %2096 = vmatpush1.msra.mxu0 %v1523
        %2097 = vmatprep.mubr.f32.mxu0 %v1246
        %2098 = vmatmul.mubr.f32.gmra.mrb[0].mxu0 %v1245
        %v2099 = vpop.f32.mrb[0].mxu0
        %v2100 = vadd.f32 %v1666, %v2099
        %v2101 = vpop.f32.mrb[0].mxu0
        %v2102 = vadd.f32 %v1670, %v2101
        %2103 = vmatprep.mubr.f32.mxu0 %v1254
        %2104 = vmatmul.mubr.f32.gmra.mrb[0].mxu0 %v1253
        %v2105 = vpop.f32.mrb[0].mxu0
        %v2106 = vadd.f32 %v1666, %v2105
        %v2107 = vpop.f32.mrb[0].mxu0
        %v2108 = vadd.f32 %v1670, %v2107
        %2109 = vmatprep.mubr.f32.mxu0 %v1262
        %2110 = vmatmul.mubr.f32.gmra.mrb[0].mxu0 %v1261
        %v2111 = vpop.f32.mrb[0].mxu0
        %v2112 = vadd.f32 %v1666, %v2111
        %v2113 = vpop.f32.mrb[0].mxu0
        %v2114 = vadd.f32 %v1670, %v2113
        %2115 = vmatprep.mubr.f32.mxu0 %v1270
        %2116 = vmatmul.mubr.f32.gmra.mrb[0].mxu0 %v1269
        %v2117 = vpop.f32.mrb[0].mxu0
        %v2118 = vadd.f32 %v1666, %v2117
        %v2119 = vpop.f32.mrb[0].mxu0
        %v2120 = vadd.f32 %v1670, %v2119
        %2121 = vmatprep.mubr.f32.mxu0 %v1278
        %2122 = vmatmul.mubr.f32.gmra.mrb[0].mxu0 %v1277
        %v2123 = vpop.f32.mrb[0].mxu0
        %v2124 = vadd.f32 %v1666, %v2123
        %v2125 = vpop.f32.mrb[0].mxu0
        %v2126 = vadd.f32 %v1670, %v2125
        %2127 = vmatprep.mubr.f32.mxu0 %v1286
        %2128 = vmatmul.mubr.f32.gmra.mrb[0].mxu0 %v1285
        %v2129 = vpop.f32.mrb[0].mxu0
        %v2130 = vadd.f32 %v1666, %v2129
        %v2131 = vpop.f32.mrb[0].mxu0
        %v2132 = vadd.f32 %v1670, %v2131
        %2133 = vmatprep.mubr.f32.mxu0 %v1294
        %2134 = vmatmul.mubr.f32.gmra.mrb[0].mxu0 %v1293
        %v2135 = vpop.f32.mrb[0].mxu0
        %v2136 = vadd.f32 %v1666, %v2135
        %v2137 = vpop.f32.mrb[0].mxu0
        %v2138 = vadd.f32 %v1670, %v2137
        %2139 = vmatprep.mubr.f32.mxu0 %v1302
        %2140 = vmatmul.mubr.f32.gmra.mrb[0].mxu0 %v1301
        %v2141 = vpop.f32.mrb[0].mxu0
        %v2142 = vadd.f32 %v1666, %v2141
        %v2143 = vpop.f32.mrb[0].mxu0
        %v2144 = vadd.f32 %v1670, %v2143
        %2145 = vmatprep.mubr.f32.mxu0 %v1310
        %2146 = vmatmul.mubr.f32.gmra.mrb[0].mxu0 %v1309
        %v2147 = vpop.f32.mrb[0].mxu0
        %v2148 = vadd.f32 %v1666, %v2147
        %v2149 = vpop.f32.mrb[0].mxu0
        %v2150 = vadd.f32 %v1670, %v2149
        %2151 = vmatprep.mubr.f32.mxu0 %v1318
        %2152 = vmatmul.mubr.f32.gmra.mrb[0].mxu0 %v1317
        %v2153 = vpop.f32.mrb[0].mxu0
        %v2154 = vadd.f32 %v1666, %v2153
        %v2155 = vpop.f32.mrb[0].mxu0
        %v2156 = vadd.f32 %v1670, %v2155
        %2157 = vmatprep.mubr.f32.mxu0 %v1326
        %2158 = vmatmul.mubr.f32.gmra.mrb[0].mxu0 %v1325
        %v2159 = vpop.f32.mrb[0].mxu0
        %v2160 = vadd.f32 %v1666, %v2159
        %v2161 = vpop.f32.mrb[0].mxu0
        %v2162 = vadd.f32 %v1670, %v2161
        %2163 = vmatprep.mubr.f32.mxu0 %v1334
        %2164 = vmatmul.mubr.f32.gmra.mrb[0].mxu0 %v1333
        %v2165 = vpop.f32.mrb[0].mxu0
        %v2166 = vadd.f32 %v1666, %v2165
        %v2167 = vpop.f32.mrb[0].mxu0
        %v2168 = vadd.f32 %v1670, %v2167
        %2169 = vmatprep.mubr.f32.mxu0 %v1342
        %2170 = vmatmul.mubr.f32.gmra.mrb[0].mxu0 %v1341
        %v2171 = vpop.f32.mrb[0].mxu0
        %v2172 = vadd.f32 %v1666, %v2171
        %v2173 = vpop.f32.mrb[0].mxu0
        %v2174 = vadd.f32 %v1670, %v2173
        %2175 = vmatprep.mubr.f32.mxu0 %v1350
        %2176 = vmatmul.mubr.f32.gmra.mrb[0].mxu0 %v1349
        %v2177 = vpop.f32.mrb[0].mxu0
        %v2178 = vadd.f32 %v1666, %v2177
        %v2179 = vpop.f32.mrb[0].mxu0
        %v2180 = vadd.f32 %v1670, %v2179
        %2181 = vmatprep.mubr.f32.mxu0 %v1358
        %2182 = vmatmul.mubr.f32.gmra.mrb[0].mxu0 %v1357
        %v2183 = vpop.f32.mrb[0].mxu0
        %v2184 = vadd.f32 %v1666, %v2183
        %v2185 = vpop.f32.mrb[0].mxu0
        %v2186 = vadd.f32 %v1670, %v2185
        %2187 = vmatprep.mubr.f32.mxu0 %v1366
        %2188 = vmatmul.mubr.f32.gmra.mrb[0].mxu0 %v1365
        %v2189 = vpop.f32.mrb[0].mxu0
        %v2190 = vadd.f32 %v1666, %v2189
        %v2191 = vpop.f32.mrb[0].mxu0
        %v2192 = vadd.f32 %v1670, %v2191
        %2193 = vmatprep.mubr.f32.mxu0 %v1374
        %2194 = vmatmul.mubr.f32.gmra.mrb[0].mxu0 %v1373
        %v2195 = vpop.f32.mrb[0].mxu0
        %v2196 = vadd.f32 %v1666, %v2195
        %v2197 = vpop.f32.mrb[0].mxu0
        %v2198 = vadd.f32 %v1670, %v2197
        %2199 = vmatprep.mubr.f32.mxu0 %v1382
        %2200 = vmatmul.mubr.f32.gmra.mrb[0].mxu0 %v1381
        %v2201 = vpop.f32.mrb[0].mxu0
        %v2202 = vadd.f32 %v1666, %v2201
        %v2203 = vpop.f32.mrb[0].mxu0
        %v2204 = vadd.f32 %v1670, %v2203
        %2205 = vmatprep.mubr.f32.mxu0 %v1390
        %2206 = vmatmul.mubr.f32.gmra.mrb[0].mxu0 %v1389
        %v2207 = vpop.f32.mrb[0].mxu0
        %v2208 = vadd.f32 %v1666, %v2207
        %v2209 = vpop.f32.mrb[0].mxu0
        %v2210 = vadd.f32 %v1670, %v2209
        %2211 = vdwg.mxu0
        %2212 = vmatprep.subr.mxu0 %v1528
        %2213 = vmatpush1.msra.mxu0 %v1527
        %2214 = vmatprep.subr.mxu0 %v1532
        %2215 = vmatpush1.msra.mxu0 %v1531
        %2216 = vmatprep.subr.mxu0 %v1536
        %2217 = vmatpush1.msra.mxu0 %v1535
        %2218 = vmatprep.subr.mxu0 %v1540
        %2219 = vmatpush1.msra.mxu0 %v1539
        %2220 = vmatprep.subr.mxu0 %v1544
        %2221 = vmatpush1.msra.mxu0 %v1543
        %2222 = vmatprep.subr.mxu0 %v1548
        %2223 = vmatpush1.msra.mxu0 %v1547
        %2224 = vmatprep.subr.mxu0 %v1552
        %2225 = vmatpush1.msra.mxu0 %v1551
        %2226 = vmatprep.subr.mxu0 %v1556
        %2227 = vmatpush1.msra.mxu0 %v1555
        %2228 = vmatprep.subr.mxu0 %v1560
        %2229 = vmatpush1.msra.mxu0 %v1559
        %2230 = vmatprep.subr.mxu0 %v1564
        %2231 = vmatpush1.msra.mxu0 %v1563
        %2232 = vmatprep.subr.mxu0 %v1568
        %2233 = vmatpush1.msra.mxu0 %v1567
        %2234 = vmatprep.subr.mxu0 %v1572
        %2235 = vmatpush1.msra.mxu0 %v1571
        %2236 = vmatprep.subr.mxu0 %v1576
        %2237 = vmatpush1.msra.mxu0 %v1575
        %2238 = vmatprep.subr.mxu0 %v1580
        %2239 = vmatpush1.msra.mxu0 %v1579
        %2240 = vmatprep.subr.mxu0 %v1584
        %2241 = vmatpush1.msra.mxu0 %v1583
        %2242 = vmatprep.subr.mxu0 %v1588
        %2243 = vmatpush1.msra.mxu0 %v1587
        %2244 = vmatprep.subr.mxu0 %v1592
        %2245 = vmatpush1.msra.mxu0 %v1591
        %2246 = vmatprep.subr.mxu0 %v1596
        %2247 = vmatpush1.msra.mxu0 %v1595
        %2248 = vmatprep.subr.mxu0 %v1600
        %2249 = vmatpush1.msra.mxu0 %v1599
        %2250 = vmatprep.subr.mxu0 %v1604
        %2251 = vmatpush1.msra.mxu0 %v1603
        %2252 = vmatprep.subr.mxu0 %v1608
        %2253 = vmatpush1.msra.mxu0 %v1607
        %2254 = vmatprep.subr.mxu0 %v1612
        %2255 = vmatpush1.msra.mxu0 %v1611
        %2256 = vmatprep.subr.mxu0 %v1616
        %2257 = vmatpush1.msra.mxu0 %v1615
        %2258 = vmatprep.subr.mxu0 %v1620
        %2259 = vmatpush1.msra.mxu0 %v1619
        %2260 = vmatprep.subr.mxu0 %v1624
        %2261 = vmatpush1.msra.mxu0 %v1623
        %2262 = vmatprep.subr.mxu0 %v1628
        %2263 = vmatpush1.msra.mxu0 %v1627
        %2264 = vmatprep.subr.mxu0 %v1632
        %2265 = vmatpush1.msra.mxu0 %v1631
        %2266 = vmatprep.subr.mxu0 %v1636
        %2267 = vmatpush1.msra.mxu0 %v1635
        %2268 = vmatprep.subr.mxu0 %v1640
        %2269 = vmatpush1.msra.mxu0 %v1639
        %2270 = vmatprep.subr.mxu0 %v1644
        %2271 = vmatpush1.msra.mxu0 %v1643
        %2272 = vmatprep.subr.mxu0 %v1648
        %2273 = vmatpush1.msra.mxu0 %v1647
        %2274 = vmatprep.subr.mxu0 %v1652
        %2275 = vmatpush1.msra.mxu0 %v1651
        %2276 = vmatprep.mubr.f32.mxu0 %v1248
        %2277 = vmatmul.mubr.f32.gmra.mrb[0].mxu0 %v1247
        %v2278 = vpop.f32.mrb[0].mxu0
        %v2279 = vadd.f32 %v2100, %v2278
        %v2280 = vpop.f32.mrb[0].mxu0
        %v2281 = vadd.f32 %v2102, %v2280
        %2282 = vmatprep.mubr.f32.mxu0 %v1256
        %2283 = vmatmul.mubr.f32.gmra.mrb[0].mxu0 %v1255
        %v2284 = vpop.f32.mrb[0].mxu0
        %v2285 = vadd.f32 %v2106, %v2284
        %v2286 = vpop.f32.mrb[0].mxu0
        %v2287 = vadd.f32 %v2108, %v2286
        %2288 = vmatprep.mubr.f32.mxu0 %v1264
        %2289 = vmatmul.mubr.f32.gmra.mrb[0].mxu0 %v1263
        %v2290 = vpop.f32.mrb[0].mxu0
        %v2291 = vadd.f32 %v2112, %v2290
        %v2292 = vpop.f32.mrb[0].mxu0
        %v2293 = vadd.f32 %v2114, %v2292
        %2294 = vmatprep.mubr.f32.mxu0 %v1272
        %2295 = vmatmul.mubr.f32.gmra.mrb[0].mxu0 %v1271
        %v2296 = vpop.f32.mrb[0].mxu0
        %v2297 = vadd.f32 %v2118, %v2296
        %v2298 = vpop.f32.mrb[0].mxu0
        %v2299 = vadd.f32 %v2120, %v2298
        %2300 = vmatprep.mubr.f32.mxu0 %v1280
        %2301 = vmatmul.mubr.f32.gmra.mrb[0].mxu0 %v1279
        %v2302 = vpop.f32.mrb[0].mxu0
        %v2303 = vadd.f32 %v2124, %v2302
        %v2304 = vpop.f32.mrb[0].mxu0
        %v2305 = vadd.f32 %v2126, %v2304
        %2306 = vmatprep.mubr.f32.mxu0 %v1288
        %2307 = vmatmul.mubr.f32.gmra.mrb[0].mxu0 %v1287
        %v2308 = vpop.f32.mrb[0].mxu0
        %v2309 = vadd.f32 %v2130, %v2308
        %v2310 = vpop.f32.mrb[0].mxu0
        %v2311 = vadd.f32 %v2132, %v2310
        %2312 = vmatprep.mubr.f32.mxu0 %v1296
        %2313 = vmatmul.mubr.f32.gmra.mrb[0].mxu0 %v1295
        %v2314 = vpop.f32.mrb[0].mxu0
        %v2315 = vadd.f32 %v2136, %v2314
        %v2316 = vpop.f32.mrb[0].mxu0
        %v2317 = vadd.f32 %v2138, %v2316
        %2318 = vmatprep.mubr.f32.mxu0 %v1304
        %2319 = vmatmul.mubr.f32.gmra.mrb[0].mxu0 %v1303
        %v2320 = vpop.f32.mrb[0].mxu0
        %v2321 = vadd.f32 %v2142, %v2320
        %v2322 = vpop.f32.mrb[0].mxu0
        %v2323 = vadd.f32 %v2144, %v2322
        %2324 = vmatprep.mubr.f32.mxu0 %v1312
        %2325 = vmatmul.mubr.f32.gmra.mrb[0].mxu0 %v1311
        %v2326 = vpop.f32.mrb[0].mxu0
        %v2327 = vadd.f32 %v2148, %v2326
        %v2328 = vpop.f32.mrb[0].mxu0
        %v2329 = vadd.f32 %v2150, %v2328
        %2330 = vmatprep.mubr.f32.mxu0 %v1320
        %2331 = vmatmul.mubr.f32.gmra.mrb[0].mxu0 %v1319
        %v2332 = vpop.f32.mrb[0].mxu0
        %v2333 = vadd.f32 %v2154, %v2332
        %v2334 = vpop.f32.mrb[0].mxu0
        %v2335 = vadd.f32 %v2156, %v2334
        %2336 = vmatprep.mubr.f32.mxu0 %v1328
        %2337 = vmatmul.mubr.f32.gmra.mrb[0].mxu0 %v1327
        %v2338 = vpop.f32.mrb[0].mxu0
        %v2339 = vadd.f32 %v2160, %v2338
        %v2340 = vpop.f32.mrb[0].mxu0
        %v2341 = vadd.f32 %v2162, %v2340
        %2342 = vmatprep.mubr.f32.mxu0 %v1336
        %2343 = vmatmul.mubr.f32.gmra.mrb[0].mxu0 %v1335
        %v2344 = vpop.f32.mrb[0].mxu0
        %v2345 = vadd.f32 %v2166, %v2344
        %v2346 = vpop.f32.mrb[0].mxu0
        %v2347 = vadd.f32 %v2168, %v2346
        %2348 = vmatprep.mubr.f32.mxu0 %v1344
        %2349 = vmatmul.mubr.f32.gmra.mrb[0].mxu0 %v1343
        %v2350 = vpop.f32.mrb[0].mxu0
        %v2351 = vadd.f32 %v2172, %v2350
        %v2352 = vpop.f32.mrb[0].mxu0
        %v2353 = vadd.f32 %v2174, %v2352
        %2354 = vmatprep.mubr.f32.mxu0 %v1352
        %2355 = vmatmul.mubr.f32.gmra.mrb[0].mxu0 %v1351
        %v2356 = vpop.f32.mrb[0].mxu0
        %v2357 = vadd.f32 %v2178, %v2356
        %v2358 = vpop.f32.mrb[0].mxu0
        %v2359 = vadd.f32 %v2180, %v2358
        %2360 = vmatprep.mubr.f32.mxu0 %v1360
        %2361 = vmatmul.mubr.f32.gmra.mrb[0].mxu0 %v1359
        %v2362 = vpop.f32.mrb[0].mxu0
        %v2363 = vadd.f32 %v2184, %v2362
        %v2364 = vpop.f32.mrb[0].mxu0
        %v2365 = vadd.f32 %v2186, %v2364
        %2366 = vmatprep.mubr.f32.mxu0 %v1368
        %2367 = vmatmul.mubr.f32.gmra.mrb[0].mxu0 %v1367
        %v2368 = vpop.f32.mrb[0].mxu0
        %v2369 = vadd.f32 %v2190, %v2368
        %v2370 = vpop.f32.mrb[0].mxu0
        %v2371 = vadd.f32 %v2192, %v2370
        %2372 = vmatprep.mubr.f32.mxu0 %v1376
        %2373 = vmatmul.mubr.f32.gmra.mrb[0].mxu0 %v1375
        %v2374 = vpop.f32.mrb[0].mxu0
        %v2375 = vadd.f32 %v2196, %v2374
        %v2376 = vpop.f32.mrb[0].mxu0
        %v2377 = vadd.f32 %v2198, %v2376
        %2378 = vmatprep.mubr.f32.mxu0 %v1384
        %2379 = vmatmul.mubr.f32.gmra.mrb[0].mxu0 %v1383
        %v2380 = vpop.f32.mrb[0].mxu0
        %v2381 = vadd.f32 %v2202, %v2380
        %v2382 = vpop.f32.mrb[0].mxu0
        %v2383 = vadd.f32 %v2204, %v2382
        %2384 = vmatprep.mubr.f32.mxu0 %v1392
        %2385 = vmatmul.mubr.f32.gmra.mrb[0].mxu0 %v1391
        %v2386 = vpop.f32.mrb[0].mxu0
        %v2387 = vadd.f32 %v2208, %v2386
        %v2388 = vpop.f32.mrb[0].mxu0
        %v2389 = vadd.f32 %v2210, %v2388
        %2390 = vdwg.mxu0
        %v2391 = vmax.f32 %v1921, 0.0
        %v2392 = vmax.f32 %v1923, 0.0
        %v2393 = vmax.f32 %v2279, 0.0
        %v2394 = vmax.f32 %v2281, 0.0
        %v2395 = vmax.f32 %v1927, 0.0
        %v2396 = vmax.f32 %v1929, 0.0
        %v2397 = vmax.f32 %v2285, 0.0
        %v2398 = vmax.f32 %v2287, 0.0
        %v2399 = vmax.f32 %v1933, 0.0
        %v2400 = vmax.f32 %v1935, 0.0
        %v2401 = vmax.f32 %v2291, 0.0
        %v2402 = vmax.f32 %v2293, 0.0
        %v2403 = vmax.f32 %v1939, 0.0
        %v2404 = vmax.f32 %v1941, 0.0
        %v2405 = vmax.f32 %v2297, 0.0
        %v2406 = vmax.f32 %v2299, 0.0
        %v2407 = vmax.f32 %v1945, 0.0
        %v2408 = vmax.f32 %v1947, 0.0
        %v2409 = vmax.f32 %v2303, 0.0
        %v2410 = vmax.f32 %v2305, 0.0
        %v2411 = vmax.f32 %v1951, 0.0
        %v2412 = vmax.f32 %v1953, 0.0
        %v2413 = vmax.f32 %v2309, 0.0
        %v2414 = vmax.f32 %v2311, 0.0
        %v2415 = vmax.f32 %v1957, 0.0
        %v2416 = vmax.f32 %v1959, 0.0
        %v2417 = vmax.f32 %v2315, 0.0
        %v2418 = vmax.f32 %v2317, 0.0
        %v2419 = vmax.f32 %v1963, 0.0
        %v2420 = vmax.f32 %v1965, 0.0
        %v2421 = vmax.f32 %v2321, 0.0
        %v2422 = vmax.f32 %v2323, 0.0
        %v2423 = vmax.f32 %v1969, 0.0
        %v2424 = vmax.f32 %v1971, 0.0
        %v2425 = vmax.f32 %v2327, 0.0
        %v2426 = vmax.f32 %v2329, 0.0
        %v2427 = vmax.f32 %v1975, 0.0
        %v2428 = vmax.f32 %v1977, 0.0
        %v2429 = vmax.f32 %v2333, 0.0
        %v2430 = vmax.f32 %v2335, 0.0
        %v2431 = vmax.f32 %v1981, 0.0
        %v2432 = vmax.f32 %v1983, 0.0
        %v2433 = vmax.f32 %v2339, 0.0
        %v2434 = vmax.f32 %v2341, 0.0
        %v2435 = vmax.f32 %v1987, 0.0
        %v2436 = vmax.f32 %v1989, 0.0
        %v2437 = vmax.f32 %v2345, 0.0
        %v2438 = vmax.f32 %v2347, 0.0
        %v2439 = vmax.f32 %v1993, 0.0
        %v2440 = vmax.f32 %v1995, 0.0
        %v2441 = vmax.f32 %v2351, 0.0
        %v2442 = vmax.f32 %v2353, 0.0
        %v2443 = vmax.f32 %v1999, 0.0
        %v2444 = vmax.f32 %v2001, 0.0
        %v2445 = vmax.f32 %v2357, 0.0
        %v2446 = vmax.f32 %v2359, 0.0
        %v2447 = vmax.f32 %v2005, 0.0
        %v2448 = vmax.f32 %v2007, 0.0
        %v2449 = vmax.f32 %v2363, 0.0
        %v2450 = vmax.f32 %v2365, 0.0
        %v2451 = vmax.f32 %v2011, 0.0
        %v2452 = vmax.f32 %v2013, 0.0
        %v2453 = vmax.f32 %v2369, 0.0
        %v2454 = vmax.f32 %v2371, 0.0
        %v2455 = vmax.f32 %v2017, 0.0
        %v2456 = vmax.f32 %v2019, 0.0
        %v2457 = vmax.f32 %v2375, 0.0
        %v2458 = vmax.f32 %v2377, 0.0
        %v2459 = vmax.f32 %v2023, 0.0
        %v2460 = vmax.f32 %v2025, 0.0
        %v2461 = vmax.f32 %v2381, 0.0
        %v2462 = vmax.f32 %v2383, 0.0
        %v2463 = vmax.f32 %v2029, 0.0
        %v2464 = vmax.f32 %v2031, 0.0
        %v2465 = vmax.f32 %v2387, 0.0
        %v2466 = vmax.f32 %v2389, 0.0
        %v2467 = vld [vmem:[#allocation5] sm:$0xff]
        %v2468 = vld [vmem:[#allocation5 + $0x8] sm:$0xff]
        %v2469 = vld [vmem:[#allocation5 + $0x10] sm:$0xff]
        %v2470 = vld [vmem:[#allocation5 + $0x18] sm:$0xff]
        %v2471 = vld [vmem:[#allocation5 + $0x20] sm:$0xff]
        %v2472 = vld [vmem:[#allocation5 + $0x28] sm:$0xff]
        %v2473 = vld [vmem:[#allocation5 + $0x30] sm:$0xff]
        %v2474 = vld [vmem:[#allocation5 + $0x38] sm:$0xff]
        %v2475 = vld [vmem:[#allocation5 + $0x40] sm:$0xff]
        %v2476 = vld [vmem:[#allocation5 + $0x48] sm:$0xff]
        %v2477 = vld [vmem:[#allocation5 + $0x50] sm:$0xff]
        %v2478 = vld [vmem:[#allocation5 + $0x58] sm:$0xff]
        %v2479 = vld [vmem:[#allocation5 + $0x60] sm:$0xff]
        %v2480 = vld [vmem:[#allocation5 + $0x68] sm:$0xff]
        %v2481 = vld [vmem:[#allocation5 + $0x70] sm:$0xff]
        %v2482 = vld [vmem:[#allocation5 + $0x78] sm:$0xff]
        %v2483 = vld [vmem:[#allocation5 + $0x80] sm:$0xff]
        %v2484 = vld [vmem:[#allocation5 + $0x88] sm:$0xff]
        %v2485 = vld [vmem:[#allocation5 + $0x90] sm:$0xff]
        %v2486 = vld [vmem:[#allocation5 + $0x98] sm:$0xff]
        %v2487 = vld [vmem:[#allocation5 + $0xa0] sm:$0xff]
        %v2488 = vld [vmem:[#allocation5 + $0xa8] sm:$0xff]
        %v2489 = vld [vmem:[#allocation5 + $0xb0] sm:$0xff]
        %v2490 = vld [vmem:[#allocation5 + $0xb8] sm:$0xff]
        %v2491 = vld [vmem:[#allocation5 + $0xc0] sm:$0xff]
        %v2492 = vld [vmem:[#allocation5 + $0xc8] sm:$0xff]
        %v2493 = vld [vmem:[#allocation5 + $0xd0] sm:$0xff]
        %v2494 = vld [vmem:[#allocation5 + $0xd8] sm:$0xff]
        %v2495 = vld [vmem:[#allocation5 + $0xe0] sm:$0xff]
        %v2496 = vld [vmem:[#allocation5 + $0xe8] sm:$0xff]
        %v2497 = vld [vmem:[#allocation5 + $0xf0] sm:$0xff]
        %v2498 = vld [vmem:[#allocation5 + $0xf8] sm:$0xff]
        %v2499 = vld [vmem:[#allocation5 + $0x100] sm:$0xff]
        %v2500 = vld [vmem:[#allocation5 + $0x108] sm:$0xff]
        %v2501 = vld [vmem:[#allocation5 + $0x110] sm:$0xff]
        %v2502 = vld [vmem:[#allocation5 + $0x118] sm:$0xff]
        %v2503 = vld [vmem:[#allocation5 + $0x120] sm:$0xff]
        %v2504 = vld [vmem:[#allocation5 + $0x128] sm:$0xff]
        %v2505 = vld [vmem:[#allocation5 + $0x130] sm:$0xff]
        %v2506 = vld [vmem:[#allocation5 + $0x138] sm:$0xff]
        %v2507 = vld [vmem:[#allocation5 + $0x140] sm:$0xff]
        %v2508 = vld [vmem:[#allocation5 + $0x148] sm:$0xff]
        %v2509 = vld [vmem:[#allocation5 + $0x150] sm:$0xff]
        %v2510 = vld [vmem:[#allocation5 + $0x158] sm:$0xff]
        %v2511 = vld [vmem:[#allocation5 + $0x160] sm:$0xff]
        %v2512 = vld [vmem:[#allocation5 + $0x168] sm:$0xff]
        %v2513 = vld [vmem:[#allocation5 + $0x170] sm:$0xff]
        %v2514 = vld [vmem:[#allocation5 + $0x178] sm:$0xff]
        %v2515 = vld [vmem:[#allocation5 + $0x180] sm:$0xff]
        %v2516 = vld [vmem:[#allocation5 + $0x188] sm:$0xff]
        %v2517 = vld [vmem:[#allocation5 + $0x190] sm:$0xff]
        %v2518 = vld [vmem:[#allocation5 + $0x198] sm:$0xff]
        %v2519 = vld [vmem:[#allocation5 + $0x1a0] sm:$0xff]
        %v2520 = vld [vmem:[#allocation5 + $0x1a8] sm:$0xff]
        %v2521 = vld [vmem:[#allocation5 + $0x1b0] sm:$0xff]
        %v2522 = vld [vmem:[#allocation5 + $0x1b8] sm:$0xff]
        %v2523 = vld [vmem:[#allocation5 + $0x1c0] sm:$0xff]
        %v2524 = vld [vmem:[#allocation5 + $0x1c8] sm:$0xff]
        %v2525 = vld [vmem:[#allocation5 + $0x1d0] sm:$0xff]
        %v2526 = vld [vmem:[#allocation5 + $0x1d8] sm:$0xff]
        %v2527 = vld [vmem:[#allocation5 + $0x1e0] sm:$0xff]
        %v2528 = vld [vmem:[#allocation5 + $0x1e8] sm:$0xff]
        %v2529 = vld [vmem:[#allocation5 + $0x1f0] sm:$0xff]
        %v2530 = vld [vmem:[#allocation5 + $0x1f8] sm:$0xff]
        %v2531 = vld [vmem:[#allocation5 + $0x200] sm:$0xff]
        %v2532 = vld [vmem:[#allocation5 + $0x208] sm:$0xff]
        %v2533 = vld [vmem:[#allocation5 + $0x210] sm:$0xff]
        %v2534 = vld [vmem:[#allocation5 + $0x218] sm:$0xff]
        %v2535 = vld [vmem:[#allocation5 + $0x220] sm:$0xff]
        %v2536 = vld [vmem:[#allocation5 + $0x228] sm:$0xff]
        %v2537 = vld [vmem:[#allocation5 + $0x230] sm:$0xff]
        %v2538 = vld [vmem:[#allocation5 + $0x238] sm:$0xff]
        %v2539 = vld [vmem:[#allocation5 + $0x240] sm:$0xff]
        %v2540 = vld [vmem:[#allocation5 + $0x248] sm:$0xff]
        %v2541 = vld [vmem:[#allocation5 + $0x250] sm:$0xff]
        %v2542 = vld [vmem:[#allocation5 + $0x258] sm:$0xff]
        %v2543 = vld [vmem:[#allocation5 + $0x260] sm:$0xff]
        %v2544 = vld [vmem:[#allocation5 + $0x268] sm:$0xff]
        %v2545 = vld [vmem:[#allocation5 + $0x270] sm:$0xff]
        %v2546 = vld [vmem:[#allocation5 + $0x278] sm:$0xff]
        %v2547 = vld [vmem:[#allocation5 + $0x280] sm:$0xff]
        %v2548 = vld [vmem:[#allocation5 + $0x288] sm:$0xff]
        %v2549 = vld [vmem:[#allocation5 + $0x290] sm:$0xff]
        %v2550 = vld [vmem:[#allocation5 + $0x298] sm:$0xff]
        %v2551 = vld [vmem:[#allocation5 + $0x2a0] sm:$0xff]
        %v2552 = vld [vmem:[#allocation5 + $0x2a8] sm:$0xff]
        %v2553 = vld [vmem:[#allocation5 + $0x2b0] sm:$0xff]
        %v2554 = vld [vmem:[#allocation5 + $0x2b8] sm:$0xff]
        %v2555 = vld [vmem:[#allocation5 + $0x2c0] sm:$0xff]
        %v2556 = vld [vmem:[#allocation5 + $0x2c8] sm:$0xff]
        %v2557 = vld [vmem:[#allocation5 + $0x2d0] sm:$0xff]
        %v2558 = vld [vmem:[#allocation5 + $0x2d8] sm:$0xff]
        %v2559 = vld [vmem:[#allocation5 + $0x2e0] sm:$0xff]
        %v2560 = vld [vmem:[#allocation5 + $0x2e8] sm:$0xff]
        %v2561 = vld [vmem:[#allocation5 + $0x2f0] sm:$0xff]
        %v2562 = vld [vmem:[#allocation5 + $0x2f8] sm:$0xff]
        %v2563 = vld [vmem:[#allocation5 + $0x300] sm:$0xff]
        %v2564 = vld [vmem:[#allocation5 + $0x308] sm:$0xff]
        %v2565 = vld [vmem:[#allocation5 + $0x310] sm:$0xff]
        %v2566 = vld [vmem:[#allocation5 + $0x318] sm:$0xff]
        %v2567 = vld [vmem:[#allocation5 + $0x320] sm:$0xff]
        %v2568 = vld [vmem:[#allocation5 + $0x328] sm:$0xff]
        %v2569 = vld [vmem:[#allocation5 + $0x330] sm:$0xff]
        %v2570 = vld [vmem:[#allocation5 + $0x338] sm:$0xff]
        %v2571 = vld [vmem:[#allocation5 + $0x340] sm:$0xff]
        %v2572 = vld [vmem:[#allocation5 + $0x348] sm:$0xff]
        %v2573 = vld [vmem:[#allocation5 + $0x350] sm:$0xff]
        %v2574 = vld [vmem:[#allocation5 + $0x358] sm:$0xff]
        %v2575 = vld [vmem:[#allocation5 + $0x360] sm:$0xff]
        %v2576 = vld [vmem:[#allocation5 + $0x368] sm:$0xff]
        %v2577 = vld [vmem:[#allocation5 + $0x370] sm:$0xff]
        %v2578 = vld [vmem:[#allocation5 + $0x378] sm:$0xff]
        %v2579 = vld [vmem:[#allocation5 + $0x380] sm:$0xff]
        %v2580 = vld [vmem:[#allocation5 + $0x388] sm:$0xff]
        %v2581 = vld [vmem:[#allocation5 + $0x390] sm:$0xff]
        %v2582 = vld [vmem:[#allocation5 + $0x398] sm:$0xff]
        %v2583 = vld [vmem:[#allocation5 + $0x3a0] sm:$0xff]
        %v2584 = vld [vmem:[#allocation5 + $0x3a8] sm:$0xff]
        %v2585 = vld [vmem:[#allocation5 + $0x3b0] sm:$0xff]
        %v2586 = vld [vmem:[#allocation5 + $0x3b8] sm:$0xff]
        %v2587 = vld [vmem:[#allocation5 + $0x3c0] sm:$0xff]
        %v2588 = vld [vmem:[#allocation5 + $0x3c8] sm:$0xff]
        %v2589 = vld [vmem:[#allocation5 + $0x3d0] sm:$0xff]
        %v2590 = vld [vmem:[#allocation5 + $0x3d8] sm:$0xff]
        %v2591 = vld [vmem:[#allocation5 + $0x3e0] sm:$0xff]
        %v2592 = vld [vmem:[#allocation5 + $0x3e8] sm:$0xff]
        %v2593 = vld [vmem:[#allocation5 + $0x3f0] sm:$0xff]
        %v2594 = vld [vmem:[#allocation5 + $0x3f8] sm:$0xff]
        %v2595 = vld [vmem:[#allocation5 + $0x400] sm:$0xff]
        %v2596 = vld [vmem:[#allocation5 + $0x408] sm:$0xff]
        %v2597 = vld [vmem:[#allocation5 + $0x410] sm:$0xff]
        %v2598 = vld [vmem:[#allocation5 + $0x418] sm:$0xff]
        %v2599 = vld [vmem:[#allocation5 + $0x420] sm:$0xff]
        %v2600 = vld [vmem:[#allocation5 + $0x428] sm:$0xff]
        %v2601 = vld [vmem:[#allocation5 + $0x430] sm:$0xff]
        %v2602 = vld [vmem:[#allocation5 + $0x438] sm:$0xff]
        %v2603 = vld [vmem:[#allocation5 + $0x440] sm:$0xff]
        %v2604 = vld [vmem:[#allocation5 + $0x448] sm:$0xff]
        %v2605 = vld [vmem:[#allocation5 + $0x450] sm:$0xff]
        %v2606 = vld [vmem:[#allocation5 + $0x458] sm:$0xff]
        %v2607 = vld [vmem:[#allocation5 + $0x460] sm:$0xff]
        %v2608 = vld [vmem:[#allocation5 + $0x468] sm:$0xff]
        %v2609 = vld [vmem:[#allocation5 + $0x470] sm:$0xff]
        %v2610 = vld [vmem:[#allocation5 + $0x478] sm:$0xff]
        %v2611 = vld [vmem:[#allocation5 + $0x480] sm:$0xff]
        %v2612 = vld [vmem:[#allocation5 + $0x488] sm:$0xff]
        %v2613 = vld [vmem:[#allocation5 + $0x490] sm:$0xff]
        %v2614 = vld [vmem:[#allocation5 + $0x498] sm:$0xff]
        %v2615 = vld [vmem:[#allocation5 + $0x4a0] sm:$0xff]
        %v2616 = vld [vmem:[#allocation5 + $0x4a8] sm:$0xff]
        %v2617 = vld [vmem:[#allocation5 + $0x4b0] sm:$0xff]
        %v2618 = vld [vmem:[#allocation5 + $0x4b8] sm:$0xff]
        %v2619 = vld [vmem:[#allocation5 + $0x4c0] sm:$0xff]
        %v2620 = vld [vmem:[#allocation5 + $0x4c8] sm:$0xff]
        %v2621 = vld [vmem:[#allocation5 + $0x4d0] sm:$0xff]
        %v2622 = vld [vmem:[#allocation5 + $0x4d8] sm:$0xff]
        %v2623 = vld [vmem:[#allocation5 + $0x4e0] sm:$0xff]
        %v2624 = vld [vmem:[#allocation5 + $0x4e8] sm:$0xff]
        %v2625 = vld [vmem:[#allocation5 + $0x4f0] sm:$0xff]
        %v2626 = vld [vmem:[#allocation5 + $0x4f8] sm:$0xff]
        %v2627 = vld [vmem:[#allocation5 + $0x500] sm:$0xff]
        %v2628 = vld [vmem:[#allocation5 + $0x508] sm:$0xff]
        %v2629 = vld [vmem:[#allocation5 + $0x510] sm:$0xff]
        %v2630 = vld [vmem:[#allocation5 + $0x518] sm:$0xff]
        %v2631 = vld [vmem:[#allocation5 + $0x520] sm:$0xff]
        %v2632 = vld [vmem:[#allocation5 + $0x528] sm:$0xff]
        %v2633 = vld [vmem:[#allocation5 + $0x530] sm:$0xff]
        %v2634 = vld [vmem:[#allocation5 + $0x538] sm:$0xff]
        %v2635 = vld [vmem:[#allocation5 + $0x540] sm:$0xff]
        %v2636 = vld [vmem:[#allocation5 + $0x548] sm:$0xff]
        %v2637 = vld [vmem:[#allocation5 + $0x550] sm:$0xff]
        %v2638 = vld [vmem:[#allocation5 + $0x558] sm:$0xff]
        %v2639 = vld [vmem:[#allocation5 + $0x560] sm:$0xff]
        %v2640 = vld [vmem:[#allocation5 + $0x568] sm:$0xff]
        %v2641 = vld [vmem:[#allocation5 + $0x570] sm:$0xff]
        %v2642 = vld [vmem:[#allocation5 + $0x578] sm:$0xff]
        %v2643 = vld [vmem:[#allocation5 + $0x580] sm:$0xff]
        %v2644 = vld [vmem:[#allocation5 + $0x588] sm:$0xff]
        %v2645 = vld [vmem:[#allocation5 + $0x590] sm:$0xff]
        %v2646 = vld [vmem:[#allocation5 + $0x598] sm:$0xff]
        %v2647 = vld [vmem:[#allocation5 + $0x5a0] sm:$0xff]
        %v2648 = vld [vmem:[#allocation5 + $0x5a8] sm:$0xff]
        %v2649 = vld [vmem:[#allocation5 + $0x5b0] sm:$0xff]
        %v2650 = vld [vmem:[#allocation5 + $0x5b8] sm:$0xff]
        %v2651 = vld [vmem:[#allocation5 + $0x5c0] sm:$0xff]
        %v2652 = vld [vmem:[#allocation5 + $0x5c8] sm:$0xff]
        %v2653 = vld [vmem:[#allocation5 + $0x5d0] sm:$0xff]
        %v2654 = vld [vmem:[#allocation5 + $0x5d8] sm:$0xff]
        %v2655 = vld [vmem:[#allocation5 + $0x5e0] sm:$0xff]
        %v2656 = vld [vmem:[#allocation5 + $0x5e8] sm:$0xff]
        %v2657 = vld [vmem:[#allocation5 + $0x5f0] sm:$0xff]
        %v2658 = vld [vmem:[#allocation5 + $0x5f8] sm:$0xff]
        %v2659 = vld [vmem:[#allocation5 + $0x600] sm:$0xff]
        %v2660 = vld [vmem:[#allocation5 + $0x608] sm:$0xff]
        %v2661 = vld [vmem:[#allocation5 + $0x610] sm:$0xff]
        %v2662 = vld [vmem:[#allocation5 + $0x618] sm:$0xff]
        %v2663 = vld [vmem:[#allocation5 + $0x620] sm:$0xff]
        %v2664 = vld [vmem:[#allocation5 + $0x628] sm:$0xff]
        %v2665 = vld [vmem:[#allocation5 + $0x630] sm:$0xff]
        %v2666 = vld [vmem:[#allocation5 + $0x638] sm:$0xff]
        %v2667 = vld [vmem:[#allocation5 + $0x640] sm:$0xff]
        %v2668 = vld [vmem:[#allocation5 + $0x648] sm:$0xff]
        %v2669 = vld [vmem:[#allocation5 + $0x650] sm:$0xff]
        %v2670 = vld [vmem:[#allocation5 + $0x658] sm:$0xff]
        %v2671 = vld [vmem:[#allocation5 + $0x660] sm:$0xff]
        %v2672 = vld [vmem:[#allocation5 + $0x668] sm:$0xff]
        %v2673 = vld [vmem:[#allocation5 + $0x670] sm:$0xff]
        %v2674 = vld [vmem:[#allocation5 + $0x678] sm:$0xff]
        %v2675 = vld [vmem:[#allocation5 + $0x680] sm:$0xff]
        %v2676 = vld [vmem:[#allocation5 + $0x688] sm:$0xff]
        %v2677 = vld [vmem:[#allocation5 + $0x690] sm:$0xff]
        %v2678 = vld [vmem:[#allocation5 + $0x698] sm:$0xff]
        %v2679 = vld [vmem:[#allocation5 + $0x6a0] sm:$0xff]
        %v2680 = vld [vmem:[#allocation5 + $0x6a8] sm:$0xff]
        %v2681 = vld [vmem:[#allocation5 + $0x6b0] sm:$0xff]
        %v2682 = vld [vmem:[#allocation5 + $0x6b8] sm:$0xff]
        %v2683 = vld [vmem:[#allocation5 + $0x6c0] sm:$0xff]
        %v2684 = vld [vmem:[#allocation5 + $0x6c8] sm:$0xff]
        %v2685 = vld [vmem:[#allocation5 + $0x6d0] sm:$0xff]
        %v2686 = vld [vmem:[#allocation5 + $0x6d8] sm:$0xff]
        %v2687 = vld [vmem:[#allocation5 + $0x6e0] sm:$0xff]
        %v2688 = vld [vmem:[#allocation5 + $0x6e8] sm:$0xff]
        %v2689 = vld [vmem:[#allocation5 + $0x6f0] sm:$0xff]
        %v2690 = vld [vmem:[#allocation5 + $0x6f8] sm:$0xff]
        %v2691 = vld [vmem:[#allocation5 + $0x700] sm:$0xff]
        %v2692 = vld [vmem:[#allocation5 + $0x708] sm:$0xff]
        %v2693 = vld [vmem:[#allocation5 + $0x710] sm:$0xff]
        %v2694 = vld [vmem:[#allocation5 + $0x718] sm:$0xff]
        %v2695 = vld [vmem:[#allocation5 + $0x720] sm:$0xff]
        %v2696 = vld [vmem:[#allocation5 + $0x728] sm:$0xff]
        %v2697 = vld [vmem:[#allocation5 + $0x730] sm:$0xff]
        %v2698 = vld [vmem:[#allocation5 + $0x738] sm:$0xff]
        %v2699 = vld [vmem:[#allocation5 + $0x740] sm:$0xff]
        %v2700 = vld [vmem:[#allocation5 + $0x748] sm:$0xff]
        %v2701 = vld [vmem:[#allocation5 + $0x750] sm:$0xff]
        %v2702 = vld [vmem:[#allocation5 + $0x758] sm:$0xff]
        %v2703 = vld [vmem:[#allocation5 + $0x760] sm:$0xff]
        %v2704 = vld [vmem:[#allocation5 + $0x768] sm:$0xff]
        %v2705 = vld [vmem:[#allocation5 + $0x770] sm:$0xff]
        %v2706 = vld [vmem:[#allocation5 + $0x778] sm:$0xff]
        %v2707 = vld [vmem:[#allocation5 + $0x780] sm:$0xff]
        %v2708 = vld [vmem:[#allocation5 + $0x788] sm:$0xff]
        %v2709 = vld [vmem:[#allocation5 + $0x790] sm:$0xff]
        %v2710 = vld [vmem:[#allocation5 + $0x798] sm:$0xff]
        %v2711 = vld [vmem:[#allocation5 + $0x7a0] sm:$0xff]
        %v2712 = vld [vmem:[#allocation5 + $0x7a8] sm:$0xff]
        %v2713 = vld [vmem:[#allocation5 + $0x7b0] sm:$0xff]
        %v2714 = vld [vmem:[#allocation5 + $0x7b8] sm:$0xff]
        %v2715 = vld [vmem:[#allocation5 + $0x7c0] sm:$0xff]
        %v2716 = vld [vmem:[#allocation5 + $0x7c8] sm:$0xff]
        %v2717 = vld [vmem:[#allocation5 + $0x7d0] sm:$0xff]
        %v2718 = vld [vmem:[#allocation5 + $0x7d8] sm:$0xff]
        %v2719 = vld [vmem:[#allocation5 + $0x7e0] sm:$0xff]
        %v2720 = vld [vmem:[#allocation5 + $0x7e8] sm:$0xff]
        %v2721 = vld [vmem:[#allocation5 + $0x7f0] sm:$0xff]
        %v2722 = vld [vmem:[#allocation5 + $0x7f8] sm:$0xff]
        %v2723 = vld [vmem:[%s6] sm:$0xf]
        %v2725 = vlaneseq
        %v2726 = vshrl.u32 %v2725, 7
        %v2727 = vsub.s32 0, %v2726
        %v2728 = vrot.slane %v2723, %v2727
        %v2729 = vlaneseq
        %v2730 = vshrl.u32 %v2729, 7
        %v2731 = vsub.s32 1, %v2730
        %v2732 = vrot.slane %v2723, %v2731
        %v2733 = vlaneseq
        %v2734 = vshrl.u32 %v2733, 7
        %v2735 = vsub.s32 2, %v2734
        %v2736 = vrot.slane %v2723, %v2735
        %v2737 = vlaneseq
        %v2738 = vshrl.u32 %v2737, 7
        %v2739 = vsub.s32 3, %v2738
        %v2740 = vrot.slane %v2723, %v2739
        %2745 = vmatprep.subr.mxu0 %v2468
        %2746 = vmatpush1.msra.mxu0 %v2467
        %2747 = vmatprep.subr.mxu0 %v2472
        %2748 = vmatpush1.msra.mxu0 %v2471
        %2749 = vmatprep.subr.mxu0 %v2476
        %2750 = vmatpush1.msra.mxu0 %v2475
        %2751 = vmatprep.subr.mxu0 %v2480
        %2752 = vmatpush1.msra.mxu0 %v2479
        %2753 = vmatprep.subr.mxu0 %v2484
        %2754 = vmatpush1.msra.mxu0 %v2483
        %2755 = vmatprep.subr.mxu0 %v2488
        %2756 = vmatpush1.msra.mxu0 %v2487
        %2757 = vmatprep.subr.mxu0 %v2492
        %2758 = vmatpush1.msra.mxu0 %v2491
        %2759 = vmatprep.subr.mxu0 %v2496
        %2760 = vmatpush1.msra.mxu0 %v2495
        %2761 = vmatprep.subr.mxu0 %v2500
        %2762 = vmatpush1.msra.mxu0 %v2499
        %2763 = vmatprep.subr.mxu0 %v2504
        %2764 = vmatpush1.msra.mxu0 %v2503
        %2765 = vmatprep.subr.mxu0 %v2508
        %2766 = vmatpush1.msra.mxu0 %v2507
        %2767 = vmatprep.subr.mxu0 %v2512
        %2768 = vmatpush1.msra.mxu0 %v2511
        %2769 = vmatprep.subr.mxu0 %v2516
        %2770 = vmatpush1.msra.mxu0 %v2515
        %2771 = vmatprep.subr.mxu0 %v2520
        %2772 = vmatpush1.msra.mxu0 %v2519
        %2773 = vmatprep.subr.mxu0 %v2524
        %2774 = vmatpush1.msra.mxu0 %v2523
        %2775 = vmatprep.subr.mxu0 %v2528
        %2776 = vmatpush1.msra.mxu0 %v2527
        %2777 = vmatprep.subr.mxu0 %v2532
        %2778 = vmatpush1.msra.mxu0 %v2531
        %2779 = vmatprep.subr.mxu0 %v2536
        %2780 = vmatpush1.msra.mxu0 %v2535
        %2781 = vmatprep.subr.mxu0 %v2540
        %2782 = vmatpush1.msra.mxu0 %v2539
        %2783 = vmatprep.subr.mxu0 %v2544
        %2784 = vmatpush1.msra.mxu0 %v2543
        %2785 = vmatprep.subr.mxu0 %v2548
        %2786 = vmatpush1.msra.mxu0 %v2547
        %2787 = vmatprep.subr.mxu0 %v2552
        %2788 = vmatpush1.msra.mxu0 %v2551
        %2789 = vmatprep.subr.mxu0 %v2556
        %2790 = vmatpush1.msra.mxu0 %v2555
        %2791 = vmatprep.subr.mxu0 %v2560
        %2792 = vmatpush1.msra.mxu0 %v2559
        %2793 = vmatprep.subr.mxu0 %v2564
        %2794 = vmatpush1.msra.mxu0 %v2563
        %2795 = vmatprep.subr.mxu0 %v2568
        %2796 = vmatpush1.msra.mxu0 %v2567
        %2797 = vmatprep.subr.mxu0 %v2572
        %2798 = vmatpush1.msra.mxu0 %v2571
        %2799 = vmatprep.subr.mxu0 %v2576
        %2800 = vmatpush1.msra.mxu0 %v2575
        %2801 = vmatprep.subr.mxu0 %v2580
        %2802 = vmatpush1.msra.mxu0 %v2579
        %2803 = vmatprep.subr.mxu0 %v2584
        %2804 = vmatpush1.msra.mxu0 %v2583
        %2805 = vmatprep.subr.mxu0 %v2588
        %2806 = vmatpush1.msra.mxu0 %v2587
        %2807 = vmatprep.subr.mxu0 %v2592
        %2808 = vmatpush1.msra.mxu0 %v2591
        %2809 = vmatprep.mubr.f32.mxu0 %v1250
        %2810 = vmatmul.mubr.f32.gmra.mrb[0].mxu0 %v1249
        %v2811 = vpop.f32.mrb[0].mxu0
        %v2812 = vadd.f32 %v2728, %v2811
        %v2813 = vpop.f32.mrb[0].mxu0
        %v2814 = vadd.f32 %v2732, %v2813
        %2815 = vmatprep.mubr.f32.mxu0 %v1258
        %2816 = vmatmul.mubr.f32.gmra.mrb[0].mxu0 %v1257
        %v2817 = vpop.f32.mrb[0].mxu0
        %v2818 = vadd.f32 %v2728, %v2817
        %v2819 = vpop.f32.mrb[0].mxu0
        %v2820 = vadd.f32 %v2732, %v2819
        %2821 = vmatprep.mubr.f32.mxu0 %v1266
        %2822 = vmatmul.mubr.f32.gmra.mrb[0].mxu0 %v1265
        %v2823 = vpop.f32.mrb[0].mxu0
        %v2824 = vadd.f32 %v2728, %v2823
        %v2825 = vpop.f32.mrb[0].mxu0
        %v2826 = vadd.f32 %v2732, %v2825
        %2827 = vmatprep.mubr.f32.mxu0 %v1274
        %2828 = vmatmul.mubr.f32.gmra.mrb[0].mxu0 %v1273
        %v2829 = vpop.f32.mrb[0].mxu0
        %v2830 = vadd.f32 %v2728, %v2829
        %v2831 = vpop.f32.mrb[0].mxu0
        %v2832 = vadd.f32 %v2732, %v2831
        %2833 = vmatprep.mubr.f32.mxu0 %v1282
        %2834 = vmatmul.mubr.f32.gmra.mrb[0].mxu0 %v1281
        %v2835 = vpop.f32.mrb[0].mxu0
        %v2836 = vadd.f32 %v2728, %v2835
        %v2837 = vpop.f32.mrb[0].mxu0
        %v2838 = vadd.f32 %v2732, %v2837
        %2839 = vmatprep.mubr.f32.mxu0 %v1290
        %2840 = vmatmul.mubr.f32.gmra.mrb[0].mxu0 %v1289
        %v2841 = vpop.f32.mrb[0].mxu0
        %v2842 = vadd.f32 %v2728, %v2841
        %v2843 = vpop.f32.mrb[0].mxu0
        %v2844 = vadd.f32 %v2732, %v2843
        %2845 = vmatprep.mubr.f32.mxu0 %v1298
        %2846 = vmatmul.mubr.f32.gmra.mrb[0].mxu0 %v1297
        %v2847 = vpop.f32.mrb[0].mxu0
        %v2848 = vadd.f32 %v2728, %v2847
        %v2849 = vpop.f32.mrb[0].mxu0
        %v2850 = vadd.f32 %v2732, %v2849
        %2851 = vmatprep.mubr.f32.mxu0 %v1306
        %2852 = vmatmul.mubr.f32.gmra.mrb[0].mxu0 %v1305
        %v2853 = vpop.f32.mrb[0].mxu0
        %v2854 = vadd.f32 %v2728, %v2853
        %v2855 = vpop.f32.mrb[0].mxu0
        %v2856 = vadd.f32 %v2732, %v2855
        %2857 = vmatprep.mubr.f32.mxu0 %v1314
        %2858 = vmatmul.mubr.f32.gmra.mrb[0].mxu0 %v1313
        %v2859 = vpop.f32.mrb[0].mxu0
        %v2860 = vadd.f32 %v2728, %v2859
        %v2861 = vpop.f32.mrb[0].mxu0
        %v2862 = vadd.f32 %v2732, %v2861
        %2863 = vmatprep.mubr.f32.mxu0 %v1322
        %2864 = vmatmul.mubr.f32.gmra.mrb[0].mxu0 %v1321
        %v2865 = vpop.f32.mrb[0].mxu0
        %v2866 = vadd.f32 %v2728, %v2865
        %v2867 = vpop.f32.mrb[0].mxu0
        %v2868 = vadd.f32 %v2732, %v2867
        %2869 = vmatprep.mubr.f32.mxu0 %v1330
        %2870 = vmatmul.mubr.f32.gmra.mrb[0].mxu0 %v1329
        %v2871 = vpop.f32.mrb[0].mxu0
        %v2872 = vadd.f32 %v2728, %v2871
        %v2873 = vpop.f32.mrb[0].mxu0
        %v2874 = vadd.f32 %v2732, %v2873
        %2875 = vmatprep.mubr.f32.mxu0 %v1338
        %2876 = vmatmul.mubr.f32.gmra.mrb[0].mxu0 %v1337
        %v2877 = vpop.f32.mrb[0].mxu0
        %v2878 = vadd.f32 %v2728, %v2877
        %v2879 = vpop.f32.mrb[0].mxu0
        %v2880 = vadd.f32 %v2732, %v2879
        %2881 = vmatprep.mubr.f32.mxu0 %v1346
        %2882 = vmatmul.mubr.f32.gmra.mrb[0].mxu0 %v1345
        %v2883 = vpop.f32.mrb[0].mxu0
        %v2884 = vadd.f32 %v2728, %v2883
        %v2885 = vpop.f32.mrb[0].mxu0
        %v2886 = vadd.f32 %v2732, %v2885
        %2887 = vmatprep.mubr.f32.mxu0 %v1354
        %2888 = vmatmul.mubr.f32.gmra.mrb[0].mxu0 %v1353
        %v2889 = vpop.f32.mrb[0].mxu0
        %v2890 = vadd.f32 %v2728, %v2889
        %v2891 = vpop.f32.mrb[0].mxu0
        %v2892 = vadd.f32 %v2732, %v2891
        %2893 = vmatprep.mubr.f32.mxu0 %v1362
        %2894 = vmatmul.mubr.f32.gmra.mrb[0].mxu0 %v1361
        %v2895 = vpop.f32.mrb[0].mxu0
        %v2896 = vadd.f32 %v2728, %v2895
        %v2897 = vpop.f32.mrb[0].mxu0
        %v2898 = vadd.f32 %v2732, %v2897
        %2899 = vmatprep.mubr.f32.mxu0 %v1370
        %2900 = vmatmul.mubr.f32.gmra.mrb[0].mxu0 %v1369
        %v2901 = vpop.f32.mrb[0].mxu0
        %v2902 = vadd.f32 %v2728, %v2901
        %v2903 = vpop.f32.mrb[0].mxu0
        %v2904 = vadd.f32 %v2732, %v2903
        %2905 = vmatprep.mubr.f32.mxu0 %v1378
        %2906 = vmatmul.mubr.f32.gmra.mrb[0].mxu0 %v1377
        %v2907 = vpop.f32.mrb[0].mxu0
        %v2908 = vadd.f32 %v2728, %v2907
        %v2909 = vpop.f32.mrb[0].mxu0
        %v2910 = vadd.f32 %v2732, %v2909
        %2911 = vmatprep.mubr.f32.mxu0 %v1386
        %2912 = vmatmul.mubr.f32.gmra.mrb[0].mxu0 %v1385
        %v2913 = vpop.f32.mrb[0].mxu0
        %v2914 = vadd.f32 %v2728, %v2913
        %v2915 = vpop.f32.mrb[0].mxu0
        %v2916 = vadd.f32 %v2732, %v2915
        %2917 = vmatprep.mubr.f32.mxu0 %v1394
        %2918 = vmatmul.mubr.f32.gmra.mrb[0].mxu0 %v1393
        %v2919 = vpop.f32.mrb[0].mxu0
        %v2920 = vadd.f32 %v2728, %v2919
        %v2921 = vpop.f32.mrb[0].mxu0
        %v2922 = vadd.f32 %v2732, %v2921
        %2923 = vdwg.mxu0
        %2924 = vmatprep.subr.mxu0 %v2596
        %2925 = vmatpush1.msra.mxu0 %v2595
        %2926 = vmatprep.subr.mxu0 %v2600
        %2927 = vmatpush1.msra.mxu0 %v2599
        %2928 = vmatprep.subr.mxu0 %v2604
        %2929 = vmatpush1.msra.mxu0 %v2603
        %2930 = vmatprep.subr.mxu0 %v2608
        %2931 = vmatpush1.msra.mxu0 %v2607
        %2932 = vmatprep.subr.mxu0 %v2612
        %2933 = vmatpush1.msra.mxu0 %v2611
        %2934 = vmatprep.subr.mxu0 %v2616
        %2935 = vmatpush1.msra.mxu0 %v2615
        %2936 = vmatprep.subr.mxu0 %v2620
        %2937 = vmatpush1.msra.mxu0 %v2619
        %2938 = vmatprep.subr.mxu0 %v2624
        %2939 = vmatpush1.msra.mxu0 %v2623
        %2940 = vmatprep.subr.mxu0 %v2628
        %2941 = vmatpush1.msra.mxu0 %v2627
        %2942 = vmatprep.subr.mxu0 %v2632
        %2943 = vmatpush1.msra.mxu0 %v2631
        %2944 = vmatprep.subr.mxu0 %v2636
        %2945 = vmatpush1.msra.mxu0 %v2635
        %2946 = vmatprep.subr.mxu0 %v2640
        %2947 = vmatpush1.msra.mxu0 %v2639
        %2948 = vmatprep.subr.mxu0 %v2644
        %2949 = vmatpush1.msra.mxu0 %v2643
        %2950 = vmatprep.subr.mxu0 %v2648
        %2951 = vmatpush1.msra.mxu0 %v2647
        %2952 = vmatprep.subr.mxu0 %v2652
        %2953 = vmatpush1.msra.mxu0 %v2651
        %2954 = vmatprep.subr.mxu0 %v2656
        %2955 = vmatpush1.msra.mxu0 %v2655
        %2956 = vmatprep.subr.mxu0 %v2660
        %2957 = vmatpush1.msra.mxu0 %v2659
        %2958 = vmatprep.subr.mxu0 %v2664
        %2959 = vmatpush1.msra.mxu0 %v2663
        %2960 = vmatprep.subr.mxu0 %v2668
        %2961 = vmatpush1.msra.mxu0 %v2667
        %2962 = vmatprep.subr.mxu0 %v2672
        %2963 = vmatpush1.msra.mxu0 %v2671
        %2964 = vmatprep.subr.mxu0 %v2676
        %2965 = vmatpush1.msra.mxu0 %v2675
        %2966 = vmatprep.subr.mxu0 %v2680
        %2967 = vmatpush1.msra.mxu0 %v2679
        %2968 = vmatprep.subr.mxu0 %v2684
        %2969 = vmatpush1.msra.mxu0 %v2683
        %2970 = vmatprep.subr.mxu0 %v2688
        %2971 = vmatpush1.msra.mxu0 %v2687
        %2972 = vmatprep.subr.mxu0 %v2692
        %2973 = vmatpush1.msra.mxu0 %v2691
        %2974 = vmatprep.subr.mxu0 %v2696
        %2975 = vmatpush1.msra.mxu0 %v2695
        %2976 = vmatprep.subr.mxu0 %v2700
        %2977 = vmatpush1.msra.mxu0 %v2699
        %2978 = vmatprep.subr.mxu0 %v2704
        %2979 = vmatpush1.msra.mxu0 %v2703
        %2980 = vmatprep.subr.mxu0 %v2708
        %2981 = vmatpush1.msra.mxu0 %v2707
        %2982 = vmatprep.subr.mxu0 %v2712
        %2983 = vmatpush1.msra.mxu0 %v2711
        %2984 = vmatprep.subr.mxu0 %v2716
        %2985 = vmatpush1.msra.mxu0 %v2715
        %2986 = vmatprep.subr.mxu0 %v2720
        %2987 = vmatpush1.msra.mxu0 %v2719
        %2988 = vmatprep.mubr.f32.mxu0 %v1252
        %2989 = vmatmul.mubr.f32.gmra.mrb[0].mxu0 %v1251
        %v2990 = vpop.f32.mrb[0].mxu0
        %v2991 = vadd.f32 %v2812, %v2990
        %v2992 = vpop.f32.mrb[0].mxu0
        %v2993 = vadd.f32 %v2814, %v2992
        %2994 = vmatprep.mubr.f32.mxu0 %v1260
        %2995 = vmatmul.mubr.f32.gmra.mrb[0].mxu0 %v1259
        %v2996 = vpop.f32.mrb[0].mxu0
        %v2997 = vadd.f32 %v2818, %v2996
        %v2998 = vpop.f32.mrb[0].mxu0
        %v2999 = vadd.f32 %v2820, %v2998
        %3000 = vmatprep.mubr.f32.mxu0 %v1268
        %3001 = vmatmul.mubr.f32.gmra.mrb[0].mxu0 %v1267
        %v3002 = vpop.f32.mrb[0].mxu0
        %v3003 = vadd.f32 %v2824, %v3002
        %v3004 = vpop.f32.mrb[0].mxu0
        %v3005 = vadd.f32 %v2826, %v3004
        %3006 = vmatprep.mubr.f32.mxu0 %v1276
        %3007 = vmatmul.mubr.f32.gmra.mrb[0].mxu0 %v1275
        %v3008 = vpop.f32.mrb[0].mxu0
        %v3009 = vadd.f32 %v2830, %v3008
        %v3010 = vpop.f32.mrb[0].mxu0
        %v3011 = vadd.f32 %v2832, %v3010
        %3012 = vmatprep.mubr.f32.mxu0 %v1284
        %3013 = vmatmul.mubr.f32.gmra.mrb[0].mxu0 %v1283
        %v3014 = vpop.f32.mrb[0].mxu0
        %v3015 = vadd.f32 %v2836, %v3014
        %v3016 = vpop.f32.mrb[0].mxu0
        %v3017 = vadd.f32 %v2838, %v3016
        %3018 = vmatprep.mubr.f32.mxu0 %v1292
        %3019 = vmatmul.mubr.f32.gmra.mrb[0].mxu0 %v1291
        %v3020 = vpop.f32.mrb[0].mxu0
        %v3021 = vadd.f32 %v2842, %v3020
        %v3022 = vpop.f32.mrb[0].mxu0
        %v3023 = vadd.f32 %v2844, %v3022
        %3024 = vmatprep.mubr.f32.mxu0 %v1300
        %3025 = vmatmul.mubr.f32.gmra.mrb[0].mxu0 %v1299
        %v3026 = vpop.f32.mrb[0].mxu0
        %v3027 = vadd.f32 %v2848, %v3026
        %v3028 = vpop.f32.mrb[0].mxu0
        %v3029 = vadd.f32 %v2850, %v3028
        %3030 = vmatprep.mubr.f32.mxu0 %v1308
        %3031 = vmatmul.mubr.f32.gmra.mrb[0].mxu0 %v1307
        %v3032 = vpop.f32.mrb[0].mxu0
        %v3033 = vadd.f32 %v2854, %v3032
        %v3034 = vpop.f32.mrb[0].mxu0
        %v3035 = vadd.f32 %v2856, %v3034
        %3036 = vmatprep.mubr.f32.mxu0 %v1316
        %3037 = vmatmul.mubr.f32.gmra.mrb[0].mxu0 %v1315
        %v3038 = vpop.f32.mrb[0].mxu0
        %v3039 = vadd.f32 %v2860, %v3038
        %v3040 = vpop.f32.mrb[0].mxu0
        %v3041 = vadd.f32 %v2862, %v3040
        %3042 = vmatprep.mubr.f32.mxu0 %v1324
        %3043 = vmatmul.mubr.f32.gmra.mrb[0].mxu0 %v1323
        %v3044 = vpop.f32.mrb[0].mxu0
        %v3045 = vadd.f32 %v2866, %v3044
        %v3046 = vpop.f32.mrb[0].mxu0
        %v3047 = vadd.f32 %v2868, %v3046
        %3048 = vmatprep.mubr.f32.mxu0 %v1332
        %3049 = vmatmul.mubr.f32.gmra.mrb[0].mxu0 %v1331
        %v3050 = vpop.f32.mrb[0].mxu0
        %v3051 = vadd.f32 %v2872, %v3050
        %v3052 = vpop.f32.mrb[0].mxu0
        %v3053 = vadd.f32 %v2874, %v3052
        %3054 = vmatprep.mubr.f32.mxu0 %v1340
        %3055 = vmatmul.mubr.f32.gmra.mrb[0].mxu0 %v1339
        %v3056 = vpop.f32.mrb[0].mxu0
        %v3057 = vadd.f32 %v2878, %v3056
        %v3058 = vpop.f32.mrb[0].mxu0
        %v3059 = vadd.f32 %v2880, %v3058
        %3060 = vmatprep.mubr.f32.mxu0 %v1348
        %3061 = vmatmul.mubr.f32.gmra.mrb[0].mxu0 %v1347
        %v3062 = vpop.f32.mrb[0].mxu0
        %v3063 = vadd.f32 %v2884, %v3062
        %v3064 = vpop.f32.mrb[0].mxu0
        %v3065 = vadd.f32 %v2886, %v3064
        %3066 = vmatprep.mubr.f32.mxu0 %v1356
        %3067 = vmatmul.mubr.f32.gmra.mrb[0].mxu0 %v1355
        %v3068 = vpop.f32.mrb[0].mxu0
        %v3069 = vadd.f32 %v2890, %v3068
        %v3070 = vpop.f32.mrb[0].mxu0
        %v3071 = vadd.f32 %v2892, %v3070
        %3072 = vmatprep.mubr.f32.mxu0 %v1364
        %3073 = vmatmul.mubr.f32.gmra.mrb[0].mxu0 %v1363
        %v3074 = vpop.f32.mrb[0].mxu0
        %v3075 = vadd.f32 %v2896, %v3074
        %v3076 = vpop.f32.mrb[0].mxu0
        %v3077 = vadd.f32 %v2898, %v3076
        %3078 = vmatprep.mubr.f32.mxu0 %v1372
        %3079 = vmatmul.mubr.f32.gmra.mrb[0].mxu0 %v1371
        %v3080 = vpop.f32.mrb[0].mxu0
        %v3081 = vadd.f32 %v2902, %v3080
        %v3082 = vpop.f32.mrb[0].mxu0
        %v3083 = vadd.f32 %v2904, %v3082
        %3084 = vmatprep.mubr.f32.mxu0 %v1380
        %3085 = vmatmul.mubr.f32.gmra.mrb[0].mxu0 %v1379
        %v3086 = vpop.f32.mrb[0].mxu0
        %v3087 = vadd.f32 %v2908, %v3086
        %v3088 = vpop.f32.mrb[0].mxu0
        %v3089 = vadd.f32 %v2910, %v3088
        %3090 = vmatprep.mubr.f32.mxu0 %v1388
        %3091 = vmatmul.mubr.f32.gmra.mrb[0].mxu0 %v1387
        %v3092 = vpop.f32.mrb[0].mxu0
        %v3093 = vadd.f32 %v2914, %v3092
        %v3094 = vpop.f32.mrb[0].mxu0
        %v3095 = vadd.f32 %v2916, %v3094
        %3096 = vmatprep.mubr.f32.mxu0 %v1396
        %3097 = vmatmul.mubr.f32.gmra.mrb[0].mxu0 %v1395
        %v3098 = vpop.f32.mrb[0].mxu0
        %v3099 = vadd.f32 %v2920, %v3098
        %v3100 = vpop.f32.mrb[0].mxu0
        %v3101 = vadd.f32 %v2922, %v3100
        %3102 = vdwg.mxu0
        %3103 = vmatprep.subr.mxu0 %v2470
        %3104 = vmatpush1.msra.mxu0 %v2469
        %3105 = vmatprep.subr.mxu0 %v2474
        %3106 = vmatpush1.msra.mxu0 %v2473
        %3107 = vmatprep.subr.mxu0 %v2478
        %3108 = vmatpush1.msra.mxu0 %v2477
        %3109 = vmatprep.subr.mxu0 %v2482
        %3110 = vmatpush1.msra.mxu0 %v2481
        %3111 = vmatprep.subr.mxu0 %v2486
        %3112 = vmatpush1.msra.mxu0 %v2485
        %3113 = vmatprep.subr.mxu0 %v2490
        %3114 = vmatpush1.msra.mxu0 %v2489
        %3115 = vmatprep.subr.mxu0 %v2494
        %3116 = vmatpush1.msra.mxu0 %v2493
        %3117 = vmatprep.subr.mxu0 %v2498
        %3118 = vmatpush1.msra.mxu0 %v2497
        %3119 = vmatprep.subr.mxu0 %v2502
        %3120 = vmatpush1.msra.mxu0 %v2501
        %3121 = vmatprep.subr.mxu0 %v2506
        %3122 = vmatpush1.msra.mxu0 %v2505
        %3123 = vmatprep.subr.mxu0 %v2510
        %3124 = vmatpush1.msra.mxu0 %v2509
        %3125 = vmatprep.subr.mxu0 %v2514
        %3126 = vmatpush1.msra.mxu0 %v2513
        %3127 = vmatprep.subr.mxu0 %v2518
        %3128 = vmatpush1.msra.mxu0 %v2517
        %3129 = vmatprep.subr.mxu0 %v2522
        %3130 = vmatpush1.msra.mxu0 %v2521
        %3131 = vmatprep.subr.mxu0 %v2526
        %3132 = vmatpush1.msra.mxu0 %v2525
        %3133 = vmatprep.subr.mxu0 %v2530
        %3134 = vmatpush1.msra.mxu0 %v2529
        %3135 = vmatprep.subr.mxu0 %v2534
        %3136 = vmatpush1.msra.mxu0 %v2533
        %3137 = vmatprep.subr.mxu0 %v2538
        %3138 = vmatpush1.msra.mxu0 %v2537
        %3139 = vmatprep.subr.mxu0 %v2542
        %3140 = vmatpush1.msra.mxu0 %v2541
        %3141 = vmatprep.subr.mxu0 %v2546
        %3142 = vmatpush1.msra.mxu0 %v2545
        %3143 = vmatprep.subr.mxu0 %v2550
        %3144 = vmatpush1.msra.mxu0 %v2549
        %3145 = vmatprep.subr.mxu0 %v2554
        %3146 = vmatpush1.msra.mxu0 %v2553
        %3147 = vmatprep.subr.mxu0 %v2558
        %3148 = vmatpush1.msra.mxu0 %v2557
        %3149 = vmatprep.subr.mxu0 %v2562
        %3150 = vmatpush1.msra.mxu0 %v2561
        %3151 = vmatprep.subr.mxu0 %v2566
        %3152 = vmatpush1.msra.mxu0 %v2565
        %3153 = vmatprep.subr.mxu0 %v2570
        %3154 = vmatpush1.msra.mxu0 %v2569
        %3155 = vmatprep.subr.mxu0 %v2574
        %3156 = vmatpush1.msra.mxu0 %v2573
        %3157 = vmatprep.subr.mxu0 %v2578
        %3158 = vmatpush1.msra.mxu0 %v2577
        %3159 = vmatprep.subr.mxu0 %v2582
        %3160 = vmatpush1.msra.mxu0 %v2581
        %3161 = vmatprep.subr.mxu0 %v2586
        %3162 = vmatpush1.msra.mxu0 %v2585
        %3163 = vmatprep.subr.mxu0 %v2590
        %3164 = vmatpush1.msra.mxu0 %v2589
        %3165 = vmatprep.subr.mxu0 %v2594
        %3166 = vmatpush1.msra.mxu0 %v2593
        %3167 = vmatprep.mubr.f32.mxu0 %v1250
        %3168 = vmatmul.mubr.f32.gmra.mrb[0].mxu0 %v1249
        %v3169 = vpop.f32.mrb[0].mxu0
        %v3170 = vadd.f32 %v2736, %v3169
        %v3171 = vpop.f32.mrb[0].mxu0
        %v3172 = vadd.f32 %v2740, %v3171
        %3173 = vmatprep.mubr.f32.mxu0 %v1258
        %3174 = vmatmul.mubr.f32.gmra.mrb[0].mxu0 %v1257
        %v3175 = vpop.f32.mrb[0].mxu0
        %v3176 = vadd.f32 %v2736, %v3175
        %v3177 = vpop.f32.mrb[0].mxu0
        %v3178 = vadd.f32 %v2740, %v3177
        %3179 = vmatprep.mubr.f32.mxu0 %v1266
        %3180 = vmatmul.mubr.f32.gmra.mrb[0].mxu0 %v1265
        %v3181 = vpop.f32.mrb[0].mxu0
        %v3182 = vadd.f32 %v2736, %v3181
        %v3183 = vpop.f32.mrb[0].mxu0
        %v3184 = vadd.f32 %v2740, %v3183
        %3185 = vmatprep.mubr.f32.mxu0 %v1274
        %3186 = vmatmul.mubr.f32.gmra.mrb[0].mxu0 %v1273
        %v3187 = vpop.f32.mrb[0].mxu0
        %v3188 = vadd.f32 %v2736, %v3187
        %v3189 = vpop.f32.mrb[0].mxu0
        %v3190 = vadd.f32 %v2740, %v3189
        %3191 = vmatprep.mubr.f32.mxu0 %v1282
        %3192 = vmatmul.mubr.f32.gmra.mrb[0].mxu0 %v1281
        %v3193 = vpop.f32.mrb[0].mxu0
        %v3194 = vadd.f32 %v2736, %v3193
        %v3195 = vpop.f32.mrb[0].mxu0
        %v3196 = vadd.f32 %v2740, %v3195
        %3197 = vmatprep.mubr.f32.mxu0 %v1290
        %3198 = vmatmul.mubr.f32.gmra.mrb[0].mxu0 %v1289
        %v3199 = vpop.f32.mrb[0].mxu0
        %v3200 = vadd.f32 %v2736, %v3199
        %v3201 = vpop.f32.mrb[0].mxu0
        %v3202 = vadd.f32 %v2740, %v3201
        %3203 = vmatprep.mubr.f32.mxu0 %v1298
        %3204 = vmatmul.mubr.f32.gmra.mrb[0].mxu0 %v1297
        %v3205 = vpop.f32.mrb[0].mxu0
        %v3206 = vadd.f32 %v2736, %v3205
        %v3207 = vpop.f32.mrb[0].mxu0
        %v3208 = vadd.f32 %v2740, %v3207
        %3209 = vmatprep.mubr.f32.mxu0 %v1306
        %3210 = vmatmul.mubr.f32.gmra.mrb[0].mxu0 %v1305
        %v3211 = vpop.f32.mrb[0].mxu0
        %v3212 = vadd.f32 %v2736, %v3211
        %v3213 = vpop.f32.mrb[0].mxu0
        %v3214 = vadd.f32 %v2740, %v3213
        %3215 = vmatprep.mubr.f32.mxu0 %v1314
        %3216 = vmatmul.mubr.f32.gmra.mrb[0].mxu0 %v1313
        %v3217 = vpop.f32.mrb[0].mxu0
        %v3218 = vadd.f32 %v2736, %v3217
        %v3219 = vpop.f32.mrb[0].mxu0
        %v3220 = vadd.f32 %v2740, %v3219
        %3221 = vmatprep.mubr.f32.mxu0 %v1322
        %3222 = vmatmul.mubr.f32.gmra.mrb[0].mxu0 %v1321
        %v3223 = vpop.f32.mrb[0].mxu0
        %v3224 = vadd.f32 %v2736, %v3223
        %v3225 = vpop.f32.mrb[0].mxu0
        %v3226 = vadd.f32 %v2740, %v3225
        %3227 = vmatprep.mubr.f32.mxu0 %v1330
        %3228 = vmatmul.mubr.f32.gmra.mrb[0].mxu0 %v1329
        %v3229 = vpop.f32.mrb[0].mxu0
        %v3230 = vadd.f32 %v2736, %v3229
        %v3231 = vpop.f32.mrb[0].mxu0
        %v3232 = vadd.f32 %v2740, %v3231
        %3233 = vmatprep.mubr.f32.mxu0 %v1338
        %3234 = vmatmul.mubr.f32.gmra.mrb[0].mxu0 %v1337
        %v3235 = vpop.f32.mrb[0].mxu0
        %v3236 = vadd.f32 %v2736, %v3235
        %v3237 = vpop.f32.mrb[0].mxu0
        %v3238 = vadd.f32 %v2740, %v3237
        %3239 = vmatprep.mubr.f32.mxu0 %v1346
        %3240 = vmatmul.mubr.f32.gmra.mrb[0].mxu0 %v1345
        %v3241 = vpop.f32.mrb[0].mxu0
        %v3242 = vadd.f32 %v2736, %v3241
        %v3243 = vpop.f32.mrb[0].mxu0
        %v3244 = vadd.f32 %v2740, %v3243
        %3245 = vmatprep.mubr.f32.mxu0 %v1354
        %3246 = vmatmul.mubr.f32.gmra.mrb[0].mxu0 %v1353
        %v3247 = vpop.f32.mrb[0].mxu0
        %v3248 = vadd.f32 %v2736, %v3247
        %v3249 = vpop.f32.mrb[0].mxu0
        %v3250 = vadd.f32 %v2740, %v3249
        %3251 = vmatprep.mubr.f32.mxu0 %v1362
        %3252 = vmatmul.mubr.f32.gmra.mrb[0].mxu0 %v1361
        %v3253 = vpop.f32.mrb[0].mxu0
        %v3254 = vadd.f32 %v2736, %v3253
        %v3255 = vpop.f32.mrb[0].mxu0
        %v3256 = vadd.f32 %v2740, %v3255
        %3257 = vmatprep.mubr.f32.mxu0 %v1370
        %3258 = vmatmul.mubr.f32.gmra.mrb[0].mxu0 %v1369
        %v3259 = vpop.f32.mrb[0].mxu0
        %v3260 = vadd.f32 %v2736, %v3259
        %v3261 = vpop.f32.mrb[0].mxu0
        %v3262 = vadd.f32 %v2740, %v3261
        %3263 = vmatprep.mubr.f32.mxu0 %v1378
        %3264 = vmatmul.mubr.f32.gmra.mrb[0].mxu0 %v1377
        %v3265 = vpop.f32.mrb[0].mxu0
        %v3266 = vadd.f32 %v2736, %v3265
        %v3267 = vpop.f32.mrb[0].mxu0
        %v3268 = vadd.f32 %v2740, %v3267
        %3269 = vmatprep.mubr.f32.mxu0 %v1386
        %3270 = vmatmul.mubr.f32.gmra.mrb[0].mxu0 %v1385
        %v3271 = vpop.f32.mrb[0].mxu0
        %v3272 = vadd.f32 %v2736, %v3271
        %v3273 = vpop.f32.mrb[0].mxu0
        %v3274 = vadd.f32 %v2740, %v3273
        %3275 = vmatprep.mubr.f32.mxu0 %v1394
        %3276 = vmatmul.mubr.f32.gmra.mrb[0].mxu0 %v1393
        %v3277 = vpop.f32.mrb[0].mxu0
        %v3278 = vadd.f32 %v2736, %v3277
        %v3279 = vpop.f32.mrb[0].mxu0
        %v3280 = vadd.f32 %v2740, %v3279
        %3281 = vdwg.mxu0
        %3282 = vmatprep.subr.mxu0 %v2598
        %3283 = vmatpush1.msra.mxu0 %v2597
        %3284 = vmatprep.subr.mxu0 %v2602
        %3285 = vmatpush1.msra.mxu0 %v2601
        %3286 = vmatprep.subr.mxu0 %v2606
        %3287 = vmatpush1.msra.mxu0 %v2605
        %3288 = vmatprep.subr.mxu0 %v2610
        %3289 = vmatpush1.msra.mxu0 %v2609
        %3290 = vmatprep.subr.mxu0 %v2614
        %3291 = vmatpush1.msra.mxu0 %v2613
        %3292 = vmatprep.subr.mxu0 %v2618
        %3293 = vmatpush1.msra.mxu0 %v2617
        %3294 = vmatprep.subr.mxu0 %v2622
        %3295 = vmatpush1.msra.mxu0 %v2621
        %3296 = vmatprep.subr.mxu0 %v2626
        %3297 = vmatpush1.msra.mxu0 %v2625
        %3298 = vmatprep.subr.mxu0 %v2630
        %3299 = vmatpush1.msra.mxu0 %v2629
        %3300 = vmatprep.subr.mxu0 %v2634
        %3301 = vmatpush1.msra.mxu0 %v2633
        %3302 = vmatprep.subr.mxu0 %v2638
        %3303 = vmatpush1.msra.mxu0 %v2637
        %3304 = vmatprep.subr.mxu0 %v2642
        %3305 = vmatpush1.msra.mxu0 %v2641
        %3306 = vmatprep.subr.mxu0 %v2646
        %3307 = vmatpush1.msra.mxu0 %v2645
        %3308 = vmatprep.subr.mxu0 %v2650
        %3309 = vmatpush1.msra.mxu0 %v2649
        %3310 = vmatprep.subr.mxu0 %v2654
        %3311 = vmatpush1.msra.mxu0 %v2653
        %3312 = vmatprep.subr.mxu0 %v2658
        %3313 = vmatpush1.msra.mxu0 %v2657
        %3314 = vmatprep.subr.mxu0 %v2662
        %3315 = vmatpush1.msra.mxu0 %v2661
        %3316 = vmatprep.subr.mxu0 %v2666
        %3317 = vmatpush1.msra.mxu0 %v2665
        %3318 = vmatprep.subr.mxu0 %v2670
        %3319 = vmatpush1.msra.mxu0 %v2669
        %3320 = vmatprep.subr.mxu0 %v2674
        %3321 = vmatpush1.msra.mxu0 %v2673
        %3322 = vmatprep.subr.mxu0 %v2678
        %3323 = vmatpush1.msra.mxu0 %v2677
        %3324 = vmatprep.subr.mxu0 %v2682
        %3325 = vmatpush1.msra.mxu0 %v2681
        %3326 = vmatprep.subr.mxu0 %v2686
        %3327 = vmatpush1.msra.mxu0 %v2685
        %3328 = vmatprep.subr.mxu0 %v2690
        %3329 = vmatpush1.msra.mxu0 %v2689
        %3330 = vmatprep.subr.mxu0 %v2694
        %3331 = vmatpush1.msra.mxu0 %v2693
        %3332 = vmatprep.subr.mxu0 %v2698
        %3333 = vmatpush1.msra.mxu0 %v2697
        %3334 = vmatprep.subr.mxu0 %v2702
        %3335 = vmatpush1.msra.mxu0 %v2701
        %3336 = vmatprep.subr.mxu0 %v2706
        %3337 = vmatpush1.msra.mxu0 %v2705
        %3338 = vmatprep.subr.mxu0 %v2710
        %3339 = vmatpush1.msra.mxu0 %v2709
        %3340 = vmatprep.subr.mxu0 %v2714
        %3341 = vmatpush1.msra.mxu0 %v2713
        %3342 = vmatprep.subr.mxu0 %v2718
        %3343 = vmatpush1.msra.mxu0 %v2717
        %3344 = vmatprep.subr.mxu0 %v2722
        %3345 = vmatpush1.msra.mxu0 %v2721
        %3346 = vmatprep.mubr.f32.mxu0 %v1252
        %3347 = vmatmul.mubr.f32.gmra.mrb[0].mxu0 %v1251
        %v3348 = vpop.f32.mrb[0].mxu0
        %v3349 = vadd.f32 %v3170, %v3348
        %v3350 = vpop.f32.mrb[0].mxu0
        %v3351 = vadd.f32 %v3172, %v3350
        %3352 = vmatprep.mubr.f32.mxu0 %v1260
        %3353 = vmatmul.mubr.f32.gmra.mrb[0].mxu0 %v1259
        %v3354 = vpop.f32.mrb[0].mxu0
        %v3355 = vadd.f32 %v3176, %v3354
        %v3356 = vpop.f32.mrb[0].mxu0
        %v3357 = vadd.f32 %v3178, %v3356
        %3358 = vmatprep.mubr.f32.mxu0 %v1268
        %3359 = vmatmul.mubr.f32.gmra.mrb[0].mxu0 %v1267
        %v3360 = vpop.f32.mrb[0].mxu0
        %v3361 = vadd.f32 %v3182, %v3360
        %v3362 = vpop.f32.mrb[0].mxu0
        %v3363 = vadd.f32 %v3184, %v3362
        %3364 = vmatprep.mubr.f32.mxu0 %v1276
        %3365 = vmatmul.mubr.f32.gmra.mrb[0].mxu0 %v1275
        %v3366 = vpop.f32.mrb[0].mxu0
        %v3367 = vadd.f32 %v3188, %v3366
        %v3368 = vpop.f32.mrb[0].mxu0
        %v3369 = vadd.f32 %v3190, %v3368
        %3370 = vmatprep.mubr.f32.mxu0 %v1284
        %3371 = vmatmul.mubr.f32.gmra.mrb[0].mxu0 %v1283
        %v3372 = vpop.f32.mrb[0].mxu0
        %v3373 = vadd.f32 %v3194, %v3372
        %v3374 = vpop.f32.mrb[0].mxu0
        %v3375 = vadd.f32 %v3196, %v3374
        %3376 = vmatprep.mubr.f32.mxu0 %v1292
        %3377 = vmatmul.mubr.f32.gmra.mrb[0].mxu0 %v1291
        %v3378 = vpop.f32.mrb[0].mxu0
        %v3379 = vadd.f32 %v3200, %v3378
        %v3380 = vpop.f32.mrb[0].mxu0
        %v3381 = vadd.f32 %v3202, %v3380
        %3382 = vmatprep.mubr.f32.mxu0 %v1300
        %3383 = vmatmul.mubr.f32.gmra.mrb[0].mxu0 %v1299
        %v3384 = vpop.f32.mrb[0].mxu0
        %v3385 = vadd.f32 %v3206, %v3384
        %v3386 = vpop.f32.mrb[0].mxu0
        %v3387 = vadd.f32 %v3208, %v3386
        %3388 = vmatprep.mubr.f32.mxu0 %v1308
        %3389 = vmatmul.mubr.f32.gmra.mrb[0].mxu0 %v1307
        %v3390 = vpop.f32.mrb[0].mxu0
        %v3391 = vadd.f32 %v3212, %v3390
        %v3392 = vpop.f32.mrb[0].mxu0
        %v3393 = vadd.f32 %v3214, %v3392
        %3394 = vmatprep.mubr.f32.mxu0 %v1316
        %3395 = vmatmul.mubr.f32.gmra.mrb[0].mxu0 %v1315
        %v3396 = vpop.f32.mrb[0].mxu0
        %v3397 = vadd.f32 %v3218, %v3396
        %v3398 = vpop.f32.mrb[0].mxu0
        %v3399 = vadd.f32 %v3220, %v3398
        %3400 = vmatprep.mubr.f32.mxu0 %v1324
        %3401 = vmatmul.mubr.f32.gmra.mrb[0].mxu0 %v1323
        %v3402 = vpop.f32.mrb[0].mxu0
        %v3403 = vadd.f32 %v3224, %v3402
        %v3404 = vpop.f32.mrb[0].mxu0
        %v3405 = vadd.f32 %v3226, %v3404
        %3406 = vmatprep.mubr.f32.mxu0 %v1332
        %3407 = vmatmul.mubr.f32.gmra.mrb[0].mxu0 %v1331
        %v3408 = vpop.f32.mrb[0].mxu0
        %v3409 = vadd.f32 %v3230, %v3408
        %v3410 = vpop.f32.mrb[0].mxu0
        %v3411 = vadd.f32 %v3232, %v3410
        %3412 = vmatprep.mubr.f32.mxu0 %v1340
        %3413 = vmatmul.mubr.f32.gmra.mrb[0].mxu0 %v1339
        %v3414 = vpop.f32.mrb[0].mxu0
        %v3415 = vadd.f32 %v3236, %v3414
        %v3416 = vpop.f32.mrb[0].mxu0
        %v3417 = vadd.f32 %v3238, %v3416
        %3418 = vmatprep.mubr.f32.mxu0 %v1348
        %3419 = vmatmul.mubr.f32.gmra.mrb[0].mxu0 %v1347
        %v3420 = vpop.f32.mrb[0].mxu0
        %v3421 = vadd.f32 %v3242, %v3420
        %v3422 = vpop.f32.mrb[0].mxu0
        %v3423 = vadd.f32 %v3244, %v3422
        %3424 = vmatprep.mubr.f32.mxu0 %v1356
        %3425 = vmatmul.mubr.f32.gmra.mrb[0].mxu0 %v1355
        %v3426 = vpop.f32.mrb[0].mxu0
        %v3427 = vadd.f32 %v3248, %v3426
        %v3428 = vpop.f32.mrb[0].mxu0
        %v3429 = vadd.f32 %v3250, %v3428
        %3430 = vmatprep.mubr.f32.mxu0 %v1364
        %3431 = vmatmul.mubr.f32.gmra.mrb[0].mxu0 %v1363
        %v3432 = vpop.f32.mrb[0].mxu0
        %v3433 = vadd.f32 %v3254, %v3432
        %v3434 = vpop.f32.mrb[0].mxu0
        %v3435 = vadd.f32 %v3256, %v3434
        %3436 = vmatprep.mubr.f32.mxu0 %v1372
        %3437 = vmatmul.mubr.f32.gmra.mrb[0].mxu0 %v1371
        %v3438 = vpop.f32.mrb[0].mxu0
        %v3439 = vadd.f32 %v3260, %v3438
        %v3440 = vpop.f32.mrb[0].mxu0
        %v3441 = vadd.f32 %v3262, %v3440
        %3442 = vmatprep.mubr.f32.mxu0 %v1380
        %3443 = vmatmul.mubr.f32.gmra.mrb[0].mxu0 %v1379
        %v3444 = vpop.f32.mrb[0].mxu0
        %v3445 = vadd.f32 %v3266, %v3444
        %v3446 = vpop.f32.mrb[0].mxu0
        %v3447 = vadd.f32 %v3268, %v3446
        %3448 = vmatprep.mubr.f32.mxu0 %v1388
        %3449 = vmatmul.mubr.f32.gmra.mrb[0].mxu0 %v1387
        %v3450 = vpop.f32.mrb[0].mxu0
        %v3451 = vadd.f32 %v3272, %v3450
        %v3452 = vpop.f32.mrb[0].mxu0
        %v3453 = vadd.f32 %v3274, %v3452
        %3454 = vmatprep.mubr.f32.mxu0 %v1396
        %3455 = vmatmul.mubr.f32.gmra.mrb[0].mxu0 %v1395
        %v3456 = vpop.f32.mrb[0].mxu0
        %v3457 = vadd.f32 %v3278, %v3456
        %v3458 = vpop.f32.mrb[0].mxu0
        %v3459 = vadd.f32 %v3280, %v3458
        %3460 = vdwg.mxu0
        %v3461 = vmax.f32 %v2991, 0.0
        %v3462 = vmax.f32 %v2993, 0.0
        %v3463 = vmax.f32 %v3349, 0.0
        %v3464 = vmax.f32 %v3351, 0.0
        %v3465 = vmax.f32 %v2997, 0.0
        %v3466 = vmax.f32 %v2999, 0.0
        %v3467 = vmax.f32 %v3355, 0.0
        %v3468 = vmax.f32 %v3357, 0.0
        %v3469 = vmax.f32 %v3003, 0.0
        %v3470 = vmax.f32 %v3005, 0.0
        %v3471 = vmax.f32 %v3361, 0.0
        %v3472 = vmax.f32 %v3363, 0.0
        %v3473 = vmax.f32 %v3009, 0.0
        %v3474 = vmax.f32 %v3011, 0.0
        %v3475 = vmax.f32 %v3367, 0.0
        %v3476 = vmax.f32 %v3369, 0.0
        %v3477 = vmax.f32 %v3015, 0.0
        %v3478 = vmax.f32 %v3017, 0.0
        %v3479 = vmax.f32 %v3373, 0.0
        %v3480 = vmax.f32 %v3375, 0.0
        %v3481 = vmax.f32 %v3021, 0.0
        %v3482 = vmax.f32 %v3023, 0.0
        %v3483 = vmax.f32 %v3379, 0.0
        %v3484 = vmax.f32 %v3381, 0.0
        %v3485 = vmax.f32 %v3027, 0.0
        %v3486 = vmax.f32 %v3029, 0.0
        %v3487 = vmax.f32 %v3385, 0.0
        %v3488 = vmax.f32 %v3387, 0.0
        %v3489 = vmax.f32 %v3033, 0.0
        %v3490 = vmax.f32 %v3035, 0.0
        %v3491 = vmax.f32 %v3391, 0.0
        %v3492 = vmax.f32 %v3393, 0.0
        %v3493 = vmax.f32 %v3039, 0.0
        %v3494 = vmax.f32 %v3041, 0.0
        %v3495 = vmax.f32 %v3397, 0.0
        %v3496 = vmax.f32 %v3399, 0.0
        %v3497 = vmax.f32 %v3045, 0.0
        %v3498 = vmax.f32 %v3047, 0.0
        %v3499 = vmax.f32 %v3403, 0.0
        %v3500 = vmax.f32 %v3405, 0.0
        %v3501 = vmax.f32 %v3051, 0.0
        %v3502 = vmax.f32 %v3053, 0.0
        %v3503 = vmax.f32 %v3409, 0.0
        %v3504 = vmax.f32 %v3411, 0.0
        %v3505 = vmax.f32 %v3057, 0.0
        %v3506 = vmax.f32 %v3059, 0.0
        %v3507 = vmax.f32 %v3415, 0.0
        %v3508 = vmax.f32 %v3417, 0.0
        %v3509 = vmax.f32 %v3063, 0.0
        %v3510 = vmax.f32 %v3065, 0.0
        %v3511 = vmax.f32 %v3421, 0.0
        %v3512 = vmax.f32 %v3423, 0.0
        %v3513 = vmax.f32 %v3069, 0.0
        %v3514 = vmax.f32 %v3071, 0.0
        %v3515 = vmax.f32 %v3427, 0.0
        %v3516 = vmax.f32 %v3429, 0.0
        %v3517 = vmax.f32 %v3075, 0.0
        %v3518 = vmax.f32 %v3077, 0.0
        %v3519 = vmax.f32 %v3433, 0.0
        %v3520 = vmax.f32 %v3435, 0.0
        %v3521 = vmax.f32 %v3081, 0.0
        %v3522 = vmax.f32 %v3083, 0.0
        %v3523 = vmax.f32 %v3439, 0.0
        %v3524 = vmax.f32 %v3441, 0.0
        %v3525 = vmax.f32 %v3087, 0.0
        %v3526 = vmax.f32 %v3089, 0.0
        %v3527 = vmax.f32 %v3445, 0.0
        %v3528 = vmax.f32 %v3447, 0.0
        %v3529 = vmax.f32 %v3093, 0.0
        %v3530 = vmax.f32 %v3095, 0.0
        %v3531 = vmax.f32 %v3451, 0.0
        %v3532 = vmax.f32 %v3453, 0.0
        %v3533 = vmax.f32 %v3099, 0.0
        %v3534 = vmax.f32 %v3101, 0.0
        %v3535 = vmax.f32 %v3457, 0.0
        %v3536 = vmax.f32 %v3459, 0.0
        %v3537 = vld [vmem:[#allocation7] sm:$0xff]
        %v3538 = vld [vmem:[#allocation7 + $0x8] sm:$0xff]
        %v3539 = vld [vmem:[#allocation7 + $0x10] sm:$0xff]
        %v3540 = vld [vmem:[#allocation7 + $0x18] sm:$0xff]
        %v3541 = vld [vmem:[#allocation7 + $0x20] sm:$0xff]
        %v3542 = vld [vmem:[#allocation7 + $0x28] sm:$0xff]
        %v3543 = vld [vmem:[#allocation7 + $0x30] sm:$0xff]
        %v3544 = vld [vmem:[#allocation7 + $0x38] sm:$0xff]
        %v3545 = vld [vmem:[#allocation7 + $0x40] sm:$0xff]
        %v3546 = vld [vmem:[#allocation7 + $0x48] sm:$0xff]
        %v3547 = vld [vmem:[#allocation7 + $0x50] sm:$0xff]
        %v3548 = vld [vmem:[#allocation7 + $0x58] sm:$0xff]
        %v3549 = vld [vmem:[#allocation7 + $0x60] sm:$0xff]
        %v3550 = vld [vmem:[#allocation7 + $0x68] sm:$0xff]
        %v3551 = vld [vmem:[#allocation7 + $0x70] sm:$0xff]
        %v3552 = vld [vmem:[#allocation7 + $0x78] sm:$0xff]
        %v3553 = vld [vmem:[#allocation7 + $0x80] sm:$0xff]
        %v3554 = vld [vmem:[#allocation7 + $0x88] sm:$0xff]
        %v3555 = vld [vmem:[#allocation7 + $0x90] sm:$0xff]
        %v3556 = vld [vmem:[#allocation7 + $0x98] sm:$0xff]
        %v3557 = vld [vmem:[#allocation7 + $0xa0] sm:$0xff]
        %v3558 = vld [vmem:[#allocation7 + $0xa8] sm:$0xff]
        %v3559 = vld [vmem:[#allocation7 + $0xb0] sm:$0xff]
        %v3560 = vld [vmem:[#allocation7 + $0xb8] sm:$0xff]
        %v3561 = vld [vmem:[#allocation7 + $0xc0] sm:$0xff]
        %v3562 = vld [vmem:[#allocation7 + $0xc8] sm:$0xff]
        %v3563 = vld [vmem:[#allocation7 + $0xd0] sm:$0xff]
        %v3564 = vld [vmem:[#allocation7 + $0xd8] sm:$0xff]
        %v3565 = vld [vmem:[#allocation7 + $0xe0] sm:$0xff]
        %v3566 = vld [vmem:[#allocation7 + $0xe8] sm:$0xff]
        %v3567 = vld [vmem:[#allocation7 + $0xf0] sm:$0xff]
        %v3568 = vld [vmem:[#allocation7 + $0xf8] sm:$0xff]
        %v3569 = vld [vmem:[#allocation7 + $0x100] sm:$0xff]
        %v3570 = vld [vmem:[#allocation7 + $0x108] sm:$0xff]
        %v3571 = vld [vmem:[#allocation7 + $0x110] sm:$0xff]
        %v3572 = vld [vmem:[#allocation7 + $0x118] sm:$0xff]
        %v3573 = vld [vmem:[#allocation7 + $0x120] sm:$0xff]
        %v3574 = vld [vmem:[#allocation7 + $0x128] sm:$0xff]
        %v3575 = vld [vmem:[#allocation7 + $0x130] sm:$0xff]
        %v3576 = vld [vmem:[#allocation7 + $0x138] sm:$0xff]
        %v3577 = vld [vmem:[#allocation7 + $0x140] sm:$0xff]
        %v3578 = vld [vmem:[#allocation7 + $0x148] sm:$0xff]
        %v3579 = vld [vmem:[#allocation7 + $0x150] sm:$0xff]
        %v3580 = vld [vmem:[#allocation7 + $0x158] sm:$0xff]
        %v3581 = vld [vmem:[#allocation7 + $0x160] sm:$0xff]
        %v3582 = vld [vmem:[#allocation7 + $0x168] sm:$0xff]
        %v3583 = vld [vmem:[#allocation7 + $0x170] sm:$0xff]
        %v3584 = vld [vmem:[#allocation7 + $0x178] sm:$0xff]
        %v3585 = vld [vmem:[#allocation7 + $0x180] sm:$0xff]
        %v3586 = vld [vmem:[#allocation7 + $0x188] sm:$0xff]
        %v3587 = vld [vmem:[#allocation7 + $0x190] sm:$0xff]
        %v3588 = vld [vmem:[#allocation7 + $0x198] sm:$0xff]
        %v3589 = vld [vmem:[#allocation7 + $0x1a0] sm:$0xff]
        %v3590 = vld [vmem:[#allocation7 + $0x1a8] sm:$0xff]
        %v3591 = vld [vmem:[#allocation7 + $0x1b0] sm:$0xff]
        %v3592 = vld [vmem:[#allocation7 + $0x1b8] sm:$0xff]
        %v3593 = vld [vmem:[#allocation7 + $0x1c0] sm:$0xff]
        %v3594 = vld [vmem:[#allocation7 + $0x1c8] sm:$0xff]
        %v3595 = vld [vmem:[#allocation7 + $0x1d0] sm:$0xff]
        %v3596 = vld [vmem:[#allocation7 + $0x1d8] sm:$0xff]
        %v3597 = vld [vmem:[#allocation7 + $0x1e0] sm:$0xff]
        %v3598 = vld [vmem:[#allocation7 + $0x1e8] sm:$0xff]
        %v3599 = vld [vmem:[#allocation7 + $0x1f0] sm:$0xff]
        %v3600 = vld [vmem:[#allocation7 + $0x1f8] sm:$0xff]
        %v3601 = vld [vmem:[#allocation7 + $0x200] sm:$0xff]
        %v3602 = vld [vmem:[#allocation7 + $0x208] sm:$0xff]
        %v3603 = vld [vmem:[#allocation7 + $0x210] sm:$0xff]
        %v3604 = vld [vmem:[#allocation7 + $0x218] sm:$0xff]
        %v3605 = vld [vmem:[#allocation7 + $0x220] sm:$0xff]
        %v3606 = vld [vmem:[#allocation7 + $0x228] sm:$0xff]
        %v3607 = vld [vmem:[#allocation7 + $0x230] sm:$0xff]
        %v3608 = vld [vmem:[#allocation7 + $0x238] sm:$0xff]
        %v3609 = vld [vmem:[#allocation7 + $0x240] sm:$0xff]
        %v3610 = vld [vmem:[#allocation7 + $0x248] sm:$0xff]
        %v3611 = vld [vmem:[#allocation7 + $0x250] sm:$0xff]
        %v3612 = vld [vmem:[#allocation7 + $0x258] sm:$0xff]
        %v3613 = vld [vmem:[#allocation7 + $0x260] sm:$0xff]
        %v3614 = vld [vmem:[#allocation7 + $0x268] sm:$0xff]
        %v3615 = vld [vmem:[#allocation7 + $0x270] sm:$0xff]
        %v3616 = vld [vmem:[#allocation7 + $0x278] sm:$0xff]
        %v3617 = vld [vmem:[#allocation7 + $0x280] sm:$0xff]
        %v3618 = vld [vmem:[#allocation7 + $0x288] sm:$0xff]
        %v3619 = vld [vmem:[#allocation7 + $0x290] sm:$0xff]
        %v3620 = vld [vmem:[#allocation7 + $0x298] sm:$0xff]
        %v3621 = vld [vmem:[#allocation7 + $0x2a0] sm:$0xff]
        %v3622 = vld [vmem:[#allocation7 + $0x2a8] sm:$0xff]
        %v3623 = vld [vmem:[#allocation7 + $0x2b0] sm:$0xff]
        %v3624 = vld [vmem:[#allocation7 + $0x2b8] sm:$0xff]
        %v3625 = vld [vmem:[#allocation7 + $0x2c0] sm:$0xff]
        %v3626 = vld [vmem:[#allocation7 + $0x2c8] sm:$0xff]
        %v3627 = vld [vmem:[#allocation7 + $0x2d0] sm:$0xff]
        %v3628 = vld [vmem:[#allocation7 + $0x2d8] sm:$0xff]
        %v3629 = vld [vmem:[#allocation7 + $0x2e0] sm:$0xff]
        %v3630 = vld [vmem:[#allocation7 + $0x2e8] sm:$0xff]
        %v3631 = vld [vmem:[#allocation7 + $0x2f0] sm:$0xff]
        %v3632 = vld [vmem:[#allocation7 + $0x2f8] sm:$0xff]
        %v3633 = vld [vmem:[#allocation7 + $0x300] sm:$0xff]
        %v3634 = vld [vmem:[#allocation7 + $0x308] sm:$0xff]
        %v3635 = vld [vmem:[#allocation7 + $0x310] sm:$0xff]
        %v3636 = vld [vmem:[#allocation7 + $0x318] sm:$0xff]
        %v3637 = vld [vmem:[#allocation7 + $0x320] sm:$0xff]
        %v3638 = vld [vmem:[#allocation7 + $0x328] sm:$0xff]
        %v3639 = vld [vmem:[#allocation7 + $0x330] sm:$0xff]
        %v3640 = vld [vmem:[#allocation7 + $0x338] sm:$0xff]
        %v3641 = vld [vmem:[#allocation7 + $0x340] sm:$0xff]
        %v3642 = vld [vmem:[#allocation7 + $0x348] sm:$0xff]
        %v3643 = vld [vmem:[#allocation7 + $0x350] sm:$0xff]
        %v3644 = vld [vmem:[#allocation7 + $0x358] sm:$0xff]
        %v3645 = vld [vmem:[#allocation7 + $0x360] sm:$0xff]
        %v3646 = vld [vmem:[#allocation7 + $0x368] sm:$0xff]
        %v3647 = vld [vmem:[#allocation7 + $0x370] sm:$0xff]
        %v3648 = vld [vmem:[#allocation7 + $0x378] sm:$0xff]
        %v3649 = vld [vmem:[#allocation7 + $0x380] sm:$0xff]
        %v3650 = vld [vmem:[#allocation7 + $0x388] sm:$0xff]
        %v3651 = vld [vmem:[#allocation7 + $0x390] sm:$0xff]
        %v3652 = vld [vmem:[#allocation7 + $0x398] sm:$0xff]
        %v3653 = vld [vmem:[#allocation7 + $0x3a0] sm:$0xff]
        %v3654 = vld [vmem:[#allocation7 + $0x3a8] sm:$0xff]
        %v3655 = vld [vmem:[#allocation7 + $0x3b0] sm:$0xff]
        %v3656 = vld [vmem:[#allocation7 + $0x3b8] sm:$0xff]
        %v3657 = vld [vmem:[#allocation7 + $0x3c0] sm:$0xff]
        %v3658 = vld [vmem:[#allocation7 + $0x3c8] sm:$0xff]
        %v3659 = vld [vmem:[#allocation7 + $0x3d0] sm:$0xff]
        %v3660 = vld [vmem:[#allocation7 + $0x3d8] sm:$0xff]
        %v3661 = vld [vmem:[#allocation7 + $0x3e0] sm:$0xff]
        %v3662 = vld [vmem:[#allocation7 + $0x3e8] sm:$0xff]
        %v3663 = vld [vmem:[#allocation7 + $0x3f0] sm:$0xff]
        %v3664 = vld [vmem:[#allocation7 + $0x3f8] sm:$0xff]
        %v3665 = vld [vmem:[%s8] sm:$0x1]
        %v3667 = vlaneseq
        %v3668 = vshrl.u32 %v3667, 7
        %v3669 = vsub.s32 0, %v3668
        %v3670 = vrot.slane %v3665, %v3669
        %3672 = vmatprep.subr.mxu0 0.0
        %3673 = vmatpush1.msra.mxu0 %v3537
        %3674 = vmatprep.subr.mxu0 0.0
        %3675 = vmatpush1.msra.mxu0 %v3538
        %3676 = vmatprep.subr.mxu0 0.0
        %3677 = vmatpush1.msra.mxu0 %v3539
        %3678 = vmatprep.subr.mxu0 0.0
        %3679 = vmatpush1.msra.mxu0 %v3540
        %3680 = vmatprep.subr.mxu0 0.0
        %3681 = vmatpush1.msra.mxu0 %v3541
        %3682 = vmatprep.subr.mxu0 0.0
        %3683 = vmatpush1.msra.mxu0 %v3542
        %3684 = vmatprep.subr.mxu0 0.0
        %3685 = vmatpush1.msra.mxu0 %v3543
        %3686 = vmatprep.subr.mxu0 0.0
        %3687 = vmatpush1.msra.mxu0 %v3544
        %3688 = vmatprep.subr.mxu0 0.0
        %3689 = vmatpush1.msra.mxu0 %v3545
        %3690 = vmatprep.subr.mxu0 0.0
        %3691 = vmatpush1.msra.mxu0 %v3546
        %3692 = vmatprep.subr.mxu0 0.0
        %3693 = vmatpush1.msra.mxu0 %v3547
        %3694 = vmatprep.subr.mxu0 0.0
        %3695 = vmatpush1.msra.mxu0 %v3548
        %3696 = vmatprep.subr.mxu0 0.0
        %3697 = vmatpush1.msra.mxu0 %v3549
        %3698 = vmatprep.subr.mxu0 0.0
        %3699 = vmatpush1.msra.mxu0 %v3550
        %3700 = vmatprep.subr.mxu0 0.0
        %3701 = vmatpush1.msra.mxu0 %v3551
        %3702 = vmatprep.subr.mxu0 0.0
        %3703 = vmatpush1.msra.mxu0 %v3552
        %3704 = vmatprep.subr.mxu0 0.0
        %3705 = vmatpush1.msra.mxu0 %v3553
        %3706 = vmatprep.subr.mxu0 0.0
        %3707 = vmatpush1.msra.mxu0 %v3554
        %3708 = vmatprep.subr.mxu0 0.0
        %3709 = vmatpush1.msra.mxu0 %v3555
        %3710 = vmatprep.subr.mxu0 0.0
        %3711 = vmatpush1.msra.mxu0 %v3556
        %3712 = vmatprep.subr.mxu0 0.0
        %3713 = vmatpush1.msra.mxu0 %v3557
        %3714 = vmatprep.subr.mxu0 0.0
        %3715 = vmatpush1.msra.mxu0 %v3558
        %3716 = vmatprep.subr.mxu0 0.0
        %3717 = vmatpush1.msra.mxu0 %v3559
        %3718 = vmatprep.subr.mxu0 0.0
        %3719 = vmatpush1.msra.mxu0 %v3560
        %3720 = vmatprep.subr.mxu0 0.0
        %3721 = vmatpush1.msra.mxu0 %v3561
        %3722 = vmatprep.subr.mxu0 0.0
        %3723 = vmatpush1.msra.mxu0 %v3562
        %3724 = vmatprep.subr.mxu0 0.0
        %3725 = vmatpush1.msra.mxu0 %v3563
        %3726 = vmatprep.subr.mxu0 0.0
        %3727 = vmatpush1.msra.mxu0 %v3564
        %3728 = vmatprep.subr.mxu0 0.0
        %3729 = vmatpush1.msra.mxu0 %v3565
        %3730 = vmatprep.subr.mxu0 0.0
        %3731 = vmatpush1.msra.mxu0 %v3566
        %3732 = vmatprep.subr.mxu0 0.0
        %3733 = vmatpush1.msra.mxu0 %v3567
        %3734 = vmatprep.subr.mxu0 0.0
        %3735 = vmatpush1.msra.mxu0 %v3568
        %3736 = vmatprep.mubr.f32.mxu0 %v2392
        %3737 = vmatmul.mubr.f32.gmra.mrb[0].mxu0 %v2391
        %v3738 = vpop.f32.mrb[0].mxu0
        %v3739 = vadd.f32 %v3670, %v3738
        %v3740 = vpop.f32.mrb[0].mxu0
        %3741 = vmatprep.mubr.f32.mxu0 %v2396
        %3742 = vmatmul.mubr.f32.gmra.mrb[0].mxu0 %v2395
        %v3743 = vpop.f32.mrb[0].mxu0
        %v3744 = vadd.f32 %v3670, %v3743
        %v3745 = vpop.f32.mrb[0].mxu0
        %3746 = vmatprep.mubr.f32.mxu0 %v2400
        %3747 = vmatmul.mubr.f32.gmra.mrb[0].mxu0 %v2399
        %v3748 = vpop.f32.mrb[0].mxu0
        %v3749 = vadd.f32 %v3670, %v3748
        %v3750 = vpop.f32.mrb[0].mxu0
        %3751 = vmatprep.mubr.f32.mxu0 %v2404
        %3752 = vmatmul.mubr.f32.gmra.mrb[0].mxu0 %v2403
        %v3753 = vpop.f32.mrb[0].mxu0
        %v3754 = vadd.f32 %v3670, %v3753
        %v3755 = vpop.f32.mrb[0].mxu0
        %3756 = vmatprep.mubr.f32.mxu0 %v2408
        %3757 = vmatmul.mubr.f32.gmra.mrb[0].mxu0 %v2407
        %v3758 = vpop.f32.mrb[0].mxu0
        %v3759 = vadd.f32 %v3670, %v3758
        %v3760 = vpop.f32.mrb[0].mxu0
        %3761 = vmatprep.mubr.f32.mxu0 %v2412
        %3762 = vmatmul.mubr.f32.gmra.mrb[0].mxu0 %v2411
        %v3763 = vpop.f32.mrb[0].mxu0
        %v3764 = vadd.f32 %v3670, %v3763
        %v3765 = vpop.f32.mrb[0].mxu0
        %3766 = vmatprep.mubr.f32.mxu0 %v2416
        %3767 = vmatmul.mubr.f32.gmra.mrb[0].mxu0 %v2415
        %v3768 = vpop.f32.mrb[0].mxu0
        %v3769 = vadd.f32 %v3670, %v3768
        %v3770 = vpop.f32.mrb[0].mxu0
        %3771 = vmatprep.mubr.f32.mxu0 %v2420
        %3772 = vmatmul.mubr.f32.gmra.mrb[0].mxu0 %v2419
        %v3773 = vpop.f32.mrb[0].mxu0
        %v3774 = vadd.f32 %v3670, %v3773
        %v3775 = vpop.f32.mrb[0].mxu0
        %3776 = vmatprep.mubr.f32.mxu0 %v2424
        %3777 = vmatmul.mubr.f32.gmra.mrb[0].mxu0 %v2423
        %v3778 = vpop.f32.mrb[0].mxu0
        %v3779 = vadd.f32 %v3670, %v3778
        %v3780 = vpop.f32.mrb[0].mxu0
        %3781 = vmatprep.mubr.f32.mxu0 %v2428
        %3782 = vmatmul.mubr.f32.gmra.mrb[0].mxu0 %v2427
        %v3783 = vpop.f32.mrb[0].mxu0
        %v3784 = vadd.f32 %v3670, %v3783
        %v3785 = vpop.f32.mrb[0].mxu0
        %3786 = vmatprep.mubr.f32.mxu0 %v2432
        %3787 = vmatmul.mubr.f32.gmra.mrb[0].mxu0 %v2431
        %v3788 = vpop.f32.mrb[0].mxu0
        %v3789 = vadd.f32 %v3670, %v3788
        %v3790 = vpop.f32.mrb[0].mxu0
        %3791 = vmatprep.mubr.f32.mxu0 %v2436
        %3792 = vmatmul.mubr.f32.gmra.mrb[0].mxu0 %v2435
        %v3793 = vpop.f32.mrb[0].mxu0
        %v3794 = vadd.f32 %v3670, %v3793
        %v3795 = vpop.f32.mrb[0].mxu0
        %3796 = vmatprep.mubr.f32.mxu0 %v2440
        %3797 = vmatmul.mubr.f32.gmra.mrb[0].mxu0 %v2439
        %v3798 = vpop.f32.mrb[0].mxu0
        %v3799 = vadd.f32 %v3670, %v3798
        %v3800 = vpop.f32.mrb[0].mxu0
        %3801 = vmatprep.mubr.f32.mxu0 %v2444
        %3802 = vmatmul.mubr.f32.gmra.mrb[0].mxu0 %v2443
        %v3803 = vpop.f32.mrb[0].mxu0
        %v3804 = vadd.f32 %v3670, %v3803
        %v3805 = vpop.f32.mrb[0].mxu0
        %3806 = vmatprep.mubr.f32.mxu0 %v2448
        %3807 = vmatmul.mubr.f32.gmra.mrb[0].mxu0 %v2447
        %v3808 = vpop.f32.mrb[0].mxu0
        %v3809 = vadd.f32 %v3670, %v3808
        %v3810 = vpop.f32.mrb[0].mxu0
        %3811 = vmatprep.mubr.f32.mxu0 %v2452
        %3812 = vmatmul.mubr.f32.gmra.mrb[0].mxu0 %v2451
        %v3813 = vpop.f32.mrb[0].mxu0
        %v3814 = vadd.f32 %v3670, %v3813
        %v3815 = vpop.f32.mrb[0].mxu0
        %3816 = vmatprep.mubr.f32.mxu0 %v2456
        %3817 = vmatmul.mubr.f32.gmra.mrb[0].mxu0 %v2455
        %v3818 = vpop.f32.mrb[0].mxu0
        %v3819 = vadd.f32 %v3670, %v3818
        %v3820 = vpop.f32.mrb[0].mxu0
        %3821 = vmatprep.mubr.f32.mxu0 %v2460
        %3822 = vmatmul.mubr.f32.gmra.mrb[0].mxu0 %v2459
        %v3823 = vpop.f32.mrb[0].mxu0
        %v3824 = vadd.f32 %v3670, %v3823
        %v3825 = vpop.f32.mrb[0].mxu0
        %3826 = vmatprep.mubr.f32.mxu0 %v2464
        %3827 = vmatmul.mubr.f32.gmra.mrb[0].mxu0 %v2463
        %v3828 = vpop.f32.mrb[0].mxu0
        %v3829 = vadd.f32 %v3670, %v3828
        %v3830 = vpop.f32.mrb[0].mxu0
        %3831 = vdwg.mxu0
        %3832 = vmatprep.subr.mxu0 0.0
        %3833 = vmatpush1.msra.mxu0 %v3569
        %3834 = vmatprep.subr.mxu0 0.0
        %3835 = vmatpush1.msra.mxu0 %v3570
        %3836 = vmatprep.subr.mxu0 0.0
        %3837 = vmatpush1.msra.mxu0 %v3571
        %3838 = vmatprep.subr.mxu0 0.0
        %3839 = vmatpush1.msra.mxu0 %v3572
        %3840 = vmatprep.subr.mxu0 0.0
        %3841 = vmatpush1.msra.mxu0 %v3573
        %3842 = vmatprep.subr.mxu0 0.0
        %3843 = vmatpush1.msra.mxu0 %v3574
        %3844 = vmatprep.subr.mxu0 0.0
        %3845 = vmatpush1.msra.mxu0 %v3575
        %3846 = vmatprep.subr.mxu0 0.0
        %3847 = vmatpush1.msra.mxu0 %v3576
        %3848 = vmatprep.subr.mxu0 0.0
        %3849 = vmatpush1.msra.mxu0 %v3577
        %3850 = vmatprep.subr.mxu0 0.0
        %3851 = vmatpush1.msra.mxu0 %v3578
        %3852 = vmatprep.subr.mxu0 0.0
        %3853 = vmatpush1.msra.mxu0 %v3579
        %3854 = vmatprep.subr.mxu0 0.0
        %3855 = vmatpush1.msra.mxu0 %v3580
        %3856 = vmatprep.subr.mxu0 0.0
        %3857 = vmatpush1.msra.mxu0 %v3581
        %3858 = vmatprep.subr.mxu0 0.0
        %3859 = vmatpush1.msra.mxu0 %v3582
        %3860 = vmatprep.subr.mxu0 0.0
        %3861 = vmatpush1.msra.mxu0 %v3583
        %3862 = vmatprep.subr.mxu0 0.0
        %3863 = vmatpush1.msra.mxu0 %v3584
        %3864 = vmatprep.subr.mxu0 0.0
        %3865 = vmatpush1.msra.mxu0 %v3585
        %3866 = vmatprep.subr.mxu0 0.0
        %3867 = vmatpush1.msra.mxu0 %v3586
        %3868 = vmatprep.subr.mxu0 0.0
        %3869 = vmatpush1.msra.mxu0 %v3587
        %3870 = vmatprep.subr.mxu0 0.0
        %3871 = vmatpush1.msra.mxu0 %v3588
        %3872 = vmatprep.subr.mxu0 0.0
        %3873 = vmatpush1.msra.mxu0 %v3589
        %3874 = vmatprep.subr.mxu0 0.0
        %3875 = vmatpush1.msra.mxu0 %v3590
        %3876 = vmatprep.subr.mxu0 0.0
        %3877 = vmatpush1.msra.mxu0 %v3591
        %3878 = vmatprep.subr.mxu0 0.0
        %3879 = vmatpush1.msra.mxu0 %v3592
        %3880 = vmatprep.subr.mxu0 0.0
        %3881 = vmatpush1.msra.mxu0 %v3593
        %3882 = vmatprep.subr.mxu0 0.0
        %3883 = vmatpush1.msra.mxu0 %v3594
        %3884 = vmatprep.subr.mxu0 0.0
        %3885 = vmatpush1.msra.mxu0 %v3595
        %3886 = vmatprep.subr.mxu0 0.0
        %3887 = vmatpush1.msra.mxu0 %v3596
        %3888 = vmatprep.subr.mxu0 0.0
        %3889 = vmatpush1.msra.mxu0 %v3597
        %3890 = vmatprep.subr.mxu0 0.0
        %3891 = vmatpush1.msra.mxu0 %v3598
        %3892 = vmatprep.subr.mxu0 0.0
        %3893 = vmatpush1.msra.mxu0 %v3599
        %3894 = vmatprep.subr.mxu0 0.0
        %3895 = vmatpush1.msra.mxu0 %v3600
        %3896 = vmatprep.mubr.f32.mxu0 %v2394
        %3897 = vmatmul.mubr.f32.gmra.mrb[0].mxu0 %v2393
        %v3898 = vpop.f32.mrb[0].mxu0
        %v3899 = vadd.f32 %v3739, %v3898
        %v3900 = vpop.f32.mrb[0].mxu0
        %3901 = vmatprep.mubr.f32.mxu0 %v2398
        %3902 = vmatmul.mubr.f32.gmra.mrb[0].mxu0 %v2397
        %v3903 = vpop.f32.mrb[0].mxu0
        %v3904 = vadd.f32 %v3744, %v3903
        %v3905 = vpop.f32.mrb[0].mxu0
        %3906 = vmatprep.mubr.f32.mxu0 %v2402
        %3907 = vmatmul.mubr.f32.gmra.mrb[0].mxu0 %v2401
        %v3908 = vpop.f32.mrb[0].mxu0
        %v3909 = vadd.f32 %v3749, %v3908
        %v3910 = vpop.f32.mrb[0].mxu0
        %3911 = vmatprep.mubr.f32.mxu0 %v2406
        %3912 = vmatmul.mubr.f32.gmra.mrb[0].mxu0 %v2405
        %v3913 = vpop.f32.mrb[0].mxu0
        %v3914 = vadd.f32 %v3754, %v3913
        %v3915 = vpop.f32.mrb[0].mxu0
        %3916 = vmatprep.mubr.f32.mxu0 %v2410
        %3917 = vmatmul.mubr.f32.gmra.mrb[0].mxu0 %v2409
        %v3918 = vpop.f32.mrb[0].mxu0
        %v3919 = vadd.f32 %v3759, %v3918
        %v3920 = vpop.f32.mrb[0].mxu0
        %3921 = vmatprep.mubr.f32.mxu0 %v2414
        %3922 = vmatmul.mubr.f32.gmra.mrb[0].mxu0 %v2413
        %v3923 = vpop.f32.mrb[0].mxu0
        %v3924 = vadd.f32 %v3764, %v3923
        %v3925 = vpop.f32.mrb[0].mxu0
        %3926 = vmatprep.mubr.f32.mxu0 %v2418
        %3927 = vmatmul.mubr.f32.gmra.mrb[0].mxu0 %v2417
        %v3928 = vpop.f32.mrb[0].mxu0
        %v3929 = vadd.f32 %v3769, %v3928
        %v3930 = vpop.f32.mrb[0].mxu0
        %3931 = vmatprep.mubr.f32.mxu0 %v2422
        %3932 = vmatmul.mubr.f32.gmra.mrb[0].mxu0 %v2421
        %v3933 = vpop.f32.mrb[0].mxu0
        %v3934 = vadd.f32 %v3774, %v3933
        %v3935 = vpop.f32.mrb[0].mxu0
        %3936 = vmatprep.mubr.f32.mxu0 %v2426
        %3937 = vmatmul.mubr.f32.gmra.mrb[0].mxu0 %v2425
        %v3938 = vpop.f32.mrb[0].mxu0
        %v3939 = vadd.f32 %v3779, %v3938
        %v3940 = vpop.f32.mrb[0].mxu0
        %3941 = vmatprep.mubr.f32.mxu0 %v2430
        %3942 = vmatmul.mubr.f32.gmra.mrb[0].mxu0 %v2429
        %v3943 = vpop.f32.mrb[0].mxu0
        %v3944 = vadd.f32 %v3784, %v3943
        %v3945 = vpop.f32.mrb[0].mxu0
        %3946 = vmatprep.mubr.f32.mxu0 %v2434
        %3947 = vmatmul.mubr.f32.gmra.mrb[0].mxu0 %v2433
        %v3948 = vpop.f32.mrb[0].mxu0
        %v3949 = vadd.f32 %v3789, %v3948
        %v3950 = vpop.f32.mrb[0].mxu0
        %3951 = vmatprep.mubr.f32.mxu0 %v2438
        %3952 = vmatmul.mubr.f32.gmra.mrb[0].mxu0 %v2437
        %v3953 = vpop.f32.mrb[0].mxu0
        %v3954 = vadd.f32 %v3794, %v3953
        %v3955 = vpop.f32.mrb[0].mxu0
        %3956 = vmatprep.mubr.f32.mxu0 %v2442
        %3957 = vmatmul.mubr.f32.gmra.mrb[0].mxu0 %v2441
        %v3958 = vpop.f32.mrb[0].mxu0
        %v3959 = vadd.f32 %v3799, %v3958
        %v3960 = vpop.f32.mrb[0].mxu0
        %3961 = vmatprep.mubr.f32.mxu0 %v2446
        %3962 = vmatmul.mubr.f32.gmra.mrb[0].mxu0 %v2445
        %v3963 = vpop.f32.mrb[0].mxu0
        %v3964 = vadd.f32 %v3804, %v3963
        %v3965 = vpop.f32.mrb[0].mxu0
        %3966 = vmatprep.mubr.f32.mxu0 %v2450
        %3967 = vmatmul.mubr.f32.gmra.mrb[0].mxu0 %v2449
        %v3968 = vpop.f32.mrb[0].mxu0
        %v3969 = vadd.f32 %v3809, %v3968
        %v3970 = vpop.f32.mrb[0].mxu0
        %3971 = vmatprep.mubr.f32.mxu0 %v2454
        %3972 = vmatmul.mubr.f32.gmra.mrb[0].mxu0 %v2453
        %v3973 = vpop.f32.mrb[0].mxu0
        %v3974 = vadd.f32 %v3814, %v3973
        %v3975 = vpop.f32.mrb[0].mxu0
        %3976 = vmatprep.mubr.f32.mxu0 %v2458
        %3977 = vmatmul.mubr.f32.gmra.mrb[0].mxu0 %v2457
        %v3978 = vpop.f32.mrb[0].mxu0
        %v3979 = vadd.f32 %v3819, %v3978
        %v3980 = vpop.f32.mrb[0].mxu0
        %3981 = vmatprep.mubr.f32.mxu0 %v2462
        %3982 = vmatmul.mubr.f32.gmra.mrb[0].mxu0 %v2461
        %v3983 = vpop.f32.mrb[0].mxu0
        %v3984 = vadd.f32 %v3824, %v3983
        %v3985 = vpop.f32.mrb[0].mxu0
        %3986 = vmatprep.mubr.f32.mxu0 %v2466
        %3987 = vmatmul.mubr.f32.gmra.mrb[0].mxu0 %v2465
        %v3988 = vpop.f32.mrb[0].mxu0
        %v3989 = vadd.f32 %v3829, %v3988
        %v3990 = vpop.f32.mrb[0].mxu0
        %3991 = vdwg.mxu0
        %3992 = vmatprep.subr.mxu0 0.0
        %3993 = vmatpush1.msra.mxu0 %v3601
        %3994 = vmatprep.subr.mxu0 0.0
        %3995 = vmatpush1.msra.mxu0 %v3602
        %3996 = vmatprep.subr.mxu0 0.0
        %3997 = vmatpush1.msra.mxu0 %v3603
        %3998 = vmatprep.subr.mxu0 0.0
        %3999 = vmatpush1.msra.mxu0 %v3604
        %4000 = vmatprep.subr.mxu0 0.0
        %4001 = vmatpush1.msra.mxu0 %v3605
        %4002 = vmatprep.subr.mxu0 0.0
        %4003 = vmatpush1.msra.mxu0 %v3606
        %4004 = vmatprep.subr.mxu0 0.0
        %4005 = vmatpush1.msra.mxu0 %v3607
        %4006 = vmatprep.subr.mxu0 0.0
        %4007 = vmatpush1.msra.mxu0 %v3608
        %4008 = vmatprep.subr.mxu0 0.0
        %4009 = vmatpush1.msra.mxu0 %v3609
        %4010 = vmatprep.subr.mxu0 0.0
        %4011 = vmatpush1.msra.mxu0 %v3610
        %4012 = vmatprep.subr.mxu0 0.0
        %4013 = vmatpush1.msra.mxu0 %v3611
        %4014 = vmatprep.subr.mxu0 0.0
        %4015 = vmatpush1.msra.mxu0 %v3612
        %4016 = vmatprep.subr.mxu0 0.0
        %4017 = vmatpush1.msra.mxu0 %v3613
        %4018 = vmatprep.subr.mxu0 0.0
        %4019 = vmatpush1.msra.mxu0 %v3614
        %4020 = vmatprep.subr.mxu0 0.0
        %4021 = vmatpush1.msra.mxu0 %v3615
        %4022 = vmatprep.subr.mxu0 0.0
        %4023 = vmatpush1.msra.mxu0 %v3616
        %4024 = vmatprep.subr.mxu0 0.0
        %4025 = vmatpush1.msra.mxu0 %v3617
        %4026 = vmatprep.subr.mxu0 0.0
        %4027 = vmatpush1.msra.mxu0 %v3618
        %4028 = vmatprep.subr.mxu0 0.0
        %4029 = vmatpush1.msra.mxu0 %v3619
        %4030 = vmatprep.subr.mxu0 0.0
        %4031 = vmatpush1.msra.mxu0 %v3620
        %4032 = vmatprep.subr.mxu0 0.0
        %4033 = vmatpush1.msra.mxu0 %v3621
        %4034 = vmatprep.subr.mxu0 0.0
        %4035 = vmatpush1.msra.mxu0 %v3622
        %4036 = vmatprep.subr.mxu0 0.0
        %4037 = vmatpush1.msra.mxu0 %v3623
        %4038 = vmatprep.subr.mxu0 0.0
        %4039 = vmatpush1.msra.mxu0 %v3624
        %4040 = vmatprep.subr.mxu0 0.0
        %4041 = vmatpush1.msra.mxu0 %v3625
        %4042 = vmatprep.subr.mxu0 0.0
        %4043 = vmatpush1.msra.mxu0 %v3626
        %4044 = vmatprep.subr.mxu0 0.0
        %4045 = vmatpush1.msra.mxu0 %v3627
        %4046 = vmatprep.subr.mxu0 0.0
        %4047 = vmatpush1.msra.mxu0 %v3628
        %4048 = vmatprep.subr.mxu0 0.0
        %4049 = vmatpush1.msra.mxu0 %v3629
        %4050 = vmatprep.subr.mxu0 0.0
        %4051 = vmatpush1.msra.mxu0 %v3630
        %4052 = vmatprep.subr.mxu0 0.0
        %4053 = vmatpush1.msra.mxu0 %v3631
        %4054 = vmatprep.subr.mxu0 0.0
        %4055 = vmatpush1.msra.mxu0 %v3632
        %4056 = vmatprep.mubr.f32.mxu0 %v3462
        %4057 = vmatmul.mubr.f32.gmra.mrb[0].mxu0 %v3461
        %v4058 = vpop.f32.mrb[0].mxu0
        %v4059 = vadd.f32 %v3899, %v4058
        %v4060 = vpop.f32.mrb[0].mxu0
        %4061 = vmatprep.mubr.f32.mxu0 %v3466
        %4062 = vmatmul.mubr.f32.gmra.mrb[0].mxu0 %v3465
        %v4063 = vpop.f32.mrb[0].mxu0
        %v4064 = vadd.f32 %v3904, %v4063
        %v4065 = vpop.f32.mrb[0].mxu0
        %4066 = vmatprep.mubr.f32.mxu0 %v3470
        %4067 = vmatmul.mubr.f32.gmra.mrb[0].mxu0 %v3469
        %v4068 = vpop.f32.mrb[0].mxu0
        %v4069 = vadd.f32 %v3909, %v4068
        %v4070 = vpop.f32.mrb[0].mxu0
        %4071 = vmatprep.mubr.f32.mxu0 %v3474
        %4072 = vmatmul.mubr.f32.gmra.mrb[0].mxu0 %v3473
        %v4073 = vpop.f32.mrb[0].mxu0
        %v4074 = vadd.f32 %v3914, %v4073
        %v4075 = vpop.f32.mrb[0].mxu0
        %4076 = vmatprep.mubr.f32.mxu0 %v3478
        %4077 = vmatmul.mubr.f32.gmra.mrb[0].mxu0 %v3477
        %v4078 = vpop.f32.mrb[0].mxu0
        %v4079 = vadd.f32 %v3919, %v4078
        %v4080 = vpop.f32.mrb[0].mxu0
        %4081 = vmatprep.mubr.f32.mxu0 %v3482
        %4082 = vmatmul.mubr.f32.gmra.mrb[0].mxu0 %v3481
        %v4083 = vpop.f32.mrb[0].mxu0
        %v4084 = vadd.f32 %v3924, %v4083
        %v4085 = vpop.f32.mrb[0].mxu0
        %4086 = vmatprep.mubr.f32.mxu0 %v3486
        %4087 = vmatmul.mubr.f32.gmra.mrb[0].mxu0 %v3485
        %v4088 = vpop.f32.mrb[0].mxu0
        %v4089 = vadd.f32 %v3929, %v4088
        %v4090 = vpop.f32.mrb[0].mxu0
        %4091 = vmatprep.mubr.f32.mxu0 %v3490
        %4092 = vmatmul.mubr.f32.gmra.mrb[0].mxu0 %v3489
        %v4093 = vpop.f32.mrb[0].mxu0
        %v4094 = vadd.f32 %v3934, %v4093
        %v4095 = vpop.f32.mrb[0].mxu0
        %4096 = vmatprep.mubr.f32.mxu0 %v3494
        %4097 = vmatmul.mubr.f32.gmra.mrb[0].mxu0 %v3493
        %v4098 = vpop.f32.mrb[0].mxu0
        %v4099 = vadd.f32 %v3939, %v4098
        %v4100 = vpop.f32.mrb[0].mxu0
        %4101 = vmatprep.mubr.f32.mxu0 %v3498
        %4102 = vmatmul.mubr.f32.gmra.mrb[0].mxu0 %v3497
        %v4103 = vpop.f32.mrb[0].mxu0
        %v4104 = vadd.f32 %v3944, %v4103
        %v4105 = vpop.f32.mrb[0].mxu0
        %4106 = vmatprep.mubr.f32.mxu0 %v3502
        %4107 = vmatmul.mubr.f32.gmra.mrb[0].mxu0 %v3501
        %v4108 = vpop.f32.mrb[0].mxu0
        %v4109 = vadd.f32 %v3949, %v4108
        %v4110 = vpop.f32.mrb[0].mxu0
        %4111 = vmatprep.mubr.f32.mxu0 %v3506
        %4112 = vmatmul.mubr.f32.gmra.mrb[0].mxu0 %v3505
        %v4113 = vpop.f32.mrb[0].mxu0
        %v4114 = vadd.f32 %v3954, %v4113
        %v4115 = vpop.f32.mrb[0].mxu0
        %4116 = vmatprep.mubr.f32.mxu0 %v3510
        %4117 = vmatmul.mubr.f32.gmra.mrb[0].mxu0 %v3509
        %v4118 = vpop.f32.mrb[0].mxu0
        %v4119 = vadd.f32 %v3959, %v4118
        %v4120 = vpop.f32.mrb[0].mxu0
        %4121 = vmatprep.mubr.f32.mxu0 %v3514
        %4122 = vmatmul.mubr.f32.gmra.mrb[0].mxu0 %v3513
        %v4123 = vpop.f32.mrb[0].mxu0
        %v4124 = vadd.f32 %v3964, %v4123
        %v4125 = vpop.f32.mrb[0].mxu0
        %4126 = vmatprep.mubr.f32.mxu0 %v3518
        %4127 = vmatmul.mubr.f32.gmra.mrb[0].mxu0 %v3517
        %v4128 = vpop.f32.mrb[0].mxu0
        %v4129 = vadd.f32 %v3969, %v4128
        %v4130 = vpop.f32.mrb[0].mxu0
        %4131 = vmatprep.mubr.f32.mxu0 %v3522
        %4132 = vmatmul.mubr.f32.gmra.mrb[0].mxu0 %v3521
        %v4133 = vpop.f32.mrb[0].mxu0
        %v4134 = vadd.f32 %v3974, %v4133
        %v4135 = vpop.f32.mrb[0].mxu0
        %4136 = vmatprep.mubr.f32.mxu0 %v3526
        %4137 = vmatmul.mubr.f32.gmra.mrb[0].mxu0 %v3525
        %v4138 = vpop.f32.mrb[0].mxu0
        %v4139 = vadd.f32 %v3979, %v4138
        %v4140 = vpop.f32.mrb[0].mxu0
        %4141 = vmatprep.mubr.f32.mxu0 %v3530
        %4142 = vmatmul.mubr.f32.gmra.mrb[0].mxu0 %v3529
        %v4143 = vpop.f32.mrb[0].mxu0
        %v4144 = vadd.f32 %v3984, %v4143
        %v4145 = vpop.f32.mrb[0].mxu0
        %4146 = vmatprep.mubr.f32.mxu0 %v3534
        %4147 = vmatmul.mubr.f32.gmra.mrb[0].mxu0 %v3533
        %v4148 = vpop.f32.mrb[0].mxu0
        %v4149 = vadd.f32 %v3989, %v4148
        %v4150 = vpop.f32.mrb[0].mxu0
        %4151 = vdwg.mxu0
        %4152 = vmatprep.subr.mxu0 0.0
        %4153 = vmatpush1.msra.mxu0 %v3633
        %4154 = vmatprep.subr.mxu0 0.0
        %4155 = vmatpush1.msra.mxu0 %v3634
        %4156 = vmatprep.subr.mxu0 0.0
        %4157 = vmatpush1.msra.mxu0 %v3635
        %4158 = vmatprep.subr.mxu0 0.0
        %4159 = vmatpush1.msra.mxu0 %v3636
        %4160 = vmatprep.subr.mxu0 0.0
        %4161 = vmatpush1.msra.mxu0 %v3637
        %4162 = vmatprep.subr.mxu0 0.0
        %4163 = vmatpush1.msra.mxu0 %v3638
        %4164 = vmatprep.subr.mxu0 0.0
        %4165 = vmatpush1.msra.mxu0 %v3639
        %4166 = vmatprep.subr.mxu0 0.0
        %4167 = vmatpush1.msra.mxu0 %v3640
        %4168 = vmatprep.subr.mxu0 0.0
        %4169 = vmatpush1.msra.mxu0 %v3641
        %4170 = vmatprep.subr.mxu0 0.0
        %4171 = vmatpush1.msra.mxu0 %v3642
        %4172 = vmatprep.subr.mxu0 0.0
        %4173 = vmatpush1.msra.mxu0 %v3643
        %4174 = vmatprep.subr.mxu0 0.0
        %4175 = vmatpush1.msra.mxu0 %v3644
        %4176 = vmatprep.subr.mxu0 0.0
        %4177 = vmatpush1.msra.mxu0 %v3645
        %4178 = vmatprep.subr.mxu0 0.0
        %4179 = vmatpush1.msra.mxu0 %v3646
        %4180 = vmatprep.subr.mxu0 0.0
        %4181 = vmatpush1.msra.mxu0 %v3647
        %4182 = vmatprep.subr.mxu0 0.0
        %4183 = vmatpush1.msra.mxu0 %v3648
        %4184 = vmatprep.subr.mxu0 0.0
        %4185 = vmatpush1.msra.mxu0 %v3649
        %4186 = vmatprep.subr.mxu0 0.0
        %4187 = vmatpush1.msra.mxu0 %v3650
        %4188 = vmatprep.subr.mxu0 0.0
        %4189 = vmatpush1.msra.mxu0 %v3651
        %4190 = vmatprep.subr.mxu0 0.0
        %4191 = vmatpush1.msra.mxu0 %v3652
        %4192 = vmatprep.subr.mxu0 0.0
        %4193 = vmatpush1.msra.mxu0 %v3653
        %4194 = vmatprep.subr.mxu0 0.0
        %4195 = vmatpush1.msra.mxu0 %v3654
        %4196 = vmatprep.subr.mxu0 0.0
        %4197 = vmatpush1.msra.mxu0 %v3655
        %4198 = vmatprep.subr.mxu0 0.0
        %4199 = vmatpush1.msra.mxu0 %v3656
        %4200 = vmatprep.subr.mxu0 0.0
        %4201 = vmatpush1.msra.mxu0 %v3657
        %4202 = vmatprep.subr.mxu0 0.0
        %4203 = vmatpush1.msra.mxu0 %v3658
        %4204 = vmatprep.subr.mxu0 0.0
        %4205 = vmatpush1.msra.mxu0 %v3659
        %4206 = vmatprep.subr.mxu0 0.0
        %4207 = vmatpush1.msra.mxu0 %v3660
        %4208 = vmatprep.subr.mxu0 0.0
        %4209 = vmatpush1.msra.mxu0 %v3661
        %4210 = vmatprep.subr.mxu0 0.0
        %4211 = vmatpush1.msra.mxu0 %v3662
        %4212 = vmatprep.subr.mxu0 0.0
        %4213 = vmatpush1.msra.mxu0 %v3663
        %4214 = vmatprep.subr.mxu0 0.0
        %4215 = vmatpush1.msra.mxu0 %v3664
        %4216 = vmatprep.mubr.f32.mxu0 %v3464
        %4217 = vmatmul.mubr.f32.gmra.mrb[0].mxu0 %v3463
        %v4218 = vpop.f32.mrb[0].mxu0
        %v4219 = vadd.f32 %v4059, %v4218
        %v4220 = vpop.f32.mrb[0].mxu0
        %4221 = vmatprep.mubr.f32.mxu0 %v3468
        %4222 = vmatmul.mubr.f32.gmra.mrb[0].mxu0 %v3467
        %v4223 = vpop.f32.mrb[0].mxu0
        %v4224 = vadd.f32 %v4064, %v4223
        %v4225 = vpop.f32.mrb[0].mxu0
        %4226 = vmatprep.mubr.f32.mxu0 %v3472
        %4227 = vmatmul.mubr.f32.gmra.mrb[0].mxu0 %v3471
        %v4228 = vpop.f32.mrb[0].mxu0
        %v4229 = vadd.f32 %v4069, %v4228
        %v4230 = vpop.f32.mrb[0].mxu0
        %4231 = vmatprep.mubr.f32.mxu0 %v3476
        %4232 = vmatmul.mubr.f32.gmra.mrb[0].mxu0 %v3475
        %v4233 = vpop.f32.mrb[0].mxu0
        %v4234 = vadd.f32 %v4074, %v4233
        %v4235 = vpop.f32.mrb[0].mxu0
        %4236 = vmatprep.mubr.f32.mxu0 %v3480
        %4237 = vmatmul.mubr.f32.gmra.mrb[0].mxu0 %v3479
        %v4238 = vpop.f32.mrb[0].mxu0
        %v4239 = vadd.f32 %v4079, %v4238
        %v4240 = vpop.f32.mrb[0].mxu0
        %4241 = vmatprep.mubr.f32.mxu0 %v3484
        %4242 = vmatmul.mubr.f32.gmra.mrb[0].mxu0 %v3483
        %v4243 = vpop.f32.mrb[0].mxu0
        %v4244 = vadd.f32 %v4084, %v4243
        %v4245 = vpop.f32.mrb[0].mxu0
        %4246 = vmatprep.mubr.f32.mxu0 %v3488
        %4247 = vmatmul.mubr.f32.gmra.mrb[0].mxu0 %v3487
        %v4248 = vpop.f32.mrb[0].mxu0
        %v4249 = vadd.f32 %v4089, %v4248
        %v4250 = vpop.f32.mrb[0].mxu0
        %4251 = vmatprep.mubr.f32.mxu0 %v3492
        %4252 = vmatmul.mubr.f32.gmra.mrb[0].mxu0 %v3491
        %v4253 = vpop.f32.mrb[0].mxu0
        %v4254 = vadd.f32 %v4094, %v4253
        %v4255 = vpop.f32.mrb[0].mxu0
        %4256 = vmatprep.mubr.f32.mxu0 %v3496
        %4257 = vmatmul.mubr.f32.gmra.mrb[0].mxu0 %v3495
        %v4258 = vpop.f32.mrb[0].mxu0
        %v4259 = vadd.f32 %v4099, %v4258
        %v4260 = vpop.f32.mrb[0].mxu0
        %4261 = vmatprep.mubr.f32.mxu0 %v3500
        %4262 = vmatmul.mubr.f32.gmra.mrb[0].mxu0 %v3499
        %v4263 = vpop.f32.mrb[0].mxu0
        %v4264 = vadd.f32 %v4104, %v4263
        %v4265 = vpop.f32.mrb[0].mxu0
        %4266 = vmatprep.mubr.f32.mxu0 %v3504
        %4267 = vmatmul.mubr.f32.gmra.mrb[0].mxu0 %v3503
        %v4268 = vpop.f32.mrb[0].mxu0
        %v4269 = vadd.f32 %v4109, %v4268
        %v4270 = vpop.f32.mrb[0].mxu0
        %4271 = vmatprep.mubr.f32.mxu0 %v3508
        %4272 = vmatmul.mubr.f32.gmra.mrb[0].mxu0 %v3507
        %v4273 = vpop.f32.mrb[0].mxu0
        %v4274 = vadd.f32 %v4114, %v4273
        %v4275 = vpop.f32.mrb[0].mxu0
        %4276 = vmatprep.mubr.f32.mxu0 %v3512
        %4277 = vmatmul.mubr.f32.gmra.mrb[0].mxu0 %v3511
        %v4278 = vpop.f32.mrb[0].mxu0
        %v4279 = vadd.f32 %v4119, %v4278
        %v4280 = vpop.f32.mrb[0].mxu0
        %4281 = vmatprep.mubr.f32.mxu0 %v3516
        %4282 = vmatmul.mubr.f32.gmra.mrb[0].mxu0 %v3515
        %v4283 = vpop.f32.mrb[0].mxu0
        %v4284 = vadd.f32 %v4124, %v4283
        %v4285 = vpop.f32.mrb[0].mxu0
        %4286 = vmatprep.mubr.f32.mxu0 %v3520
        %4287 = vmatmul.mubr.f32.gmra.mrb[0].mxu0 %v3519
        %v4288 = vpop.f32.mrb[0].mxu0
        %v4289 = vadd.f32 %v4129, %v4288
        %v4290 = vpop.f32.mrb[0].mxu0
        %4291 = vmatprep.mubr.f32.mxu0 %v3524
        %4292 = vmatmul.mubr.f32.gmra.mrb[0].mxu0 %v3523
        %v4293 = vpop.f32.mrb[0].mxu0
        %v4294 = vadd.f32 %v4134, %v4293
        %v4295 = vpop.f32.mrb[0].mxu0
        %4296 = vmatprep.mubr.f32.mxu0 %v3528
        %4297 = vmatmul.mubr.f32.gmra.mrb[0].mxu0 %v3527
        %v4298 = vpop.f32.mrb[0].mxu0
        %v4299 = vadd.f32 %v4139, %v4298
        %v4300 = vpop.f32.mrb[0].mxu0
        %4301 = vmatprep.mubr.f32.mxu0 %v3532
        %4302 = vmatmul.mubr.f32.gmra.mrb[0].mxu0 %v3531
        %v4303 = vpop.f32.mrb[0].mxu0
        %v4304 = vadd.f32 %v4144, %v4303
        %v4305 = vpop.f32.mrb[0].mxu0
        %4306 = vmatprep.mubr.f32.mxu0 %v3536
        %4307 = vmatmul.mubr.f32.gmra.mrb[0].mxu0 %v3535
        %v4308 = vpop.f32.mrb[0].mxu0
        %v4309 = vadd.f32 %v4149, %v4308
        %v4310 = vpop.f32.mrb[0].mxu0
        %4311 = vdwg.mxu0
        %4312 = vst [vmem:[%s370] sm:$0xff] %v4219
        %4313 = vst [vmem:[%s370 + $0x8] sm:$0xff] %v4224
        %4314 = vst [vmem:[%s370 + $0x10] sm:$0xff] %v4229
        %4315 = vst [vmem:[%s370 + $0x18] sm:$0xff] %v4234
        %4316 = vst [vmem:[%s370 + $0x20] sm:$0xff] %v4239
        %4317 = vst [vmem:[%s370 + $0x28] sm:$0xff] %v4244
        %4318 = vst [vmem:[%s370 + $0x30] sm:$0xff] %v4249
        %4319 = vst [vmem:[%s370 + $0x38] sm:$0xff] %v4254
        %4320 = vst [vmem:[%s370 + $0x40] sm:$0xff] %v4259
        %4321 = vst [vmem:[%s370 + $0x48] sm:$0xff] %v4264
        %4322 = vst [vmem:[%s370 + $0x50] sm:$0xff] %v4269
        %4323 = vst [vmem:[%s370 + $0x58] sm:$0xff] %v4274
        %4324 = vst [vmem:[%s370 + $0x60] sm:$0xff] %v4279
        %4325 = vst [vmem:[%s370 + $0x68] sm:$0xff] %v4284
        %4326 = vst [vmem:[%s370 + $0x70] sm:$0xff] %v4289
        %4327 = vst [vmem:[%s370 + $0x78] sm:$0xff] %v4294
        %4328 = vst [vmem:[%s370 + $0x80] sm:$0xff] %v4299
        %4329 = vst [vmem:[%s370 + $0x88] sm:$0xff] %v4304
        %4330 = vst [vmem:[%s370 + $0x90] sm:$0xff] %v4309
        %s4331 = sand.u32 %s227, 1
        %s4332 = scalar_lea.sflag [#allocation4], %s4331
        %s4333 = sand.u32 %s227, 1
        %s4334 = smul.addr %s4333, 152
        %s4335 = scalar_lea.vmem [#allocation8], %s4334
        // Predicated region
        $region69: #{tpu_custom_call.1} parent=55 // pred_check
          %p4336 = pneg %p237
        $region70: #{tpu_custom_call.1} parent=55 // pred_check_branch
          %4338 = sbr.rel (%p4336) target = $region72
        $region71: #{tpu_custom_call.1} parent=55 // pred_region
          %s4339 = smul.u32 19, %s25
          %s4341 = ssub.s32 2432, 2432
          %4342 = vsyncadd %s4332, %s4341
          %s4343 = smul.addr %s4339, 128
          %s4344 = scalar_lea.hbm %s9, %s4343
          %s4345 = sshll.u32 %s4335, 4
          %s4346 = int_to_ptr.vmem [resolvable:$true] %s4345
          %4351 = dma.vmem_to_hbm [thread:$0]  %s4346, 2432, %s4344, %s4332, 128, 128, 8
        $region72: #{tpu_custom_call.1} parent=55 // pred_fallthru
          _
      $region56: #{tpu_custom_call.1} parent=5 // pred_fallthru
        _
      %p4352 = scmp.le.s32.totalorder 2, %s20
      // Predicated region
      $region73: #{tpu_custom_call.1} parent=5 // pred_check
        %p4353 = pneg %p4352
      $region74: #{tpu_custom_call.1} parent=5 // pred_check_branch
        %4355 = sbr.rel (%p4353) target = $region76
      $region75: #{tpu_custom_call.1} parent=5 // pred_region
        %s4356 = ssub.s32 %s20, 2
        // Predicated region
        $region77: #{tpu_custom_call.1} parent=75 // pred_check
          %p4357 = pneg %p243
        $region78: #{tpu_custom_call.1} parent=75 // pred_check_branch
          %4359 = sbr.rel (%p4357) target = $region80
        $region79: #{tpu_custom_call.1} parent=75 // pred_region
          %s4360 = sand.u32 %s228, 1
          %s4361 = scalar_lea.sflag [#allocation4], %s4360
          %s4362 = sand.u32 %s228, 1
          %s4363 = smul.addr %s4362, 152
          %s4364 = scalar_lea.vmem [#allocation8], %s4363
          %4365 = dma.done %s4361, 2432
        $region80: #{tpu_custom_call.1} parent=75 // pred_fallthru
          _
      $region76: #{tpu_custom_call.1} parent=5 // pred_fallthru
        _
    $region6: #{tpu_custom_call.1} parent=1 // loop_footer
      %s24 = sadd.s32 1, %s20
    $region7: #{tpu_custom_call.1} parent=1 // loop_footer_branch
      %19 = sbr.rel target = $region3
    $region8: #{tpu_custom_call.1} parent=1 // loop_exit
      _
    %4366 = vsyncpa [#allocation3], 1
    %s4367 = scalar_lea.sflag [#allocation3], 1
    %4368 = vsyncpa %s4367, 1
    %4369 = vsyncpa [#allocation6], 1
    %4370 = vsyncpa [#allocation4], 1
    %s4371 = scalar_lea.sflag [#allocation4], 1
    %4372 = vsyncpa %s4371, 1

// kernel: tpu_custom_call.1
$region0: #{tpu_custom_call.1}
  #allocation0 [shape = 'u32[]', space=smem, size = 0x4, offset = 0x4, fixed_abs, tag = 'smem constant byte address 0x4 - core index']
  #allocation1 [shape = 'u32[144,128]{1,0:T(1,128)}', space=vmem, size = 0x12000, scoped, tag = 'internal scratch']
  %s0 = inlined_call_operand.vmem [shape: f32[304,32], index: 0, kind: input, shape index: {}]
  %s1 = inlined_call_operand.vmem [shape: f32[32,1024], index: 1, kind: input, shape index: {}]
  %s2 = inlined_call_operand.vmem [shape: f32[1,1024], index: 2, kind: input, shape index: {}]
  %s3 = inlined_call_operand.hbm [shape: f32[512,512], index: 3, kind: input, shape index: {}]
  %s4 = inlined_call_operand.vmem [shape: f32[1,512], index: 4, kind: input, shape index: {}]
  %s5 = inlined_call_operand.hbm [shape: f32[512,512], index: 5, kind: input, shape index: {}]
  %s6 = inlined_call_operand.vmem [shape: f32[1,512], index: 6, kind: input, shape index: {}]
  %s7 = inlined_call_operand.hbm [shape: f32[1024,128], index: 7, kind: input, shape index: {}]
  %s8 = inlined_call_operand.vmem [shape: f32[1,128], index: 8, kind: input, shape index: {}]
  %s9 = inlined_call_operand.hbm [shape: f32[304,128], index: 9, kind: output, shape index: {}]
  %s10 = sld [smem:[#allocation0]]
  $region81: #{tpu_custom_call.1} parent=0
    _
  %s12 = ssub.s32 1, %s10
  %s13 = scalar_select 0, %s12, %s10
  $region1: #{tpu_custom_call.1} parent=0
    #allocation2 [shape = 'u8[1048576]{0}', space=vmem, size = 0x100000, scoped, tag = 'input window, operand 3, single buffered']
    #allocation3 [shape = 's32[2]{0}', space=sflag, size = 0x8, scoped, tag = 'scoped memory for tpu_custom_call.1']
    #allocation4 [shape = 's32[2]{0}', space=sflag, size = 0x8, scoped, tag = 'scoped memory for tpu_custom_call.1']
    #allocation5 [shape = 'u8[1048576]{0}', space=vmem, size = 0x100000, scoped, tag = 'input window, operand 5, single buffered']
    #allocation6 [shape = 's32[1]{0}', space=sflag, size = 0x4, scoped, tag = 'scoped memory for tpu_custom_call.1']
    #allocation7 [shape = 'u8[524288]{0}', space=vmem, size = 0x80000, scoped, tag = 'input window, operand 7, single buffered']
    #allocation8 [shape = 'u8[155648]{0}', space=vmem, size = 0x26000, scoped, tag = 'output window, operand 0']
    %14 = vsyncpa [#allocation3], 0
    %15 = vsyncpa [#allocation6], 0
    %16 = vsyncpa [#allocation4], 0
    %s17 = scalar_lea.sflag [#allocation4], 1
    %18 = vsyncpa %s17, 0
    loop: start=0, step=1, limit=4
    $region2: #{tpu_custom_call.1} parent=1 // loop_pre_header
      _
    $region3: #{tpu_custom_call.1} parent=1 // loop_header
      %s20 = sphi 0, %s24
      %p21 = scmp.ge.s32.totalorder %s20, 4
      %s30 = sphi 0, %s32
      %s33 = sphi 0, %s30
      %s34 = sphi 0, %s33
      %s50 = sphi 0, %s34
      %s54 = sphi 0, %s54
      %s56 = sphi 0, %s54
      %s57 = sphi 0, %s56
      %s71 = sphi 0, %s57
      %s75 = sphi 0, %s75
      %s77 = sphi 0, %s75
      %s78 = sphi 0, %s77
      %s92 = sphi 0, %s78
      %s96 = sphi 0, %s96
      %s98 = sphi 0, %s96
      %s99 = sphi 0, %s98
      %s113 = sphi 0, %s99
      %s117 = sphi 0, %s117
      %s119 = sphi 0, %s117
      %s120 = sphi 0, %s119
      %s134 = sphi 0, %s120
      %s138 = sphi 0, %s138
      %s140 = sphi 0, %s138
      %s141 = sphi 0, %s140
      %s155 = sphi 0, %s141
      %s159 = sphi 0, %s159
      %s161 = sphi 0, %s159
      %s162 = sphi 0, %s161
      %s176 = sphi 0, %s162
      %s180 = sphi 0, %s180
      %s182 = sphi 0, %s180
      %s183 = sphi 0, %s182
      %s197 = sphi 0, %s183
      %s201 = sphi 0, %s201
      %s203 = sphi 0, %s201
      %s204 = sphi 0, %s203
      %s218 = sphi 0, %s204
      %s224 = sphi 0, %s226
      %s227 = sphi 0, %s224
      %s228 = sphi 0, %s227
      %s244 = sphi 0, %s228
    $region4: #{tpu_custom_call.1} parent=1 // loop_header_branch
      %23 = sbr.rel (%p21) target = $region8
    $region5: #{tpu_custom_call.1} parent=1 // loop_body
      %s25 = ssub.s32 %s20, 1
      %s26 = ssub.s32 %s20, 2
      %s27 = sadd.s32 %s20, 1
      %s28 = ssub.s32 %s20, %s27
      %p29 = scmp.eq.s32.totalorder %s28, 0
      %s31 = sadd.s32 %s30, 1
      %s32 = scalar_select %p29, %s30, %s31
      %p35 = pneg %p29
      %p36 = scmp.eq.s32.totalorder %s20, 1
      %p37 = por %p35, %p36
      %p38 = scmp.ne.s32.totalorder %s30, %s33
      %p39 = scmp.eq.s32.totalorder %s20, 0
      %p40 = por %p38, %p39
      %p41 = scmp.ne.s32.totalorder %s30, %s33
      %p42 = scmp.eq.s32.totalorder %s25, 1
      %p43 = por %p41, %p42
      %p44 = scmp.ne.s32.totalorder %s33, %s34
      %p45 = scmp.eq.s32.totalorder %s25, 0
      %p46 = por %p44, %p45
      %p47 = scmp.ne.s32.totalorder %s33, %s34
      %p48 = scmp.eq.s32.totalorder %s26, 1
      %p49 = por %p47, %p48
      %p51 = scmp.ne.s32.totalorder %s34, %s50
      %p52 = scmp.eq.s32.totalorder %s26, 0
      %p53 = por %p51, %p52
      %s55 = sadd.s32 %s54, 1
      %p58 = scmp.eq.s32.totalorder %s20, 1
      %p59 = scmp.ne.s32.totalorder %s54, %s56
      %p60 = scmp.eq.s32.totalorder %s20, 0
      %p61 = por %p59, %p60
      %p62 = scmp.ne.s32.totalorder %s54, %s56
      %p63 = scmp.eq.s32.totalorder %s25, 1
      %p64 = por %p62, %p63
      %p65 = scmp.ne.s32.totalorder %s56, %s57
      %p66 = scmp.eq.s32.totalorder %s25, 0
      %p67 = por %p65, %p66
      %p68 = scmp.ne.s32.totalorder %s56, %s57
      %p69 = scmp.eq.s32.totalorder %s26, 1
      %p70 = por %p68, %p69
      %p72 = scmp.ne.s32.totalorder %s57, %s71
      %p73 = scmp.eq.s32.totalorder %s26, 0
      %p74 = por %p72, %p73
      %s76 = sadd.s32 %s75, 1
      %p79 = scmp.eq.s32.totalorder %s20, 1
      %p80 = scmp.ne.s32.totalorder %s75, %s77
      %p81 = scmp.eq.s32.totalorder %s20, 0
      %p82 = por %p80, %p81
      %p83 = scmp.ne.s32.totalorder %s75, %s77
      %p84 = scmp.eq.s32.totalorder %s25, 1
      %p85 = por %p83, %p84
      %p86 = scmp.ne.s32.totalorder %s77, %s78
      %p87 = scmp.eq.s32.totalorder %s25, 0
      %p88 = por %p86, %p87
      %p89 = scmp.ne.s32.totalorder %s77, %s78
      %p90 = scmp.eq.s32.totalorder %s26, 1
      %p91 = por %p89, %p90
      %p93 = scmp.ne.s32.totalorder %s78, %s92
      %p94 = scmp.eq.s32.totalorder %s26, 0
      %p95 = por %p93, %p94
      %s97 = sadd.s32 %s96, 1
      %p100 = scmp.eq.s32.totalorder %s20, 1
      %p101 = scmp.ne.s32.totalorder %s96, %s98
      %p102 = scmp.eq.s32.totalorder %s20, 0
      %p103 = por %p101, %p102
      %p104 = scmp.ne.s32.totalorder %s96, %s98
      %p105 = scmp.eq.s32.totalorder %s25, 1
      %p106 = por %p104, %p105
      %p107 = scmp.ne.s32.totalorder %s98, %s99
      %p108 = scmp.eq.s32.totalorder %s25, 0
      %p109 = por %p107, %p108
      %p110 = scmp.ne.s32.totalorder %s98, %s99
      %p111 = scmp.eq.s32.totalorder %s26, 1
      %p112 = por %p110, %p111
      %p114 = scmp.ne.s32.totalorder %s99, %s113
      %p115 = scmp.eq.s32.totalorder %s26, 0
      %p116 = por %p114, %p115
      %s118 = sadd.s32 %s117, 1
      %p121 = scmp.eq.s32.totalorder %s20, 1
      %p122 = scmp.ne.s32.totalorder %s117, %s119
      %p123 = scmp.eq.s32.totalorder %s20, 0
      %p124 = por %p122, %p123
      %p125 = scmp.ne.s32.totalorder %s117, %s119
      %p126 = scmp.eq.s32.totalorder %s25, 1
      %p127 = por %p125, %p126
      %p128 = scmp.ne.s32.totalorder %s119, %s120
      %p129 = scmp.eq.s32.totalorder %s25, 0
      %p130 = por %p128, %p129
      %p131 = scmp.ne.s32.totalorder %s119, %s120
      %p132 = scmp.eq.s32.totalorder %s26, 1
      %p133 = por %p131, %p132
      %p135 = scmp.ne.s32.totalorder %s120, %s134
      %p136 = scmp.eq.s32.totalorder %s26, 0
      %p137 = por %p135, %p136
      %s139 = sadd.s32 %s138, 1
      %p142 = scmp.eq.s32.totalorder %s20, 1
      %p143 = scmp.ne.s32.totalorder %s138, %s140
      %p144 = scmp.eq.s32.totalorder %s20, 0
      %p145 = por %p143, %p144
      %p146 = scmp.ne.s32.totalorder %s138, %s140
      %p147 = scmp.eq.s32.totalorder %s25, 1
      %p148 = por %p146, %p147
      %p149 = scmp.ne.s32.totalorder %s140, %s141
      %p150 = scmp.eq.s32.totalorder %s25, 0
      %p151 = por %p149, %p150
      %p152 = scmp.ne.s32.totalorder %s140, %s141
      %p153 = scmp.eq.s32.totalorder %s26, 1
      %p154 = por %p152, %p153
      %p156 = scmp.ne.s32.totalorder %s141, %s155
      %p157 = scmp.eq.s32.totalorder %s26, 0
      %p158 = por %p156, %p157
      %s160 = sadd.s32 %s159, 1
      %p163 = scmp.eq.s32.totalorder %s20, 1
      %p164 = scmp.ne.s32.totalorder %s159, %s161
      %p165 = scmp.eq.s32.totalorder %s20, 0
      %p166 = por %p164, %p165
      %p167 = scmp.ne.s32.totalorder %s159, %s161
      %p168 = scmp.eq.s32.totalorder %s25, 1
      %p169 = por %p167, %p168
      %p170 = scmp.ne.s32.totalorder %s161, %s162
      %p171 = scmp.eq.s32.totalorder %s25, 0
      %p172 = por %p170, %p171
      %p173 = scmp.ne.s32.totalorder %s161, %s162
      %p174 = scmp.eq.s32.totalorder %s26, 1
      %p175 = por %p173, %p174
      %p177 = scmp.ne.s32.totalorder %s162, %s176
      %p178 = scmp.eq.s32.totalorder %s26, 0
      %p179 = por %p177, %p178
      %s181 = sadd.s32 %s180, 1
      %p184 = scmp.eq.s32.totalorder %s20, 1
      %p185 = scmp.ne.s32.totalorder %s180, %s182
      %p186 = scmp.eq.s32.totalorder %s20, 0
      %p187 = por %p185, %p186
      %p188 = scmp.ne.s32.totalorder %s180, %s182
      %p189 = scmp.eq.s32.totalorder %s25, 1
      %p190 = por %p188, %p189
      %p191 = scmp.ne.s32.totalorder %s182, %s183
      %p192 = scmp.eq.s32.totalorder %s25, 0
      %p193 = por %p191, %p192
      %p194 = scmp.ne.s32.totalorder %s182, %s183
      %p195 = scmp.eq.s32.totalorder %s26, 1
      %p196 = por %p194, %p195
      %p198 = scmp.ne.s32.totalorder %s183, %s197
      %p199 = scmp.eq.s32.totalorder %s26, 0
      %p200 = por %p198, %p199
      %s202 = sadd.s32 %s201, 1
      %p205 = scmp.eq.s32.totalorder %s20, 1
      %p206 = scmp.ne.s32.totalorder %s201, %s203
      %p207 = scmp.eq.s32.totalorder %s20, 0
      %p208 = por %p206, %p207
      %p209 = scmp.ne.s32.totalorder %s201, %s203
      %p210 = scmp.eq.s32.totalorder %s25, 1
      %p211 = por %p209, %p210
      %p212 = scmp.ne.s32.totalorder %s203, %s204
      %p213 = scmp.eq.s32.totalorder %s25, 0
      %p214 = por %p212, %p213
      %p215 = scmp.ne.s32.totalorder %s203, %s204
      %p216 = scmp.eq.s32.totalorder %s26, 1
      %p217 = por %p215, %p216
      %p219 = scmp.ne.s32.totalorder %s204, %s218
      %p220 = scmp.eq.s32.totalorder %s26, 0
      %p221 = por %p219, %p220
      %s222 = ssub.s32 %s20, %s27
      %p223 = scmp.eq.s32.totalorder %s222, 0
      %s225 = sadd.s32 %s224, 1
      %s226 = scalar_select %p223, %s224, %s225
      %p229 = pneg %p223
      %p230 = scmp.eq.s32.totalorder %s20, 1
      %p231 = por %p229, %p230
      %p232 = scmp.ne.s32.totalorder %s224, %s227
      %p233 = scmp.eq.s32.totalorder %s20, 0
      %p234 = por %p232, %p233
      %p235 = scmp.ne.s32.totalorder %s224, %s227
      %p236 = scmp.eq.s32.totalorder %s25, 1
      %p237 = por %p235, %p236
      %p238 = scmp.ne.s32.totalorder %s227, %s228
      %p239 = scmp.eq.s32.totalorder %s25, 0
      %p240 = por %p238, %p239
      %p241 = scmp.ne.s32.totalorder %s227, %s228
      %p242 = scmp.eq.s32.totalorder %s26, 1
      %p243 = por %p241, %p242
      %p245 = scmp.ne.s32.totalorder %s228, %s244
      %p246 = scmp.eq.s32.totalorder %s26, 0
      %p247 = por %p245, %p246
      %p248 = scmp.le.s32.totalorder 1, %s20
      %p249 = scmp.lt.s32.totalorder %s20, 3
      %p250 = pnand %p248, %p249
      %p251 = pneg %p250
      // Predicated region
      $region9: #{tpu_custom_call.1} parent=5 // pred_check
        _
      $region10: #{tpu_custom_call.1} parent=5 // pred_check_branch
        %253 = sbr.rel (%p250) target = $region12
      $region11: #{tpu_custom_call.1} parent=5 // pred_region
        %s254 = ssub.s32 %s20, 1
        // Predicated region
        $region13: #{tpu_custom_call.1} parent=11 // pred_check
          %p255 = pneg %p67
        $region14: #{tpu_custom_call.1} parent=11 // pred_check_branch
          %257 = sbr.rel (%p255) target = $region16
        $region15: #{tpu_custom_call.1} parent=11 // pred_region
          _
        $region16: #{tpu_custom_call.1} parent=11 // pred_fallthru
          _
        // Predicated region
        $region17: #{tpu_custom_call.1} parent=11 // pred_check
          %p258 = pneg %p88
        $region18: #{tpu_custom_call.1} parent=11 // pred_check_branch
          %260 = sbr.rel (%p258) target = $region20
        $region19: #{tpu_custom_call.1} parent=11 // pred_region
          _
        $region20: #{tpu_custom_call.1} parent=11 // pred_fallthru
          _
        // Predicated region
        $region21: #{tpu_custom_call.1} parent=11 // pred_check
          %p261 = pneg %p109
        $region22: #{tpu_custom_call.1} parent=11 // pred_check_branch
          %263 = sbr.rel (%p261) target = $region24
        $region23: #{tpu_custom_call.1} parent=11 // pred_region
          %s265 = ssub.s32 32768, 32768
          %266 = vsyncadd [#allocation3], %s265
          %s267 = sshll.u32 [#allocation2], 4
          %s268 = int_to_ptr.vmem [resolvable:$true] %s267
          %273 = dma.hbm_to_vmem [thread:$0]  %s3, 32768, %s268, [#allocation3], 512, 512, 32
        $region24: #{tpu_custom_call.1} parent=11 // pred_fallthru
          _
        // Predicated region
        $region25: #{tpu_custom_call.1} parent=11 // pred_check
          %p274 = pneg %p130
        $region26: #{tpu_custom_call.1} parent=11 // pred_check_branch
          %276 = sbr.rel (%p274) target = $region28
        $region27: #{tpu_custom_call.1} parent=11 // pred_region
          _
        $region28: #{tpu_custom_call.1} parent=11 // pred_fallthru
          _
        // Predicated region
        $region29: #{tpu_custom_call.1} parent=11 // pred_check
          %p277 = pneg %p151
        $region30: #{tpu_custom_call.1} parent=11 // pred_check_branch
          %279 = sbr.rel (%p277) target = $region32
        $region31: #{tpu_custom_call.1} parent=11 // pred_region
          %s281 = ssub.s32 32768, 32768
          %282 = vsyncadd [#allocation6], %s281
          %s283 = sshll.u32 [#allocation5], 4
          %s284 = int_to_ptr.vmem [resolvable:$true] %s283
          %289 = dma.hbm_to_vmem [thread:$0]  %s5, 32768, %s284, [#allocation6], 512, 512, 32
        $region32: #{tpu_custom_call.1} parent=11 // pred_fallthru
          _
        // Predicated region
        $region33: #{tpu_custom_call.1} parent=11 // pred_check
          %p290 = pneg %p172
        $region34: #{tpu_custom_call.1} parent=11 // pred_check_branch
          %292 = sbr.rel (%p290) target = $region36
        $region35: #{tpu_custom_call.1} parent=11 // pred_region
          _
        $region36: #{tpu_custom_call.1} parent=11 // pred_fallthru
          _
        // Predicated region
        $region37: #{tpu_custom_call.1} parent=11 // pred_check
          %p293 = pneg %p193
        $region38: #{tpu_custom_call.1} parent=11 // pred_check_branch
          %295 = sbr.rel (%p293) target = $region40
        $region39: #{tpu_custom_call.1} parent=11 // pred_region
          %s297 = ssub.s32 16384, 16384
          %298 = vsyncadd [#allocation6], %s297
          %s299 = sshll.u32 [#allocation7], 4
          %s300 = int_to_ptr.vmem [resolvable:$true] %s299
          %305 = dma.hbm_to_vmem [thread:$0]  %s7, 16384, %s300, [#allocation6], 128, 128, 8
        $region40: #{tpu_custom_call.1} parent=11 // pred_fallthru
          _
        // Predicated region
        $region41: #{tpu_custom_call.1} parent=11 // pred_check
          %p306 = pneg %p214
        $region42: #{tpu_custom_call.1} parent=11 // pred_check_branch
          %308 = sbr.rel (%p306) target = $region44
        $region43: #{tpu_custom_call.1} parent=11 // pred_region
          _
        $region44: #{tpu_custom_call.1} parent=11 // pred_fallthru
          _
      $region12: #{tpu_custom_call.1} parent=5 // pred_fallthru
        _
      %p309 = scmp.lt.s32.totalorder %s20, 2
      // Predicated region
      $region45: #{tpu_custom_call.1} parent=5 // pred_check
        %p310 = pneg %p309
      $region46: #{tpu_custom_call.1} parent=5 // pred_check_branch
        %312 = sbr.rel (%p310) target = $region48
      $region47: #{tpu_custom_call.1} parent=5 // pred_region
        // Predicated region
        $region49: #{tpu_custom_call.1} parent=47 // pred_check
          %p313 = pneg %p40
        $region50: #{tpu_custom_call.1} parent=47 // pred_check_branch
          %315 = sbr.rel (%p313) target = $region52
        $region51: #{tpu_custom_call.1} parent=47 // pred_region
          %s316 = smul.u32 19, %s20
          %p317 = scmp.lt.s32.totalorder %s316, 37
          %s318 = scalar_select %p317, %s316, 37
          %s319 = smul.addr %s318, 8
          %s320 = scalar_lea.vmem %s0, %s319
          %s321 = smul.u32 19, %s20
        $region52: #{tpu_custom_call.1} parent=47 // pred_fallthru
          _
      $region48: #{tpu_custom_call.1} parent=5 // pred_fallthru
        _
      %p322 = scmp.le.s32.totalorder 1, %s20
      %p323 = scmp.lt.s32.totalorder %s20, 3
      %p324 = pnand %p322, %p323
      %p325 = pneg %p324
      // Predicated region
      $region53: #{tpu_custom_call.1} parent=5 // pred_check
        _
      $region54: #{tpu_custom_call.1} parent=5 // pred_check_branch
        %327 = sbr.rel (%p324) target = $region56
      $region55: #{tpu_custom_call.1} parent=5 // pred_region
        %s328 = ssub.s32 %s20, 1
        // Predicated region
        $region57: #{tpu_custom_call.1} parent=55 // pred_check
          %p329 = pneg %p109
        $region58: #{tpu_custom_call.1} parent=55 // pred_check_branch
          %331 = sbr.rel (%p329) target = $region60
        $region59: #{tpu_custom_call.1} parent=55 // pred_region
          %332 = dma.done [#allocation3], 32768
        $region60: #{tpu_custom_call.1} parent=55 // pred_fallthru
          _
        // Predicated region
        $region61: #{tpu_custom_call.1} parent=55 // pred_check
          %p333 = pneg %p151
        $region62: #{tpu_custom_call.1} parent=55 // pred_check_branch
          %335 = sbr.rel (%p333) target = $region64
        $region63: #{tpu_custom_call.1} parent=55 // pred_region
          %336 = dma.done [#allocation6], 32768
        $region64: #{tpu_custom_call.1} parent=55 // pred_fallthru
          _
        // Predicated region
        $region65: #{tpu_custom_call.1} parent=55 // pred_check
          %p337 = pneg %p193
        $region66: #{tpu_custom_call.1} parent=55 // pred_check_branch
          %339 = sbr.rel (%p337) target = $region68
        $region67: #{tpu_custom_call.1} parent=55 // pred_region
          %340 = dma.done [#allocation6], 16384
        $region68: #{tpu_custom_call.1} parent=55 // pred_fallthru
          _
        %s341 = smul.u32 19, %s25
        %p342 = scmp.lt.s32.totalorder %s341, 37
        %s343 = scalar_select %p342, %s341, 37
        %s344 = smul.addr %s343, 8
        %s345 = scalar_lea.vmem %s0, %s344
        %p346 = pneg %p46
        %p347 = pneg %p43
        %p348 = pneg %p67
        %p349 = pneg %p64
        %p350 = pneg %p88
        %p351 = pneg %p85
        %p352 = pneg %p109
        %p353 = pneg %p106
        %p354 = pneg %p130
        %p355 = pneg %p127
        %p356 = pneg %p151
        %p357 = pneg %p148
        %p358 = pneg %p172
        %p359 = pneg %p169
        %p360 = pneg %p193
        %p361 = pneg %p190
        %p362 = pneg %p214
        %p363 = pneg %p211
        %p364 = pneg %p240
        %p365 = pneg %p237
        %s366 = sand.u32 %s227, 1
        %s367 = scalar_lea.sflag [#allocation4], %s366
        %s368 = sand.u32 %s227, 1
        %s369 = smul.addr %s368, 152
        %s370 = scalar_lea.vmem [#allocation8], %s369
        %s371 = smul.u32 19, %s25
        %p372 = scmp.lt.s32.totalorder %s371, 37
        %s373 = scalar_select %p372, %s371, 37
        %s374 = smul.addr %s373, 8
        %s375 = scalar_lea.vmem %s0, %s374
        %s376 = smul.u32 19, %s25
        %s377 = smul.u32 19, %s25
        %v378 = vld [vmem:[%s375] sm:$0xff]
        %v379 = vld [vmem:[%s375 + $0x8] sm:$0xff]
        %v380 = vld [vmem:[%s375 + $0x10] sm:$0xff]
        %v381 = vld [vmem:[%s375 + $0x18] sm:$0xff]
        %v382 = vld [vmem:[%s375 + $0x20] sm:$0xff]
        %v383 = vld [vmem:[%s375 + $0x28] sm:$0xff]
        %v384 = vld [vmem:[%s375 + $0x30] sm:$0xff]
        %v385 = vld [vmem:[%s375 + $0x38] sm:$0xff]
        %v386 = vld [vmem:[%s375 + $0x40] sm:$0xff]
        %v387 = vld [vmem:[%s375 + $0x48] sm:$0xff]
        %v388 = vld [vmem:[%s375 + $0x50] sm:$0xff]
        %v389 = vld [vmem:[%s375 + $0x58] sm:$0xff]
        %v390 = vld [vmem:[%s375 + $0x60] sm:$0xff]
        %v391 = vld [vmem:[%s375 + $0x68] sm:$0xff]
        %v392 = vld [vmem:[%s375 + $0x70] sm:$0xff]
        %v393 = vld [vmem:[%s375 + $0x78] sm:$0xff]
        %v394 = vld [vmem:[%s375 + $0x80] sm:$0xff]
        %v395 = vld [vmem:[%s375 + $0x88] sm:$0xff]
        %v396 = vld [vmem:[%s375 + $0x90] sm:$0xff]
        %v397 = vld [vmem:[%s1] sm:$0xff]
        %v398 = vld [vmem:[%s1 + $0x8] sm:$0xff]
        %v399 = vld [vmem:[%s1 + $0x10] sm:$0xff]
        %v400 = vld [vmem:[%s1 + $0x18] sm:$0xff]
        %v401 = vld [vmem:[%s1 + $0x20] sm:$0xff]
        %v402 = vld [vmem:[%s1 + $0x28] sm:$0xff]
        %v403 = vld [vmem:[%s1 + $0x30] sm:$0xff]
        %v404 = vld [vmem:[%s1 + $0x38] sm:$0xff]
        %v405 = vld [vmem:[%s1 + $0x40] sm:$0xff]
        %v406 = vld [vmem:[%s1 + $0x48] sm:$0xff]
        %v407 = vld [vmem:[%s1 + $0x50] sm:$0xff]
        %v408 = vld [vmem:[%s1 + $0x58] sm:$0xff]
        %v409 = vld [vmem:[%s1 + $0x60] sm:$0xff]
        %v410 = vld [vmem:[%s1 + $0x68] sm:$0xff]
        %v411 = vld [vmem:[%s1 + $0x70] sm:$0xff]
        %v412 = vld [vmem:[%s1 + $0x78] sm:$0xff]
        %v413 = vld [vmem:[%s1 + $0x80] sm:$0xff]
        %v414 = vld [vmem:[%s1 + $0x88] sm:$0xff]
        %v415 = vld [vmem:[%s1 + $0x90] sm:$0xff]
        %v416 = vld [vmem:[%s1 + $0x98] sm:$0xff]
        %v417 = vld [vmem:[%s1 + $0xa0] sm:$0xff]
        %v418 = vld [vmem:[%s1 + $0xa8] sm:$0xff]
        %v419 = vld [vmem:[%s1 + $0xb0] sm:$0xff]
        %v420 = vld [vmem:[%s1 + $0xb8] sm:$0xff]
        %v421 = vld [vmem:[%s1 + $0xc0] sm:$0xff]
        %v422 = vld [vmem:[%s1 + $0xc8] sm:$0xff]
        %v423 = vld [vmem:[%s1 + $0xd0] sm:$0xff]
        %v424 = vld [vmem:[%s1 + $0xd8] sm:$0xff]
        %v425 = vld [vmem:[%s1 + $0xe0] sm:$0xff]
        %v426 = vld [vmem:[%s1 + $0xe8] sm:$0xff]
        %v427 = vld [vmem:[%s1 + $0xf0] sm:$0xff]
        %v428 = vld [vmem:[%s1 + $0xf8] sm:$0xff]
        %v429 = vld [vmem:[%s2] sm:$0xff]
        %v431 = vlaneseq
        %v432 = vshrl.u32 %v431, 7
        %v433 = vsub.s32 0, %v432
        %v434 = vrot.slane %v429, %v433
        %v435 = vlaneseq
        %v436 = vshrl.u32 %v435, 7
        %v437 = vsub.s32 1, %v436
        %v438 = vrot.slane %v429, %v437
        %v439 = vlaneseq
        %v440 = vshrl.u32 %v439, 7
        %v441 = vsub.s32 2, %v440
        %v442 = vrot.slane %v429, %v441
        %v443 = vlaneseq
        %v444 = vshrl.u32 %v443, 7
        %v445 = vsub.s32 3, %v444
        %v446 = vrot.slane %v429, %v445
        %v447 = vlaneseq
        %v448 = vshrl.u32 %v447, 7
        %v449 = vsub.s32 4, %v448
        %v450 = vrot.slane %v429, %v449
        %v451 = vlaneseq
        %v452 = vshrl.u32 %v451, 7
        %v453 = vsub.s32 5, %v452
        %v454 = vrot.slane %v429, %v453
        %v455 = vlaneseq
        %v456 = vshrl.u32 %v455, 7
        %v457 = vsub.s32 6, %v456
        %v458 = vrot.slane %v429, %v457
        %v459 = vlaneseq
        %v460 = vshrl.u32 %v459, 7
        %v461 = vsub.s32 7, %v460
        %v462 = vrot.slane %v429, %v461
        %vm471 = vcmask 261120
        %v473 = vsel %vm471, %v378, 0
        %v476 = vsel %vm471, %v379, 0
        %v479 = vsel %vm471, %v380, 0
        %v482 = vsel %vm471, %v381, 0
        %v485 = vsel %vm471, %v382, 0
        %v488 = vsel %vm471, %v383, 0
        %v491 = vsel %vm471, %v384, 0
        %v494 = vsel %vm471, %v385, 0
        %v497 = vsel %vm471, %v386, 0
        %v500 = vsel %vm471, %v387, 0
        %v503 = vsel %vm471, %v388, 0
        %v506 = vsel %vm471, %v389, 0
        %v509 = vsel %vm471, %v390, 0
        %v512 = vsel %vm471, %v391, 0
        %v515 = vsel %vm471, %v392, 0
        %v518 = vsel %vm471, %v393, 0
        %v521 = vsel %vm471, %v394, 0
        %v524 = vsel %vm471, %v395, 0
        %v527 = vsel %vm471, %v396, 0
        %529 = vmatprep.subr.mxu0 %v398
        %530 = vmatpush1.msra.mxu0 %v397
        %531 = vmatprep.subr.mxu0 %v406
        %532 = vmatpush1.msra.mxu0 %v405
        %533 = vmatprep.subr.mxu0 %v414
        %534 = vmatpush1.msra.mxu0 %v413
        %535 = vmatprep.subr.mxu0 %v422
        %536 = vmatpush1.msra.mxu0 %v421
        %537 = vmatprep.subr.mxu0 0.0
        %538 = vmatpush1.msra.mxu0 0.0
        %539 = vmatprep.subr.mxu0 0.0
        %540 = vmatpush1.msra.mxu0 0.0
        %541 = vmatprep.subr.mxu0 0.0
        %542 = vmatpush1.msra.mxu0 0.0
        %543 = vmatprep.subr.mxu0 0.0
        %544 = vmatpush1.msra.mxu0 0.0
        %545 = vmatprep.subr.mxu0 0.0
        %546 = vmatpush1.msra.mxu0 0.0
        %547 = vmatprep.subr.mxu0 0.0
        %548 = vmatpush1.msra.mxu0 0.0
        %549 = vmatprep.subr.mxu0 0.0
        %550 = vmatpush1.msra.mxu0 0.0
        %551 = vmatprep.subr.mxu0 0.0
        %552 = vmatpush1.msra.mxu0 0.0
        %553 = vmatprep.subr.mxu0 0.0
        %554 = vmatpush1.msra.mxu0 0.0
        %555 = vmatprep.subr.mxu0 0.0
        %556 = vmatpush1.msra.mxu0 0.0
        %557 = vmatprep.subr.mxu0 0.0
        %558 = vmatpush1.msra.mxu0 0.0
        %559 = vmatprep.subr.mxu0 0.0
        %560 = vmatpush1.msra.mxu0 0.0
        %561 = vmatprep.subr.mxu0 0.0
        %562 = vmatpush1.msra.mxu0 0.0
        %563 = vmatprep.subr.mxu0 0.0
        %564 = vmatpush1.msra.mxu0 0.0
        %565 = vmatprep.subr.mxu0 0.0
        %566 = vmatpush1.msra.mxu0 0.0
        %567 = vmatprep.subr.mxu0 0.0
        %568 = vmatpush1.msra.mxu0 0.0
        %569 = vmatprep.subr.mxu0 0.0
        %570 = vmatpush1.msra.mxu0 0.0
        %571 = vmatprep.subr.mxu0 0.0
        %572 = vmatpush1.msra.mxu0 0.0
        %573 = vmatprep.subr.mxu0 0.0
        %574 = vmatpush1.msra.mxu0 0.0
        %575 = vmatprep.subr.mxu0 0.0
        %576 = vmatpush1.msra.mxu0 0.0
        %577 = vmatprep.subr.mxu0 0.0
        %578 = vmatpush1.msra.mxu0 0.0
        %579 = vmatprep.subr.mxu0 0.0
        %580 = vmatpush1.msra.mxu0 0.0
        %581 = vmatprep.subr.mxu0 0.0
        %582 = vmatpush1.msra.mxu0 0.0
        %583 = vmatprep.subr.mxu0 0.0
        %584 = vmatpush1.msra.mxu0 0.0
        %585 = vmatprep.subr.mxu0 0.0
        %586 = vmatpush1.msra.mxu0 0.0
        %587 = vmatprep.subr.mxu0 0.0
        %588 = vmatpush1.msra.mxu0 0.0
        %589 = vmatprep.subr.mxu0 0.0
        %590 = vmatpush1.msra.mxu0 0.0
        %591 = vmatprep.subr.mxu0 0.0
        %592 = vmatpush1.msra.mxu0 0.0
        %593 = vmatprep.mubr.f32.mxu0 0.0
        %594 = vmatmul.mubr.f32.gmra.mrb[0].mxu0 %v473
        %v595 = vpop.f32.mrb[0].mxu0
        %v596 = vadd.f32 %v434, %v595
        %v597 = vpop.f32.mrb[0].mxu0
        %v598 = vadd.f32 %v438, %v597
        %599 = vmatprep.mubr.f32.mxu0 0.0
        %600 = vmatmul.mubr.f32.gmra.mrb[0].mxu0 %v476
        %v601 = vpop.f32.mrb[0].mxu0
        %v602 = vadd.f32 %v434, %v601
        %v603 = vpop.f32.mrb[0].mxu0
        %v604 = vadd.f32 %v438, %v603
        %605 = vmatprep.mubr.f32.mxu0 0.0
        %606 = vmatmul.mubr.f32.gmra.mrb[0].mxu0 %v479
        %v607 = vpop.f32.mrb[0].mxu0
        %v608 = vadd.f32 %v434, %v607
        %v609 = vpop.f32.mrb[0].mxu0
        %v610 = vadd.f32 %v438, %v609
        %611 = vmatprep.mubr.f32.mxu0 0.0
        %612 = vmatmul.mubr.f32.gmra.mrb[0].mxu0 %v482
        %v613 = vpop.f32.mrb[0].mxu0
        %v614 = vadd.f32 %v434, %v613
        %v615 = vpop.f32.mrb[0].mxu0
        %v616 = vadd.f32 %v438, %v615
        %617 = vmatprep.mubr.f32.mxu0 0.0
        %618 = vmatmul.mubr.f32.gmra.mrb[0].mxu0 %v485
        %v619 = vpop.f32.mrb[0].mxu0
        %v620 = vadd.f32 %v434, %v619
        %v621 = vpop.f32.mrb[0].mxu0
        %v622 = vadd.f32 %v438, %v621
        %623 = vmatprep.mubr.f32.mxu0 0.0
        %624 = vmatmul.mubr.f32.gmra.mrb[0].mxu0 %v488
        %v625 = vpop.f32.mrb[0].mxu0
        %v626 = vadd.f32 %v434, %v625
        %v627 = vpop.f32.mrb[0].mxu0
        %v628 = vadd.f32 %v438, %v627
        %629 = vmatprep.mubr.f32.mxu0 0.0
        %630 = vmatmul.mubr.f32.gmra.mrb[0].mxu0 %v491
        %v631 = vpop.f32.mrb[0].mxu0
        %v632 = vadd.f32 %v434, %v631
        %v633 = vpop.f32.mrb[0].mxu0
        %v634 = vadd.f32 %v438, %v633
        %635 = vmatprep.mubr.f32.mxu0 0.0
        %636 = vmatmul.mubr.f32.gmra.mrb[0].mxu0 %v494
        %v637 = vpop.f32.mrb[0].mxu0
        %v638 = vadd.f32 %v434, %v637
        %v639 = vpop.f32.mrb[0].mxu0
        %v640 = vadd.f32 %v438, %v639
        %641 = vmatprep.mubr.f32.mxu0 0.0
        %642 = vmatmul.mubr.f32.gmra.mrb[0].mxu0 %v497
        %v643 = vpop.f32.mrb[0].mxu0
        %v644 = vadd.f32 %v434, %v643
        %v645 = vpop.f32.mrb[0].mxu0
        %v646 = vadd.f32 %v438, %v645
        %647 = vmatprep.mubr.f32.mxu0 0.0
        %648 = vmatmul.mubr.f32.gmra.mrb[0].mxu0 %v500
        %v649 = vpop.f32.mrb[0].mxu0
        %v650 = vadd.f32 %v434, %v649
        %v651 = vpop.f32.mrb[0].mxu0
        %v652 = vadd.f32 %v438, %v651
        %653 = vmatprep.mubr.f32.mxu0 0.0
        %654 = vmatmul.mubr.f32.gmra.mrb[0].mxu0 %v503
        %v655 = vpop.f32.mrb[0].mxu0
        %v656 = vadd.f32 %v434, %v655
        %v657 = vpop.f32.mrb[0].mxu0
        %v658 = vadd.f32 %v438, %v657
        %659 = vmatprep.mubr.f32.mxu0 0.0
        %660 = vmatmul.mubr.f32.gmra.mrb[0].mxu0 %v506
        %v661 = vpop.f32.mrb[0].mxu0
        %v662 = vadd.f32 %v434, %v661
        %v663 = vpop.f32.mrb[0].mxu0
        %v664 = vadd.f32 %v438, %v663
        %665 = vmatprep.mubr.f32.mxu0 0.0
        %666 = vmatmul.mubr.f32.gmra.mrb[0].mxu0 %v509
        %v667 = vpop.f32.mrb[0].mxu0
        %v668 = vadd.f32 %v434, %v667
        %v669 = vpop.f32.mrb[0].mxu0
        %v670 = vadd.f32 %v438, %v669
        %671 = vmatprep.mubr.f32.mxu0 0.0
        %672 = vmatmul.mubr.f32.gmra.mrb[0].mxu0 %v512
        %v673 = vpop.f32.mrb[0].mxu0
        %v674 = vadd.f32 %v434, %v673
        %v675 = vpop.f32.mrb[0].mxu0
        %v676 = vadd.f32 %v438, %v675
        %677 = vmatprep.mubr.f32.mxu0 0.0
        %678 = vmatmul.mubr.f32.gmra.mrb[0].mxu0 %v515
        %v679 = vpop.f32.mrb[0].mxu0
        %v680 = vadd.f32 %v434, %v679
        %v681 = vpop.f32.mrb[0].mxu0
        %v682 = vadd.f32 %v438, %v681
        %683 = vmatprep.mubr.f32.mxu0 0.0
        %684 = vmatmul.mubr.f32.gmra.mrb[0].mxu0 %v518
        %v685 = vpop.f32.mrb[0].mxu0
        %v686 = vadd.f32 %v434, %v685
        %v687 = vpop.f32.mrb[0].mxu0
        %v688 = vadd.f32 %v438, %v687
        %689 = vmatprep.mubr.f32.mxu0 0.0
        %690 = vmatmul.mubr.f32.gmra.mrb[0].mxu0 %v521
        %v691 = vpop.f32.mrb[0].mxu0
        %v692 = vadd.f32 %v434, %v691
        %v693 = vpop.f32.mrb[0].mxu0
        %v694 = vadd.f32 %v438, %v693
        %695 = vmatprep.mubr.f32.mxu0 0.0
        %696 = vmatmul.mubr.f32.gmra.mrb[0].mxu0 %v524
        %v697 = vpop.f32.mrb[0].mxu0
        %v698 = vadd.f32 %v434, %v697
        %v699 = vpop.f32.mrb[0].mxu0
        %v700 = vadd.f32 %v438, %v699
        %701 = vmatprep.mubr.f32.mxu0 0.0
        %702 = vmatmul.mubr.f32.gmra.mrb[0].mxu0 %v527
        %v703 = vpop.f32.mrb[0].mxu0
        %v704 = vadd.f32 %v434, %v703
        %v705 = vpop.f32.mrb[0].mxu0
        %v706 = vadd.f32 %v438, %v705
        %707 = vdwg.mxu0
        %708 = vmatprep.subr.mxu0 %v400
        %709 = vmatpush1.msra.mxu0 %v399
        %710 = vmatprep.subr.mxu0 %v408
        %711 = vmatpush1.msra.mxu0 %v407
        %712 = vmatprep.subr.mxu0 %v416
        %713 = vmatpush1.msra.mxu0 %v415
        %714 = vmatprep.subr.mxu0 %v424
        %715 = vmatpush1.msra.mxu0 %v423
        %716 = vmatprep.subr.mxu0 0.0
        %717 = vmatpush1.msra.mxu0 0.0
        %718 = vmatprep.subr.mxu0 0.0
        %719 = vmatpush1.msra.mxu0 0.0
        %720 = vmatprep.subr.mxu0 0.0
        %721 = vmatpush1.msra.mxu0 0.0
        %722 = vmatprep.subr.mxu0 0.0
        %723 = vmatpush1.msra.mxu0 0.0
        %724 = vmatprep.subr.mxu0 0.0
        %725 = vmatpush1.msra.mxu0 0.0
        %726 = vmatprep.subr.mxu0 0.0
        %727 = vmatpush1.msra.mxu0 0.0
        %728 = vmatprep.subr.mxu0 0.0
        %729 = vmatpush1.msra.mxu0 0.0
        %730 = vmatprep.subr.mxu0 0.0
        %731 = vmatpush1.msra.mxu0 0.0
        %732 = vmatprep.subr.mxu0 0.0
        %733 = vmatpush1.msra.mxu0 0.0
        %734 = vmatprep.subr.mxu0 0.0
        %735 = vmatpush1.msra.mxu0 0.0
        %736 = vmatprep.subr.mxu0 0.0
        %737 = vmatpush1.msra.mxu0 0.0
        %738 = vmatprep.subr.mxu0 0.0
        %739 = vmatpush1.msra.mxu0 0.0
        %740 = vmatprep.subr.mxu0 0.0
        %741 = vmatpush1.msra.mxu0 0.0
        %742 = vmatprep.subr.mxu0 0.0
        %743 = vmatpush1.msra.mxu0 0.0
        %744 = vmatprep.subr.mxu0 0.0
        %745 = vmatpush1.msra.mxu0 0.0
        %746 = vmatprep.subr.mxu0 0.0
        %747 = vmatpush1.msra.mxu0 0.0
        %748 = vmatprep.subr.mxu0 0.0
        %749 = vmatpush1.msra.mxu0 0.0
        %750 = vmatprep.subr.mxu0 0.0
        %751 = vmatpush1.msra.mxu0 0.0
        %752 = vmatprep.subr.mxu0 0.0
        %753 = vmatpush1.msra.mxu0 0.0
        %754 = vmatprep.subr.mxu0 0.0
        %755 = vmatpush1.msra.mxu0 0.0
        %756 = vmatprep.subr.mxu0 0.0
        %757 = vmatpush1.msra.mxu0 0.0
        %758 = vmatprep.subr.mxu0 0.0
        %759 = vmatpush1.msra.mxu0 0.0
        %760 = vmatprep.subr.mxu0 0.0
        %761 = vmatpush1.msra.mxu0 0.0
        %762 = vmatprep.subr.mxu0 0.0
        %763 = vmatpush1.msra.mxu0 0.0
        %764 = vmatprep.subr.mxu0 0.0
        %765 = vmatpush1.msra.mxu0 0.0
        %766 = vmatprep.subr.mxu0 0.0
        %767 = vmatpush1.msra.mxu0 0.0
        %768 = vmatprep.subr.mxu0 0.0
        %769 = vmatpush1.msra.mxu0 0.0
        %770 = vmatprep.subr.mxu0 0.0
        %771 = vmatpush1.msra.mxu0 0.0
        %772 = vmatprep.mubr.f32.mxu0 0.0
        %773 = vmatmul.mubr.f32.gmra.mrb[0].mxu0 %v473
        %v774 = vpop.f32.mrb[0].mxu0
        %v775 = vadd.f32 %v442, %v774
        %v776 = vpop.f32.mrb[0].mxu0
        %v777 = vadd.f32 %v446, %v776
        %778 = vmatprep.mubr.f32.mxu0 0.0
        %779 = vmatmul.mubr.f32.gmra.mrb[0].mxu0 %v476
        %v780 = vpop.f32.mrb[0].mxu0
        %v781 = vadd.f32 %v442, %v780
        %v782 = vpop.f32.mrb[0].mxu0
        %v783 = vadd.f32 %v446, %v782
        %784 = vmatprep.mubr.f32.mxu0 0.0
        %785 = vmatmul.mubr.f32.gmra.mrb[0].mxu0 %v479
        %v786 = vpop.f32.mrb[0].mxu0
        %v787 = vadd.f32 %v442, %v786
        %v788 = vpop.f32.mrb[0].mxu0
        %v789 = vadd.f32 %v446, %v788
        %790 = vmatprep.mubr.f32.mxu0 0.0
        %791 = vmatmul.mubr.f32.gmra.mrb[0].mxu0 %v482
        %v792 = vpop.f32.mrb[0].mxu0
        %v793 = vadd.f32 %v442, %v792
        %v794 = vpop.f32.mrb[0].mxu0
        %v795 = vadd.f32 %v446, %v794
        %796 = vmatprep.mubr.f32.mxu0 0.0
        %797 = vmatmul.mubr.f32.gmra.mrb[0].mxu0 %v485
        %v798 = vpop.f32.mrb[0].mxu0
        %v799 = vadd.f32 %v442, %v798
        %v800 = vpop.f32.mrb[0].mxu0
        %v801 = vadd.f32 %v446, %v800
        %802 = vmatprep.mubr.f32.mxu0 0.0
        %803 = vmatmul.mubr.f32.gmra.mrb[0].mxu0 %v488
        %v804 = vpop.f32.mrb[0].mxu0
        %v805 = vadd.f32 %v442, %v804
        %v806 = vpop.f32.mrb[0].mxu0
        %v807 = vadd.f32 %v446, %v806
        %808 = vmatprep.mubr.f32.mxu0 0.0
        %809 = vmatmul.mubr.f32.gmra.mrb[0].mxu0 %v491
        %v810 = vpop.f32.mrb[0].mxu0
        %v811 = vadd.f32 %v442, %v810
        %v812 = vpop.f32.mrb[0].mxu0
        %v813 = vadd.f32 %v446, %v812
        %814 = vmatprep.mubr.f32.mxu0 0.0
        %815 = vmatmul.mubr.f32.gmra.mrb[0].mxu0 %v494
        %v816 = vpop.f32.mrb[0].mxu0
        %v817 = vadd.f32 %v442, %v816
        %v818 = vpop.f32.mrb[0].mxu0
        %v819 = vadd.f32 %v446, %v818
        %820 = vmatprep.mubr.f32.mxu0 0.0
        %821 = vmatmul.mubr.f32.gmra.mrb[0].mxu0 %v497
        %v822 = vpop.f32.mrb[0].mxu0
        %v823 = vadd.f32 %v442, %v822
        %v824 = vpop.f32.mrb[0].mxu0
        %v825 = vadd.f32 %v446, %v824
        %826 = vmatprep.mubr.f32.mxu0 0.0
        %827 = vmatmul.mubr.f32.gmra.mrb[0].mxu0 %v500
        %v828 = vpop.f32.mrb[0].mxu0
        %v829 = vadd.f32 %v442, %v828
        %v830 = vpop.f32.mrb[0].mxu0
        %v831 = vadd.f32 %v446, %v830
        %832 = vmatprep.mubr.f32.mxu0 0.0
        %833 = vmatmul.mubr.f32.gmra.mrb[0].mxu0 %v503
        %v834 = vpop.f32.mrb[0].mxu0
        %v835 = vadd.f32 %v442, %v834
        %v836 = vpop.f32.mrb[0].mxu0
        %v837 = vadd.f32 %v446, %v836
        %838 = vmatprep.mubr.f32.mxu0 0.0
        %839 = vmatmul.mubr.f32.gmra.mrb[0].mxu0 %v506
        %v840 = vpop.f32.mrb[0].mxu0
        %v841 = vadd.f32 %v442, %v840
        %v842 = vpop.f32.mrb[0].mxu0
        %v843 = vadd.f32 %v446, %v842
        %844 = vmatprep.mubr.f32.mxu0 0.0
        %845 = vmatmul.mubr.f32.gmra.mrb[0].mxu0 %v509
        %v846 = vpop.f32.mrb[0].mxu0
        %v847 = vadd.f32 %v442, %v846
        %v848 = vpop.f32.mrb[0].mxu0
        %v849 = vadd.f32 %v446, %v848
        %850 = vmatprep.mubr.f32.mxu0 0.0
        %851 = vmatmul.mubr.f32.gmra.mrb[0].mxu0 %v512
        %v852 = vpop.f32.mrb[0].mxu0
        %v853 = vadd.f32 %v442, %v852
        %v854 = vpop.f32.mrb[0].mxu0
        %v855 = vadd.f32 %v446, %v854
        %856 = vmatprep.mubr.f32.mxu0 0.0
        %857 = vmatmul.mubr.f32.gmra.mrb[0].mxu0 %v515
        %v858 = vpop.f32.mrb[0].mxu0
        %v859 = vadd.f32 %v442, %v858
        %v860 = vpop.f32.mrb[0].mxu0
        %v861 = vadd.f32 %v446, %v860
        %862 = vmatprep.mubr.f32.mxu0 0.0
        %863 = vmatmul.mubr.f32.gmra.mrb[0].mxu0 %v518
        %v864 = vpop.f32.mrb[0].mxu0
        %v865 = vadd.f32 %v442, %v864
        %v866 = vpop.f32.mrb[0].mxu0
        %v867 = vadd.f32 %v446, %v866
        %868 = vmatprep.mubr.f32.mxu0 0.0
        %869 = vmatmul.mubr.f32.gmra.mrb[0].mxu0 %v521
        %v870 = vpop.f32.mrb[0].mxu0
        %v871 = vadd.f32 %v442, %v870
        %v872 = vpop.f32.mrb[0].mxu0
        %v873 = vadd.f32 %v446, %v872
        %874 = vmatprep.mubr.f32.mxu0 0.0
        %875 = vmatmul.mubr.f32.gmra.mrb[0].mxu0 %v524
        %v876 = vpop.f32.mrb[0].mxu0
        %v877 = vadd.f32 %v442, %v876
        %v878 = vpop.f32.mrb[0].mxu0
        %v879 = vadd.f32 %v446, %v878
        %880 = vmatprep.mubr.f32.mxu0 0.0
        %881 = vmatmul.mubr.f32.gmra.mrb[0].mxu0 %v527
        %v882 = vpop.f32.mrb[0].mxu0
        %v883 = vadd.f32 %v442, %v882
        %v884 = vpop.f32.mrb[0].mxu0
        %v885 = vadd.f32 %v446, %v884
        %886 = vdwg.mxu0
        %887 = vmatprep.subr.mxu0 %v402
        %888 = vmatpush1.msra.mxu0 %v401
        %889 = vmatprep.subr.mxu0 %v410
        %890 = vmatpush1.msra.mxu0 %v409
        %891 = vmatprep.subr.mxu0 %v418
        %892 = vmatpush1.msra.mxu0 %v417
        %893 = vmatprep.subr.mxu0 %v426
        %894 = vmatpush1.msra.mxu0 %v425
        %895 = vmatprep.subr.mxu0 0.0
        %896 = vmatpush1.msra.mxu0 0.0
        %897 = vmatprep.subr.mxu0 0.0
        %898 = vmatpush1.msra.mxu0 0.0
        %899 = vmatprep.subr.mxu0 0.0
        %900 = vmatpush1.msra.mxu0 0.0
        %901 = vmatprep.subr.mxu0 0.0
        %902 = vmatpush1.msra.mxu0 0.0
        %903 = vmatprep.subr.mxu0 0.0
        %904 = vmatpush1.msra.mxu0 0.0
        %905 = vmatprep.subr.mxu0 0.0
        %906 = vmatpush1.msra.mxu0 0.0
        %907 = vmatprep.subr.mxu0 0.0
        %908 = vmatpush1.msra.mxu0 0.0
        %909 = vmatprep.subr.mxu0 0.0
        %910 = vmatpush1.msra.mxu0 0.0
        %911 = vmatprep.subr.mxu0 0.0
        %912 = vmatpush1.msra.mxu0 0.0
        %913 = vmatprep.subr.mxu0 0.0
        %914 = vmatpush1.msra.mxu0 0.0
        %915 = vmatprep.subr.mxu0 0.0
        %916 = vmatpush1.msra.mxu0 0.0
        %917 = vmatprep.subr.mxu0 0.0
        %918 = vmatpush1.msra.mxu0 0.0
        %919 = vmatprep.subr.mxu0 0.0
        %920 = vmatpush1.msra.mxu0 0.0
        %921 = vmatprep.subr.mxu0 0.0
        %922 = vmatpush1.msra.mxu0 0.0
        %923 = vmatprep.subr.mxu0 0.0
        %924 = vmatpush1.msra.mxu0 0.0
        %925 = vmatprep.subr.mxu0 0.0
        %926 = vmatpush1.msra.mxu0 0.0
        %927 = vmatprep.subr.mxu0 0.0
        %928 = vmatpush1.msra.mxu0 0.0
        %929 = vmatprep.subr.mxu0 0.0
        %930 = vmatpush1.msra.mxu0 0.0
        %931 = vmatprep.subr.mxu0 0.0
        %932 = vmatpush1.msra.mxu0 0.0
        %933 = vmatprep.subr.mxu0 0.0
        %934 = vmatpush1.msra.mxu0 0.0
        %935 = vmatprep.subr.mxu0 0.0
        %936 = vmatpush1.msra.mxu0 0.0
        %937 = vmatprep.subr.mxu0 0.0
        %938 = vmatpush1.msra.mxu0 0.0
        %939 = vmatprep.subr.mxu0 0.0
        %940 = vmatpush1.msra.mxu0 0.0
        %941 = vmatprep.subr.mxu0 0.0
        %942 = vmatpush1.msra.mxu0 0.0
        %943 = vmatprep.subr.mxu0 0.0
        %944 = vmatpush1.msra.mxu0 0.0
        %945 = vmatprep.subr.mxu0 0.0
        %946 = vmatpush1.msra.mxu0 0.0
        %947 = vmatprep.subr.mxu0 0.0
        %948 = vmatpush1.msra.mxu0 0.0
        %949 = vmatprep.subr.mxu0 0.0
        %950 = vmatpush1.msra.mxu0 0.0
        %951 = vmatprep.mubr.f32.mxu0 0.0
        %952 = vmatmul.mubr.f32.gmra.mrb[0].mxu0 %v473
        %v953 = vpop.f32.mrb[0].mxu0
        %v954 = vadd.f32 %v450, %v953
        %v955 = vpop.f32.mrb[0].mxu0
        %v956 = vadd.f32 %v454, %v955
        %957 = vmatprep.mubr.f32.mxu0 0.0
        %958 = vmatmul.mubr.f32.gmra.mrb[0].mxu0 %v476
        %v959 = vpop.f32.mrb[0].mxu0
        %v960 = vadd.f32 %v450, %v959
        %v961 = vpop.f32.mrb[0].mxu0
        %v962 = vadd.f32 %v454, %v961
        %963 = vmatprep.mubr.f32.mxu0 0.0
        %964 = vmatmul.mubr.f32.gmra.mrb[0].mxu0 %v479
        %v965 = vpop.f32.mrb[0].mxu0
        %v966 = vadd.f32 %v450, %v965
        %v967 = vpop.f32.mrb[0].mxu0
        %v968 = vadd.f32 %v454, %v967
        %969 = vmatprep.mubr.f32.mxu0 0.0
        %970 = vmatmul.mubr.f32.gmra.mrb[0].mxu0 %v482
        %v971 = vpop.f32.mrb[0].mxu0
        %v972 = vadd.f32 %v450, %v971
        %v973 = vpop.f32.mrb[0].mxu0
        %v974 = vadd.f32 %v454, %v973
        %975 = vmatprep.mubr.f32.mxu0 0.0
        %976 = vmatmul.mubr.f32.gmra.mrb[0].mxu0 %v485
        %v977 = vpop.f32.mrb[0].mxu0
        %v978 = vadd.f32 %v450, %v977
        %v979 = vpop.f32.mrb[0].mxu0
        %v980 = vadd.f32 %v454, %v979
        %981 = vmatprep.mubr.f32.mxu0 0.0
        %982 = vmatmul.mubr.f32.gmra.mrb[0].mxu0 %v488
        %v983 = vpop.f32.mrb[0].mxu0
        %v984 = vadd.f32 %v450, %v983
        %v985 = vpop.f32.mrb[0].mxu0
        %v986 = vadd.f32 %v454, %v985
        %987 = vmatprep.mubr.f32.mxu0 0.0
        %988 = vmatmul.mubr.f32.gmra.mrb[0].mxu0 %v491
        %v989 = vpop.f32.mrb[0].mxu0
        %v990 = vadd.f32 %v450, %v989
        %v991 = vpop.f32.mrb[0].mxu0
        %v992 = vadd.f32 %v454, %v991
        %993 = vmatprep.mubr.f32.mxu0 0.0
        %994 = vmatmul.mubr.f32.gmra.mrb[0].mxu0 %v494
        %v995 = vpop.f32.mrb[0].mxu0
        %v996 = vadd.f32 %v450, %v995
        %v997 = vpop.f32.mrb[0].mxu0
        %v998 = vadd.f32 %v454, %v997
        %999 = vmatprep.mubr.f32.mxu0 0.0
        %1000 = vmatmul.mubr.f32.gmra.mrb[0].mxu0 %v497
        %v1001 = vpop.f32.mrb[0].mxu0
        %v1002 = vadd.f32 %v450, %v1001
        %v1003 = vpop.f32.mrb[0].mxu0
        %v1004 = vadd.f32 %v454, %v1003
        %1005 = vmatprep.mubr.f32.mxu0 0.0
        %1006 = vmatmul.mubr.f32.gmra.mrb[0].mxu0 %v500
        %v1007 = vpop.f32.mrb[0].mxu0
        %v1008 = vadd.f32 %v450, %v1007
        %v1009 = vpop.f32.mrb[0].mxu0
        %v1010 = vadd.f32 %v454, %v1009
        %1011 = vmatprep.mubr.f32.mxu0 0.0
        %1012 = vmatmul.mubr.f32.gmra.mrb[0].mxu0 %v503
        %v1013 = vpop.f32.mrb[0].mxu0
        %v1014 = vadd.f32 %v450, %v1013
        %v1015 = vpop.f32.mrb[0].mxu0
        %v1016 = vadd.f32 %v454, %v1015
        %1017 = vmatprep.mubr.f32.mxu0 0.0
        %1018 = vmatmul.mubr.f32.gmra.mrb[0].mxu0 %v506
        %v1019 = vpop.f32.mrb[0].mxu0
        %v1020 = vadd.f32 %v450, %v1019
        %v1021 = vpop.f32.mrb[0].mxu0
        %v1022 = vadd.f32 %v454, %v1021
        %1023 = vmatprep.mubr.f32.mxu0 0.0
        %1024 = vmatmul.mubr.f32.gmra.mrb[0].mxu0 %v509
        %v1025 = vpop.f32.mrb[0].mxu0
        %v1026 = vadd.f32 %v450, %v1025
        %v1027 = vpop.f32.mrb[0].mxu0
        %v1028 = vadd.f32 %v454, %v1027
        %1029 = vmatprep.mubr.f32.mxu0 0.0
        %1030 = vmatmul.mubr.f32.gmra.mrb[0].mxu0 %v512
        %v1031 = vpop.f32.mrb[0].mxu0
        %v1032 = vadd.f32 %v450, %v1031
        %v1033 = vpop.f32.mrb[0].mxu0
        %v1034 = vadd.f32 %v454, %v1033
        %1035 = vmatprep.mubr.f32.mxu0 0.0
        %1036 = vmatmul.mubr.f32.gmra.mrb[0].mxu0 %v515
        %v1037 = vpop.f32.mrb[0].mxu0
        %v1038 = vadd.f32 %v450, %v1037
        %v1039 = vpop.f32.mrb[0].mxu0
        %v1040 = vadd.f32 %v454, %v1039
        %1041 = vmatprep.mubr.f32.mxu0 0.0
        %1042 = vmatmul.mubr.f32.gmra.mrb[0].mxu0 %v518
        %v1043 = vpop.f32.mrb[0].mxu0
        %v1044 = vadd.f32 %v450, %v1043
        %v1045 = vpop.f32.mrb[0].mxu0
        %v1046 = vadd.f32 %v454, %v1045
        %1047 = vmatprep.mubr.f32.mxu0 0.0
        %1048 = vmatmul.mubr.f32.gmra.mrb[0].mxu0 %v521
        %v1049 = vpop.f32.mrb[0].mxu0
        %v1050 = vadd.f32 %v450, %v1049
        %v1051 = vpop.f32.mrb[0].mxu0
        %v1052 = vadd.f32 %v454, %v1051
        %1053 = vmatprep.mubr.f32.mxu0 0.0
        %1054 = vmatmul.mubr.f32.gmra.mrb[0].mxu0 %v524
        %v1055 = vpop.f32.mrb[0].mxu0
        %v1056 = vadd.f32 %v450, %v1055
        %v1057 = vpop.f32.mrb[0].mxu0
        %v1058 = vadd.f32 %v454, %v1057
        %1059 = vmatprep.mubr.f32.mxu0 0.0
        %1060 = vmatmul.mubr.f32.gmra.mrb[0].mxu0 %v527
        %v1061 = vpop.f32.mrb[0].mxu0
        %v1062 = vadd.f32 %v450, %v1061
        %v1063 = vpop.f32.mrb[0].mxu0
        %v1064 = vadd.f32 %v454, %v1063
        %1065 = vdwg.mxu0
        %1066 = vmatprep.subr.mxu0 %v404
        %1067 = vmatpush1.msra.mxu0 %v403
        %1068 = vmatprep.subr.mxu0 %v412
        %1069 = vmatpush1.msra.mxu0 %v411
        %1070 = vmatprep.subr.mxu0 %v420
        %1071 = vmatpush1.msra.mxu0 %v419
        %1072 = vmatprep.subr.mxu0 %v428
        %1073 = vmatpush1.msra.mxu0 %v427
        %1074 = vmatprep.subr.mxu0 0.0
        %1075 = vmatpush1.msra.mxu0 0.0
        %1076 = vmatprep.subr.mxu0 0.0
        %1077 = vmatpush1.msra.mxu0 0.0
        %1078 = vmatprep.subr.mxu0 0.0
        %1079 = vmatpush1.msra.mxu0 0.0
        %1080 = vmatprep.subr.mxu0 0.0
        %1081 = vmatpush1.msra.mxu0 0.0
        %1082 = vmatprep.subr.mxu0 0.0
        %1083 = vmatpush1.msra.mxu0 0.0
        %1084 = vmatprep.subr.mxu0 0.0
        %1085 = vmatpush1.msra.mxu0 0.0
        %1086 = vmatprep.subr.mxu0 0.0
        %1087 = vmatpush1.msra.mxu0 0.0
        %1088 = vmatprep.subr.mxu0 0.0
        %1089 = vmatpush1.msra.mxu0 0.0
        %1090 = vmatprep.subr.mxu0 0.0
        %1091 = vmatpush1.msra.mxu0 0.0
        %1092 = vmatprep.subr.mxu0 0.0
        %1093 = vmatpush1.msra.mxu0 0.0
        %1094 = vmatprep.subr.mxu0 0.0
        %1095 = vmatpush1.msra.mxu0 0.0
        %1096 = vmatprep.subr.mxu0 0.0
        %1097 = vmatpush1.msra.mxu0 0.0
        %1098 = vmatprep.subr.mxu0 0.0
        %1099 = vmatpush1.msra.mxu0 0.0
        %1100 = vmatprep.subr.mxu0 0.0
        %1101 = vmatpush1.msra.mxu0 0.0
        %1102 = vmatprep.subr.mxu0 0.0
        %1103 = vmatpush1.msra.mxu0 0.0
        %1104 = vmatprep.subr.mxu0 0.0
        %1105 = vmatpush1.msra.mxu0 0.0
        %1106 = vmatprep.subr.mxu0 0.0
        %1107 = vmatpush1.msra.mxu0 0.0
        %1108 = vmatprep.subr.mxu0 0.0
        %1109 = vmatpush1.msra.mxu0 0.0
        %1110 = vmatprep.subr.mxu0 0.0
        %1111 = vmatpush1.msra.mxu0 0.0
        %1112 = vmatprep.subr.mxu0 0.0
        %1113 = vmatpush1.msra.mxu0 0.0
        %1114 = vmatprep.subr.mxu0 0.0
        %1115 = vmatpush1.msra.mxu0 0.0
        %1116 = vmatprep.subr.mxu0 0.0
        %1117 = vmatpush1.msra.mxu0 0.0
        %1118 = vmatprep.subr.mxu0 0.0
        %1119 = vmatpush1.msra.mxu0 0.0
        %1120 = vmatprep.subr.mxu0 0.0
        %1121 = vmatpush1.msra.mxu0 0.0
        %1122 = vmatprep.subr.mxu0 0.0
        %1123 = vmatpush1.msra.mxu0 0.0
        %1124 = vmatprep.subr.mxu0 0.0
        %1125 = vmatpush1.msra.mxu0 0.0
        %1126 = vmatprep.subr.mxu0 0.0
        %1127 = vmatpush1.msra.mxu0 0.0
        %1128 = vmatprep.subr.mxu0 0.0
        %1129 = vmatpush1.msra.mxu0 0.0
        %1130 = vmatprep.mubr.f32.mxu0 0.0
        %1131 = vmatmul.mubr.f32.gmra.mrb[0].mxu0 %v473
        %v1132 = vpop.f32.mrb[0].mxu0
        %v1133 = vadd.f32 %v458, %v1132
        %v1134 = vpop.f32.mrb[0].mxu0
        %v1135 = vadd.f32 %v462, %v1134
        %1136 = vmatprep.mubr.f32.mxu0 0.0
        %1137 = vmatmul.mubr.f32.gmra.mrb[0].mxu0 %v476
        %v1138 = vpop.f32.mrb[0].mxu0
        %v1139 = vadd.f32 %v458, %v1138
        %v1140 = vpop.f32.mrb[0].mxu0
        %v1141 = vadd.f32 %v462, %v1140
        %1142 = vmatprep.mubr.f32.mxu0 0.0
        %1143 = vmatmul.mubr.f32.gmra.mrb[0].mxu0 %v479
        %v1144 = vpop.f32.mrb[0].mxu0
        %v1145 = vadd.f32 %v458, %v1144
        %v1146 = vpop.f32.mrb[0].mxu0
        %v1147 = vadd.f32 %v462, %v1146
        %1148 = vmatprep.mubr.f32.mxu0 0.0
        %1149 = vmatmul.mubr.f32.gmra.mrb[0].mxu0 %v482
        %v1150 = vpop.f32.mrb[0].mxu0
        %v1151 = vadd.f32 %v458, %v1150
        %v1152 = vpop.f32.mrb[0].mxu0
        %v1153 = vadd.f32 %v462, %v1152
        %1154 = vmatprep.mubr.f32.mxu0 0.0
        %1155 = vmatmul.mubr.f32.gmra.mrb[0].mxu0 %v485
        %v1156 = vpop.f32.mrb[0].mxu0
        %v1157 = vadd.f32 %v458, %v1156
        %v1158 = vpop.f32.mrb[0].mxu0
        %v1159 = vadd.f32 %v462, %v1158
        %1160 = vmatprep.mubr.f32.mxu0 0.0
        %1161 = vmatmul.mubr.f32.gmra.mrb[0].mxu0 %v488
        %v1162 = vpop.f32.mrb[0].mxu0
        %v1163 = vadd.f32 %v458, %v1162
        %v1164 = vpop.f32.mrb[0].mxu0
        %v1165 = vadd.f32 %v462, %v1164
        %1166 = vmatprep.mubr.f32.mxu0 0.0
        %1167 = vmatmul.mubr.f32.gmra.mrb[0].mxu0 %v491
        %v1168 = vpop.f32.mrb[0].mxu0
        %v1169 = vadd.f32 %v458, %v1168
        %v1170 = vpop.f32.mrb[0].mxu0
        %v1171 = vadd.f32 %v462, %v1170
        %1172 = vmatprep.mubr.f32.mxu0 0.0
        %1173 = vmatmul.mubr.f32.gmra.mrb[0].mxu0 %v494
        %v1174 = vpop.f32.mrb[0].mxu0
        %v1175 = vadd.f32 %v458, %v1174
        %v1176 = vpop.f32.mrb[0].mxu0
        %v1177 = vadd.f32 %v462, %v1176
        %1178 = vmatprep.mubr.f32.mxu0 0.0
        %1179 = vmatmul.mubr.f32.gmra.mrb[0].mxu0 %v497
        %v1180 = vpop.f32.mrb[0].mxu0
        %v1181 = vadd.f32 %v458, %v1180
        %v1182 = vpop.f32.mrb[0].mxu0
        %v1183 = vadd.f32 %v462, %v1182
        %1184 = vmatprep.mubr.f32.mxu0 0.0
        %1185 = vmatmul.mubr.f32.gmra.mrb[0].mxu0 %v500
        %v1186 = vpop.f32.mrb[0].mxu0
        %v1187 = vadd.f32 %v458, %v1186
        %v1188 = vpop.f32.mrb[0].mxu0
        %v1189 = vadd.f32 %v462, %v1188
        %1190 = vmatprep.mubr.f32.mxu0 0.0
        %1191 = vmatmul.mubr.f32.gmra.mrb[0].mxu0 %v503
        %v1192 = vpop.f32.mrb[0].mxu0
        %v1193 = vadd.f32 %v458, %v1192
        %v1194 = vpop.f32.mrb[0].mxu0
        %v1195 = vadd.f32 %v462, %v1194
        %1196 = vmatprep.mubr.f32.mxu0 0.0
        %1197 = vmatmul.mubr.f32.gmra.mrb[0].mxu0 %v506
        %v1198 = vpop.f32.mrb[0].mxu0
        %v1199 = vadd.f32 %v458, %v1198
        %v1200 = vpop.f32.mrb[0].mxu0
        %v1201 = vadd.f32 %v462, %v1200
        %1202 = vmatprep.mubr.f32.mxu0 0.0
        %1203 = vmatmul.mubr.f32.gmra.mrb[0].mxu0 %v509
        %v1204 = vpop.f32.mrb[0].mxu0
        %v1205 = vadd.f32 %v458, %v1204
        %v1206 = vpop.f32.mrb[0].mxu0
        %v1207 = vadd.f32 %v462, %v1206
        %1208 = vmatprep.mubr.f32.mxu0 0.0
        %1209 = vmatmul.mubr.f32.gmra.mrb[0].mxu0 %v512
        %v1210 = vpop.f32.mrb[0].mxu0
        %v1211 = vadd.f32 %v458, %v1210
        %v1212 = vpop.f32.mrb[0].mxu0
        %v1213 = vadd.f32 %v462, %v1212
        %1214 = vmatprep.mubr.f32.mxu0 0.0
        %1215 = vmatmul.mubr.f32.gmra.mrb[0].mxu0 %v515
        %v1216 = vpop.f32.mrb[0].mxu0
        %v1217 = vadd.f32 %v458, %v1216
        %v1218 = vpop.f32.mrb[0].mxu0
        %v1219 = vadd.f32 %v462, %v1218
        %1220 = vmatprep.mubr.f32.mxu0 0.0
        %1221 = vmatmul.mubr.f32.gmra.mrb[0].mxu0 %v518
        %v1222 = vpop.f32.mrb[0].mxu0
        %v1223 = vadd.f32 %v458, %v1222
        %v1224 = vpop.f32.mrb[0].mxu0
        %v1225 = vadd.f32 %v462, %v1224
        %1226 = vmatprep.mubr.f32.mxu0 0.0
        %1227 = vmatmul.mubr.f32.gmra.mrb[0].mxu0 %v521
        %v1228 = vpop.f32.mrb[0].mxu0
        %v1229 = vadd.f32 %v458, %v1228
        %v1230 = vpop.f32.mrb[0].mxu0
        %v1231 = vadd.f32 %v462, %v1230
        %1232 = vmatprep.mubr.f32.mxu0 0.0
        %1233 = vmatmul.mubr.f32.gmra.mrb[0].mxu0 %v524
        %v1234 = vpop.f32.mrb[0].mxu0
        %v1235 = vadd.f32 %v458, %v1234
        %v1236 = vpop.f32.mrb[0].mxu0
        %v1237 = vadd.f32 %v462, %v1236
        %1238 = vmatprep.mubr.f32.mxu0 0.0
        %1239 = vmatmul.mubr.f32.gmra.mrb[0].mxu0 %v527
        %v1240 = vpop.f32.mrb[0].mxu0
        %v1241 = vadd.f32 %v458, %v1240
        %v1242 = vpop.f32.mrb[0].mxu0
        %v1243 = vadd.f32 %v462, %v1242
        %1244 = vdwg.mxu0
        %v1245 = vmax.f32 %v596, 0.0
        %v1246 = vmax.f32 %v598, 0.0
        %v1247 = vmax.f32 %v775, 0.0
        %v1248 = vmax.f32 %v777, 0.0
        %v1249 = vmax.f32 %v954, 0.0
        %v1250 = vmax.f32 %v956, 0.0
        %v1251 = vmax.f32 %v1133, 0.0
        %v1252 = vmax.f32 %v1135, 0.0
        %v1253 = vmax.f32 %v602, 0.0
        %v1254 = vmax.f32 %v604, 0.0
        %v1255 = vmax.f32 %v781, 0.0
        %v1256 = vmax.f32 %v783, 0.0
        %v1257 = vmax.f32 %v960, 0.0
        %v1258 = vmax.f32 %v962, 0.0
        %v1259 = vmax.f32 %v1139, 0.0
        %v1260 = vmax.f32 %v1141, 0.0
        %v1261 = vmax.f32 %v608, 0.0
        %v1262 = vmax.f32 %v610, 0.0
        %v1263 = vmax.f32 %v787, 0.0
        %v1264 = vmax.f32 %v789, 0.0
        %v1265 = vmax.f32 %v966, 0.0
        %v1266 = vmax.f32 %v968, 0.0
        %v1267 = vmax.f32 %v1145, 0.0
        %v1268 = vmax.f32 %v1147, 0.0
        %v1269 = vmax.f32 %v614, 0.0
        %v1270 = vmax.f32 %v616, 0.0
        %v1271 = vmax.f32 %v793, 0.0
        %v1272 = vmax.f32 %v795, 0.0
        %v1273 = vmax.f32 %v972, 0.0
        %v1274 = vmax.f32 %v974, 0.0
        %v1275 = vmax.f32 %v1151, 0.0
        %v1276 = vmax.f32 %v1153, 0.0
        %v1277 = vmax.f32 %v620, 0.0
        %v1278 = vmax.f32 %v622, 0.0
        %v1279 = vmax.f32 %v799, 0.0
        %v1280 = vmax.f32 %v801, 0.0
        %v1281 = vmax.f32 %v978, 0.0
        %v1282 = vmax.f32 %v980, 0.0
        %v1283 = vmax.f32 %v1157, 0.0
        %v1284 = vmax.f32 %v1159, 0.0
        %v1285 = vmax.f32 %v626, 0.0
        %v1286 = vmax.f32 %v628, 0.0
        %v1287 = vmax.f32 %v805, 0.0
        %v1288 = vmax.f32 %v807, 0.0
        %v1289 = vmax.f32 %v984, 0.0
        %v1290 = vmax.f32 %v986, 0.0
        %v1291 = vmax.f32 %v1163, 0.0
        %v1292 = vmax.f32 %v1165, 0.0
        %v1293 = vmax.f32 %v632, 0.0
        %v1294 = vmax.f32 %v634, 0.0
        %v1295 = vmax.f32 %v811, 0.0
        %v1296 = vmax.f32 %v813, 0.0
        %v1297 = vmax.f32 %v990, 0.0
        %v1298 = vmax.f32 %v992, 0.0
        %v1299 = vmax.f32 %v1169, 0.0
        %v1300 = vmax.f32 %v1171, 0.0
        %v1301 = vmax.f32 %v638, 0.0
        %v1302 = vmax.f32 %v640, 0.0
        %v1303 = vmax.f32 %v817, 0.0
        %v1304 = vmax.f32 %v819, 0.0
        %v1305 = vmax.f32 %v996, 0.0
        %v1306 = vmax.f32 %v998, 0.0
        %v1307 = vmax.f32 %v1175, 0.0
        %v1308 = vmax.f32 %v1177, 0.0
        %v1309 = vmax.f32 %v644, 0.0
        %v1310 = vmax.f32 %v646, 0.0
        %v1311 = vmax.f32 %v823, 0.0
        %v1312 = vmax.f32 %v825, 0.0
        %v1313 = vmax.f32 %v1002, 0.0
        %v1314 = vmax.f32 %v1004, 0.0
        %v1315 = vmax.f32 %v1181, 0.0
        %v1316 = vmax.f32 %v1183, 0.0
        %v1317 = vmax.f32 %v650, 0.0
        %v1318 = vmax.f32 %v652, 0.0
        %v1319 = vmax.f32 %v829, 0.0
        %v1320 = vmax.f32 %v831, 0.0
        %v1321 = vmax.f32 %v1008, 0.0
        %v1322 = vmax.f32 %v1010, 0.0
        %v1323 = vmax.f32 %v1187, 0.0
        %v1324 = vmax.f32 %v1189, 0.0
        %v1325 = vmax.f32 %v656, 0.0
        %v1326 = vmax.f32 %v658, 0.0
        %v1327 = vmax.f32 %v835, 0.0
        %v1328 = vmax.f32 %v837, 0.0
        %v1329 = vmax.f32 %v1014, 0.0
        %v1330 = vmax.f32 %v1016, 0.0
        %v1331 = vmax.f32 %v1193, 0.0
        %v1332 = vmax.f32 %v1195, 0.0
        %v1333 = vmax.f32 %v662, 0.0
        %v1334 = vmax.f32 %v664, 0.0
        %v1335 = vmax.f32 %v841, 0.0
        %v1336 = vmax.f32 %v843, 0.0
        %v1337 = vmax.f32 %v1020, 0.0
        %v1338 = vmax.f32 %v1022, 0.0
        %v1339 = vmax.f32 %v1199, 0.0
        %v1340 = vmax.f32 %v1201, 0.0
        %v1341 = vmax.f32 %v668, 0.0
        %v1342 = vmax.f32 %v670, 0.0
        %v1343 = vmax.f32 %v847, 0.0
        %v1344 = vmax.f32 %v849, 0.0
        %v1345 = vmax.f32 %v1026, 0.0
        %v1346 = vmax.f32 %v1028, 0.0
        %v1347 = vmax.f32 %v1205, 0.0
        %v1348 = vmax.f32 %v1207, 0.0
        %v1349 = vmax.f32 %v674, 0.0
        %v1350 = vmax.f32 %v676, 0.0
        %v1351 = vmax.f32 %v853, 0.0
        %v1352 = vmax.f32 %v855, 0.0
        %v1353 = vmax.f32 %v1032, 0.0
        %v1354 = vmax.f32 %v1034, 0.0
        %v1355 = vmax.f32 %v1211, 0.0
        %v1356 = vmax.f32 %v1213, 0.0
        %v1357 = vmax.f32 %v680, 0.0
        %v1358 = vmax.f32 %v682, 0.0
        %v1359 = vmax.f32 %v859, 0.0
        %v1360 = vmax.f32 %v861, 0.0
        %v1361 = vmax.f32 %v1038, 0.0
        %v1362 = vmax.f32 %v1040, 0.0
        %v1363 = vmax.f32 %v1217, 0.0
        %v1364 = vmax.f32 %v1219, 0.0
        %v1365 = vmax.f32 %v686, 0.0
        %v1366 = vmax.f32 %v688, 0.0
        %v1367 = vmax.f32 %v865, 0.0
        %v1368 = vmax.f32 %v867, 0.0
        %v1369 = vmax.f32 %v1044, 0.0
        %v1370 = vmax.f32 %v1046, 0.0
        %v1371 = vmax.f32 %v1223, 0.0
        %v1372 = vmax.f32 %v1225, 0.0
        %v1373 = vmax.f32 %v692, 0.0
        %v1374 = vmax.f32 %v694, 0.0
        %v1375 = vmax.f32 %v871, 0.0
        %v1376 = vmax.f32 %v873, 0.0
        %v1377 = vmax.f32 %v1050, 0.0
        %v1378 = vmax.f32 %v1052, 0.0
        %v1379 = vmax.f32 %v1229, 0.0
        %v1380 = vmax.f32 %v1231, 0.0
        %v1381 = vmax.f32 %v698, 0.0
        %v1382 = vmax.f32 %v700, 0.0
        %v1383 = vmax.f32 %v877, 0.0
        %v1384 = vmax.f32 %v879, 0.0
        %v1385 = vmax.f32 %v1056, 0.0
        %v1386 = vmax.f32 %v1058, 0.0
        %v1387 = vmax.f32 %v1235, 0.0
        %v1388 = vmax.f32 %v1237, 0.0
        %v1389 = vmax.f32 %v704, 0.0
        %v1390 = vmax.f32 %v706, 0.0
        %v1391 = vmax.f32 %v883, 0.0
        %v1392 = vmax.f32 %v885, 0.0
        %v1393 = vmax.f32 %v1062, 0.0
        %v1394 = vmax.f32 %v1064, 0.0
        %v1395 = vmax.f32 %v1241, 0.0
        %v1396 = vmax.f32 %v1243, 0.0
        %v1397 = vld [vmem:[#allocation2] sm:$0xff]
        %v1398 = vld [vmem:[#allocation2 + $0x8] sm:$0xff]
        %v1399 = vld [vmem:[#allocation2 + $0x10] sm:$0xff]
        %v1400 = vld [vmem:[#allocation2 + $0x18] sm:$0xff]
        %v1401 = vld [vmem:[#allocation2 + $0x20] sm:$0xff]
        %v1402 = vld [vmem:[#allocation2 + $0x28] sm:$0xff]
        %v1403 = vld [vmem:[#allocation2 + $0x30] sm:$0xff]
        %v1404 = vld [vmem:[#allocation2 + $0x38] sm:$0xff]
        %v1405 = vld [vmem:[#allocation2 + $0x40] sm:$0xff]
        %v1406 = vld [vmem:[#allocation2 + $0x48] sm:$0xff]
        %v1407 = vld [vmem:[#allocation2 + $0x50] sm:$0xff]
        %v1408 = vld [vmem:[#allocation2 + $0x58] sm:$0xff]
        %v1409 = vld [vmem:[#allocation2 + $0x60] sm:$0xff]
        %v1410 = vld [vmem:[#allocation2 + $0x68] sm:$0xff]
        %v1411 = vld [vmem:[#allocation2 + $0x70] sm:$0xff]
        %v1412 = vld [vmem:[#allocation2 + $0x78] sm:$0xff]
        %v1413 = vld [vmem:[#allocation2 + $0x80] sm:$0xff]
        %v1414 = vld [vmem:[#allocation2 + $0x88] sm:$0xff]
        %v1415 = vld [vmem:[#allocation2 + $0x90] sm:$0xff]
        %v1416 = vld [vmem:[#allocation2 + $0x98] sm:$0xff]
        %v1417 = vld [vmem:[#allocation2 + $0xa0] sm:$0xff]
        %v1418 = vld [vmem:[#allocation2 + $0xa8] sm:$0xff]
        %v1419 = vld [vmem:[#allocation2 + $0xb0] sm:$0xff]
        %v1420 = vld [vmem:[#allocation2 + $0xb8] sm:$0xff]
        %v1421 = vld [vmem:[#allocation2 + $0xc0] sm:$0xff]
        %v1422 = vld [vmem:[#allocation2 + $0xc8] sm:$0xff]
        %v1423 = vld [vmem:[#allocation2 + $0xd0] sm:$0xff]
        %v1424 = vld [vmem:[#allocation2 + $0xd8] sm:$0xff]
        %v1425 = vld [vmem:[#allocation2 + $0xe0] sm:$0xff]
        %v1426 = vld [vmem:[#allocation2 + $0xe8] sm:$0xff]
        %v1427 = vld [vmem:[#allocation2 + $0xf0] sm:$0xff]
        %v1428 = vld [vmem:[#allocation2 + $0xf8] sm:$0xff]
        %v1429 = vld [vmem:[#allocation2 + $0x100] sm:$0xff]
        %v1430 = vld [vmem:[#allocation2 + $0x108] sm:$0xff]
        %v1431 = vld [vmem:[#allocation2 + $0x110] sm:$0xff]
        %v1432 = vld [vmem:[#allocation2 + $0x118] sm:$0xff]
        %v1433 = vld [vmem:[#allocation2 + $0x120] sm:$0xff]
        %v1434 = vld [vmem:[#allocation2 + $0x128] sm:$0xff]
        %v1435 = vld [vmem:[#allocation2 + $0x130] sm:$0xff]
        %v1436 = vld [vmem:[#allocation2 + $0x138] sm:$0xff]
        %v1437 = vld [vmem:[#allocation2 + $0x140] sm:$0xff]
        %v1438 = vld [vmem:[#allocation2 + $0x148] sm:$0xff]
        %v1439 = vld [vmem:[#allocation2 + $0x150] sm:$0xff]
        %v1440 = vld [vmem:[#allocation2 + $0x158] sm:$0xff]
        %v1441 = vld [vmem:[#allocation2 + $0x160] sm:$0xff]
        %v1442 = vld [vmem:[#allocation2 + $0x168] sm:$0xff]
        %v1443 = vld [vmem:[#allocation2 + $0x170] sm:$0xff]
        %v1444 = vld [vmem:[#allocation2 + $0x178] sm:$0xff]
        %v1445 = vld [vmem:[#allocation2 + $0x180] sm:$0xff]
        %v1446 = vld [vmem:[#allocation2 + $0x188] sm:$0xff]
        %v1447 = vld [vmem:[#allocation2 + $0x190] sm:$0xff]
        %v1448 = vld [vmem:[#allocation2 + $0x198] sm:$0xff]
        %v1449 = vld [vmem:[#allocation2 + $0x1a0] sm:$0xff]
        %v1450 = vld [vmem:[#allocation2 + $0x1a8] sm:$0xff]
        %v1451 = vld [vmem:[#allocation2 + $0x1b0] sm:$0xff]
        %v1452 = vld [vmem:[#allocation2 + $0x1b8] sm:$0xff]
        %v1453 = vld [vmem:[#allocation2 + $0x1c0] sm:$0xff]
        %v1454 = vld [vmem:[#allocation2 + $0x1c8] sm:$0xff]
        %v1455 = vld [vmem:[#allocation2 + $0x1d0] sm:$0xff]
        %v1456 = vld [vmem:[#allocation2 + $0x1d8] sm:$0xff]
        %v1457 = vld [vmem:[#allocation2 + $0x1e0] sm:$0xff]
        %v1458 = vld [vmem:[#allocation2 + $0x1e8] sm:$0xff]
        %v1459 = vld [vmem:[#allocation2 + $0x1f0] sm:$0xff]
        %v1460 = vld [vmem:[#allocation2 + $0x1f8] sm:$0xff]
        %v1461 = vld [vmem:[#allocation2 + $0x200] sm:$0xff]
        %v1462 = vld [vmem:[#allocation2 + $0x208] sm:$0xff]
        %v1463 = vld [vmem:[#allocation2 + $0x210] sm:$0xff]
        %v1464 = vld [vmem:[#allocation2 + $0x218] sm:$0xff]
        %v1465 = vld [vmem:[#allocation2 + $0x220] sm:$0xff]
        %v1466 = vld [vmem:[#allocation2 + $0x228] sm:$0xff]
        %v1467 = vld [vmem:[#allocation2 + $0x230] sm:$0xff]
        %v1468 = vld [vmem:[#allocation2 + $0x238] sm:$0xff]
        %v1469 = vld [vmem:[#allocation2 + $0x240] sm:$0xff]
        %v1470 = vld [vmem:[#allocation2 + $0x248] sm:$0xff]
        %v1471 = vld [vmem:[#allocation2 + $0x250] sm:$0xff]
        %v1472 = vld [vmem:[#allocation2 + $0x258] sm:$0xff]
        %v1473 = vld [vmem:[#allocation2 + $0x260] sm:$0xff]
        %v1474 = vld [vmem:[#allocation2 + $0x268] sm:$0xff]
        %v1475 = vld [vmem:[#allocation2 + $0x270] sm:$0xff]
        %v1476 = vld [vmem:[#allocation2 + $0x278] sm:$0xff]
        %v1477 = vld [vmem:[#allocation2 + $0x280] sm:$0xff]
        %v1478 = vld [vmem:[#allocation2 + $0x288] sm:$0xff]
        %v1479 = vld [vmem:[#allocation2 + $0x290] sm:$0xff]
        %v1480 = vld [vmem:[#allocation2 + $0x298] sm:$0xff]
        %v1481 = vld [vmem:[#allocation2 + $0x2a0] sm:$0xff]
        %v1482 = vld [vmem:[#allocation2 + $0x2a8] sm:$0xff]
        %v1483 = vld [vmem:[#allocation2 + $0x2b0] sm:$0xff]
        %v1484 = vld [vmem:[#allocation2 + $0x2b8] sm:$0xff]
        %v1485 = vld [vmem:[#allocation2 + $0x2c0] sm:$0xff]
        %v1486 = vld [vmem:[#allocation2 + $0x2c8] sm:$0xff]
        %v1487 = vld [vmem:[#allocation2 + $0x2d0] sm:$0xff]
        %v1488 = vld [vmem:[#allocation2 + $0x2d8] sm:$0xff]
        %v1489 = vld [vmem:[#allocation2 + $0x2e0] sm:$0xff]
        %v1490 = vld [vmem:[#allocation2 + $0x2e8] sm:$0xff]
        %v1491 = vld [vmem:[#allocation2 + $0x2f0] sm:$0xff]
        %v1492 = vld [vmem:[#allocation2 + $0x2f8] sm:$0xff]
        %v1493 = vld [vmem:[#allocation2 + $0x300] sm:$0xff]
        %v1494 = vld [vmem:[#allocation2 + $0x308] sm:$0xff]
        %v1495 = vld [vmem:[#allocation2 + $0x310] sm:$0xff]
        %v1496 = vld [vmem:[#allocation2 + $0x318] sm:$0xff]
        %v1497 = vld [vmem:[#allocation2 + $0x320] sm:$0xff]
        %v1498 = vld [vmem:[#allocation2 + $0x328] sm:$0xff]
        %v1499 = vld [vmem:[#allocation2 + $0x330] sm:$0xff]
        %v1500 = vld [vmem:[#allocation2 + $0x338] sm:$0xff]
        %v1501 = vld [vmem:[#allocation2 + $0x340] sm:$0xff]
        %v1502 = vld [vmem:[#allocation2 + $0x348] sm:$0xff]
        %v1503 = vld [vmem:[#allocation2 + $0x350] sm:$0xff]
        %v1504 = vld [vmem:[#allocation2 + $0x358] sm:$0xff]
        %v1505 = vld [vmem:[#allocation2 + $0x360] sm:$0xff]
        %v1506 = vld [vmem:[#allocation2 + $0x368] sm:$0xff]
        %v1507 = vld [vmem:[#allocation2 + $0x370] sm:$0xff]
        %v1508 = vld [vmem:[#allocation2 + $0x378] sm:$0xff]
        %v1509 = vld [vmem:[#allocation2 + $0x380] sm:$0xff]
        %v1510 = vld [vmem:[#allocation2 + $0x388] sm:$0xff]
        %v1511 = vld [vmem:[#allocation2 + $0x390] sm:$0xff]
        %v1512 = vld [vmem:[#allocation2 + $0x398] sm:$0xff]
        %v1513 = vld [vmem:[#allocation2 + $0x3a0] sm:$0xff]
        %v1514 = vld [vmem:[#allocation2 + $0x3a8] sm:$0xff]
        %v1515 = vld [vmem:[#allocation2 + $0x3b0] sm:$0xff]
        %v1516 = vld [vmem:[#allocation2 + $0x3b8] sm:$0xff]
        %v1517 = vld [vmem:[#allocation2 + $0x3c0] sm:$0xff]
        %v1518 = vld [vmem:[#allocation2 + $0x3c8] sm:$0xff]
        %v1519 = vld [vmem:[#allocation2 + $0x3d0] sm:$0xff]
        %v1520 = vld [vmem:[#allocation2 + $0x3d8] sm:$0xff]
        %v1521 = vld [vmem:[#allocation2 + $0x3e0] sm:$0xff]
        %v1522 = vld [vmem:[#allocation2 + $0x3e8] sm:$0xff]
        %v1523 = vld [vmem:[#allocation2 + $0x3f0] sm:$0xff]
        %v1524 = vld [vmem:[#allocation2 + $0x3f8] sm:$0xff]
        %v1525 = vld [vmem:[#allocation2 + $0x400] sm:$0xff]
        %v1526 = vld [vmem:[#allocation2 + $0x408] sm:$0xff]
        %v1527 = vld [vmem:[#allocation2 + $0x410] sm:$0xff]
        %v1528 = vld [vmem:[#allocation2 + $0x418] sm:$0xff]
        %v1529 = vld [vmem:[#allocation2 + $0x420] sm:$0xff]
        %v1530 = vld [vmem:[#allocation2 + $0x428] sm:$0xff]
        %v1531 = vld [vmem:[#allocation2 + $0x430] sm:$0xff]
        %v1532 = vld [vmem:[#allocation2 + $0x438] sm:$0xff]
        %v1533 = vld [vmem:[#allocation2 + $0x440] sm:$0xff]
        %v1534 = vld [vmem:[#allocation2 + $0x448] sm:$0xff]
        %v1535 = vld [vmem:[#allocation2 + $0x450] sm:$0xff]
        %v1536 = vld [vmem:[#allocation2 + $0x458] sm:$0xff]
        %v1537 = vld [vmem:[#allocation2 + $0x460] sm:$0xff]
        %v1538 = vld [vmem:[#allocation2 + $0x468] sm:$0xff]
        %v1539 = vld [vmem:[#allocation2 + $0x470] sm:$0xff]
        %v1540 = vld [vmem:[#allocation2 + $0x478] sm:$0xff]
        %v1541 = vld [vmem:[#allocation2 + $0x480] sm:$0xff]
        %v1542 = vld [vmem:[#allocation2 + $0x488] sm:$0xff]
        %v1543 = vld [vmem:[#allocation2 + $0x490] sm:$0xff]
        %v1544 = vld [vmem:[#allocation2 + $0x498] sm:$0xff]
        %v1545 = vld [vmem:[#allocation2 + $0x4a0] sm:$0xff]
        %v1546 = vld [vmem:[#allocation2 + $0x4a8] sm:$0xff]
        %v1547 = vld [vmem:[#allocation2 + $0x4b0] sm:$0xff]
        %v1548 = vld [vmem:[#allocation2 + $0x4b8] sm:$0xff]
        %v1549 = vld [vmem:[#allocation2 + $0x4c0] sm:$0xff]
        %v1550 = vld [vmem:[#allocation2 + $0x4c8] sm:$0xff]
        %v1551 = vld [vmem:[#allocation2 + $0x4d0] sm:$0xff]
        %v1552 = vld [vmem:[#allocation2 + $0x4d8] sm:$0xff]
        %v1553 = vld [vmem:[#allocation2 + $0x4e0] sm:$0xff]
        %v1554 = vld [vmem:[#allocation2 + $0x4e8] sm:$0xff]
        %v1555 = vld [vmem:[#allocation2 + $0x4f0] sm:$0xff]
        %v1556 = vld [vmem:[#allocation2 + $0x4f8] sm:$0xff]
        %v1557 = vld [vmem:[#allocation2 + $0x500] sm:$0xff]
        %v1558 = vld [vmem:[#allocation2 + $0x508] sm:$0xff]
        %v1559 = vld [vmem:[#allocation2 + $0x510] sm:$0xff]
        %v1560 = vld [vmem:[#allocation2 + $0x518] sm:$0xff]
        %v1561 = vld [vmem:[#allocation2 + $0x520] sm:$0xff]
        %v1562 = vld [vmem:[#allocation2 + $0x528] sm:$0xff]
        %v1563 = vld [vmem:[#allocation2 + $0x530] sm:$0xff]
        %v1564 = vld [vmem:[#allocation2 + $0x538] sm:$0xff]
        %v1565 = vld [vmem:[#allocation2 + $0x540] sm:$0xff]
        %v1566 = vld [vmem:[#allocation2 + $0x548] sm:$0xff]
        %v1567 = vld [vmem:[#allocation2 + $0x550] sm:$0xff]
        %v1568 = vld [vmem:[#allocation2 + $0x558] sm:$0xff]
        %v1569 = vld [vmem:[#allocation2 + $0x560] sm:$0xff]
        %v1570 = vld [vmem:[#allocation2 + $0x568] sm:$0xff]
        %v1571 = vld [vmem:[#allocation2 + $0x570] sm:$0xff]
        %v1572 = vld [vmem:[#allocation2 + $0x578] sm:$0xff]
        %v1573 = vld [vmem:[#allocation2 + $0x580] sm:$0xff]
        %v1574 = vld [vmem:[#allocation2 + $0x588] sm:$0xff]
        %v1575 = vld [vmem:[#allocation2 + $0x590] sm:$0xff]
        %v1576 = vld [vmem:[#allocation2 + $0x598] sm:$0xff]
        %v1577 = vld [vmem:[#allocation2 + $0x5a0] sm:$0xff]
        %v1578 = vld [vmem:[#allocation2 + $0x5a8] sm:$0xff]
        %v1579 = vld [vmem:[#allocation2 + $0x5b0] sm:$0xff]
        %v1580 = vld [vmem:[#allocation2 + $0x5b8] sm:$0xff]
        %v1581 = vld [vmem:[#allocation2 + $0x5c0] sm:$0xff]
        %v1582 = vld [vmem:[#allocation2 + $0x5c8] sm:$0xff]
        %v1583 = vld [vmem:[#allocation2 + $0x5d0] sm:$0xff]
        %v1584 = vld [vmem:[#allocation2 + $0x5d8] sm:$0xff]
        %v1585 = vld [vmem:[#allocation2 + $0x5e0] sm:$0xff]
        %v1586 = vld [vmem:[#allocation2 + $0x5e8] sm:$0xff]
        %v1587 = vld [vmem:[#allocation2 + $0x5f0] sm:$0xff]
        %v1588 = vld [vmem:[#allocation2 + $0x5f8] sm:$0xff]
        %v1589 = vld [vmem:[#allocation2 + $0x600] sm:$0xff]
        %v1590 = vld [vmem:[#allocation2 + $0x608] sm:$0xff]
        %v1591 = vld [vmem:[#allocation2 + $0x610] sm:$0xff]
        %v1592 = vld [vmem:[#allocation2 + $0x618] sm:$0xff]
        %v1593 = vld [vmem:[#allocation2 + $0x620] sm:$0xff]
        %v1594 = vld [vmem:[#allocation2 + $0x628] sm:$0xff]
        %v1595 = vld [vmem:[#allocation2 + $0x630] sm:$0xff]
        %v1596 = vld [vmem:[#allocation2 + $0x638] sm:$0xff]
        %v1597 = vld [vmem:[#allocation2 + $0x640] sm:$0xff]
        %v1598 = vld [vmem:[#allocation2 + $0x648] sm:$0xff]
        %v1599 = vld [vmem:[#allocation2 + $0x650] sm:$0xff]
        %v1600 = vld [vmem:[#allocation2 + $0x658] sm:$0xff]
        %v1601 = vld [vmem:[#allocation2 + $0x660] sm:$0xff]
        %v1602 = vld [vmem:[#allocation2 + $0x668] sm:$0xff]
        %v1603 = vld [vmem:[#allocation2 + $0x670] sm:$0xff]
        %v1604 = vld [vmem:[#allocation2 + $0x678] sm:$0xff]
        %v1605 = vld [vmem:[#allocation2 + $0x680] sm:$0xff]
        %v1606 = vld [vmem:[#allocation2 + $0x688] sm:$0xff]
        %v1607 = vld [vmem:[#allocation2 + $0x690] sm:$0xff]
        %v1608 = vld [vmem:[#allocation2 + $0x698] sm:$0xff]
        %v1609 = vld [vmem:[#allocation2 + $0x6a0] sm:$0xff]
        %v1610 = vld [vmem:[#allocation2 + $0x6a8] sm:$0xff]
        %v1611 = vld [vmem:[#allocation2 + $0x6b0] sm:$0xff]
        %v1612 = vld [vmem:[#allocation2 + $0x6b8] sm:$0xff]
        %v1613 = vld [vmem:[#allocation2 + $0x6c0] sm:$0xff]
        %v1614 = vld [vmem:[#allocation2 + $0x6c8] sm:$0xff]
        %v1615 = vld [vmem:[#allocation2 + $0x6d0] sm:$0xff]
        %v1616 = vld [vmem:[#allocation2 + $0x6d8] sm:$0xff]
        %v1617 = vld [vmem:[#allocation2 + $0x6e0] sm:$0xff]
        %v1618 = vld [vmem:[#allocation2 + $0x6e8] sm:$0xff]
        %v1619 = vld [vmem:[#allocation2 + $0x6f0] sm:$0xff]
        %v1620 = vld [vmem:[#allocation2 + $0x6f8] sm:$0xff]
        %v1621 = vld [vmem:[#allocation2 + $0x700] sm:$0xff]
        %v1622 = vld [vmem:[#allocation2 + $0x708] sm:$0xff]
        %v1623 = vld [vmem:[#allocation2 + $0x710] sm:$0xff]
        %v1624 = vld [vmem:[#allocation2 + $0x718] sm:$0xff]
        %v1625 = vld [vmem:[#allocation2 + $0x720] sm:$0xff]
        %v1626 = vld [vmem:[#allocation2 + $0x728] sm:$0xff]
        %v1627 = vld [vmem:[#allocation2 + $0x730] sm:$0xff]
        %v1628 = vld [vmem:[#allocation2 + $0x738] sm:$0xff]
        %v1629 = vld [vmem:[#allocation2 + $0x740] sm:$0xff]
        %v1630 = vld [vmem:[#allocation2 + $0x748] sm:$0xff]
        %v1631 = vld [vmem:[#allocation2 + $0x750] sm:$0xff]
        %v1632 = vld [vmem:[#allocation2 + $0x758] sm:$0xff]
        %v1633 = vld [vmem:[#allocation2 + $0x760] sm:$0xff]
        %v1634 = vld [vmem:[#allocation2 + $0x768] sm:$0xff]
        %v1635 = vld [vmem:[#allocation2 + $0x770] sm:$0xff]
        %v1636 = vld [vmem:[#allocation2 + $0x778] sm:$0xff]
        %v1637 = vld [vmem:[#allocation2 + $0x780] sm:$0xff]
        %v1638 = vld [vmem:[#allocation2 + $0x788] sm:$0xff]
        %v1639 = vld [vmem:[#allocation2 + $0x790] sm:$0xff]
        %v1640 = vld [vmem:[#allocation2 + $0x798] sm:$0xff]
        %v1641 = vld [vmem:[#allocation2 + $0x7a0] sm:$0xff]
        %v1642 = vld [vmem:[#allocation2 + $0x7a8] sm:$0xff]
        %v1643 = vld [vmem:[#allocation2 + $0x7b0] sm:$0xff]
        %v1644 = vld [vmem:[#allocation2 + $0x7b8] sm:$0xff]
        %v1645 = vld [vmem:[#allocation2 + $0x7c0] sm:$0xff]
        %v1646 = vld [vmem:[#allocation2 + $0x7c8] sm:$0xff]
        %v1647 = vld [vmem:[#allocation2 + $0x7d0] sm:$0xff]
        %v1648 = vld [vmem:[#allocation2 + $0x7d8] sm:$0xff]
        %v1649 = vld [vmem:[#allocation2 + $0x7e0] sm:$0xff]
        %v1650 = vld [vmem:[#allocation2 + $0x7e8] sm:$0xff]
        %v1651 = vld [vmem:[#allocation2 + $0x7f0] sm:$0xff]
        %v1652 = vld [vmem:[#allocation2 + $0x7f8] sm:$0xff]
        %v1653 = vld [vmem:[%s4] sm:$0xf]
        %v1655 = vlaneseq
        %v1656 = vshrl.u32 %v1655, 7
        %v1657 = vsub.s32 0, %v1656
        %v1658 = vrot.slane %v1653, %v1657
        %v1659 = vlaneseq
        %v1660 = vshrl.u32 %v1659, 7
        %v1661 = vsub.s32 1, %v1660
        %v1662 = vrot.slane %v1653, %v1661
        %v1663 = vlaneseq
        %v1664 = vshrl.u32 %v1663, 7
        %v1665 = vsub.s32 2, %v1664
        %v1666 = vrot.slane %v1653, %v1665
        %v1667 = vlaneseq
        %v1668 = vshrl.u32 %v1667, 7
        %v1669 = vsub.s32 3, %v1668
        %v1670 = vrot.slane %v1653, %v1669
        %1675 = vmatprep.subr.mxu0 %v1398
        %1676 = vmatpush1.msra.mxu0 %v1397
        %1677 = vmatprep.subr.mxu0 %v1402
        %1678 = vmatpush1.msra.mxu0 %v1401
        %1679 = vmatprep.subr.mxu0 %v1406
        %1680 = vmatpush1.msra.mxu0 %v1405
        %1681 = vmatprep.subr.mxu0 %v1410
        %1682 = vmatpush1.msra.mxu0 %v1409
        %1683 = vmatprep.subr.mxu0 %v1414
        %1684 = vmatpush1.msra.mxu0 %v1413
        %1685 = vmatprep.subr.mxu0 %v1418
        %1686 = vmatpush1.msra.mxu0 %v1417
        %1687 = vmatprep.subr.mxu0 %v1422
        %1688 = vmatpush1.msra.mxu0 %v1421
        %1689 = vmatprep.subr.mxu0 %v1426
        %1690 = vmatpush1.msra.mxu0 %v1425
        %1691 = vmatprep.subr.mxu0 %v1430
        %1692 = vmatpush1.msra.mxu0 %v1429
        %1693 = vmatprep.subr.mxu0 %v1434
        %1694 = vmatpush1.msra.mxu0 %v1433
        %1695 = vmatprep.subr.mxu0 %v1438
        %1696 = vmatpush1.msra.mxu0 %v1437
        %1697 = vmatprep.subr.mxu0 %v1442
        %1698 = vmatpush1.msra.mxu0 %v1441
        %1699 = vmatprep.subr.mxu0 %v1446
        %1700 = vmatpush1.msra.mxu0 %v1445
        %1701 = vmatprep.subr.mxu0 %v1450
        %1702 = vmatpush1.msra.mxu0 %v1449
        %1703 = vmatprep.subr.mxu0 %v1454
        %1704 = vmatpush1.msra.mxu0 %v1453
        %1705 = vmatprep.subr.mxu0 %v1458
        %1706 = vmatpush1.msra.mxu0 %v1457
        %1707 = vmatprep.subr.mxu0 %v1462
        %1708 = vmatpush1.msra.mxu0 %v1461
        %1709 = vmatprep.subr.mxu0 %v1466
        %1710 = vmatpush1.msra.mxu0 %v1465
        %1711 = vmatprep.subr.mxu0 %v1470
        %1712 = vmatpush1.msra.mxu0 %v1469
        %1713 = vmatprep.subr.mxu0 %v1474
        %1714 = vmatpush1.msra.mxu0 %v1473
        %1715 = vmatprep.subr.mxu0 %v1478
        %1716 = vmatpush1.msra.mxu0 %v1477
        %1717 = vmatprep.subr.mxu0 %v1482
        %1718 = vmatpush1.msra.mxu0 %v1481
        %1719 = vmatprep.subr.mxu0 %v1486
        %1720 = vmatpush1.msra.mxu0 %v1485
        %1721 = vmatprep.subr.mxu0 %v1490
        %1722 = vmatpush1.msra.mxu0 %v1489
        %1723 = vmatprep.subr.mxu0 %v1494
        %1724 = vmatpush1.msra.mxu0 %v1493
        %1725 = vmatprep.subr.mxu0 %v1498
        %1726 = vmatpush1.msra.mxu0 %v1497
        %1727 = vmatprep.subr.mxu0 %v1502
        %1728 = vmatpush1.msra.mxu0 %v1501
        %1729 = vmatprep.subr.mxu0 %v1506
        %1730 = vmatpush1.msra.mxu0 %v1505
        %1731 = vmatprep.subr.mxu0 %v1510
        %1732 = vmatpush1.msra.mxu0 %v1509
        %1733 = vmatprep.subr.mxu0 %v1514
        %1734 = vmatpush1.msra.mxu0 %v1513
        %1735 = vmatprep.subr.mxu0 %v1518
        %1736 = vmatpush1.msra.mxu0 %v1517
        %1737 = vmatprep.subr.mxu0 %v1522
        %1738 = vmatpush1.msra.mxu0 %v1521
        %1739 = vmatprep.mubr.f32.mxu0 %v1246
        %1740 = vmatmul.mubr.f32.gmra.mrb[0].mxu0 %v1245
        %v1741 = vpop.f32.mrb[0].mxu0
        %v1742 = vadd.f32 %v1658, %v1741
        %v1743 = vpop.f32.mrb[0].mxu0
        %v1744 = vadd.f32 %v1662, %v1743
        %1745 = vmatprep.mubr.f32.mxu0 %v1254
        %1746 = vmatmul.mubr.f32.gmra.mrb[0].mxu0 %v1253
        %v1747 = vpop.f32.mrb[0].mxu0
        %v1748 = vadd.f32 %v1658, %v1747
        %v1749 = vpop.f32.mrb[0].mxu0
        %v1750 = vadd.f32 %v1662, %v1749
        %1751 = vmatprep.mubr.f32.mxu0 %v1262
        %1752 = vmatmul.mubr.f32.gmra.mrb[0].mxu0 %v1261
        %v1753 = vpop.f32.mrb[0].mxu0
        %v1754 = vadd.f32 %v1658, %v1753
        %v1755 = vpop.f32.mrb[0].mxu0
        %v1756 = vadd.f32 %v1662, %v1755
        %1757 = vmatprep.mubr.f32.mxu0 %v1270
        %1758 = vmatmul.mubr.f32.gmra.mrb[0].mxu0 %v1269
        %v1759 = vpop.f32.mrb[0].mxu0
        %v1760 = vadd.f32 %v1658, %v1759
        %v1761 = vpop.f32.mrb[0].mxu0
        %v1762 = vadd.f32 %v1662, %v1761
        %1763 = vmatprep.mubr.f32.mxu0 %v1278
        %1764 = vmatmul.mubr.f32.gmra.mrb[0].mxu0 %v1277
        %v1765 = vpop.f32.mrb[0].mxu0
        %v1766 = vadd.f32 %v1658, %v1765
        %v1767 = vpop.f32.mrb[0].mxu0
        %v1768 = vadd.f32 %v1662, %v1767
        %1769 = vmatprep.mubr.f32.mxu0 %v1286
        %1770 = vmatmul.mubr.f32.gmra.mrb[0].mxu0 %v1285
        %v1771 = vpop.f32.mrb[0].mxu0
        %v1772 = vadd.f32 %v1658, %v1771
        %v1773 = vpop.f32.mrb[0].mxu0
        %v1774 = vadd.f32 %v1662, %v1773
        %1775 = vmatprep.mubr.f32.mxu0 %v1294
        %1776 = vmatmul.mubr.f32.gmra.mrb[0].mxu0 %v1293
        %v1777 = vpop.f32.mrb[0].mxu0
        %v1778 = vadd.f32 %v1658, %v1777
        %v1779 = vpop.f32.mrb[0].mxu0
        %v1780 = vadd.f32 %v1662, %v1779
        %1781 = vmatprep.mubr.f32.mxu0 %v1302
        %1782 = vmatmul.mubr.f32.gmra.mrb[0].mxu0 %v1301
        %v1783 = vpop.f32.mrb[0].mxu0
        %v1784 = vadd.f32 %v1658, %v1783
        %v1785 = vpop.f32.mrb[0].mxu0
        %v1786 = vadd.f32 %v1662, %v1785
        %1787 = vmatprep.mubr.f32.mxu0 %v1310
        %1788 = vmatmul.mubr.f32.gmra.mrb[0].mxu0 %v1309
        %v1789 = vpop.f32.mrb[0].mxu0
        %v1790 = vadd.f32 %v1658, %v1789
        %v1791 = vpop.f32.mrb[0].mxu0
        %v1792 = vadd.f32 %v1662, %v1791
        %1793 = vmatprep.mubr.f32.mxu0 %v1318
        %1794 = vmatmul.mubr.f32.gmra.mrb[0].mxu0 %v1317
        %v1795 = vpop.f32.mrb[0].mxu0
        %v1796 = vadd.f32 %v1658, %v1795
        %v1797 = vpop.f32.mrb[0].mxu0
        %v1798 = vadd.f32 %v1662, %v1797
        %1799 = vmatprep.mubr.f32.mxu0 %v1326
        %1800 = vmatmul.mubr.f32.gmra.mrb[0].mxu0 %v1325
        %v1801 = vpop.f32.mrb[0].mxu0
        %v1802 = vadd.f32 %v1658, %v1801
        %v1803 = vpop.f32.mrb[0].mxu0
        %v1804 = vadd.f32 %v1662, %v1803
        %1805 = vmatprep.mubr.f32.mxu0 %v1334
        %1806 = vmatmul.mubr.f32.gmra.mrb[0].mxu0 %v1333
        %v1807 = vpop.f32.mrb[0].mxu0
        %v1808 = vadd.f32 %v1658, %v1807
        %v1809 = vpop.f32.mrb[0].mxu0
        %v1810 = vadd.f32 %v1662, %v1809
        %1811 = vmatprep.mubr.f32.mxu0 %v1342
        %1812 = vmatmul.mubr.f32.gmra.mrb[0].mxu0 %v1341
        %v1813 = vpop.f32.mrb[0].mxu0
        %v1814 = vadd.f32 %v1658, %v1813
        %v1815 = vpop.f32.mrb[0].mxu0
        %v1816 = vadd.f32 %v1662, %v1815
        %1817 = vmatprep.mubr.f32.mxu0 %v1350
        %1818 = vmatmul.mubr.f32.gmra.mrb[0].mxu0 %v1349
        %v1819 = vpop.f32.mrb[0].mxu0
        %v1820 = vadd.f32 %v1658, %v1819
        %v1821 = vpop.f32.mrb[0].mxu0
        %v1822 = vadd.f32 %v1662, %v1821
        %1823 = vmatprep.mubr.f32.mxu0 %v1358
        %1824 = vmatmul.mubr.f32.gmra.mrb[0].mxu0 %v1357
        %v1825 = vpop.f32.mrb[0].mxu0
        %v1826 = vadd.f32 %v1658, %v1825
        %v1827 = vpop.f32.mrb[0].mxu0
        %v1828 = vadd.f32 %v1662, %v1827
        %1829 = vmatprep.mubr.f32.mxu0 %v1366
        %1830 = vmatmul.mubr.f32.gmra.mrb[0].mxu0 %v1365
        %v1831 = vpop.f32.mrb[0].mxu0
        %v1832 = vadd.f32 %v1658, %v1831
        %v1833 = vpop.f32.mrb[0].mxu0
        %v1834 = vadd.f32 %v1662, %v1833
        %1835 = vmatprep.mubr.f32.mxu0 %v1374
        %1836 = vmatmul.mubr.f32.gmra.mrb[0].mxu0 %v1373
        %v1837 = vpop.f32.mrb[0].mxu0
        %v1838 = vadd.f32 %v1658, %v1837
        %v1839 = vpop.f32.mrb[0].mxu0
        %v1840 = vadd.f32 %v1662, %v1839
        %1841 = vmatprep.mubr.f32.mxu0 %v1382
        %1842 = vmatmul.mubr.f32.gmra.mrb[0].mxu0 %v1381
        %v1843 = vpop.f32.mrb[0].mxu0
        %v1844 = vadd.f32 %v1658, %v1843
        %v1845 = vpop.f32.mrb[0].mxu0
        %v1846 = vadd.f32 %v1662, %v1845
        %1847 = vmatprep.mubr.f32.mxu0 %v1390
        %1848 = vmatmul.mubr.f32.gmra.mrb[0].mxu0 %v1389
        %v1849 = vpop.f32.mrb[0].mxu0
        %v1850 = vadd.f32 %v1658, %v1849
        %v1851 = vpop.f32.mrb[0].mxu0
        %v1852 = vadd.f32 %v1662, %v1851
        %1853 = vdwg.mxu0
        %1854 = vmatprep.subr.mxu0 %v1526
        %1855 = vmatpush1.msra.mxu0 %v1525
        %1856 = vmatprep.subr.mxu0 %v1530
        %1857 = vmatpush1.msra.mxu0 %v1529
        %1858 = vmatprep.subr.mxu0 %v1534
        %1859 = vmatpush1.msra.mxu0 %v1533
        %1860 = vmatprep.subr.mxu0 %v1538
        %1861 = vmatpush1.msra.mxu0 %v1537
        %1862 = vmatprep.subr.mxu0 %v1542
        %1863 = vmatpush1.msra.mxu0 %v1541
        %1864 = vmatprep.subr.mxu0 %v1546
        %1865 = vmatpush1.msra.mxu0 %v1545
        %1866 = vmatprep.subr.mxu0 %v1550
        %1867 = vmatpush1.msra.mxu0 %v1549
        %1868 = vmatprep.subr.mxu0 %v1554
        %1869 = vmatpush1.msra.mxu0 %v1553
        %1870 = vmatprep.subr.mxu0 %v1558
        %1871 = vmatpush1.msra.mxu0 %v1557
        %1872 = vmatprep.subr.mxu0 %v1562
        %1873 = vmatpush1.msra.mxu0 %v1561
        %1874 = vmatprep.subr.mxu0 %v1566
        %1875 = vmatpush1.msra.mxu0 %v1565
        %1876 = vmatprep.subr.mxu0 %v1570
        %1877 = vmatpush1.msra.mxu0 %v1569
        %1878 = vmatprep.subr.mxu0 %v1574
        %1879 = vmatpush1.msra.mxu0 %v1573
        %1880 = vmatprep.subr.mxu0 %v1578
        %1881 = vmatpush1.msra.mxu0 %v1577
        %1882 = vmatprep.subr.mxu0 %v1582
        %1883 = vmatpush1.msra.mxu0 %v1581
        %1884 = vmatprep.subr.mxu0 %v1586
        %1885 = vmatpush1.msra.mxu0 %v1585
        %1886 = vmatprep.subr.mxu0 %v1590
        %1887 = vmatpush1.msra.mxu0 %v1589
        %1888 = vmatprep.subr.mxu0 %v1594
        %1889 = vmatpush1.msra.mxu0 %v1593
        %1890 = vmatprep.subr.mxu0 %v1598
        %1891 = vmatpush1.msra.mxu0 %v1597
        %1892 = vmatprep.subr.mxu0 %v1602
        %1893 = vmatpush1.msra.mxu0 %v1601
        %1894 = vmatprep.subr.mxu0 %v1606
        %1895 = vmatpush1.msra.mxu0 %v1605
        %1896 = vmatprep.subr.mxu0 %v1610
        %1897 = vmatpush1.msra.mxu0 %v1609
        %1898 = vmatprep.subr.mxu0 %v1614
        %1899 = vmatpush1.msra.mxu0 %v1613
        %1900 = vmatprep.subr.mxu0 %v1618
        %1901 = vmatpush1.msra.mxu0 %v1617
        %1902 = vmatprep.subr.mxu0 %v1622
        %1903 = vmatpush1.msra.mxu0 %v1621
        %1904 = vmatprep.subr.mxu0 %v1626
        %1905 = vmatpush1.msra.mxu0 %v1625
        %1906 = vmatprep.subr.mxu0 %v1630
        %1907 = vmatpush1.msra.mxu0 %v1629
        %1908 = vmatprep.subr.mxu0 %v1634
        %1909 = vmatpush1.msra.mxu0 %v1633
        %1910 = vmatprep.subr.mxu0 %v1638
        %1911 = vmatpush1.msra.mxu0 %v1637
        %1912 = vmatprep.subr.mxu0 %v1642
        %1913 = vmatpush1.msra.mxu0 %v1641
        %1914 = vmatprep.subr.mxu0 %v1646
        %1915 = vmatpush1.msra.mxu0 %v1645
        %1916 = vmatprep.subr.mxu0 %v1650
        %1917 = vmatpush1.msra.mxu0 %v1649
        %1918 = vmatprep.mubr.f32.mxu0 %v1248
        %1919 = vmatmul.mubr.f32.gmra.mrb[0].mxu0 %v1247
        %v1920 = vpop.f32.mrb[0].mxu0
        %v1921 = vadd.f32 %v1742, %v1920
        %v1922 = vpop.f32.mrb[0].mxu0
        %v1923 = vadd.f32 %v1744, %v1922
        %1924 = vmatprep.mubr.f32.mxu0 %v1256
        %1925 = vmatmul.mubr.f32.gmra.mrb[0].mxu0 %v1255
        %v1926 = vpop.f32.mrb[0].mxu0
        %v1927 = vadd.f32 %v1748, %v1926
        %v1928 = vpop.f32.mrb[0].mxu0
        %v1929 = vadd.f32 %v1750, %v1928
        %1930 = vmatprep.mubr.f32.mxu0 %v1264
        %1931 = vmatmul.mubr.f32.gmra.mrb[0].mxu0 %v1263
        %v1932 = vpop.f32.mrb[0].mxu0
        %v1933 = vadd.f32 %v1754, %v1932
        %v1934 = vpop.f32.mrb[0].mxu0
        %v1935 = vadd.f32 %v1756, %v1934
        %1936 = vmatprep.mubr.f32.mxu0 %v1272
        %1937 = vmatmul.mubr.f32.gmra.mrb[0].mxu0 %v1271
        %v1938 = vpop.f32.mrb[0].mxu0
        %v1939 = vadd.f32 %v1760, %v1938
        %v1940 = vpop.f32.mrb[0].mxu0
        %v1941 = vadd.f32 %v1762, %v1940
        %1942 = vmatprep.mubr.f32.mxu0 %v1280
        %1943 = vmatmul.mubr.f32.gmra.mrb[0].mxu0 %v1279
        %v1944 = vpop.f32.mrb[0].mxu0
        %v1945 = vadd.f32 %v1766, %v1944
        %v1946 = vpop.f32.mrb[0].mxu0
        %v1947 = vadd.f32 %v1768, %v1946
        %1948 = vmatprep.mubr.f32.mxu0 %v1288
        %1949 = vmatmul.mubr.f32.gmra.mrb[0].mxu0 %v1287
        %v1950 = vpop.f32.mrb[0].mxu0
        %v1951 = vadd.f32 %v1772, %v1950
        %v1952 = vpop.f32.mrb[0].mxu0
        %v1953 = vadd.f32 %v1774, %v1952
        %1954 = vmatprep.mubr.f32.mxu0 %v1296
        %1955 = vmatmul.mubr.f32.gmra.mrb[0].mxu0 %v1295
        %v1956 = vpop.f32.mrb[0].mxu0
        %v1957 = vadd.f32 %v1778, %v1956
        %v1958 = vpop.f32.mrb[0].mxu0
        %v1959 = vadd.f32 %v1780, %v1958
        %1960 = vmatprep.mubr.f32.mxu0 %v1304
        %1961 = vmatmul.mubr.f32.gmra.mrb[0].mxu0 %v1303
        %v1962 = vpop.f32.mrb[0].mxu0
        %v1963 = vadd.f32 %v1784, %v1962
        %v1964 = vpop.f32.mrb[0].mxu0
        %v1965 = vadd.f32 %v1786, %v1964
        %1966 = vmatprep.mubr.f32.mxu0 %v1312
        %1967 = vmatmul.mubr.f32.gmra.mrb[0].mxu0 %v1311
        %v1968 = vpop.f32.mrb[0].mxu0
        %v1969 = vadd.f32 %v1790, %v1968
        %v1970 = vpop.f32.mrb[0].mxu0
        %v1971 = vadd.f32 %v1792, %v1970
        %1972 = vmatprep.mubr.f32.mxu0 %v1320
        %1973 = vmatmul.mubr.f32.gmra.mrb[0].mxu0 %v1319
        %v1974 = vpop.f32.mrb[0].mxu0
        %v1975 = vadd.f32 %v1796, %v1974
        %v1976 = vpop.f32.mrb[0].mxu0
        %v1977 = vadd.f32 %v1798, %v1976
        %1978 = vmatprep.mubr.f32.mxu0 %v1328
        %1979 = vmatmul.mubr.f32.gmra.mrb[0].mxu0 %v1327
        %v1980 = vpop.f32.mrb[0].mxu0
        %v1981 = vadd.f32 %v1802, %v1980
        %v1982 = vpop.f32.mrb[0].mxu0
        %v1983 = vadd.f32 %v1804, %v1982
        %1984 = vmatprep.mubr.f32.mxu0 %v1336
        %1985 = vmatmul.mubr.f32.gmra.mrb[0].mxu0 %v1335
        %v1986 = vpop.f32.mrb[0].mxu0
        %v1987 = vadd.f32 %v1808, %v1986
        %v1988 = vpop.f32.mrb[0].mxu0
        %v1989 = vadd.f32 %v1810, %v1988
        %1990 = vmatprep.mubr.f32.mxu0 %v1344
        %1991 = vmatmul.mubr.f32.gmra.mrb[0].mxu0 %v1343
        %v1992 = vpop.f32.mrb[0].mxu0
        %v1993 = vadd.f32 %v1814, %v1992
        %v1994 = vpop.f32.mrb[0].mxu0
        %v1995 = vadd.f32 %v1816, %v1994
        %1996 = vmatprep.mubr.f32.mxu0 %v1352
        %1997 = vmatmul.mubr.f32.gmra.mrb[0].mxu0 %v1351
        %v1998 = vpop.f32.mrb[0].mxu0
        %v1999 = vadd.f32 %v1820, %v1998
        %v2000 = vpop.f32.mrb[0].mxu0
        %v2001 = vadd.f32 %v1822, %v2000
        %2002 = vmatprep.mubr.f32.mxu0 %v1360
        %2003 = vmatmul.mubr.f32.gmra.mrb[0].mxu0 %v1359
        %v2004 = vpop.f32.mrb[0].mxu0
        %v2005 = vadd.f32 %v1826, %v2004
        %v2006 = vpop.f32.mrb[0].mxu0
        %v2007 = vadd.f32 %v1828, %v2006
        %2008 = vmatprep.mubr.f32.mxu0 %v1368
        %2009 = vmatmul.mubr.f32.gmra.mrb[0].mxu0 %v1367
        %v2010 = vpop.f32.mrb[0].mxu0
        %v2011 = vadd.f32 %v1832, %v2010
        %v2012 = vpop.f32.mrb[0].mxu0
        %v2013 = vadd.f32 %v1834, %v2012
        %2014 = vmatprep.mubr.f32.mxu0 %v1376
        %2015 = vmatmul.mubr.f32.gmra.mrb[0].mxu0 %v1375
        %v2016 = vpop.f32.mrb[0].mxu0
        %v2017 = vadd.f32 %v1838, %v2016
        %v2018 = vpop.f32.mrb[0].mxu0
        %v2019 = vadd.f32 %v1840, %v2018
        %2020 = vmatprep.mubr.f32.mxu0 %v1384
        %2021 = vmatmul.mubr.f32.gmra.mrb[0].mxu0 %v1383
        %v2022 = vpop.f32.mrb[0].mxu0
        %v2023 = vadd.f32 %v1844, %v2022
        %v2024 = vpop.f32.mrb[0].mxu0
        %v2025 = vadd.f32 %v1846, %v2024
        %2026 = vmatprep.mubr.f32.mxu0 %v1392
        %2027 = vmatmul.mubr.f32.gmra.mrb[0].mxu0 %v1391
        %v2028 = vpop.f32.mrb[0].mxu0
        %v2029 = vadd.f32 %v1850, %v2028
        %v2030 = vpop.f32.mrb[0].mxu0
        %v2031 = vadd.f32 %v1852, %v2030
        %2032 = vdwg.mxu0
        %2033 = vmatprep.subr.mxu0 %v1400
        %2034 = vmatpush1.msra.mxu0 %v1399
        %2035 = vmatprep.subr.mxu0 %v1404
        %2036 = vmatpush1.msra.mxu0 %v1403
        %2037 = vmatprep.subr.mxu0 %v1408
        %2038 = vmatpush1.msra.mxu0 %v1407
        %2039 = vmatprep.subr.mxu0 %v1412
        %2040 = vmatpush1.msra.mxu0 %v1411
        %2041 = vmatprep.subr.mxu0 %v1416
        %2042 = vmatpush1.msra.mxu0 %v1415
        %2043 = vmatprep.subr.mxu0 %v1420
        %2044 = vmatpush1.msra.mxu0 %v1419
        %2045 = vmatprep.subr.mxu0 %v1424
        %2046 = vmatpush1.msra.mxu0 %v1423
        %2047 = vmatprep.subr.mxu0 %v1428
        %2048 = vmatpush1.msra.mxu0 %v1427
        %2049 = vmatprep.subr.mxu0 %v1432
        %2050 = vmatpush1.msra.mxu0 %v1431
        %2051 = vmatprep.subr.mxu0 %v1436
        %2052 = vmatpush1.msra.mxu0 %v1435
        %2053 = vmatprep.subr.mxu0 %v1440
        %2054 = vmatpush1.msra.mxu0 %v1439
        %2055 = vmatprep.subr.mxu0 %v1444
        %2056 = vmatpush1.msra.mxu0 %v1443
        %2057 = vmatprep.subr.mxu0 %v1448
        %2058 = vmatpush1.msra.mxu0 %v1447
        %2059 = vmatprep.subr.mxu0 %v1452
        %2060 = vmatpush1.msra.mxu0 %v1451
        %2061 = vmatprep.subr.mxu0 %v1456
        %2062 = vmatpush1.msra.mxu0 %v1455
        %2063 = vmatprep.subr.mxu0 %v1460
        %2064 = vmatpush1.msra.mxu0 %v1459
        %2065 = vmatprep.subr.mxu0 %v1464
        %2066 = vmatpush1.msra.mxu0 %v1463
        %2067 = vmatprep.subr.mxu0 %v1468
        %2068 = vmatpush1.msra.mxu0 %v1467
        %2069 = vmatprep.subr.mxu0 %v1472
        %2070 = vmatpush1.msra.mxu0 %v1471
        %2071 = vmatprep.subr.mxu0 %v1476
        %2072 = vmatpush1.msra.mxu0 %v1475
        %2073 = vmatprep.subr.mxu0 %v1480
        %2074 = vmatpush1.msra.mxu0 %v1479
        %2075 = vmatprep.subr.mxu0 %v1484
        %2076 = vmatpush1.msra.mxu0 %v1483
        %2077 = vmatprep.subr.mxu0 %v1488
        %2078 = vmatpush1.msra.mxu0 %v1487
        %2079 = vmatprep.subr.mxu0 %v1492
        %2080 = vmatpush1.msra.mxu0 %v1491
        %2081 = vmatprep.subr.mxu0 %v1496
        %2082 = vmatpush1.msra.mxu0 %v1495
        %2083 = vmatprep.subr.mxu0 %v1500
        %2084 = vmatpush1.msra.mxu0 %v1499
        %2085 = vmatprep.subr.mxu0 %v1504
        %2086 = vmatpush1.msra.mxu0 %v1503
        %2087 = vmatprep.subr.mxu0 %v1508
        %2088 = vmatpush1.msra.mxu0 %v1507
        %2089 = vmatprep.subr.mxu0 %v1512
        %2090 = vmatpush1.msra.mxu0 %v1511
        %2091 = vmatprep.subr.mxu0 %v1516
        %2092 = vmatpush1.msra.mxu0 %v1515
        %2093 = vmatprep.subr.mxu0 %v1520
        %2094 = vmatpush1.msra.mxu0 %v1519
        %2095 = vmatprep.subr.mxu0 %v1524
        %2096 = vmatpush1.msra.mxu0 %v1523
        %2097 = vmatprep.mubr.f32.mxu0 %v1246
        %2098 = vmatmul.mubr.f32.gmra.mrb[0].mxu0 %v1245
        %v2099 = vpop.f32.mrb[0].mxu0
        %v2100 = vadd.f32 %v1666, %v2099
        %v2101 = vpop.f32.mrb[0].mxu0
        %v2102 = vadd.f32 %v1670, %v2101
        %2103 = vmatprep.mubr.f32.mxu0 %v1254
        %2104 = vmatmul.mubr.f32.gmra.mrb[0].mxu0 %v1253
        %v2105 = vpop.f32.mrb[0].mxu0
        %v2106 = vadd.f32 %v1666, %v2105
        %v2107 = vpop.f32.mrb[0].mxu0
        %v2108 = vadd.f32 %v1670, %v2107
        %2109 = vmatprep.mubr.f32.mxu0 %v1262
        %2110 = vmatmul.mubr.f32.gmra.mrb[0].mxu0 %v1261
        %v2111 = vpop.f32.mrb[0].mxu0
        %v2112 = vadd.f32 %v1666, %v2111
        %v2113 = vpop.f32.mrb[0].mxu0
        %v2114 = vadd.f32 %v1670, %v2113
        %2115 = vmatprep.mubr.f32.mxu0 %v1270
        %2116 = vmatmul.mubr.f32.gmra.mrb[0].mxu0 %v1269
        %v2117 = vpop.f32.mrb[0].mxu0
        %v2118 = vadd.f32 %v1666, %v2117
        %v2119 = vpop.f32.mrb[0].mxu0
        %v2120 = vadd.f32 %v1670, %v2119
        %2121 = vmatprep.mubr.f32.mxu0 %v1278
        %2122 = vmatmul.mubr.f32.gmra.mrb[0].mxu0 %v1277
        %v2123 = vpop.f32.mrb[0].mxu0
        %v2124 = vadd.f32 %v1666, %v2123
        %v2125 = vpop.f32.mrb[0].mxu0
        %v2126 = vadd.f32 %v1670, %v2125
        %2127 = vmatprep.mubr.f32.mxu0 %v1286
        %2128 = vmatmul.mubr.f32.gmra.mrb[0].mxu0 %v1285
        %v2129 = vpop.f32.mrb[0].mxu0
        %v2130 = vadd.f32 %v1666, %v2129
        %v2131 = vpop.f32.mrb[0].mxu0
        %v2132 = vadd.f32 %v1670, %v2131
        %2133 = vmatprep.mubr.f32.mxu0 %v1294
        %2134 = vmatmul.mubr.f32.gmra.mrb[0].mxu0 %v1293
        %v2135 = vpop.f32.mrb[0].mxu0
        %v2136 = vadd.f32 %v1666, %v2135
        %v2137 = vpop.f32.mrb[0].mxu0
        %v2138 = vadd.f32 %v1670, %v2137
        %2139 = vmatprep.mubr.f32.mxu0 %v1302
        %2140 = vmatmul.mubr.f32.gmra.mrb[0].mxu0 %v1301
        %v2141 = vpop.f32.mrb[0].mxu0
        %v2142 = vadd.f32 %v1666, %v2141
        %v2143 = vpop.f32.mrb[0].mxu0
        %v2144 = vadd.f32 %v1670, %v2143
        %2145 = vmatprep.mubr.f32.mxu0 %v1310
        %2146 = vmatmul.mubr.f32.gmra.mrb[0].mxu0 %v1309
        %v2147 = vpop.f32.mrb[0].mxu0
        %v2148 = vadd.f32 %v1666, %v2147
        %v2149 = vpop.f32.mrb[0].mxu0
        %v2150 = vadd.f32 %v1670, %v2149
        %2151 = vmatprep.mubr.f32.mxu0 %v1318
        %2152 = vmatmul.mubr.f32.gmra.mrb[0].mxu0 %v1317
        %v2153 = vpop.f32.mrb[0].mxu0
        %v2154 = vadd.f32 %v1666, %v2153
        %v2155 = vpop.f32.mrb[0].mxu0
        %v2156 = vadd.f32 %v1670, %v2155
        %2157 = vmatprep.mubr.f32.mxu0 %v1326
        %2158 = vmatmul.mubr.f32.gmra.mrb[0].mxu0 %v1325
        %v2159 = vpop.f32.mrb[0].mxu0
        %v2160 = vadd.f32 %v1666, %v2159
        %v2161 = vpop.f32.mrb[0].mxu0
        %v2162 = vadd.f32 %v1670, %v2161
        %2163 = vmatprep.mubr.f32.mxu0 %v1334
        %2164 = vmatmul.mubr.f32.gmra.mrb[0].mxu0 %v1333
        %v2165 = vpop.f32.mrb[0].mxu0
        %v2166 = vadd.f32 %v1666, %v2165
        %v2167 = vpop.f32.mrb[0].mxu0
        %v2168 = vadd.f32 %v1670, %v2167
        %2169 = vmatprep.mubr.f32.mxu0 %v1342
        %2170 = vmatmul.mubr.f32.gmra.mrb[0].mxu0 %v1341
        %v2171 = vpop.f32.mrb[0].mxu0
        %v2172 = vadd.f32 %v1666, %v2171
        %v2173 = vpop.f32.mrb[0].mxu0
        %v2174 = vadd.f32 %v1670, %v2173
        %2175 = vmatprep.mubr.f32.mxu0 %v1350
        %2176 = vmatmul.mubr.f32.gmra.mrb[0].mxu0 %v1349
        %v2177 = vpop.f32.mrb[0].mxu0
        %v2178 = vadd.f32 %v1666, %v2177
        %v2179 = vpop.f32.mrb[0].mxu0
        %v2180 = vadd.f32 %v1670, %v2179
        %2181 = vmatprep.mubr.f32.mxu0 %v1358
        %2182 = vmatmul.mubr.f32.gmra.mrb[0].mxu0 %v1357
        %v2183 = vpop.f32.mrb[0].mxu0
        %v2184 = vadd.f32 %v1666, %v2183
        %v2185 = vpop.f32.mrb[0].mxu0
        %v2186 = vadd.f32 %v1670, %v2185
        %2187 = vmatprep.mubr.f32.mxu0 %v1366
        %2188 = vmatmul.mubr.f32.gmra.mrb[0].mxu0 %v1365
        %v2189 = vpop.f32.mrb[0].mxu0
        %v2190 = vadd.f32 %v1666, %v2189
        %v2191 = vpop.f32.mrb[0].mxu0
        %v2192 = vadd.f32 %v1670, %v2191
        %2193 = vmatprep.mubr.f32.mxu0 %v1374
        %2194 = vmatmul.mubr.f32.gmra.mrb[0].mxu0 %v1373
        %v2195 = vpop.f32.mrb[0].mxu0
        %v2196 = vadd.f32 %v1666, %v2195
        %v2197 = vpop.f32.mrb[0].mxu0
        %v2198 = vadd.f32 %v1670, %v2197
        %2199 = vmatprep.mubr.f32.mxu0 %v1382
        %2200 = vmatmul.mubr.f32.gmra.mrb[0].mxu0 %v1381
        %v2201 = vpop.f32.mrb[0].mxu0
        %v2202 = vadd.f32 %v1666, %v2201
        %v2203 = vpop.f32.mrb[0].mxu0
        %v2204 = vadd.f32 %v1670, %v2203
        %2205 = vmatprep.mubr.f32.mxu0 %v1390
        %2206 = vmatmul.mubr.f32.gmra.mrb[0].mxu0 %v1389
        %v2207 = vpop.f32.mrb[0].mxu0
        %v2208 = vadd.f32 %v1666, %v2207
        %v2209 = vpop.f32.mrb[0].mxu0
        %v2210 = vadd.f32 %v1670, %v2209
        %2211 = vdwg.mxu0
        %2212 = vmatprep.subr.mxu0 %v1528
        %2213 = vmatpush1.msra.mxu0 %v1527
        %2214 = vmatprep.subr.mxu0 %v1532
        %2215 = vmatpush1.msra.mxu0 %v1531
        %2216 = vmatprep.subr.mxu0 %v1536
        %2217 = vmatpush1.msra.mxu0 %v1535
        %2218 = vmatprep.subr.mxu0 %v1540
        %2219 = vmatpush1.msra.mxu0 %v1539
        %2220 = vmatprep.subr.mxu0 %v1544
        %2221 = vmatpush1.msra.mxu0 %v1543
        %2222 = vmatprep.subr.mxu0 %v1548
        %2223 = vmatpush1.msra.mxu0 %v1547
        %2224 = vmatprep.subr.mxu0 %v1552
        %2225 = vmatpush1.msra.mxu0 %v1551
        %2226 = vmatprep.subr.mxu0 %v1556
        %2227 = vmatpush1.msra.mxu0 %v1555
        %2228 = vmatprep.subr.mxu0 %v1560
        %2229 = vmatpush1.msra.mxu0 %v1559
        %2230 = vmatprep.subr.mxu0 %v1564
        %2231 = vmatpush1.msra.mxu0 %v1563
        %2232 = vmatprep.subr.mxu0 %v1568
        %2233 = vmatpush1.msra.mxu0 %v1567
        %2234 = vmatprep.subr.mxu0 %v1572
        %2235 = vmatpush1.msra.mxu0 %v1571
        %2236 = vmatprep.subr.mxu0 %v1576
        %2237 = vmatpush1.msra.mxu0 %v1575
        %2238 = vmatprep.subr.mxu0 %v1580
        %2239 = vmatpush1.msra.mxu0 %v1579
        %2240 = vmatprep.subr.mxu0 %v1584
        %2241 = vmatpush1.msra.mxu0 %v1583
        %2242 = vmatprep.subr.mxu0 %v1588
        %2243 = vmatpush1.msra.mxu0 %v1587
        %2244 = vmatprep.subr.mxu0 %v1592
        %2245 = vmatpush1.msra.mxu0 %v1591
        %2246 = vmatprep.subr.mxu0 %v1596
        %2247 = vmatpush1.msra.mxu0 %v1595
        %2248 = vmatprep.subr.mxu0 %v1600
        %2249 = vmatpush1.msra.mxu0 %v1599
        %2250 = vmatprep.subr.mxu0 %v1604
        %2251 = vmatpush1.msra.mxu0 %v1603
        %2252 = vmatprep.subr.mxu0 %v1608
        %2253 = vmatpush1.msra.mxu0 %v1607
        %2254 = vmatprep.subr.mxu0 %v1612
        %2255 = vmatpush1.msra.mxu0 %v1611
        %2256 = vmatprep.subr.mxu0 %v1616
        %2257 = vmatpush1.msra.mxu0 %v1615
        %2258 = vmatprep.subr.mxu0 %v1620
        %2259 = vmatpush1.msra.mxu0 %v1619
        %2260 = vmatprep.subr.mxu0 %v1624
        %2261 = vmatpush1.msra.mxu0 %v1623
        %2262 = vmatprep.subr.mxu0 %v1628
        %2263 = vmatpush1.msra.mxu0 %v1627
        %2264 = vmatprep.subr.mxu0 %v1632
        %2265 = vmatpush1.msra.mxu0 %v1631
        %2266 = vmatprep.subr.mxu0 %v1636
        %2267 = vmatpush1.msra.mxu0 %v1635
        %2268 = vmatprep.subr.mxu0 %v1640
        %2269 = vmatpush1.msra.mxu0 %v1639
        %2270 = vmatprep.subr.mxu0 %v1644
        %2271 = vmatpush1.msra.mxu0 %v1643
        %2272 = vmatprep.subr.mxu0 %v1648
        %2273 = vmatpush1.msra.mxu0 %v1647
        %2274 = vmatprep.subr.mxu0 %v1652
        %2275 = vmatpush1.msra.mxu0 %v1651
        %2276 = vmatprep.mubr.f32.mxu0 %v1248
        %2277 = vmatmul.mubr.f32.gmra.mrb[0].mxu0 %v1247
        %v2278 = vpop.f32.mrb[0].mxu0
        %v2279 = vadd.f32 %v2100, %v2278
        %v2280 = vpop.f32.mrb[0].mxu0
        %v2281 = vadd.f32 %v2102, %v2280
        %2282 = vmatprep.mubr.f32.mxu0 %v1256
        %2283 = vmatmul.mubr.f32.gmra.mrb[0].mxu0 %v1255
        %v2284 = vpop.f32.mrb[0].mxu0
        %v2285 = vadd.f32 %v2106, %v2284
        %v2286 = vpop.f32.mrb[0].mxu0
        %v2287 = vadd.f32 %v2108, %v2286
        %2288 = vmatprep.mubr.f32.mxu0 %v1264
        %2289 = vmatmul.mubr.f32.gmra.mrb[0].mxu0 %v1263
        %v2290 = vpop.f32.mrb[0].mxu0
        %v2291 = vadd.f32 %v2112, %v2290
        %v2292 = vpop.f32.mrb[0].mxu0
        %v2293 = vadd.f32 %v2114, %v2292
        %2294 = vmatprep.mubr.f32.mxu0 %v1272
        %2295 = vmatmul.mubr.f32.gmra.mrb[0].mxu0 %v1271
        %v2296 = vpop.f32.mrb[0].mxu0
        %v2297 = vadd.f32 %v2118, %v2296
        %v2298 = vpop.f32.mrb[0].mxu0
        %v2299 = vadd.f32 %v2120, %v2298
        %2300 = vmatprep.mubr.f32.mxu0 %v1280
        %2301 = vmatmul.mubr.f32.gmra.mrb[0].mxu0 %v1279
        %v2302 = vpop.f32.mrb[0].mxu0
        %v2303 = vadd.f32 %v2124, %v2302
        %v2304 = vpop.f32.mrb[0].mxu0
        %v2305 = vadd.f32 %v2126, %v2304
        %2306 = vmatprep.mubr.f32.mxu0 %v1288
        %2307 = vmatmul.mubr.f32.gmra.mrb[0].mxu0 %v1287
        %v2308 = vpop.f32.mrb[0].mxu0
        %v2309 = vadd.f32 %v2130, %v2308
        %v2310 = vpop.f32.mrb[0].mxu0
        %v2311 = vadd.f32 %v2132, %v2310
        %2312 = vmatprep.mubr.f32.mxu0 %v1296
        %2313 = vmatmul.mubr.f32.gmra.mrb[0].mxu0 %v1295
        %v2314 = vpop.f32.mrb[0].mxu0
        %v2315 = vadd.f32 %v2136, %v2314
        %v2316 = vpop.f32.mrb[0].mxu0
        %v2317 = vadd.f32 %v2138, %v2316
        %2318 = vmatprep.mubr.f32.mxu0 %v1304
        %2319 = vmatmul.mubr.f32.gmra.mrb[0].mxu0 %v1303
        %v2320 = vpop.f32.mrb[0].mxu0
        %v2321 = vadd.f32 %v2142, %v2320
        %v2322 = vpop.f32.mrb[0].mxu0
        %v2323 = vadd.f32 %v2144, %v2322
        %2324 = vmatprep.mubr.f32.mxu0 %v1312
        %2325 = vmatmul.mubr.f32.gmra.mrb[0].mxu0 %v1311
        %v2326 = vpop.f32.mrb[0].mxu0
        %v2327 = vadd.f32 %v2148, %v2326
        %v2328 = vpop.f32.mrb[0].mxu0
        %v2329 = vadd.f32 %v2150, %v2328
        %2330 = vmatprep.mubr.f32.mxu0 %v1320
        %2331 = vmatmul.mubr.f32.gmra.mrb[0].mxu0 %v1319
        %v2332 = vpop.f32.mrb[0].mxu0
        %v2333 = vadd.f32 %v2154, %v2332
        %v2334 = vpop.f32.mrb[0].mxu0
        %v2335 = vadd.f32 %v2156, %v2334
        %2336 = vmatprep.mubr.f32.mxu0 %v1328
        %2337 = vmatmul.mubr.f32.gmra.mrb[0].mxu0 %v1327
        %v2338 = vpop.f32.mrb[0].mxu0
        %v2339 = vadd.f32 %v2160, %v2338
        %v2340 = vpop.f32.mrb[0].mxu0
        %v2341 = vadd.f32 %v2162, %v2340
        %2342 = vmatprep.mubr.f32.mxu0 %v1336
        %2343 = vmatmul.mubr.f32.gmra.mrb[0].mxu0 %v1335
        %v2344 = vpop.f32.mrb[0].mxu0
        %v2345 = vadd.f32 %v2166, %v2344
        %v2346 = vpop.f32.mrb[0].mxu0
        %v2347 = vadd.f32 %v2168, %v2346
        %2348 = vmatprep.mubr.f32.mxu0 %v1344
        %2349 = vmatmul.mubr.f32.gmra.mrb[0].mxu0 %v1343
        %v2350 = vpop.f32.mrb[0].mxu0
        %v2351 = vadd.f32 %v2172, %v2350
        %v2352 = vpop.f32.mrb[0].mxu0
        %v2353 = vadd.f32 %v2174, %v2352
        %2354 = vmatprep.mubr.f32.mxu0 %v1352
        %2355 = vmatmul.mubr.f32.gmra.mrb[0].mxu0 %v1351
        %v2356 = vpop.f32.mrb[0].mxu0
        %v2357 = vadd.f32 %v2178, %v2356
        %v2358 = vpop.f32.mrb[0].mxu0
        %v2359 = vadd.f32 %v2180, %v2358
        %2360 = vmatprep.mubr.f32.mxu0 %v1360
        %2361 = vmatmul.mubr.f32.gmra.mrb[0].mxu0 %v1359
        %v2362 = vpop.f32.mrb[0].mxu0
        %v2363 = vadd.f32 %v2184, %v2362
        %v2364 = vpop.f32.mrb[0].mxu0
        %v2365 = vadd.f32 %v2186, %v2364
        %2366 = vmatprep.mubr.f32.mxu0 %v1368
        %2367 = vmatmul.mubr.f32.gmra.mrb[0].mxu0 %v1367
        %v2368 = vpop.f32.mrb[0].mxu0
        %v2369 = vadd.f32 %v2190, %v2368
        %v2370 = vpop.f32.mrb[0].mxu0
        %v2371 = vadd.f32 %v2192, %v2370
        %2372 = vmatprep.mubr.f32.mxu0 %v1376
        %2373 = vmatmul.mubr.f32.gmra.mrb[0].mxu0 %v1375
        %v2374 = vpop.f32.mrb[0].mxu0
        %v2375 = vadd.f32 %v2196, %v2374
        %v2376 = vpop.f32.mrb[0].mxu0
        %v2377 = vadd.f32 %v2198, %v2376
        %2378 = vmatprep.mubr.f32.mxu0 %v1384
        %2379 = vmatmul.mubr.f32.gmra.mrb[0].mxu0 %v1383
        %v2380 = vpop.f32.mrb[0].mxu0
        %v2381 = vadd.f32 %v2202, %v2380
        %v2382 = vpop.f32.mrb[0].mxu0
        %v2383 = vadd.f32 %v2204, %v2382
        %2384 = vmatprep.mubr.f32.mxu0 %v1392
        %2385 = vmatmul.mubr.f32.gmra.mrb[0].mxu0 %v1391
        %v2386 = vpop.f32.mrb[0].mxu0
        %v2387 = vadd.f32 %v2208, %v2386
        %v2388 = vpop.f32.mrb[0].mxu0
        %v2389 = vadd.f32 %v2210, %v2388
        %2390 = vdwg.mxu0
        %v2391 = vmax.f32 %v1921, 0.0
        %v2392 = vmax.f32 %v1923, 0.0
        %v2393 = vmax.f32 %v2279, 0.0
        %v2394 = vmax.f32 %v2281, 0.0
        %v2395 = vmax.f32 %v1927, 0.0
        %v2396 = vmax.f32 %v1929, 0.0
        %v2397 = vmax.f32 %v2285, 0.0
        %v2398 = vmax.f32 %v2287, 0.0
        %v2399 = vmax.f32 %v1933, 0.0
        %v2400 = vmax.f32 %v1935, 0.0
        %v2401 = vmax.f32 %v2291, 0.0
        %v2402 = vmax.f32 %v2293, 0.0
        %v2403 = vmax.f32 %v1939, 0.0
        %v2404 = vmax.f32 %v1941, 0.0
        %v2405 = vmax.f32 %v2297, 0.0
        %v2406 = vmax.f32 %v2299, 0.0
        %v2407 = vmax.f32 %v1945, 0.0
        %v2408 = vmax.f32 %v1947, 0.0
        %v2409 = vmax.f32 %v2303, 0.0
        %v2410 = vmax.f32 %v2305, 0.0
        %v2411 = vmax.f32 %v1951, 0.0
        %v2412 = vmax.f32 %v1953, 0.0
        %v2413 = vmax.f32 %v2309, 0.0
        %v2414 = vmax.f32 %v2311, 0.0
        %v2415 = vmax.f32 %v1957, 0.0
        %v2416 = vmax.f32 %v1959, 0.0
        %v2417 = vmax.f32 %v2315, 0.0
        %v2418 = vmax.f32 %v2317, 0.0
        %v2419 = vmax.f32 %v1963, 0.0
        %v2420 = vmax.f32 %v1965, 0.0
        %v2421 = vmax.f32 %v2321, 0.0
        %v2422 = vmax.f32 %v2323, 0.0
        %v2423 = vmax.f32 %v1969, 0.0
        %v2424 = vmax.f32 %v1971, 0.0
        %v2425 = vmax.f32 %v2327, 0.0
        %v2426 = vmax.f32 %v2329, 0.0
        %v2427 = vmax.f32 %v1975, 0.0
        %v2428 = vmax.f32 %v1977, 0.0
        %v2429 = vmax.f32 %v2333, 0.0
        %v2430 = vmax.f32 %v2335, 0.0
        %v2431 = vmax.f32 %v1981, 0.0
        %v2432 = vmax.f32 %v1983, 0.0
        %v2433 = vmax.f32 %v2339, 0.0
        %v2434 = vmax.f32 %v2341, 0.0
        %v2435 = vmax.f32 %v1987, 0.0
        %v2436 = vmax.f32 %v1989, 0.0
        %v2437 = vmax.f32 %v2345, 0.0
        %v2438 = vmax.f32 %v2347, 0.0
        %v2439 = vmax.f32 %v1993, 0.0
        %v2440 = vmax.f32 %v1995, 0.0
        %v2441 = vmax.f32 %v2351, 0.0
        %v2442 = vmax.f32 %v2353, 0.0
        %v2443 = vmax.f32 %v1999, 0.0
        %v2444 = vmax.f32 %v2001, 0.0
        %v2445 = vmax.f32 %v2357, 0.0
        %v2446 = vmax.f32 %v2359, 0.0
        %v2447 = vmax.f32 %v2005, 0.0
        %v2448 = vmax.f32 %v2007, 0.0
        %v2449 = vmax.f32 %v2363, 0.0
        %v2450 = vmax.f32 %v2365, 0.0
        %v2451 = vmax.f32 %v2011, 0.0
        %v2452 = vmax.f32 %v2013, 0.0
        %v2453 = vmax.f32 %v2369, 0.0
        %v2454 = vmax.f32 %v2371, 0.0
        %v2455 = vmax.f32 %v2017, 0.0
        %v2456 = vmax.f32 %v2019, 0.0
        %v2457 = vmax.f32 %v2375, 0.0
        %v2458 = vmax.f32 %v2377, 0.0
        %v2459 = vmax.f32 %v2023, 0.0
        %v2460 = vmax.f32 %v2025, 0.0
        %v2461 = vmax.f32 %v2381, 0.0
        %v2462 = vmax.f32 %v2383, 0.0
        %v2463 = vmax.f32 %v2029, 0.0
        %v2464 = vmax.f32 %v2031, 0.0
        %v2465 = vmax.f32 %v2387, 0.0
        %v2466 = vmax.f32 %v2389, 0.0
        %v2467 = vld [vmem:[#allocation5] sm:$0xff]
        %v2468 = vld [vmem:[#allocation5 + $0x8] sm:$0xff]
        %v2469 = vld [vmem:[#allocation5 + $0x10] sm:$0xff]
        %v2470 = vld [vmem:[#allocation5 + $0x18] sm:$0xff]
        %v2471 = vld [vmem:[#allocation5 + $0x20] sm:$0xff]
        %v2472 = vld [vmem:[#allocation5 + $0x28] sm:$0xff]
        %v2473 = vld [vmem:[#allocation5 + $0x30] sm:$0xff]
        %v2474 = vld [vmem:[#allocation5 + $0x38] sm:$0xff]
        %v2475 = vld [vmem:[#allocation5 + $0x40] sm:$0xff]
        %v2476 = vld [vmem:[#allocation5 + $0x48] sm:$0xff]
        %v2477 = vld [vmem:[#allocation5 + $0x50] sm:$0xff]
        %v2478 = vld [vmem:[#allocation5 + $0x58] sm:$0xff]
        %v2479 = vld [vmem:[#allocation5 + $0x60] sm:$0xff]
        %v2480 = vld [vmem:[#allocation5 + $0x68] sm:$0xff]
        %v2481 = vld [vmem:[#allocation5 + $0x70] sm:$0xff]
        %v2482 = vld [vmem:[#allocation5 + $0x78] sm:$0xff]
        %v2483 = vld [vmem:[#allocation5 + $0x80] sm:$0xff]
        %v2484 = vld [vmem:[#allocation5 + $0x88] sm:$0xff]
        %v2485 = vld [vmem:[#allocation5 + $0x90] sm:$0xff]
        %v2486 = vld [vmem:[#allocation5 + $0x98] sm:$0xff]
        %v2487 = vld [vmem:[#allocation5 + $0xa0] sm:$0xff]
        %v2488 = vld [vmem:[#allocation5 + $0xa8] sm:$0xff]
        %v2489 = vld [vmem:[#allocation5 + $0xb0] sm:$0xff]
        %v2490 = vld [vmem:[#allocation5 + $0xb8] sm:$0xff]
        %v2491 = vld [vmem:[#allocation5 + $0xc0] sm:$0xff]
        %v2492 = vld [vmem:[#allocation5 + $0xc8] sm:$0xff]
        %v2493 = vld [vmem:[#allocation5 + $0xd0] sm:$0xff]
        %v2494 = vld [vmem:[#allocation5 + $0xd8] sm:$0xff]
        %v2495 = vld [vmem:[#allocation5 + $0xe0] sm:$0xff]
        %v2496 = vld [vmem:[#allocation5 + $0xe8] sm:$0xff]
        %v2497 = vld [vmem:[#allocation5 + $0xf0] sm:$0xff]
        %v2498 = vld [vmem:[#allocation5 + $0xf8] sm:$0xff]
        %v2499 = vld [vmem:[#allocation5 + $0x100] sm:$0xff]
        %v2500 = vld [vmem:[#allocation5 + $0x108] sm:$0xff]
        %v2501 = vld [vmem:[#allocation5 + $0x110] sm:$0xff]
        %v2502 = vld [vmem:[#allocation5 + $0x118] sm:$0xff]
        %v2503 = vld [vmem:[#allocation5 + $0x120] sm:$0xff]
        %v2504 = vld [vmem:[#allocation5 + $0x128] sm:$0xff]
        %v2505 = vld [vmem:[#allocation5 + $0x130] sm:$0xff]
        %v2506 = vld [vmem:[#allocation5 + $0x138] sm:$0xff]
        %v2507 = vld [vmem:[#allocation5 + $0x140] sm:$0xff]
        %v2508 = vld [vmem:[#allocation5 + $0x148] sm:$0xff]
        %v2509 = vld [vmem:[#allocation5 + $0x150] sm:$0xff]
        %v2510 = vld [vmem:[#allocation5 + $0x158] sm:$0xff]
        %v2511 = vld [vmem:[#allocation5 + $0x160] sm:$0xff]
        %v2512 = vld [vmem:[#allocation5 + $0x168] sm:$0xff]
        %v2513 = vld [vmem:[#allocation5 + $0x170] sm:$0xff]
        %v2514 = vld [vmem:[#allocation5 + $0x178] sm:$0xff]
        %v2515 = vld [vmem:[#allocation5 + $0x180] sm:$0xff]
        %v2516 = vld [vmem:[#allocation5 + $0x188] sm:$0xff]
        %v2517 = vld [vmem:[#allocation5 + $0x190] sm:$0xff]
        %v2518 = vld [vmem:[#allocation5 + $0x198] sm:$0xff]
        %v2519 = vld [vmem:[#allocation5 + $0x1a0] sm:$0xff]
        %v2520 = vld [vmem:[#allocation5 + $0x1a8] sm:$0xff]
        %v2521 = vld [vmem:[#allocation5 + $0x1b0] sm:$0xff]
        %v2522 = vld [vmem:[#allocation5 + $0x1b8] sm:$0xff]
        %v2523 = vld [vmem:[#allocation5 + $0x1c0] sm:$0xff]
        %v2524 = vld [vmem:[#allocation5 + $0x1c8] sm:$0xff]
        %v2525 = vld [vmem:[#allocation5 + $0x1d0] sm:$0xff]
        %v2526 = vld [vmem:[#allocation5 + $0x1d8] sm:$0xff]
        %v2527 = vld [vmem:[#allocation5 + $0x1e0] sm:$0xff]
        %v2528 = vld [vmem:[#allocation5 + $0x1e8] sm:$0xff]
        %v2529 = vld [vmem:[#allocation5 + $0x1f0] sm:$0xff]
        %v2530 = vld [vmem:[#allocation5 + $0x1f8] sm:$0xff]
        %v2531 = vld [vmem:[#allocation5 + $0x200] sm:$0xff]
        %v2532 = vld [vmem:[#allocation5 + $0x208] sm:$0xff]
        %v2533 = vld [vmem:[#allocation5 + $0x210] sm:$0xff]
        %v2534 = vld [vmem:[#allocation5 + $0x218] sm:$0xff]
        %v2535 = vld [vmem:[#allocation5 + $0x220] sm:$0xff]
        %v2536 = vld [vmem:[#allocation5 + $0x228] sm:$0xff]
        %v2537 = vld [vmem:[#allocation5 + $0x230] sm:$0xff]
        %v2538 = vld [vmem:[#allocation5 + $0x238] sm:$0xff]
        %v2539 = vld [vmem:[#allocation5 + $0x240] sm:$0xff]
        %v2540 = vld [vmem:[#allocation5 + $0x248] sm:$0xff]
        %v2541 = vld [vmem:[#allocation5 + $0x250] sm:$0xff]
        %v2542 = vld [vmem:[#allocation5 + $0x258] sm:$0xff]
        %v2543 = vld [vmem:[#allocation5 + $0x260] sm:$0xff]
        %v2544 = vld [vmem:[#allocation5 + $0x268] sm:$0xff]
        %v2545 = vld [vmem:[#allocation5 + $0x270] sm:$0xff]
        %v2546 = vld [vmem:[#allocation5 + $0x278] sm:$0xff]
        %v2547 = vld [vmem:[#allocation5 + $0x280] sm:$0xff]
        %v2548 = vld [vmem:[#allocation5 + $0x288] sm:$0xff]
        %v2549 = vld [vmem:[#allocation5 + $0x290] sm:$0xff]
        %v2550 = vld [vmem:[#allocation5 + $0x298] sm:$0xff]
        %v2551 = vld [vmem:[#allocation5 + $0x2a0] sm:$0xff]
        %v2552 = vld [vmem:[#allocation5 + $0x2a8] sm:$0xff]
        %v2553 = vld [vmem:[#allocation5 + $0x2b0] sm:$0xff]
        %v2554 = vld [vmem:[#allocation5 + $0x2b8] sm:$0xff]
        %v2555 = vld [vmem:[#allocation5 + $0x2c0] sm:$0xff]
        %v2556 = vld [vmem:[#allocation5 + $0x2c8] sm:$0xff]
        %v2557 = vld [vmem:[#allocation5 + $0x2d0] sm:$0xff]
        %v2558 = vld [vmem:[#allocation5 + $0x2d8] sm:$0xff]
        %v2559 = vld [vmem:[#allocation5 + $0x2e0] sm:$0xff]
        %v2560 = vld [vmem:[#allocation5 + $0x2e8] sm:$0xff]
        %v2561 = vld [vmem:[#allocation5 + $0x2f0] sm:$0xff]
        %v2562 = vld [vmem:[#allocation5 + $0x2f8] sm:$0xff]
        %v2563 = vld [vmem:[#allocation5 + $0x300] sm:$0xff]
        %v2564 = vld [vmem:[#allocation5 + $0x308] sm:$0xff]
        %v2565 = vld [vmem:[#allocation5 + $0x310] sm:$0xff]
        %v2566 = vld [vmem:[#allocation5 + $0x318] sm:$0xff]
        %v2567 = vld [vmem:[#allocation5 + $0x320] sm:$0xff]
        %v2568 = vld [vmem:[#allocation5 + $0x328] sm:$0xff]
        %v2569 = vld [vmem:[#allocation5 + $0x330] sm:$0xff]
        %v2570 = vld [vmem:[#allocation5 + $0x338] sm:$0xff]
        %v2571 = vld [vmem:[#allocation5 + $0x340] sm:$0xff]
        %v2572 = vld [vmem:[#allocation5 + $0x348] sm:$0xff]
        %v2573 = vld [vmem:[#allocation5 + $0x350] sm:$0xff]
        %v2574 = vld [vmem:[#allocation5 + $0x358] sm:$0xff]
        %v2575 = vld [vmem:[#allocation5 + $0x360] sm:$0xff]
        %v2576 = vld [vmem:[#allocation5 + $0x368] sm:$0xff]
        %v2577 = vld [vmem:[#allocation5 + $0x370] sm:$0xff]
        %v2578 = vld [vmem:[#allocation5 + $0x378] sm:$0xff]
        %v2579 = vld [vmem:[#allocation5 + $0x380] sm:$0xff]
        %v2580 = vld [vmem:[#allocation5 + $0x388] sm:$0xff]
        %v2581 = vld [vmem:[#allocation5 + $0x390] sm:$0xff]
        %v2582 = vld [vmem:[#allocation5 + $0x398] sm:$0xff]
        %v2583 = vld [vmem:[#allocation5 + $0x3a0] sm:$0xff]
        %v2584 = vld [vmem:[#allocation5 + $0x3a8] sm:$0xff]
        %v2585 = vld [vmem:[#allocation5 + $0x3b0] sm:$0xff]
        %v2586 = vld [vmem:[#allocation5 + $0x3b8] sm:$0xff]
        %v2587 = vld [vmem:[#allocation5 + $0x3c0] sm:$0xff]
        %v2588 = vld [vmem:[#allocation5 + $0x3c8] sm:$0xff]
        %v2589 = vld [vmem:[#allocation5 + $0x3d0] sm:$0xff]
        %v2590 = vld [vmem:[#allocation5 + $0x3d8] sm:$0xff]
        %v2591 = vld [vmem:[#allocation5 + $0x3e0] sm:$0xff]
        %v2592 = vld [vmem:[#allocation5 + $0x3e8] sm:$0xff]
        %v2593 = vld [vmem:[#allocation5 + $0x3f0] sm:$0xff]
        %v2594 = vld [vmem:[#allocation5 + $0x3f8] sm:$0xff]
        %v2595 = vld [vmem:[#allocation5 + $0x400] sm:$0xff]
        %v2596 = vld [vmem:[#allocation5 + $0x408] sm:$0xff]
        %v2597 = vld [vmem:[#allocation5 + $0x410] sm:$0xff]
        %v2598 = vld [vmem:[#allocation5 + $0x418] sm:$0xff]
        %v2599 = vld [vmem:[#allocation5 + $0x420] sm:$0xff]
        %v2600 = vld [vmem:[#allocation5 + $0x428] sm:$0xff]
        %v2601 = vld [vmem:[#allocation5 + $0x430] sm:$0xff]
        %v2602 = vld [vmem:[#allocation5 + $0x438] sm:$0xff]
        %v2603 = vld [vmem:[#allocation5 + $0x440] sm:$0xff]
        %v2604 = vld [vmem:[#allocation5 + $0x448] sm:$0xff]
        %v2605 = vld [vmem:[#allocation5 + $0x450] sm:$0xff]
        %v2606 = vld [vmem:[#allocation5 + $0x458] sm:$0xff]
        %v2607 = vld [vmem:[#allocation5 + $0x460] sm:$0xff]
        %v2608 = vld [vmem:[#allocation5 + $0x468] sm:$0xff]
        %v2609 = vld [vmem:[#allocation5 + $0x470] sm:$0xff]
        %v2610 = vld [vmem:[#allocation5 + $0x478] sm:$0xff]
        %v2611 = vld [vmem:[#allocation5 + $0x480] sm:$0xff]
        %v2612 = vld [vmem:[#allocation5 + $0x488] sm:$0xff]
        %v2613 = vld [vmem:[#allocation5 + $0x490] sm:$0xff]
        %v2614 = vld [vmem:[#allocation5 + $0x498] sm:$0xff]
        %v2615 = vld [vmem:[#allocation5 + $0x4a0] sm:$0xff]
        %v2616 = vld [vmem:[#allocation5 + $0x4a8] sm:$0xff]
        %v2617 = vld [vmem:[#allocation5 + $0x4b0] sm:$0xff]
        %v2618 = vld [vmem:[#allocation5 + $0x4b8] sm:$0xff]
        %v2619 = vld [vmem:[#allocation5 + $0x4c0] sm:$0xff]
        %v2620 = vld [vmem:[#allocation5 + $0x4c8] sm:$0xff]
        %v2621 = vld [vmem:[#allocation5 + $0x4d0] sm:$0xff]
        %v2622 = vld [vmem:[#allocation5 + $0x4d8] sm:$0xff]
        %v2623 = vld [vmem:[#allocation5 + $0x4e0] sm:$0xff]
        %v2624 = vld [vmem:[#allocation5 + $0x4e8] sm:$0xff]
        %v2625 = vld [vmem:[#allocation5 + $0x4f0] sm:$0xff]
        %v2626 = vld [vmem:[#allocation5 + $0x4f8] sm:$0xff]
        %v2627 = vld [vmem:[#allocation5 + $0x500] sm:$0xff]
        %v2628 = vld [vmem:[#allocation5 + $0x508] sm:$0xff]
        %v2629 = vld [vmem:[#allocation5 + $0x510] sm:$0xff]
        %v2630 = vld [vmem:[#allocation5 + $0x518] sm:$0xff]
        %v2631 = vld [vmem:[#allocation5 + $0x520] sm:$0xff]
        %v2632 = vld [vmem:[#allocation5 + $0x528] sm:$0xff]
        %v2633 = vld [vmem:[#allocation5 + $0x530] sm:$0xff]
        %v2634 = vld [vmem:[#allocation5 + $0x538] sm:$0xff]
        %v2635 = vld [vmem:[#allocation5 + $0x540] sm:$0xff]
        %v2636 = vld [vmem:[#allocation5 + $0x548] sm:$0xff]
        %v2637 = vld [vmem:[#allocation5 + $0x550] sm:$0xff]
        %v2638 = vld [vmem:[#allocation5 + $0x558] sm:$0xff]
        %v2639 = vld [vmem:[#allocation5 + $0x560] sm:$0xff]
        %v2640 = vld [vmem:[#allocation5 + $0x568] sm:$0xff]
        %v2641 = vld [vmem:[#allocation5 + $0x570] sm:$0xff]
        %v2642 = vld [vmem:[#allocation5 + $0x578] sm:$0xff]
        %v2643 = vld [vmem:[#allocation5 + $0x580] sm:$0xff]
        %v2644 = vld [vmem:[#allocation5 + $0x588] sm:$0xff]
        %v2645 = vld [vmem:[#allocation5 + $0x590] sm:$0xff]
        %v2646 = vld [vmem:[#allocation5 + $0x598] sm:$0xff]
        %v2647 = vld [vmem:[#allocation5 + $0x5a0] sm:$0xff]
        %v2648 = vld [vmem:[#allocation5 + $0x5a8] sm:$0xff]
        %v2649 = vld [vmem:[#allocation5 + $0x5b0] sm:$0xff]
        %v2650 = vld [vmem:[#allocation5 + $0x5b8] sm:$0xff]
        %v2651 = vld [vmem:[#allocation5 + $0x5c0] sm:$0xff]
        %v2652 = vld [vmem:[#allocation5 + $0x5c8] sm:$0xff]
        %v2653 = vld [vmem:[#allocation5 + $0x5d0] sm:$0xff]
        %v2654 = vld [vmem:[#allocation5 + $0x5d8] sm:$0xff]
        %v2655 = vld [vmem:[#allocation5 + $0x5e0] sm:$0xff]
        %v2656 = vld [vmem:[#allocation5 + $0x5e8] sm:$0xff]
        %v2657 = vld [vmem:[#allocation5 + $0x5f0] sm:$0xff]
        %v2658 = vld [vmem:[#allocation5 + $0x5f8] sm:$0xff]
        %v2659 = vld [vmem:[#allocation5 + $0x600] sm:$0xff]
        %v2660 = vld [vmem:[#allocation5 + $0x608] sm:$0xff]
        %v2661 = vld [vmem:[#allocation5 + $0x610] sm:$0xff]
        %v2662 = vld [vmem:[#allocation5 + $0x618] sm:$0xff]
        %v2663 = vld [vmem:[#allocation5 + $0x620] sm:$0xff]
        %v2664 = vld [vmem:[#allocation5 + $0x628] sm:$0xff]
        %v2665 = vld [vmem:[#allocation5 + $0x630] sm:$0xff]
        %v2666 = vld [vmem:[#allocation5 + $0x638] sm:$0xff]
        %v2667 = vld [vmem:[#allocation5 + $0x640] sm:$0xff]
        %v2668 = vld [vmem:[#allocation5 + $0x648] sm:$0xff]
        %v2669 = vld [vmem:[#allocation5 + $0x650] sm:$0xff]
        %v2670 = vld [vmem:[#allocation5 + $0x658] sm:$0xff]
        %v2671 = vld [vmem:[#allocation5 + $0x660] sm:$0xff]
        %v2672 = vld [vmem:[#allocation5 + $0x668] sm:$0xff]
        %v2673 = vld [vmem:[#allocation5 + $0x670] sm:$0xff]
        %v2674 = vld [vmem:[#allocation5 + $0x678] sm:$0xff]
        %v2675 = vld [vmem:[#allocation5 + $0x680] sm:$0xff]
        %v2676 = vld [vmem:[#allocation5 + $0x688] sm:$0xff]
        %v2677 = vld [vmem:[#allocation5 + $0x690] sm:$0xff]
        %v2678 = vld [vmem:[#allocation5 + $0x698] sm:$0xff]
        %v2679 = vld [vmem:[#allocation5 + $0x6a0] sm:$0xff]
        %v2680 = vld [vmem:[#allocation5 + $0x6a8] sm:$0xff]
        %v2681 = vld [vmem:[#allocation5 + $0x6b0] sm:$0xff]
        %v2682 = vld [vmem:[#allocation5 + $0x6b8] sm:$0xff]
        %v2683 = vld [vmem:[#allocation5 + $0x6c0] sm:$0xff]
        %v2684 = vld [vmem:[#allocation5 + $0x6c8] sm:$0xff]
        %v2685 = vld [vmem:[#allocation5 + $0x6d0] sm:$0xff]
        %v2686 = vld [vmem:[#allocation5 + $0x6d8] sm:$0xff]
        %v2687 = vld [vmem:[#allocation5 + $0x6e0] sm:$0xff]
        %v2688 = vld [vmem:[#allocation5 + $0x6e8] sm:$0xff]
        %v2689 = vld [vmem:[#allocation5 + $0x6f0] sm:$0xff]
        %v2690 = vld [vmem:[#allocation5 + $0x6f8] sm:$0xff]
        %v2691 = vld [vmem:[#allocation5 + $0x700] sm:$0xff]
        %v2692 = vld [vmem:[#allocation5 + $0x708] sm:$0xff]
        %v2693 = vld [vmem:[#allocation5 + $0x710] sm:$0xff]
        %v2694 = vld [vmem:[#allocation5 + $0x718] sm:$0xff]
        %v2695 = vld [vmem:[#allocation5 + $0x720] sm:$0xff]
        %v2696 = vld [vmem:[#allocation5 + $0x728] sm:$0xff]
        %v2697 = vld [vmem:[#allocation5 + $0x730] sm:$0xff]
        %v2698 = vld [vmem:[#allocation5 + $0x738] sm:$0xff]
        %v2699 = vld [vmem:[#allocation5 + $0x740] sm:$0xff]
        %v2700 = vld [vmem:[#allocation5 + $0x748] sm:$0xff]
        %v2701 = vld [vmem:[#allocation5 + $0x750] sm:$0xff]
        %v2702 = vld [vmem:[#allocation5 + $0x758] sm:$0xff]
        %v2703 = vld [vmem:[#allocation5 + $0x760] sm:$0xff]
        %v2704 = vld [vmem:[#allocation5 + $0x768] sm:$0xff]
        %v2705 = vld [vmem:[#allocation5 + $0x770] sm:$0xff]
        %v2706 = vld [vmem:[#allocation5 + $0x778] sm:$0xff]
        %v2707 = vld [vmem:[#allocation5 + $0x780] sm:$0xff]
        %v2708 = vld [vmem:[#allocation5 + $0x788] sm:$0xff]
        %v2709 = vld [vmem:[#allocation5 + $0x790] sm:$0xff]
        %v2710 = vld [vmem:[#allocation5 + $0x798] sm:$0xff]
        %v2711 = vld [vmem:[#allocation5 + $0x7a0] sm:$0xff]
        %v2712 = vld [vmem:[#allocation5 + $0x7a8] sm:$0xff]
        %v2713 = vld [vmem:[#allocation5 + $0x7b0] sm:$0xff]
        %v2714 = vld [vmem:[#allocation5 + $0x7b8] sm:$0xff]
        %v2715 = vld [vmem:[#allocation5 + $0x7c0] sm:$0xff]
        %v2716 = vld [vmem:[#allocation5 + $0x7c8] sm:$0xff]
        %v2717 = vld [vmem:[#allocation5 + $0x7d0] sm:$0xff]
        %v2718 = vld [vmem:[#allocation5 + $0x7d8] sm:$0xff]
        %v2719 = vld [vmem:[#allocation5 + $0x7e0] sm:$0xff]
        %v2720 = vld [vmem:[#allocation5 + $0x7e8] sm:$0xff]
        %v2721 = vld [vmem:[#allocation5 + $0x7f0] sm:$0xff]
        %v2722 = vld [vmem:[#allocation5 + $0x7f8] sm:$0xff]
        %v2723 = vld [vmem:[%s6] sm:$0xf]
        %v2725 = vlaneseq
        %v2726 = vshrl.u32 %v2725, 7
        %v2727 = vsub.s32 0, %v2726
        %v2728 = vrot.slane %v2723, %v2727
        %v2729 = vlaneseq
        %v2730 = vshrl.u32 %v2729, 7
        %v2731 = vsub.s32 1, %v2730
        %v2732 = vrot.slane %v2723, %v2731
        %v2733 = vlaneseq
        %v2734 = vshrl.u32 %v2733, 7
        %v2735 = vsub.s32 2, %v2734
        %v2736 = vrot.slane %v2723, %v2735
        %v2737 = vlaneseq
        %v2738 = vshrl.u32 %v2737, 7
        %v2739 = vsub.s32 3, %v2738
        %v2740 = vrot.slane %v2723, %v2739
        %2745 = vmatprep.subr.mxu0 %v2468
        %2746 = vmatpush1.msra.mxu0 %v2467
        %2747 = vmatprep.subr.mxu0 %v2472
        %2748 = vmatpush1.msra.mxu0 %v2471
        %2749 = vmatprep.subr.mxu0 %v2476
        %2750 = vmatpush1.msra.mxu0 %v2475
        %2751 = vmatprep.subr.mxu0 %v2480
        %2752 = vmatpush1.msra.mxu0 %v2479
        %2753 = vmatprep.subr.mxu0 %v2484
        %2754 = vmatpush1.msra.mxu0 %v2483
        %2755 = vmatprep.subr.mxu0 %v2488
        %2756 = vmatpush1.msra.mxu0 %v2487
        %2757 = vmatprep.subr.mxu0 %v2492
        %2758 = vmatpush1.msra.mxu0 %v2491
        %2759 = vmatprep.subr.mxu0 %v2496
        %2760 = vmatpush1.msra.mxu0 %v2495
        %2761 = vmatprep.subr.mxu0 %v2500
        %2762 = vmatpush1.msra.mxu0 %v2499
        %2763 = vmatprep.subr.mxu0 %v2504
        %2764 = vmatpush1.msra.mxu0 %v2503
        %2765 = vmatprep.subr.mxu0 %v2508
        %2766 = vmatpush1.msra.mxu0 %v2507
        %2767 = vmatprep.subr.mxu0 %v2512
        %2768 = vmatpush1.msra.mxu0 %v2511
        %2769 = vmatprep.subr.mxu0 %v2516
        %2770 = vmatpush1.msra.mxu0 %v2515
        %2771 = vmatprep.subr.mxu0 %v2520
        %2772 = vmatpush1.msra.mxu0 %v2519
        %2773 = vmatprep.subr.mxu0 %v2524
        %2774 = vmatpush1.msra.mxu0 %v2523
        %2775 = vmatprep.subr.mxu0 %v2528
        %2776 = vmatpush1.msra.mxu0 %v2527
        %2777 = vmatprep.subr.mxu0 %v2532
        %2778 = vmatpush1.msra.mxu0 %v2531
        %2779 = vmatprep.subr.mxu0 %v2536
        %2780 = vmatpush1.msra.mxu0 %v2535
        %2781 = vmatprep.subr.mxu0 %v2540
        %2782 = vmatpush1.msra.mxu0 %v2539
        %2783 = vmatprep.subr.mxu0 %v2544
        %2784 = vmatpush1.msra.mxu0 %v2543
        %2785 = vmatprep.subr.mxu0 %v2548
        %2786 = vmatpush1.msra.mxu0 %v2547
        %2787 = vmatprep.subr.mxu0 %v2552
        %2788 = vmatpush1.msra.mxu0 %v2551
        %2789 = vmatprep.subr.mxu0 %v2556
        %2790 = vmatpush1.msra.mxu0 %v2555
        %2791 = vmatprep.subr.mxu0 %v2560
        %2792 = vmatpush1.msra.mxu0 %v2559
        %2793 = vmatprep.subr.mxu0 %v2564
        %2794 = vmatpush1.msra.mxu0 %v2563
        %2795 = vmatprep.subr.mxu0 %v2568
        %2796 = vmatpush1.msra.mxu0 %v2567
        %2797 = vmatprep.subr.mxu0 %v2572
        %2798 = vmatpush1.msra.mxu0 %v2571
        %2799 = vmatprep.subr.mxu0 %v2576
        %2800 = vmatpush1.msra.mxu0 %v2575
        %2801 = vmatprep.subr.mxu0 %v2580
        %2802 = vmatpush1.msra.mxu0 %v2579
        %2803 = vmatprep.subr.mxu0 %v2584
        %2804 = vmatpush1.msra.mxu0 %v2583
        %2805 = vmatprep.subr.mxu0 %v2588
        %2806 = vmatpush1.msra.mxu0 %v2587
        %2807 = vmatprep.subr.mxu0 %v2592
        %2808 = vmatpush1.msra.mxu0 %v2591
        %2809 = vmatprep.mubr.f32.mxu0 %v1250
        %2810 = vmatmul.mubr.f32.gmra.mrb[0].mxu0 %v1249
        %v2811 = vpop.f32.mrb[0].mxu0
        %v2812 = vadd.f32 %v2728, %v2811
        %v2813 = vpop.f32.mrb[0].mxu0
        %v2814 = vadd.f32 %v2732, %v2813
        %2815 = vmatprep.mubr.f32.mxu0 %v1258
        %2816 = vmatmul.mubr.f32.gmra.mrb[0].mxu0 %v1257
        %v2817 = vpop.f32.mrb[0].mxu0
        %v2818 = vadd.f32 %v2728, %v2817
        %v2819 = vpop.f32.mrb[0].mxu0
        %v2820 = vadd.f32 %v2732, %v2819
        %2821 = vmatprep.mubr.f32.mxu0 %v1266
        %2822 = vmatmul.mubr.f32.gmra.mrb[0].mxu0 %v1265
        %v2823 = vpop.f32.mrb[0].mxu0
        %v2824 = vadd.f32 %v2728, %v2823
        %v2825 = vpop.f32.mrb[0].mxu0
        %v2826 = vadd.f32 %v2732, %v2825
        %2827 = vmatprep.mubr.f32.mxu0 %v1274
        %2828 = vmatmul.mubr.f32.gmra.mrb[0].mxu0 %v1273
        %v2829 = vpop.f32.mrb[0].mxu0
        %v2830 = vadd.f32 %v2728, %v2829
        %v2831 = vpop.f32.mrb[0].mxu0
        %v2832 = vadd.f32 %v2732, %v2831
        %2833 = vmatprep.mubr.f32.mxu0 %v1282
        %2834 = vmatmul.mubr.f32.gmra.mrb[0].mxu0 %v1281
        %v2835 = vpop.f32.mrb[0].mxu0
        %v2836 = vadd.f32 %v2728, %v2835
        %v2837 = vpop.f32.mrb[0].mxu0
        %v2838 = vadd.f32 %v2732, %v2837
        %2839 = vmatprep.mubr.f32.mxu0 %v1290
        %2840 = vmatmul.mubr.f32.gmra.mrb[0].mxu0 %v1289
        %v2841 = vpop.f32.mrb[0].mxu0
        %v2842 = vadd.f32 %v2728, %v2841
        %v2843 = vpop.f32.mrb[0].mxu0
        %v2844 = vadd.f32 %v2732, %v2843
        %2845 = vmatprep.mubr.f32.mxu0 %v1298
        %2846 = vmatmul.mubr.f32.gmra.mrb[0].mxu0 %v1297
        %v2847 = vpop.f32.mrb[0].mxu0
        %v2848 = vadd.f32 %v2728, %v2847
        %v2849 = vpop.f32.mrb[0].mxu0
        %v2850 = vadd.f32 %v2732, %v2849
        %2851 = vmatprep.mubr.f32.mxu0 %v1306
        %2852 = vmatmul.mubr.f32.gmra.mrb[0].mxu0 %v1305
        %v2853 = vpop.f32.mrb[0].mxu0
        %v2854 = vadd.f32 %v2728, %v2853
        %v2855 = vpop.f32.mrb[0].mxu0
        %v2856 = vadd.f32 %v2732, %v2855
        %2857 = vmatprep.mubr.f32.mxu0 %v1314
        %2858 = vmatmul.mubr.f32.gmra.mrb[0].mxu0 %v1313
        %v2859 = vpop.f32.mrb[0].mxu0
        %v2860 = vadd.f32 %v2728, %v2859
        %v2861 = vpop.f32.mrb[0].mxu0
        %v2862 = vadd.f32 %v2732, %v2861
        %2863 = vmatprep.mubr.f32.mxu0 %v1322
        %2864 = vmatmul.mubr.f32.gmra.mrb[0].mxu0 %v1321
        %v2865 = vpop.f32.mrb[0].mxu0
        %v2866 = vadd.f32 %v2728, %v2865
        %v2867 = vpop.f32.mrb[0].mxu0
        %v2868 = vadd.f32 %v2732, %v2867
        %2869 = vmatprep.mubr.f32.mxu0 %v1330
        %2870 = vmatmul.mubr.f32.gmra.mrb[0].mxu0 %v1329
        %v2871 = vpop.f32.mrb[0].mxu0
        %v2872 = vadd.f32 %v2728, %v2871
        %v2873 = vpop.f32.mrb[0].mxu0
        %v2874 = vadd.f32 %v2732, %v2873
        %2875 = vmatprep.mubr.f32.mxu0 %v1338
        %2876 = vmatmul.mubr.f32.gmra.mrb[0].mxu0 %v1337
        %v2877 = vpop.f32.mrb[0].mxu0
        %v2878 = vadd.f32 %v2728, %v2877
        %v2879 = vpop.f32.mrb[0].mxu0
        %v2880 = vadd.f32 %v2732, %v2879
        %2881 = vmatprep.mubr.f32.mxu0 %v1346
        %2882 = vmatmul.mubr.f32.gmra.mrb[0].mxu0 %v1345
        %v2883 = vpop.f32.mrb[0].mxu0
        %v2884 = vadd.f32 %v2728, %v2883
        %v2885 = vpop.f32.mrb[0].mxu0
        %v2886 = vadd.f32 %v2732, %v2885
        %2887 = vmatprep.mubr.f32.mxu0 %v1354
        %2888 = vmatmul.mubr.f32.gmra.mrb[0].mxu0 %v1353
        %v2889 = vpop.f32.mrb[0].mxu0
        %v2890 = vadd.f32 %v2728, %v2889
        %v2891 = vpop.f32.mrb[0].mxu0
        %v2892 = vadd.f32 %v2732, %v2891
        %2893 = vmatprep.mubr.f32.mxu0 %v1362
        %2894 = vmatmul.mubr.f32.gmra.mrb[0].mxu0 %v1361
        %v2895 = vpop.f32.mrb[0].mxu0
        %v2896 = vadd.f32 %v2728, %v2895
        %v2897 = vpop.f32.mrb[0].mxu0
        %v2898 = vadd.f32 %v2732, %v2897
        %2899 = vmatprep.mubr.f32.mxu0 %v1370
        %2900 = vmatmul.mubr.f32.gmra.mrb[0].mxu0 %v1369
        %v2901 = vpop.f32.mrb[0].mxu0
        %v2902 = vadd.f32 %v2728, %v2901
        %v2903 = vpop.f32.mrb[0].mxu0
        %v2904 = vadd.f32 %v2732, %v2903
        %2905 = vmatprep.mubr.f32.mxu0 %v1378
        %2906 = vmatmul.mubr.f32.gmra.mrb[0].mxu0 %v1377
        %v2907 = vpop.f32.mrb[0].mxu0
        %v2908 = vadd.f32 %v2728, %v2907
        %v2909 = vpop.f32.mrb[0].mxu0
        %v2910 = vadd.f32 %v2732, %v2909
        %2911 = vmatprep.mubr.f32.mxu0 %v1386
        %2912 = vmatmul.mubr.f32.gmra.mrb[0].mxu0 %v1385
        %v2913 = vpop.f32.mrb[0].mxu0
        %v2914 = vadd.f32 %v2728, %v2913
        %v2915 = vpop.f32.mrb[0].mxu0
        %v2916 = vadd.f32 %v2732, %v2915
        %2917 = vmatprep.mubr.f32.mxu0 %v1394
        %2918 = vmatmul.mubr.f32.gmra.mrb[0].mxu0 %v1393
        %v2919 = vpop.f32.mrb[0].mxu0
        %v2920 = vadd.f32 %v2728, %v2919
        %v2921 = vpop.f32.mrb[0].mxu0
        %v2922 = vadd.f32 %v2732, %v2921
        %2923 = vdwg.mxu0
        %2924 = vmatprep.subr.mxu0 %v2596
        %2925 = vmatpush1.msra.mxu0 %v2595
        %2926 = vmatprep.subr.mxu0 %v2600
        %2927 = vmatpush1.msra.mxu0 %v2599
        %2928 = vmatprep.subr.mxu0 %v2604
        %2929 = vmatpush1.msra.mxu0 %v2603
        %2930 = vmatprep.subr.mxu0 %v2608
        %2931 = vmatpush1.msra.mxu0 %v2607
        %2932 = vmatprep.subr.mxu0 %v2612
        %2933 = vmatpush1.msra.mxu0 %v2611
        %2934 = vmatprep.subr.mxu0 %v2616
        %2935 = vmatpush1.msra.mxu0 %v2615
        %2936 = vmatprep.subr.mxu0 %v2620
        %2937 = vmatpush1.msra.mxu0 %v2619
        %2938 = vmatprep.subr.mxu0 %v2624
        %2939 = vmatpush1.msra.mxu0 %v2623
        %2940 = vmatprep.subr.mxu0 %v2628
        %2941 = vmatpush1.msra.mxu0 %v2627
        %2942 = vmatprep.subr.mxu0 %v2632
        %2943 = vmatpush1.msra.mxu0 %v2631
        %2944 = vmatprep.subr.mxu0 %v2636
        %2945 = vmatpush1.msra.mxu0 %v2635
        %2946 = vmatprep.subr.mxu0 %v2640
        %2947 = vmatpush1.msra.mxu0 %v2639
        %2948 = vmatprep.subr.mxu0 %v2644
        %2949 = vmatpush1.msra.mxu0 %v2643
        %2950 = vmatprep.subr.mxu0 %v2648
        %2951 = vmatpush1.msra.mxu0 %v2647
        %2952 = vmatprep.subr.mxu0 %v2652
        %2953 = vmatpush1.msra.mxu0 %v2651
        %2954 = vmatprep.subr.mxu0 %v2656
        %2955 = vmatpush1.msra.mxu0 %v2655
        %2956 = vmatprep.subr.mxu0 %v2660
        %2957 = vmatpush1.msra.mxu0 %v2659
        %2958 = vmatprep.subr.mxu0 %v2664
        %2959 = vmatpush1.msra.mxu0 %v2663
        %2960 = vmatprep.subr.mxu0 %v2668
        %2961 = vmatpush1.msra.mxu0 %v2667
        %2962 = vmatprep.subr.mxu0 %v2672
        %2963 = vmatpush1.msra.mxu0 %v2671
        %2964 = vmatprep.subr.mxu0 %v2676
        %2965 = vmatpush1.msra.mxu0 %v2675
        %2966 = vmatprep.subr.mxu0 %v2680
        %2967 = vmatpush1.msra.mxu0 %v2679
        %2968 = vmatprep.subr.mxu0 %v2684
        %2969 = vmatpush1.msra.mxu0 %v2683
        %2970 = vmatprep.subr.mxu0 %v2688
        %2971 = vmatpush1.msra.mxu0 %v2687
        %2972 = vmatprep.subr.mxu0 %v2692
        %2973 = vmatpush1.msra.mxu0 %v2691
        %2974 = vmatprep.subr.mxu0 %v2696
        %2975 = vmatpush1.msra.mxu0 %v2695
        %2976 = vmatprep.subr.mxu0 %v2700
        %2977 = vmatpush1.msra.mxu0 %v2699
        %2978 = vmatprep.subr.mxu0 %v2704
        %2979 = vmatpush1.msra.mxu0 %v2703
        %2980 = vmatprep.subr.mxu0 %v2708
        %2981 = vmatpush1.msra.mxu0 %v2707
        %2982 = vmatprep.subr.mxu0 %v2712
        %2983 = vmatpush1.msra.mxu0 %v2711
        %2984 = vmatprep.subr.mxu0 %v2716
        %2985 = vmatpush1.msra.mxu0 %v2715
        %2986 = vmatprep.subr.mxu0 %v2720
        %2987 = vmatpush1.msra.mxu0 %v2719
        %2988 = vmatprep.mubr.f32.mxu0 %v1252
        %2989 = vmatmul.mubr.f32.gmra.mrb[0].mxu0 %v1251
        %v2990 = vpop.f32.mrb[0].mxu0
        %v2991 = vadd.f32 %v2812, %v2990
        %v2992 = vpop.f32.mrb[0].mxu0
        %v2993 = vadd.f32 %v2814, %v2992
        %2994 = vmatprep.mubr.f32.mxu0 %v1260
        %2995 = vmatmul.mubr.f32.gmra.mrb[0].mxu0 %v1259
        %v2996 = vpop.f32.mrb[0].mxu0
        %v2997 = vadd.f32 %v2818, %v2996
        %v2998 = vpop.f32.mrb[0].mxu0
        %v2999 = vadd.f32 %v2820, %v2998
        %3000 = vmatprep.mubr.f32.mxu0 %v1268
        %3001 = vmatmul.mubr.f32.gmra.mrb[0].mxu0 %v1267
        %v3002 = vpop.f32.mrb[0].mxu0
        %v3003 = vadd.f32 %v2824, %v3002
        %v3004 = vpop.f32.mrb[0].mxu0
        %v3005 = vadd.f32 %v2826, %v3004
        %3006 = vmatprep.mubr.f32.mxu0 %v1276
        %3007 = vmatmul.mubr.f32.gmra.mrb[0].mxu0 %v1275
        %v3008 = vpop.f32.mrb[0].mxu0
        %v3009 = vadd.f32 %v2830, %v3008
        %v3010 = vpop.f32.mrb[0].mxu0
        %v3011 = vadd.f32 %v2832, %v3010
        %3012 = vmatprep.mubr.f32.mxu0 %v1284
        %3013 = vmatmul.mubr.f32.gmra.mrb[0].mxu0 %v1283
        %v3014 = vpop.f32.mrb[0].mxu0
        %v3015 = vadd.f32 %v2836, %v3014
        %v3016 = vpop.f32.mrb[0].mxu0
        %v3017 = vadd.f32 %v2838, %v3016
        %3018 = vmatprep.mubr.f32.mxu0 %v1292
        %3019 = vmatmul.mubr.f32.gmra.mrb[0].mxu0 %v1291
        %v3020 = vpop.f32.mrb[0].mxu0
        %v3021 = vadd.f32 %v2842, %v3020
        %v3022 = vpop.f32.mrb[0].mxu0
        %v3023 = vadd.f32 %v2844, %v3022
        %3024 = vmatprep.mubr.f32.mxu0 %v1300
        %3025 = vmatmul.mubr.f32.gmra.mrb[0].mxu0 %v1299
        %v3026 = vpop.f32.mrb[0].mxu0
        %v3027 = vadd.f32 %v2848, %v3026
        %v3028 = vpop.f32.mrb[0].mxu0
        %v3029 = vadd.f32 %v2850, %v3028
        %3030 = vmatprep.mubr.f32.mxu0 %v1308
        %3031 = vmatmul.mubr.f32.gmra.mrb[0].mxu0 %v1307
        %v3032 = vpop.f32.mrb[0].mxu0
        %v3033 = vadd.f32 %v2854, %v3032
        %v3034 = vpop.f32.mrb[0].mxu0
        %v3035 = vadd.f32 %v2856, %v3034
        %3036 = vmatprep.mubr.f32.mxu0 %v1316
        %3037 = vmatmul.mubr.f32.gmra.mrb[0].mxu0 %v1315
        %v3038 = vpop.f32.mrb[0].mxu0
        %v3039 = vadd.f32 %v2860, %v3038
        %v3040 = vpop.f32.mrb[0].mxu0
        %v3041 = vadd.f32 %v2862, %v3040
        %3042 = vmatprep.mubr.f32.mxu0 %v1324
        %3043 = vmatmul.mubr.f32.gmra.mrb[0].mxu0 %v1323
        %v3044 = vpop.f32.mrb[0].mxu0
        %v3045 = vadd.f32 %v2866, %v3044
        %v3046 = vpop.f32.mrb[0].mxu0
        %v3047 = vadd.f32 %v2868, %v3046
        %3048 = vmatprep.mubr.f32.mxu0 %v1332
        %3049 = vmatmul.mubr.f32.gmra.mrb[0].mxu0 %v1331
        %v3050 = vpop.f32.mrb[0].mxu0
        %v3051 = vadd.f32 %v2872, %v3050
        %v3052 = vpop.f32.mrb[0].mxu0
        %v3053 = vadd.f32 %v2874, %v3052
        %3054 = vmatprep.mubr.f32.mxu0 %v1340
        %3055 = vmatmul.mubr.f32.gmra.mrb[0].mxu0 %v1339
        %v3056 = vpop.f32.mrb[0].mxu0
        %v3057 = vadd.f32 %v2878, %v3056
        %v3058 = vpop.f32.mrb[0].mxu0
        %v3059 = vadd.f32 %v2880, %v3058
        %3060 = vmatprep.mubr.f32.mxu0 %v1348
        %3061 = vmatmul.mubr.f32.gmra.mrb[0].mxu0 %v1347
        %v3062 = vpop.f32.mrb[0].mxu0
        %v3063 = vadd.f32 %v2884, %v3062
        %v3064 = vpop.f32.mrb[0].mxu0
        %v3065 = vadd.f32 %v2886, %v3064
        %3066 = vmatprep.mubr.f32.mxu0 %v1356
        %3067 = vmatmul.mubr.f32.gmra.mrb[0].mxu0 %v1355
        %v3068 = vpop.f32.mrb[0].mxu0
        %v3069 = vadd.f32 %v2890, %v3068
        %v3070 = vpop.f32.mrb[0].mxu0
        %v3071 = vadd.f32 %v2892, %v3070
        %3072 = vmatprep.mubr.f32.mxu0 %v1364
        %3073 = vmatmul.mubr.f32.gmra.mrb[0].mxu0 %v1363
        %v3074 = vpop.f32.mrb[0].mxu0
        %v3075 = vadd.f32 %v2896, %v3074
        %v3076 = vpop.f32.mrb[0].mxu0
        %v3077 = vadd.f32 %v2898, %v3076
        %3078 = vmatprep.mubr.f32.mxu0 %v1372
        %3079 = vmatmul.mubr.f32.gmra.mrb[0].mxu0 %v1371
        %v3080 = vpop.f32.mrb[0].mxu0
        %v3081 = vadd.f32 %v2902, %v3080
        %v3082 = vpop.f32.mrb[0].mxu0
        %v3083 = vadd.f32 %v2904, %v3082
        %3084 = vmatprep.mubr.f32.mxu0 %v1380
        %3085 = vmatmul.mubr.f32.gmra.mrb[0].mxu0 %v1379
        %v3086 = vpop.f32.mrb[0].mxu0
        %v3087 = vadd.f32 %v2908, %v3086
        %v3088 = vpop.f32.mrb[0].mxu0
        %v3089 = vadd.f32 %v2910, %v3088
        %3090 = vmatprep.mubr.f32.mxu0 %v1388
        %3091 = vmatmul.mubr.f32.gmra.mrb[0].mxu0 %v1387
        %v3092 = vpop.f32.mrb[0].mxu0
        %v3093 = vadd.f32 %v2914, %v3092
        %v3094 = vpop.f32.mrb[0].mxu0
        %v3095 = vadd.f32 %v2916, %v3094
        %3096 = vmatprep.mubr.f32.mxu0 %v1396
        %3097 = vmatmul.mubr.f32.gmra.mrb[0].mxu0 %v1395
        %v3098 = vpop.f32.mrb[0].mxu0
        %v3099 = vadd.f32 %v2920, %v3098
        %v3100 = vpop.f32.mrb[0].mxu0
        %v3101 = vadd.f32 %v2922, %v3100
        %3102 = vdwg.mxu0
        %3103 = vmatprep.subr.mxu0 %v2470
        %3104 = vmatpush1.msra.mxu0 %v2469
        %3105 = vmatprep.subr.mxu0 %v2474
        %3106 = vmatpush1.msra.mxu0 %v2473
        %3107 = vmatprep.subr.mxu0 %v2478
        %3108 = vmatpush1.msra.mxu0 %v2477
        %3109 = vmatprep.subr.mxu0 %v2482
        %3110 = vmatpush1.msra.mxu0 %v2481
        %3111 = vmatprep.subr.mxu0 %v2486
        %3112 = vmatpush1.msra.mxu0 %v2485
        %3113 = vmatprep.subr.mxu0 %v2490
        %3114 = vmatpush1.msra.mxu0 %v2489
        %3115 = vmatprep.subr.mxu0 %v2494
        %3116 = vmatpush1.msra.mxu0 %v2493
        %3117 = vmatprep.subr.mxu0 %v2498
        %3118 = vmatpush1.msra.mxu0 %v2497
        %3119 = vmatprep.subr.mxu0 %v2502
        %3120 = vmatpush1.msra.mxu0 %v2501
        %3121 = vmatprep.subr.mxu0 %v2506
        %3122 = vmatpush1.msra.mxu0 %v2505
        %3123 = vmatprep.subr.mxu0 %v2510
        %3124 = vmatpush1.msra.mxu0 %v2509
        %3125 = vmatprep.subr.mxu0 %v2514
        %3126 = vmatpush1.msra.mxu0 %v2513
        %3127 = vmatprep.subr.mxu0 %v2518
        %3128 = vmatpush1.msra.mxu0 %v2517
        %3129 = vmatprep.subr.mxu0 %v2522
        %3130 = vmatpush1.msra.mxu0 %v2521
        %3131 = vmatprep.subr.mxu0 %v2526
        %3132 = vmatpush1.msra.mxu0 %v2525
        %3133 = vmatprep.subr.mxu0 %v2530
        %3134 = vmatpush1.msra.mxu0 %v2529
        %3135 = vmatprep.subr.mxu0 %v2534
        %3136 = vmatpush1.msra.mxu0 %v2533
        %3137 = vmatprep.subr.mxu0 %v2538
        %3138 = vmatpush1.msra.mxu0 %v2537
        %3139 = vmatprep.subr.mxu0 %v2542
        %3140 = vmatpush1.msra.mxu0 %v2541
        %3141 = vmatprep.subr.mxu0 %v2546
        %3142 = vmatpush1.msra.mxu0 %v2545
        %3143 = vmatprep.subr.mxu0 %v2550
        %3144 = vmatpush1.msra.mxu0 %v2549
        %3145 = vmatprep.subr.mxu0 %v2554
        %3146 = vmatpush1.msra.mxu0 %v2553
        %3147 = vmatprep.subr.mxu0 %v2558
        %3148 = vmatpush1.msra.mxu0 %v2557
        %3149 = vmatprep.subr.mxu0 %v2562
        %3150 = vmatpush1.msra.mxu0 %v2561
        %3151 = vmatprep.subr.mxu0 %v2566
        %3152 = vmatpush1.msra.mxu0 %v2565
        %3153 = vmatprep.subr.mxu0 %v2570
        %3154 = vmatpush1.msra.mxu0 %v2569
        %3155 = vmatprep.subr.mxu0 %v2574
        %3156 = vmatpush1.msra.mxu0 %v2573
        %3157 = vmatprep.subr.mxu0 %v2578
        %3158 = vmatpush1.msra.mxu0 %v2577
        %3159 = vmatprep.subr.mxu0 %v2582
        %3160 = vmatpush1.msra.mxu0 %v2581
        %3161 = vmatprep.subr.mxu0 %v2586
        %3162 = vmatpush1.msra.mxu0 %v2585
        %3163 = vmatprep.subr.mxu0 %v2590
        %3164 = vmatpush1.msra.mxu0 %v2589
        %3165 = vmatprep.subr.mxu0 %v2594
        %3166 = vmatpush1.msra.mxu0 %v2593
        %3167 = vmatprep.mubr.f32.mxu0 %v1250
        %3168 = vmatmul.mubr.f32.gmra.mrb[0].mxu0 %v1249
        %v3169 = vpop.f32.mrb[0].mxu0
        %v3170 = vadd.f32 %v2736, %v3169
        %v3171 = vpop.f32.mrb[0].mxu0
        %v3172 = vadd.f32 %v2740, %v3171
        %3173 = vmatprep.mubr.f32.mxu0 %v1258
        %3174 = vmatmul.mubr.f32.gmra.mrb[0].mxu0 %v1257
        %v3175 = vpop.f32.mrb[0].mxu0
        %v3176 = vadd.f32 %v2736, %v3175
        %v3177 = vpop.f32.mrb[0].mxu0
        %v3178 = vadd.f32 %v2740, %v3177
        %3179 = vmatprep.mubr.f32.mxu0 %v1266
        %3180 = vmatmul.mubr.f32.gmra.mrb[0].mxu0 %v1265
        %v3181 = vpop.f32.mrb[0].mxu0
        %v3182 = vadd.f32 %v2736, %v3181
        %v3183 = vpop.f32.mrb[0].mxu0
        %v3184 = vadd.f32 %v2740, %v3183
        %3185 = vmatprep.mubr.f32.mxu0 %v1274
        %3186 = vmatmul.mubr.f32.gmra.mrb[0].mxu0 %v1273
        %v3187 = vpop.f32.mrb[0].mxu0
        %v3188 = vadd.f32 %v2736, %v3187
        %v3189 = vpop.f32.mrb[0].mxu0
        %v3190 = vadd.f32 %v2740, %v3189
        %3191 = vmatprep.mubr.f32.mxu0 %v1282
        %3192 = vmatmul.mubr.f32.gmra.mrb[0].mxu0 %v1281
        %v3193 = vpop.f32.mrb[0].mxu0
        %v3194 = vadd.f32 %v2736, %v3193
        %v3195 = vpop.f32.mrb[0].mxu0
        %v3196 = vadd.f32 %v2740, %v3195
        %3197 = vmatprep.mubr.f32.mxu0 %v1290
        %3198 = vmatmul.mubr.f32.gmra.mrb[0].mxu0 %v1289
        %v3199 = vpop.f32.mrb[0].mxu0
        %v3200 = vadd.f32 %v2736, %v3199
        %v3201 = vpop.f32.mrb[0].mxu0
        %v3202 = vadd.f32 %v2740, %v3201
        %3203 = vmatprep.mubr.f32.mxu0 %v1298
        %3204 = vmatmul.mubr.f32.gmra.mrb[0].mxu0 %v1297
        %v3205 = vpop.f32.mrb[0].mxu0
        %v3206 = vadd.f32 %v2736, %v3205
        %v3207 = vpop.f32.mrb[0].mxu0
        %v3208 = vadd.f32 %v2740, %v3207
        %3209 = vmatprep.mubr.f32.mxu0 %v1306
        %3210 = vmatmul.mubr.f32.gmra.mrb[0].mxu0 %v1305
        %v3211 = vpop.f32.mrb[0].mxu0
        %v3212 = vadd.f32 %v2736, %v3211
        %v3213 = vpop.f32.mrb[0].mxu0
        %v3214 = vadd.f32 %v2740, %v3213
        %3215 = vmatprep.mubr.f32.mxu0 %v1314
        %3216 = vmatmul.mubr.f32.gmra.mrb[0].mxu0 %v1313
        %v3217 = vpop.f32.mrb[0].mxu0
        %v3218 = vadd.f32 %v2736, %v3217
        %v3219 = vpop.f32.mrb[0].mxu0
        %v3220 = vadd.f32 %v2740, %v3219
        %3221 = vmatprep.mubr.f32.mxu0 %v1322
        %3222 = vmatmul.mubr.f32.gmra.mrb[0].mxu0 %v1321
        %v3223 = vpop.f32.mrb[0].mxu0
        %v3224 = vadd.f32 %v2736, %v3223
        %v3225 = vpop.f32.mrb[0].mxu0
        %v3226 = vadd.f32 %v2740, %v3225
        %3227 = vmatprep.mubr.f32.mxu0 %v1330
        %3228 = vmatmul.mubr.f32.gmra.mrb[0].mxu0 %v1329
        %v3229 = vpop.f32.mrb[0].mxu0
        %v3230 = vadd.f32 %v2736, %v3229
        %v3231 = vpop.f32.mrb[0].mxu0
        %v3232 = vadd.f32 %v2740, %v3231
        %3233 = vmatprep.mubr.f32.mxu0 %v1338
        %3234 = vmatmul.mubr.f32.gmra.mrb[0].mxu0 %v1337
        %v3235 = vpop.f32.mrb[0].mxu0
        %v3236 = vadd.f32 %v2736, %v3235
        %v3237 = vpop.f32.mrb[0].mxu0
        %v3238 = vadd.f32 %v2740, %v3237
        %3239 = vmatprep.mubr.f32.mxu0 %v1346
        %3240 = vmatmul.mubr.f32.gmra.mrb[0].mxu0 %v1345
        %v3241 = vpop.f32.mrb[0].mxu0
        %v3242 = vadd.f32 %v2736, %v3241
        %v3243 = vpop.f32.mrb[0].mxu0
        %v3244 = vadd.f32 %v2740, %v3243
        %3245 = vmatprep.mubr.f32.mxu0 %v1354
        %3246 = vmatmul.mubr.f32.gmra.mrb[0].mxu0 %v1353
        %v3247 = vpop.f32.mrb[0].mxu0
        %v3248 = vadd.f32 %v2736, %v3247
        %v3249 = vpop.f32.mrb[0].mxu0
        %v3250 = vadd.f32 %v2740, %v3249
        %3251 = vmatprep.mubr.f32.mxu0 %v1362
        %3252 = vmatmul.mubr.f32.gmra.mrb[0].mxu0 %v1361
        %v3253 = vpop.f32.mrb[0].mxu0
        %v3254 = vadd.f32 %v2736, %v3253
        %v3255 = vpop.f32.mrb[0].mxu0
        %v3256 = vadd.f32 %v2740, %v3255
        %3257 = vmatprep.mubr.f32.mxu0 %v1370
        %3258 = vmatmul.mubr.f32.gmra.mrb[0].mxu0 %v1369
        %v3259 = vpop.f32.mrb[0].mxu0
        %v3260 = vadd.f32 %v2736, %v3259
        %v3261 = vpop.f32.mrb[0].mxu0
        %v3262 = vadd.f32 %v2740, %v3261
        %3263 = vmatprep.mubr.f32.mxu0 %v1378
        %3264 = vmatmul.mubr.f32.gmra.mrb[0].mxu0 %v1377
        %v3265 = vpop.f32.mrb[0].mxu0
        %v3266 = vadd.f32 %v2736, %v3265
        %v3267 = vpop.f32.mrb[0].mxu0
        %v3268 = vadd.f32 %v2740, %v3267
        %3269 = vmatprep.mubr.f32.mxu0 %v1386
        %3270 = vmatmul.mubr.f32.gmra.mrb[0].mxu0 %v1385
        %v3271 = vpop.f32.mrb[0].mxu0
        %v3272 = vadd.f32 %v2736, %v3271
        %v3273 = vpop.f32.mrb[0].mxu0
        %v3274 = vadd.f32 %v2740, %v3273
        %3275 = vmatprep.mubr.f32.mxu0 %v1394
        %3276 = vmatmul.mubr.f32.gmra.mrb[0].mxu0 %v1393
        %v3277 = vpop.f32.mrb[0].mxu0
        %v3278 = vadd.f32 %v2736, %v3277
        %v3279 = vpop.f32.mrb[0].mxu0
        %v3280 = vadd.f32 %v2740, %v3279
        %3281 = vdwg.mxu0
        %3282 = vmatprep.subr.mxu0 %v2598
        %3283 = vmatpush1.msra.mxu0 %v2597
        %3284 = vmatprep.subr.mxu0 %v2602
        %3285 = vmatpush1.msra.mxu0 %v2601
        %3286 = vmatprep.subr.mxu0 %v2606
        %3287 = vmatpush1.msra.mxu0 %v2605
        %3288 = vmatprep.subr.mxu0 %v2610
        %3289 = vmatpush1.msra.mxu0 %v2609
        %3290 = vmatprep.subr.mxu0 %v2614
        %3291 = vmatpush1.msra.mxu0 %v2613
        %3292 = vmatprep.subr.mxu0 %v2618
        %3293 = vmatpush1.msra.mxu0 %v2617
        %3294 = vmatprep.subr.mxu0 %v2622
        %3295 = vmatpush1.msra.mxu0 %v2621
        %3296 = vmatprep.subr.mxu0 %v2626
        %3297 = vmatpush1.msra.mxu0 %v2625
        %3298 = vmatprep.subr.mxu0 %v2630
        %3299 = vmatpush1.msra.mxu0 %v2629
        %3300 = vmatprep.subr.mxu0 %v2634
        %3301 = vmatpush1.msra.mxu0 %v2633
        %3302 = vmatprep.subr.mxu0 %v2638
        %3303 = vmatpush1.msra.mxu0 %v2637
        %3304 = vmatprep.subr.mxu0 %v2642
        %3305 = vmatpush1.msra.mxu0 %v2641
        %3306 = vmatprep.subr.mxu0 %v2646
        %3307 = vmatpush1.msra.mxu0 %v2645
        %3308 = vmatprep.subr.mxu0 %v2650
        %3309 = vmatpush1.msra.mxu0 %v2649
        %3310 = vmatprep.subr.mxu0 %v2654
        %3311 = vmatpush1.msra.mxu0 %v2653
        %3312 = vmatprep.subr.mxu0 %v2658
        %3313 = vmatpush1.msra.mxu0 %v2657
        %3314 = vmatprep.subr.mxu0 %v2662
        %3315 = vmatpush1.msra.mxu0 %v2661
        %3316 = vmatprep.subr.mxu0 %v2666
        %3317 = vmatpush1.msra.mxu0 %v2665
        %3318 = vmatprep.subr.mxu0 %v2670
        %3319 = vmatpush1.msra.mxu0 %v2669
        %3320 = vmatprep.subr.mxu0 %v2674
        %3321 = vmatpush1.msra.mxu0 %v2673
        %3322 = vmatprep.subr.mxu0 %v2678
        %3323 = vmatpush1.msra.mxu0 %v2677
        %3324 = vmatprep.subr.mxu0 %v2682
        %3325 = vmatpush1.msra.mxu0 %v2681
        %3326 = vmatprep.subr.mxu0 %v2686
        %3327 = vmatpush1.msra.mxu0 %v2685
        %3328 = vmatprep.subr.mxu0 %v2690
        %3329 = vmatpush1.msra.mxu0 %v2689
        %3330 = vmatprep.subr.mxu0 %v2694
        %3331 = vmatpush1.msra.mxu0 %v2693
        %3332 = vmatprep.subr.mxu0 %v2698
        %3333 = vmatpush1.msra.mxu0 %v2697
        %3334 = vmatprep.subr.mxu0 %v2702
        %3335 = vmatpush1.msra.mxu0 %v2701
        %3336 = vmatprep.subr.mxu0 %v2706
        %3337 = vmatpush1.msra.mxu0 %v2705
        %3338 = vmatprep.subr.mxu0 %v2710
        %3339 = vmatpush1.msra.mxu0 %v2709
        %3340 = vmatprep.subr.mxu0 %v2714
        %3341 = vmatpush1.msra.mxu0 %v2713
        %3342 = vmatprep.subr.mxu0 %v2718
        %3343 = vmatpush1.msra.mxu0 %v2717
        %3344 = vmatprep.subr.mxu0 %v2722
        %3345 = vmatpush1.msra.mxu0 %v2721
        %3346 = vmatprep.mubr.f32.mxu0 %v1252
        %3347 = vmatmul.mubr.f32.gmra.mrb[0].mxu0 %v1251
        %v3348 = vpop.f32.mrb[0].mxu0
        %v3349 = vadd.f32 %v3170, %v3348
        %v3350 = vpop.f32.mrb[0].mxu0
        %v3351 = vadd.f32 %v3172, %v3350
        %3352 = vmatprep.mubr.f32.mxu0 %v1260
        %3353 = vmatmul.mubr.f32.gmra.mrb[0].mxu0 %v1259
        %v3354 = vpop.f32.mrb[0].mxu0
        %v3355 = vadd.f32 %v3176, %v3354
        %v3356 = vpop.f32.mrb[0].mxu0
        %v3357 = vadd.f32 %v3178, %v3356
        %3358 = vmatprep.mubr.f32.mxu0 %v1268
        %3359 = vmatmul.mubr.f32.gmra.mrb[0].mxu0 %v1267
        %v3360 = vpop.f32.mrb[0].mxu0
        %v3361 = vadd.f32 %v3182, %v3360
        %v3362 = vpop.f32.mrb[0].mxu0
        %v3363 = vadd.f32 %v3184, %v3362
        %3364 = vmatprep.mubr.f32.mxu0 %v1276
        %3365 = vmatmul.mubr.f32.gmra.mrb[0].mxu0 %v1275
        %v3366 = vpop.f32.mrb[0].mxu0
        %v3367 = vadd.f32 %v3188, %v3366
        %v3368 = vpop.f32.mrb[0].mxu0
        %v3369 = vadd.f32 %v3190, %v3368
        %3370 = vmatprep.mubr.f32.mxu0 %v1284
        %3371 = vmatmul.mubr.f32.gmra.mrb[0].mxu0 %v1283
        %v3372 = vpop.f32.mrb[0].mxu0
        %v3373 = vadd.f32 %v3194, %v3372
        %v3374 = vpop.f32.mrb[0].mxu0
        %v3375 = vadd.f32 %v3196, %v3374
        %3376 = vmatprep.mubr.f32.mxu0 %v1292
        %3377 = vmatmul.mubr.f32.gmra.mrb[0].mxu0 %v1291
        %v3378 = vpop.f32.mrb[0].mxu0
        %v3379 = vadd.f32 %v3200, %v3378
        %v3380 = vpop.f32.mrb[0].mxu0
        %v3381 = vadd.f32 %v3202, %v3380
        %3382 = vmatprep.mubr.f32.mxu0 %v1300
        %3383 = vmatmul.mubr.f32.gmra.mrb[0].mxu0 %v1299
        %v3384 = vpop.f32.mrb[0].mxu0
        %v3385 = vadd.f32 %v3206, %v3384
        %v3386 = vpop.f32.mrb[0].mxu0
        %v3387 = vadd.f32 %v3208, %v3386
        %3388 = vmatprep.mubr.f32.mxu0 %v1308
        %3389 = vmatmul.mubr.f32.gmra.mrb[0].mxu0 %v1307
        %v3390 = vpop.f32.mrb[0].mxu0
        %v3391 = vadd.f32 %v3212, %v3390
        %v3392 = vpop.f32.mrb[0].mxu0
        %v3393 = vadd.f32 %v3214, %v3392
        %3394 = vmatprep.mubr.f32.mxu0 %v1316
        %3395 = vmatmul.mubr.f32.gmra.mrb[0].mxu0 %v1315
        %v3396 = vpop.f32.mrb[0].mxu0
        %v3397 = vadd.f32 %v3218, %v3396
        %v3398 = vpop.f32.mrb[0].mxu0
        %v3399 = vadd.f32 %v3220, %v3398
        %3400 = vmatprep.mubr.f32.mxu0 %v1324
        %3401 = vmatmul.mubr.f32.gmra.mrb[0].mxu0 %v1323
        %v3402 = vpop.f32.mrb[0].mxu0
        %v3403 = vadd.f32 %v3224, %v3402
        %v3404 = vpop.f32.mrb[0].mxu0
        %v3405 = vadd.f32 %v3226, %v3404
        %3406 = vmatprep.mubr.f32.mxu0 %v1332
        %3407 = vmatmul.mubr.f32.gmra.mrb[0].mxu0 %v1331
        %v3408 = vpop.f32.mrb[0].mxu0
        %v3409 = vadd.f32 %v3230, %v3408
        %v3410 = vpop.f32.mrb[0].mxu0
        %v3411 = vadd.f32 %v3232, %v3410
        %3412 = vmatprep.mubr.f32.mxu0 %v1340
        %3413 = vmatmul.mubr.f32.gmra.mrb[0].mxu0 %v1339
        %v3414 = vpop.f32.mrb[0].mxu0
        %v3415 = vadd.f32 %v3236, %v3414
        %v3416 = vpop.f32.mrb[0].mxu0
        %v3417 = vadd.f32 %v3238, %v3416
        %3418 = vmatprep.mubr.f32.mxu0 %v1348
        %3419 = vmatmul.mubr.f32.gmra.mrb[0].mxu0 %v1347
        %v3420 = vpop.f32.mrb[0].mxu0
        %v3421 = vadd.f32 %v3242, %v3420
        %v3422 = vpop.f32.mrb[0].mxu0
        %v3423 = vadd.f32 %v3244, %v3422
        %3424 = vmatprep.mubr.f32.mxu0 %v1356
        %3425 = vmatmul.mubr.f32.gmra.mrb[0].mxu0 %v1355
        %v3426 = vpop.f32.mrb[0].mxu0
        %v3427 = vadd.f32 %v3248, %v3426
        %v3428 = vpop.f32.mrb[0].mxu0
        %v3429 = vadd.f32 %v3250, %v3428
        %3430 = vmatprep.mubr.f32.mxu0 %v1364
        %3431 = vmatmul.mubr.f32.gmra.mrb[0].mxu0 %v1363
        %v3432 = vpop.f32.mrb[0].mxu0
        %v3433 = vadd.f32 %v3254, %v3432
        %v3434 = vpop.f32.mrb[0].mxu0
        %v3435 = vadd.f32 %v3256, %v3434
        %3436 = vmatprep.mubr.f32.mxu0 %v1372
        %3437 = vmatmul.mubr.f32.gmra.mrb[0].mxu0 %v1371
        %v3438 = vpop.f32.mrb[0].mxu0
        %v3439 = vadd.f32 %v3260, %v3438
        %v3440 = vpop.f32.mrb[0].mxu0
        %v3441 = vadd.f32 %v3262, %v3440
        %3442 = vmatprep.mubr.f32.mxu0 %v1380
        %3443 = vmatmul.mubr.f32.gmra.mrb[0].mxu0 %v1379
        %v3444 = vpop.f32.mrb[0].mxu0
        %v3445 = vadd.f32 %v3266, %v3444
        %v3446 = vpop.f32.mrb[0].mxu0
        %v3447 = vadd.f32 %v3268, %v3446
        %3448 = vmatprep.mubr.f32.mxu0 %v1388
        %3449 = vmatmul.mubr.f32.gmra.mrb[0].mxu0 %v1387
        %v3450 = vpop.f32.mrb[0].mxu0
        %v3451 = vadd.f32 %v3272, %v3450
        %v3452 = vpop.f32.mrb[0].mxu0
        %v3453 = vadd.f32 %v3274, %v3452
        %3454 = vmatprep.mubr.f32.mxu0 %v1396
        %3455 = vmatmul.mubr.f32.gmra.mrb[0].mxu0 %v1395
        %v3456 = vpop.f32.mrb[0].mxu0
        %v3457 = vadd.f32 %v3278, %v3456
        %v3458 = vpop.f32.mrb[0].mxu0
        %v3459 = vadd.f32 %v3280, %v3458
        %3460 = vdwg.mxu0
        %v3461 = vmax.f32 %v2991, 0.0
        %v3462 = vmax.f32 %v2993, 0.0
        %v3463 = vmax.f32 %v3349, 0.0
        %v3464 = vmax.f32 %v3351, 0.0
        %v3465 = vmax.f32 %v2997, 0.0
        %v3466 = vmax.f32 %v2999, 0.0
        %v3467 = vmax.f32 %v3355, 0.0
        %v3468 = vmax.f32 %v3357, 0.0
        %v3469 = vmax.f32 %v3003, 0.0
        %v3470 = vmax.f32 %v3005, 0.0
        %v3471 = vmax.f32 %v3361, 0.0
        %v3472 = vmax.f32 %v3363, 0.0
        %v3473 = vmax.f32 %v3009, 0.0
        %v3474 = vmax.f32 %v3011, 0.0
        %v3475 = vmax.f32 %v3367, 0.0
        %v3476 = vmax.f32 %v3369, 0.0
        %v3477 = vmax.f32 %v3015, 0.0
        %v3478 = vmax.f32 %v3017, 0.0
        %v3479 = vmax.f32 %v3373, 0.0
        %v3480 = vmax.f32 %v3375, 0.0
        %v3481 = vmax.f32 %v3021, 0.0
        %v3482 = vmax.f32 %v3023, 0.0
        %v3483 = vmax.f32 %v3379, 0.0
        %v3484 = vmax.f32 %v3381, 0.0
        %v3485 = vmax.f32 %v3027, 0.0
        %v3486 = vmax.f32 %v3029, 0.0
        %v3487 = vmax.f32 %v3385, 0.0
        %v3488 = vmax.f32 %v3387, 0.0
        %v3489 = vmax.f32 %v3033, 0.0
        %v3490 = vmax.f32 %v3035, 0.0
        %v3491 = vmax.f32 %v3391, 0.0
        %v3492 = vmax.f32 %v3393, 0.0
        %v3493 = vmax.f32 %v3039, 0.0
        %v3494 = vmax.f32 %v3041, 0.0
        %v3495 = vmax.f32 %v3397, 0.0
        %v3496 = vmax.f32 %v3399, 0.0
        %v3497 = vmax.f32 %v3045, 0.0
        %v3498 = vmax.f32 %v3047, 0.0
        %v3499 = vmax.f32 %v3403, 0.0
        %v3500 = vmax.f32 %v3405, 0.0
        %v3501 = vmax.f32 %v3051, 0.0
        %v3502 = vmax.f32 %v3053, 0.0
        %v3503 = vmax.f32 %v3409, 0.0
        %v3504 = vmax.f32 %v3411, 0.0
        %v3505 = vmax.f32 %v3057, 0.0
        %v3506 = vmax.f32 %v3059, 0.0
        %v3507 = vmax.f32 %v3415, 0.0
        %v3508 = vmax.f32 %v3417, 0.0
        %v3509 = vmax.f32 %v3063, 0.0
        %v3510 = vmax.f32 %v3065, 0.0
        %v3511 = vmax.f32 %v3421, 0.0
        %v3512 = vmax.f32 %v3423, 0.0
        %v3513 = vmax.f32 %v3069, 0.0
        %v3514 = vmax.f32 %v3071, 0.0
        %v3515 = vmax.f32 %v3427, 0.0
        %v3516 = vmax.f32 %v3429, 0.0
        %v3517 = vmax.f32 %v3075, 0.0
        %v3518 = vmax.f32 %v3077, 0.0
        %v3519 = vmax.f32 %v3433, 0.0
        %v3520 = vmax.f32 %v3435, 0.0
        %v3521 = vmax.f32 %v3081, 0.0
        %v3522 = vmax.f32 %v3083, 0.0
        %v3523 = vmax.f32 %v3439, 0.0
        %v3524 = vmax.f32 %v3441, 0.0
        %v3525 = vmax.f32 %v3087, 0.0
        %v3526 = vmax.f32 %v3089, 0.0
        %v3527 = vmax.f32 %v3445, 0.0
        %v3528 = vmax.f32 %v3447, 0.0
        %v3529 = vmax.f32 %v3093, 0.0
        %v3530 = vmax.f32 %v3095, 0.0
        %v3531 = vmax.f32 %v3451, 0.0
        %v3532 = vmax.f32 %v3453, 0.0
        %v3533 = vmax.f32 %v3099, 0.0
        %v3534 = vmax.f32 %v3101, 0.0
        %v3535 = vmax.f32 %v3457, 0.0
        %v3536 = vmax.f32 %v3459, 0.0
        %v3537 = vld [vmem:[#allocation7] sm:$0xff]
        %v3538 = vld [vmem:[#allocation7 + $0x8] sm:$0xff]
        %v3539 = vld [vmem:[#allocation7 + $0x10] sm:$0xff]
        %v3540 = vld [vmem:[#allocation7 + $0x18] sm:$0xff]
        %v3541 = vld [vmem:[#allocation7 + $0x20] sm:$0xff]
        %v3542 = vld [vmem:[#allocation7 + $0x28] sm:$0xff]
        %v3543 = vld [vmem:[#allocation7 + $0x30] sm:$0xff]
        %v3544 = vld [vmem:[#allocation7 + $0x38] sm:$0xff]
        %v3545 = vld [vmem:[#allocation7 + $0x40] sm:$0xff]
        %v3546 = vld [vmem:[#allocation7 + $0x48] sm:$0xff]
        %v3547 = vld [vmem:[#allocation7 + $0x50] sm:$0xff]
        %v3548 = vld [vmem:[#allocation7 + $0x58] sm:$0xff]
        %v3549 = vld [vmem:[#allocation7 + $0x60] sm:$0xff]
        %v3550 = vld [vmem:[#allocation7 + $0x68] sm:$0xff]
        %v3551 = vld [vmem:[#allocation7 + $0x70] sm:$0xff]
        %v3552 = vld [vmem:[#allocation7 + $0x78] sm:$0xff]
        %v3553 = vld [vmem:[#allocation7 + $0x80] sm:$0xff]
        %v3554 = vld [vmem:[#allocation7 + $0x88] sm:$0xff]
        %v3555 = vld [vmem:[#allocation7 + $0x90] sm:$0xff]
        %v3556 = vld [vmem:[#allocation7 + $0x98] sm:$0xff]
        %v3557 = vld [vmem:[#allocation7 + $0xa0] sm:$0xff]
        %v3558 = vld [vmem:[#allocation7 + $0xa8] sm:$0xff]
        %v3559 = vld [vmem:[#allocation7 + $0xb0] sm:$0xff]
        %v3560 = vld [vmem:[#allocation7 + $0xb8] sm:$0xff]
        %v3561 = vld [vmem:[#allocation7 + $0xc0] sm:$0xff]
        %v3562 = vld [vmem:[#allocation7 + $0xc8] sm:$0xff]
        %v3563 = vld [vmem:[#allocation7 + $0xd0] sm:$0xff]
        %v3564 = vld [vmem:[#allocation7 + $0xd8] sm:$0xff]
        %v3565 = vld [vmem:[#allocation7 + $0xe0] sm:$0xff]
        %v3566 = vld [vmem:[#allocation7 + $0xe8] sm:$0xff]
        %v3567 = vld [vmem:[#allocation7 + $0xf0] sm:$0xff]
        %v3568 = vld [vmem:[#allocation7 + $0xf8] sm:$0xff]
        %v3569 = vld [vmem:[#allocation7 + $0x100] sm:$0xff]
        %v3570 = vld [vmem:[#allocation7 + $0x108] sm:$0xff]
        %v3571 = vld [vmem:[#allocation7 + $0x110] sm:$0xff]
        %v3572 = vld [vmem:[#allocation7 + $0x118] sm:$0xff]
        %v3573 = vld [vmem:[#allocation7 + $0x120] sm:$0xff]
        %v3574 = vld [vmem:[#allocation7 + $0x128] sm:$0xff]
        %v3575 = vld [vmem:[#allocation7 + $0x130] sm:$0xff]
        %v3576 = vld [vmem:[#allocation7 + $0x138] sm:$0xff]
        %v3577 = vld [vmem:[#allocation7 + $0x140] sm:$0xff]
        %v3578 = vld [vmem:[#allocation7 + $0x148] sm:$0xff]
        %v3579 = vld [vmem:[#allocation7 + $0x150] sm:$0xff]
        %v3580 = vld [vmem:[#allocation7 + $0x158] sm:$0xff]
        %v3581 = vld [vmem:[#allocation7 + $0x160] sm:$0xff]
        %v3582 = vld [vmem:[#allocation7 + $0x168] sm:$0xff]
        %v3583 = vld [vmem:[#allocation7 + $0x170] sm:$0xff]
        %v3584 = vld [vmem:[#allocation7 + $0x178] sm:$0xff]
        %v3585 = vld [vmem:[#allocation7 + $0x180] sm:$0xff]
        %v3586 = vld [vmem:[#allocation7 + $0x188] sm:$0xff]
        %v3587 = vld [vmem:[#allocation7 + $0x190] sm:$0xff]
        %v3588 = vld [vmem:[#allocation7 + $0x198] sm:$0xff]
        %v3589 = vld [vmem:[#allocation7 + $0x1a0] sm:$0xff]
        %v3590 = vld [vmem:[#allocation7 + $0x1a8] sm:$0xff]
        %v3591 = vld [vmem:[#allocation7 + $0x1b0] sm:$0xff]
        %v3592 = vld [vmem:[#allocation7 + $0x1b8] sm:$0xff]
        %v3593 = vld [vmem:[#allocation7 + $0x1c0] sm:$0xff]
        %v3594 = vld [vmem:[#allocation7 + $0x1c8] sm:$0xff]
        %v3595 = vld [vmem:[#allocation7 + $0x1d0] sm:$0xff]
        %v3596 = vld [vmem:[#allocation7 + $0x1d8] sm:$0xff]
        %v3597 = vld [vmem:[#allocation7 + $0x1e0] sm:$0xff]
        %v3598 = vld [vmem:[#allocation7 + $0x1e8] sm:$0xff]
        %v3599 = vld [vmem:[#allocation7 + $0x1f0] sm:$0xff]
        %v3600 = vld [vmem:[#allocation7 + $0x1f8] sm:$0xff]
        %v3601 = vld [vmem:[#allocation7 + $0x200] sm:$0xff]
        %v3602 = vld [vmem:[#allocation7 + $0x208] sm:$0xff]
        %v3603 = vld [vmem:[#allocation7 + $0x210] sm:$0xff]
        %v3604 = vld [vmem:[#allocation7 + $0x218] sm:$0xff]
        %v3605 = vld [vmem:[#allocation7 + $0x220] sm:$0xff]
        %v3606 = vld [vmem:[#allocation7 + $0x228] sm:$0xff]
        %v3607 = vld [vmem:[#allocation7 + $0x230] sm:$0xff]
        %v3608 = vld [vmem:[#allocation7 + $0x238] sm:$0xff]
        %v3609 = vld [vmem:[#allocation7 + $0x240] sm:$0xff]
        %v3610 = vld [vmem:[#allocation7 + $0x248] sm:$0xff]
        %v3611 = vld [vmem:[#allocation7 + $0x250] sm:$0xff]
        %v3612 = vld [vmem:[#allocation7 + $0x258] sm:$0xff]
        %v3613 = vld [vmem:[#allocation7 + $0x260] sm:$0xff]
        %v3614 = vld [vmem:[#allocation7 + $0x268] sm:$0xff]
        %v3615 = vld [vmem:[#allocation7 + $0x270] sm:$0xff]
        %v3616 = vld [vmem:[#allocation7 + $0x278] sm:$0xff]
        %v3617 = vld [vmem:[#allocation7 + $0x280] sm:$0xff]
        %v3618 = vld [vmem:[#allocation7 + $0x288] sm:$0xff]
        %v3619 = vld [vmem:[#allocation7 + $0x290] sm:$0xff]
        %v3620 = vld [vmem:[#allocation7 + $0x298] sm:$0xff]
        %v3621 = vld [vmem:[#allocation7 + $0x2a0] sm:$0xff]
        %v3622 = vld [vmem:[#allocation7 + $0x2a8] sm:$0xff]
        %v3623 = vld [vmem:[#allocation7 + $0x2b0] sm:$0xff]
        %v3624 = vld [vmem:[#allocation7 + $0x2b8] sm:$0xff]
        %v3625 = vld [vmem:[#allocation7 + $0x2c0] sm:$0xff]
        %v3626 = vld [vmem:[#allocation7 + $0x2c8] sm:$0xff]
        %v3627 = vld [vmem:[#allocation7 + $0x2d0] sm:$0xff]
        %v3628 = vld [vmem:[#allocation7 + $0x2d8] sm:$0xff]
        %v3629 = vld [vmem:[#allocation7 + $0x2e0] sm:$0xff]
        %v3630 = vld [vmem:[#allocation7 + $0x2e8] sm:$0xff]
        %v3631 = vld [vmem:[#allocation7 + $0x2f0] sm:$0xff]
        %v3632 = vld [vmem:[#allocation7 + $0x2f8] sm:$0xff]
        %v3633 = vld [vmem:[#allocation7 + $0x300] sm:$0xff]
        %v3634 = vld [vmem:[#allocation7 + $0x308] sm:$0xff]
        %v3635 = vld [vmem:[#allocation7 + $0x310] sm:$0xff]
        %v3636 = vld [vmem:[#allocation7 + $0x318] sm:$0xff]
        %v3637 = vld [vmem:[#allocation7 + $0x320] sm:$0xff]
        %v3638 = vld [vmem:[#allocation7 + $0x328] sm:$0xff]
        %v3639 = vld [vmem:[#allocation7 + $0x330] sm:$0xff]
        %v3640 = vld [vmem:[#allocation7 + $0x338] sm:$0xff]
        %v3641 = vld [vmem:[#allocation7 + $0x340] sm:$0xff]
        %v3642 = vld [vmem:[#allocation7 + $0x348] sm:$0xff]
        %v3643 = vld [vmem:[#allocation7 + $0x350] sm:$0xff]
        %v3644 = vld [vmem:[#allocation7 + $0x358] sm:$0xff]
        %v3645 = vld [vmem:[#allocation7 + $0x360] sm:$0xff]
        %v3646 = vld [vmem:[#allocation7 + $0x368] sm:$0xff]
        %v3647 = vld [vmem:[#allocation7 + $0x370] sm:$0xff]
        %v3648 = vld [vmem:[#allocation7 + $0x378] sm:$0xff]
        %v3649 = vld [vmem:[#allocation7 + $0x380] sm:$0xff]
        %v3650 = vld [vmem:[#allocation7 + $0x388] sm:$0xff]
        %v3651 = vld [vmem:[#allocation7 + $0x390] sm:$0xff]
        %v3652 = vld [vmem:[#allocation7 + $0x398] sm:$0xff]
        %v3653 = vld [vmem:[#allocation7 + $0x3a0] sm:$0xff]
        %v3654 = vld [vmem:[#allocation7 + $0x3a8] sm:$0xff]
        %v3655 = vld [vmem:[#allocation7 + $0x3b0] sm:$0xff]
        %v3656 = vld [vmem:[#allocation7 + $0x3b8] sm:$0xff]
        %v3657 = vld [vmem:[#allocation7 + $0x3c0] sm:$0xff]
        %v3658 = vld [vmem:[#allocation7 + $0x3c8] sm:$0xff]
        %v3659 = vld [vmem:[#allocation7 + $0x3d0] sm:$0xff]
        %v3660 = vld [vmem:[#allocation7 + $0x3d8] sm:$0xff]
        %v3661 = vld [vmem:[#allocation7 + $0x3e0] sm:$0xff]
        %v3662 = vld [vmem:[#allocation7 + $0x3e8] sm:$0xff]
        %v3663 = vld [vmem:[#allocation7 + $0x3f0] sm:$0xff]
        %v3664 = vld [vmem:[#allocation7 + $0x3f8] sm:$0xff]
        %v3665 = vld [vmem:[%s8] sm:$0x1]
        %v3667 = vlaneseq
        %v3668 = vshrl.u32 %v3667, 7
        %v3669 = vsub.s32 0, %v3668
        %v3670 = vrot.slane %v3665, %v3669
        %3672 = vmatprep.subr.mxu0 0.0
        %3673 = vmatpush1.msra.mxu0 %v3537
        %3674 = vmatprep.subr.mxu0 0.0
        %3675 = vmatpush1.msra.mxu0 %v3538
        %3676 = vmatprep.subr.mxu0 0.0
        %3677 = vmatpush1.msra.mxu0 %v3539
        %3678 = vmatprep.subr.mxu0 0.0
        %3679 = vmatpush1.msra.mxu0 %v3540
        %3680 = vmatprep.subr.mxu0 0.0
        %3681 = vmatpush1.msra.mxu0 %v3541
        %3682 = vmatprep.subr.mxu0 0.0
        %3683 = vmatpush1.msra.mxu0 %v3542
        %3684 = vmatprep.subr.mxu0 0.0
        %3685 = vmatpush1.msra.mxu0 %v3543
        %3686 = vmatprep.subr.mxu0 0.0
        %3687 = vmatpush1.msra.mxu0 %v3544
        %3688 = vmatprep.subr.mxu0 0.0
        %3689 = vmatpush1.msra.mxu0 %v3545
        %3690 = vmatprep.subr.mxu0 0.0
        %3691 = vmatpush1.msra.mxu0 %v3546
        %3692 = vmatprep.subr.mxu0 0.0
        %3693 = vmatpush1.msra.mxu0 %v3547
        %3694 = vmatprep.subr.mxu0 0.0
        %3695 = vmatpush1.msra.mxu0 %v3548
        %3696 = vmatprep.subr.mxu0 0.0
        %3697 = vmatpush1.msra.mxu0 %v3549
        %3698 = vmatprep.subr.mxu0 0.0
        %3699 = vmatpush1.msra.mxu0 %v3550
        %3700 = vmatprep.subr.mxu0 0.0
        %3701 = vmatpush1.msra.mxu0 %v3551
        %3702 = vmatprep.subr.mxu0 0.0
        %3703 = vmatpush1.msra.mxu0 %v3552
        %3704 = vmatprep.subr.mxu0 0.0
        %3705 = vmatpush1.msra.mxu0 %v3553
        %3706 = vmatprep.subr.mxu0 0.0
        %3707 = vmatpush1.msra.mxu0 %v3554
        %3708 = vmatprep.subr.mxu0 0.0
        %3709 = vmatpush1.msra.mxu0 %v3555
        %3710 = vmatprep.subr.mxu0 0.0
        %3711 = vmatpush1.msra.mxu0 %v3556
        %3712 = vmatprep.subr.mxu0 0.0
        %3713 = vmatpush1.msra.mxu0 %v3557
        %3714 = vmatprep.subr.mxu0 0.0
        %3715 = vmatpush1.msra.mxu0 %v3558
        %3716 = vmatprep.subr.mxu0 0.0
        %3717 = vmatpush1.msra.mxu0 %v3559
        %3718 = vmatprep.subr.mxu0 0.0
        %3719 = vmatpush1.msra.mxu0 %v3560
        %3720 = vmatprep.subr.mxu0 0.0
        %3721 = vmatpush1.msra.mxu0 %v3561
        %3722 = vmatprep.subr.mxu0 0.0
        %3723 = vmatpush1.msra.mxu0 %v3562
        %3724 = vmatprep.subr.mxu0 0.0
        %3725 = vmatpush1.msra.mxu0 %v3563
        %3726 = vmatprep.subr.mxu0 0.0
        %3727 = vmatpush1.msra.mxu0 %v3564
        %3728 = vmatprep.subr.mxu0 0.0
        %3729 = vmatpush1.msra.mxu0 %v3565
        %3730 = vmatprep.subr.mxu0 0.0
        %3731 = vmatpush1.msra.mxu0 %v3566
        %3732 = vmatprep.subr.mxu0 0.0
        %3733 = vmatpush1.msra.mxu0 %v3567
        %3734 = vmatprep.subr.mxu0 0.0
        %3735 = vmatpush1.msra.mxu0 %v3568
        %3736 = vmatprep.mubr.f32.mxu0 %v2392
        %3737 = vmatmul.mubr.f32.gmra.mrb[0].mxu0 %v2391
        %v3738 = vpop.f32.mrb[0].mxu0
        %v3739 = vadd.f32 %v3670, %v3738
        %v3740 = vpop.f32.mrb[0].mxu0
        %3741 = vmatprep.mubr.f32.mxu0 %v2396
        %3742 = vmatmul.mubr.f32.gmra.mrb[0].mxu0 %v2395
        %v3743 = vpop.f32.mrb[0].mxu0
        %v3744 = vadd.f32 %v3670, %v3743
        %v3745 = vpop.f32.mrb[0].mxu0
        %3746 = vmatprep.mubr.f32.mxu0 %v2400
        %3747 = vmatmul.mubr.f32.gmra.mrb[0].mxu0 %v2399
        %v3748 = vpop.f32.mrb[0].mxu0
        %v3749 = vadd.f32 %v3670, %v3748
        %v3750 = vpop.f32.mrb[0].mxu0
        %3751 = vmatprep.mubr.f32.mxu0 %v2404
        %3752 = vmatmul.mubr.f32.gmra.mrb[0].mxu0 %v2403
        %v3753 = vpop.f32.mrb[0].mxu0
        %v3754 = vadd.f32 %v3670, %v3753
        %v3755 = vpop.f32.mrb[0].mxu0
        %3756 = vmatprep.mubr.f32.mxu0 %v2408
        %3757 = vmatmul.mubr.f32.gmra.mrb[0].mxu0 %v2407
        %v3758 = vpop.f32.mrb[0].mxu0
        %v3759 = vadd.f32 %v3670, %v3758
        %v3760 = vpop.f32.mrb[0].mxu0
        %3761 = vmatprep.mubr.f32.mxu0 %v2412
        %3762 = vmatmul.mubr.f32.gmra.mrb[0].mxu0 %v2411
        %v3763 = vpop.f32.mrb[0].mxu0
        %v3764 = vadd.f32 %v3670, %v3763
        %v3765 = vpop.f32.mrb[0].mxu0
        %3766 = vmatprep.mubr.f32.mxu0 %v2416
        %3767 = vmatmul.mubr.f32.gmra.mrb[0].mxu0 %v2415
        %v3768 = vpop.f32.mrb[0].mxu0
        %v3769 = vadd.f32 %v3670, %v3768
        %v3770 = vpop.f32.mrb[0].mxu0
        %3771 = vmatprep.mubr.f32.mxu0 %v2420
        %3772 = vmatmul.mubr.f32.gmra.mrb[0].mxu0 %v2419
        %v3773 = vpop.f32.mrb[0].mxu0
        %v3774 = vadd.f32 %v3670, %v3773
        %v3775 = vpop.f32.mrb[0].mxu0
        %3776 = vmatprep.mubr.f32.mxu0 %v2424
        %3777 = vmatmul.mubr.f32.gmra.mrb[0].mxu0 %v2423
        %v3778 = vpop.f32.mrb[0].mxu0
        %v3779 = vadd.f32 %v3670, %v3778
        %v3780 = vpop.f32.mrb[0].mxu0
        %3781 = vmatprep.mubr.f32.mxu0 %v2428
        %3782 = vmatmul.mubr.f32.gmra.mrb[0].mxu0 %v2427
        %v3783 = vpop.f32.mrb[0].mxu0
        %v3784 = vadd.f32 %v3670, %v3783
        %v3785 = vpop.f32.mrb[0].mxu0
        %3786 = vmatprep.mubr.f32.mxu0 %v2432
        %3787 = vmatmul.mubr.f32.gmra.mrb[0].mxu0 %v2431
        %v3788 = vpop.f32.mrb[0].mxu0
        %v3789 = vadd.f32 %v3670, %v3788
        %v3790 = vpop.f32.mrb[0].mxu0
        %3791 = vmatprep.mubr.f32.mxu0 %v2436
        %3792 = vmatmul.mubr.f32.gmra.mrb[0].mxu0 %v2435
        %v3793 = vpop.f32.mrb[0].mxu0
        %v3794 = vadd.f32 %v3670, %v3793
        %v3795 = vpop.f32.mrb[0].mxu0
        %3796 = vmatprep.mubr.f32.mxu0 %v2440
        %3797 = vmatmul.mubr.f32.gmra.mrb[0].mxu0 %v2439
        %v3798 = vpop.f32.mrb[0].mxu0
        %v3799 = vadd.f32 %v3670, %v3798
        %v3800 = vpop.f32.mrb[0].mxu0
        %3801 = vmatprep.mubr.f32.mxu0 %v2444
        %3802 = vmatmul.mubr.f32.gmra.mrb[0].mxu0 %v2443
        %v3803 = vpop.f32.mrb[0].mxu0
        %v3804 = vadd.f32 %v3670, %v3803
        %v3805 = vpop.f32.mrb[0].mxu0
        %3806 = vmatprep.mubr.f32.mxu0 %v2448
        %3807 = vmatmul.mubr.f32.gmra.mrb[0].mxu0 %v2447
        %v3808 = vpop.f32.mrb[0].mxu0
        %v3809 = vadd.f32 %v3670, %v3808
        %v3810 = vpop.f32.mrb[0].mxu0
        %3811 = vmatprep.mubr.f32.mxu0 %v2452
        %3812 = vmatmul.mubr.f32.gmra.mrb[0].mxu0 %v2451
        %v3813 = vpop.f32.mrb[0].mxu0
        %v3814 = vadd.f32 %v3670, %v3813
        %v3815 = vpop.f32.mrb[0].mxu0
        %3816 = vmatprep.mubr.f32.mxu0 %v2456
        %3817 = vmatmul.mubr.f32.gmra.mrb[0].mxu0 %v2455
        %v3818 = vpop.f32.mrb[0].mxu0
        %v3819 = vadd.f32 %v3670, %v3818
        %v3820 = vpop.f32.mrb[0].mxu0
        %3821 = vmatprep.mubr.f32.mxu0 %v2460
        %3822 = vmatmul.mubr.f32.gmra.mrb[0].mxu0 %v2459
        %v3823 = vpop.f32.mrb[0].mxu0
        %v3824 = vadd.f32 %v3670, %v3823
        %v3825 = vpop.f32.mrb[0].mxu0
        %3826 = vmatprep.mubr.f32.mxu0 %v2464
        %3827 = vmatmul.mubr.f32.gmra.mrb[0].mxu0 %v2463
        %v3828 = vpop.f32.mrb[0].mxu0
        %v3829 = vadd.f32 %v3670, %v3828
        %v3830 = vpop.f32.mrb[0].mxu0
        %3831 = vdwg.mxu0
        %3832 = vmatprep.subr.mxu0 0.0
        %3833 = vmatpush1.msra.mxu0 %v3569
        %3834 = vmatprep.subr.mxu0 0.0
        %3835 = vmatpush1.msra.mxu0 %v3570
        %3836 = vmatprep.subr.mxu0 0.0
        %3837 = vmatpush1.msra.mxu0 %v3571
        %3838 = vmatprep.subr.mxu0 0.0
        %3839 = vmatpush1.msra.mxu0 %v3572
        %3840 = vmatprep.subr.mxu0 0.0
        %3841 = vmatpush1.msra.mxu0 %v3573
        %3842 = vmatprep.subr.mxu0 0.0
        %3843 = vmatpush1.msra.mxu0 %v3574
        %3844 = vmatprep.subr.mxu0 0.0
        %3845 = vmatpush1.msra.mxu0 %v3575
        %3846 = vmatprep.subr.mxu0 0.0
        %3847 = vmatpush1.msra.mxu0 %v3576
        %3848 = vmatprep.subr.mxu0 0.0
        %3849 = vmatpush1.msra.mxu0 %v3577
        %3850 = vmatprep.subr.mxu0 0.0
        %3851 = vmatpush1.msra.mxu0 %v3578
        %3852 = vmatprep.subr.mxu0 0.0
        %3853 = vmatpush1.msra.mxu0 %v3579
        %3854 = vmatprep.subr.mxu0 0.0
        %3855 = vmatpush1.msra.mxu0 %v3580
        %3856 = vmatprep.subr.mxu0 0.0
        %3857 = vmatpush1.msra.mxu0 %v3581
        %3858 = vmatprep.subr.mxu0 0.0
        %3859 = vmatpush1.msra.mxu0 %v3582
        %3860 = vmatprep.subr.mxu0 0.0
        %3861 = vmatpush1.msra.mxu0 %v3583
        %3862 = vmatprep.subr.mxu0 0.0
        %3863 = vmatpush1.msra.mxu0 %v3584
        %3864 = vmatprep.subr.mxu0 0.0
        %3865 = vmatpush1.msra.mxu0 %v3585
        %3866 = vmatprep.subr.mxu0 0.0
        %3867 = vmatpush1.msra.mxu0 %v3586
        %3868 = vmatprep.subr.mxu0 0.0
        %3869 = vmatpush1.msra.mxu0 %v3587
        %3870 = vmatprep.subr.mxu0 0.0
        %3871 = vmatpush1.msra.mxu0 %v3588
        %3872 = vmatprep.subr.mxu0 0.0
        %3873 = vmatpush1.msra.mxu0 %v3589
        %3874 = vmatprep.subr.mxu0 0.0
        %3875 = vmatpush1.msra.mxu0 %v3590
        %3876 = vmatprep.subr.mxu0 0.0
        %3877 = vmatpush1.msra.mxu0 %v3591
        %3878 = vmatprep.subr.mxu0 0.0
        %3879 = vmatpush1.msra.mxu0 %v3592
        %3880 = vmatprep.subr.mxu0 0.0
        %3881 = vmatpush1.msra.mxu0 %v3593
        %3882 = vmatprep.subr.mxu0 0.0
        %3883 = vmatpush1.msra.mxu0 %v3594
        %3884 = vmatprep.subr.mxu0 0.0
        %3885 = vmatpush1.msra.mxu0 %v3595
        %3886 = vmatprep.subr.mxu0 0.0
        %3887 = vmatpush1.msra.mxu0 %v3596
        %3888 = vmatprep.subr.mxu0 0.0
        %3889 = vmatpush1.msra.mxu0 %v3597
        %3890 = vmatprep.subr.mxu0 0.0
        %3891 = vmatpush1.msra.mxu0 %v3598
        %3892 = vmatprep.subr.mxu0 0.0
        %3893 = vmatpush1.msra.mxu0 %v3599
        %3894 = vmatprep.subr.mxu0 0.0
        %3895 = vmatpush1.msra.mxu0 %v3600
        %3896 = vmatprep.mubr.f32.mxu0 %v2394
        %3897 = vmatmul.mubr.f32.gmra.mrb[0].mxu0 %v2393
        %v3898 = vpop.f32.mrb[0].mxu0
        %v3899 = vadd.f32 %v3739, %v3898
        %v3900 = vpop.f32.mrb[0].mxu0
        %3901 = vmatprep.mubr.f32.mxu0 %v2398
        %3902 = vmatmul.mubr.f32.gmra.mrb[0].mxu0 %v2397
        %v3903 = vpop.f32.mrb[0].mxu0
        %v3904 = vadd.f32 %v3744, %v3903
        %v3905 = vpop.f32.mrb[0].mxu0
        %3906 = vmatprep.mubr.f32.mxu0 %v2402
        %3907 = vmatmul.mubr.f32.gmra.mrb[0].mxu0 %v2401
        %v3908 = vpop.f32.mrb[0].mxu0
        %v3909 = vadd.f32 %v3749, %v3908
        %v3910 = vpop.f32.mrb[0].mxu0
        %3911 = vmatprep.mubr.f32.mxu0 %v2406
        %3912 = vmatmul.mubr.f32.gmra.mrb[0].mxu0 %v2405
        %v3913 = vpop.f32.mrb[0].mxu0
        %v3914 = vadd.f32 %v3754, %v3913
        %v3915 = vpop.f32.mrb[0].mxu0
        %3916 = vmatprep.mubr.f32.mxu0 %v2410
        %3917 = vmatmul.mubr.f32.gmra.mrb[0].mxu0 %v2409
        %v3918 = vpop.f32.mrb[0].mxu0
        %v3919 = vadd.f32 %v3759, %v3918
        %v3920 = vpop.f32.mrb[0].mxu0
        %3921 = vmatprep.mubr.f32.mxu0 %v2414
        %3922 = vmatmul.mubr.f32.gmra.mrb[0].mxu0 %v2413
        %v3923 = vpop.f32.mrb[0].mxu0
        %v3924 = vadd.f32 %v3764, %v3923
        %v3925 = vpop.f32.mrb[0].mxu0
        %3926 = vmatprep.mubr.f32.mxu0 %v2418
        %3927 = vmatmul.mubr.f32.gmra.mrb[0].mxu0 %v2417
        %v3928 = vpop.f32.mrb[0].mxu0
        %v3929 = vadd.f32 %v3769, %v3928
        %v3930 = vpop.f32.mrb[0].mxu0
        %3931 = vmatprep.mubr.f32.mxu0 %v2422
        %3932 = vmatmul.mubr.f32.gmra.mrb[0].mxu0 %v2421
        %v3933 = vpop.f32.mrb[0].mxu0
        %v3934 = vadd.f32 %v3774, %v3933
        %v3935 = vpop.f32.mrb[0].mxu0
        %3936 = vmatprep.mubr.f32.mxu0 %v2426
        %3937 = vmatmul.mubr.f32.gmra.mrb[0].mxu0 %v2425
        %v3938 = vpop.f32.mrb[0].mxu0
        %v3939 = vadd.f32 %v3779, %v3938
        %v3940 = vpop.f32.mrb[0].mxu0
        %3941 = vmatprep.mubr.f32.mxu0 %v2430
        %3942 = vmatmul.mubr.f32.gmra.mrb[0].mxu0 %v2429
        %v3943 = vpop.f32.mrb[0].mxu0
        %v3944 = vadd.f32 %v3784, %v3943
        %v3945 = vpop.f32.mrb[0].mxu0
        %3946 = vmatprep.mubr.f32.mxu0 %v2434
        %3947 = vmatmul.mubr.f32.gmra.mrb[0].mxu0 %v2433
        %v3948 = vpop.f32.mrb[0].mxu0
        %v3949 = vadd.f32 %v3789, %v3948
        %v3950 = vpop.f32.mrb[0].mxu0
        %3951 = vmatprep.mubr.f32.mxu0 %v2438
        %3952 = vmatmul.mubr.f32.gmra.mrb[0].mxu0 %v2437
        %v3953 = vpop.f32.mrb[0].mxu0
        %v3954 = vadd.f32 %v3794, %v3953
        %v3955 = vpop.f32.mrb[0].mxu0
        %3956 = vmatprep.mubr.f32.mxu0 %v2442
        %3957 = vmatmul.mubr.f32.gmra.mrb[0].mxu0 %v2441
        %v3958 = vpop.f32.mrb[0].mxu0
        %v3959 = vadd.f32 %v3799, %v3958
        %v3960 = vpop.f32.mrb[0].mxu0
        %3961 = vmatprep.mubr.f32.mxu0 %v2446
        %3962 = vmatmul.mubr.f32.gmra.mrb[0].mxu0 %v2445
        %v3963 = vpop.f32.mrb[0].mxu0
        %v3964 = vadd.f32 %v3804, %v3963
        %v3965 = vpop.f32.mrb[0].mxu0
        %3966 = vmatprep.mubr.f32.mxu0 %v2450
        %3967 = vmatmul.mubr.f32.gmra.mrb[0].mxu0 %v2449
        %v3968 = vpop.f32.mrb[0].mxu0
        %v3969 = vadd.f32 %v3809, %v3968
        %v3970 = vpop.f32.mrb[0].mxu0
        %3971 = vmatprep.mubr.f32.mxu0 %v2454
        %3972 = vmatmul.mubr.f32.gmra.mrb[0].mxu0 %v2453
        %v3973 = vpop.f32.mrb[0].mxu0
        %v3974 = vadd.f32 %v3814, %v3973
        %v3975 = vpop.f32.mrb[0].mxu0
        %3976 = vmatprep.mubr.f32.mxu0 %v2458
        %3977 = vmatmul.mubr.f32.gmra.mrb[0].mxu0 %v2457
        %v3978 = vpop.f32.mrb[0].mxu0
        %v3979 = vadd.f32 %v3819, %v3978
        %v3980 = vpop.f32.mrb[0].mxu0
        %3981 = vmatprep.mubr.f32.mxu0 %v2462
        %3982 = vmatmul.mubr.f32.gmra.mrb[0].mxu0 %v2461
        %v3983 = vpop.f32.mrb[0].mxu0
        %v3984 = vadd.f32 %v3824, %v3983
        %v3985 = vpop.f32.mrb[0].mxu0
        %3986 = vmatprep.mubr.f32.mxu0 %v2466
        %3987 = vmatmul.mubr.f32.gmra.mrb[0].mxu0 %v2465
        %v3988 = vpop.f32.mrb[0].mxu0
        %v3989 = vadd.f32 %v3829, %v3988
        %v3990 = vpop.f32.mrb[0].mxu0
        %3991 = vdwg.mxu0
        %3992 = vmatprep.subr.mxu0 0.0
        %3993 = vmatpush1.msra.mxu0 %v3601
        %3994 = vmatprep.subr.mxu0 0.0
        %3995 = vmatpush1.msra.mxu0 %v3602
        %3996 = vmatprep.subr.mxu0 0.0
        %3997 = vmatpush1.msra.mxu0 %v3603
        %3998 = vmatprep.subr.mxu0 0.0
        %3999 = vmatpush1.msra.mxu0 %v3604
        %4000 = vmatprep.subr.mxu0 0.0
        %4001 = vmatpush1.msra.mxu0 %v3605
        %4002 = vmatprep.subr.mxu0 0.0
        %4003 = vmatpush1.msra.mxu0 %v3606
        %4004 = vmatprep.subr.mxu0 0.0
        %4005 = vmatpush1.msra.mxu0 %v3607
        %4006 = vmatprep.subr.mxu0 0.0
        %4007 = vmatpush1.msra.mxu0 %v3608
        %4008 = vmatprep.subr.mxu0 0.0
        %4009 = vmatpush1.msra.mxu0 %v3609
        %4010 = vmatprep.subr.mxu0 0.0
        %4011 = vmatpush1.msra.mxu0 %v3610
        %4012 = vmatprep.subr.mxu0 0.0
        %4013 = vmatpush1.msra.mxu0 %v3611
        %4014 = vmatprep.subr.mxu0 0.0
        %4015 = vmatpush1.msra.mxu0 %v3612
        %4016 = vmatprep.subr.mxu0 0.0
        %4017 = vmatpush1.msra.mxu0 %v3613
        %4018 = vmatprep.subr.mxu0 0.0
        %4019 = vmatpush1.msra.mxu0 %v3614
        %4020 = vmatprep.subr.mxu0 0.0
        %4021 = vmatpush1.msra.mxu0 %v3615
        %4022 = vmatprep.subr.mxu0 0.0
        %4023 = vmatpush1.msra.mxu0 %v3616
        %4024 = vmatprep.subr.mxu0 0.0
        %4025 = vmatpush1.msra.mxu0 %v3617
        %4026 = vmatprep.subr.mxu0 0.0
        %4027 = vmatpush1.msra.mxu0 %v3618
        %4028 = vmatprep.subr.mxu0 0.0
        %4029 = vmatpush1.msra.mxu0 %v3619
        %4030 = vmatprep.subr.mxu0 0.0
        %4031 = vmatpush1.msra.mxu0 %v3620
        %4032 = vmatprep.subr.mxu0 0.0
        %4033 = vmatpush1.msra.mxu0 %v3621
        %4034 = vmatprep.subr.mxu0 0.0
        %4035 = vmatpush1.msra.mxu0 %v3622
        %4036 = vmatprep.subr.mxu0 0.0
        %4037 = vmatpush1.msra.mxu0 %v3623
        %4038 = vmatprep.subr.mxu0 0.0
        %4039 = vmatpush1.msra.mxu0 %v3624
        %4040 = vmatprep.subr.mxu0 0.0
        %4041 = vmatpush1.msra.mxu0 %v3625
        %4042 = vmatprep.subr.mxu0 0.0
        %4043 = vmatpush1.msra.mxu0 %v3626
        %4044 = vmatprep.subr.mxu0 0.0
        %4045 = vmatpush1.msra.mxu0 %v3627
        %4046 = vmatprep.subr.mxu0 0.0
        %4047 = vmatpush1.msra.mxu0 %v3628
        %4048 = vmatprep.subr.mxu0 0.0
        %4049 = vmatpush1.msra.mxu0 %v3629
        %4050 = vmatprep.subr.mxu0 0.0
        %4051 = vmatpush1.msra.mxu0 %v3630
        %4052 = vmatprep.subr.mxu0 0.0
        %4053 = vmatpush1.msra.mxu0 %v3631
        %4054 = vmatprep.subr.mxu0 0.0
        %4055 = vmatpush1.msra.mxu0 %v3632
        %4056 = vmatprep.mubr.f32.mxu0 %v3462
        %4057 = vmatmul.mubr.f32.gmra.mrb[0].mxu0 %v3461
        %v4058 = vpop.f32.mrb[0].mxu0
        %v4059 = vadd.f32 %v3899, %v4058
        %v4060 = vpop.f32.mrb[0].mxu0
        %4061 = vmatprep.mubr.f32.mxu0 %v3466
        %4062 = vmatmul.mubr.f32.gmra.mrb[0].mxu0 %v3465
        %v4063 = vpop.f32.mrb[0].mxu0
        %v4064 = vadd.f32 %v3904, %v4063
        %v4065 = vpop.f32.mrb[0].mxu0
        %4066 = vmatprep.mubr.f32.mxu0 %v3470
        %4067 = vmatmul.mubr.f32.gmra.mrb[0].mxu0 %v3469
        %v4068 = vpop.f32.mrb[0].mxu0
        %v4069 = vadd.f32 %v3909, %v4068
        %v4070 = vpop.f32.mrb[0].mxu0
        %4071 = vmatprep.mubr.f32.mxu0 %v3474
        %4072 = vmatmul.mubr.f32.gmra.mrb[0].mxu0 %v3473
        %v4073 = vpop.f32.mrb[0].mxu0
        %v4074 = vadd.f32 %v3914, %v4073
        %v4075 = vpop.f32.mrb[0].mxu0
        %4076 = vmatprep.mubr.f32.mxu0 %v3478
        %4077 = vmatmul.mubr.f32.gmra.mrb[0].mxu0 %v3477
        %v4078 = vpop.f32.mrb[0].mxu0
        %v4079 = vadd.f32 %v3919, %v4078
        %v4080 = vpop.f32.mrb[0].mxu0
        %4081 = vmatprep.mubr.f32.mxu0 %v3482
        %4082 = vmatmul.mubr.f32.gmra.mrb[0].mxu0 %v3481
        %v4083 = vpop.f32.mrb[0].mxu0
        %v4084 = vadd.f32 %v3924, %v4083
        %v4085 = vpop.f32.mrb[0].mxu0
        %4086 = vmatprep.mubr.f32.mxu0 %v3486
        %4087 = vmatmul.mubr.f32.gmra.mrb[0].mxu0 %v3485
        %v4088 = vpop.f32.mrb[0].mxu0
        %v4089 = vadd.f32 %v3929, %v4088
        %v4090 = vpop.f32.mrb[0].mxu0
        %4091 = vmatprep.mubr.f32.mxu0 %v3490
        %4092 = vmatmul.mubr.f32.gmra.mrb[0].mxu0 %v3489
        %v4093 = vpop.f32.mrb[0].mxu0
        %v4094 = vadd.f32 %v3934, %v4093
        %v4095 = vpop.f32.mrb[0].mxu0
        %4096 = vmatprep.mubr.f32.mxu0 %v3494
        %4097 = vmatmul.mubr.f32.gmra.mrb[0].mxu0 %v3493
        %v4098 = vpop.f32.mrb[0].mxu0
        %v4099 = vadd.f32 %v3939, %v4098
        %v4100 = vpop.f32.mrb[0].mxu0
        %4101 = vmatprep.mubr.f32.mxu0 %v3498
        %4102 = vmatmul.mubr.f32.gmra.mrb[0].mxu0 %v3497
        %v4103 = vpop.f32.mrb[0].mxu0
        %v4104 = vadd.f32 %v3944, %v4103
        %v4105 = vpop.f32.mrb[0].mxu0
        %4106 = vmatprep.mubr.f32.mxu0 %v3502
        %4107 = vmatmul.mubr.f32.gmra.mrb[0].mxu0 %v3501
        %v4108 = vpop.f32.mrb[0].mxu0
        %v4109 = vadd.f32 %v3949, %v4108
        %v4110 = vpop.f32.mrb[0].mxu0
        %4111 = vmatprep.mubr.f32.mxu0 %v3506
        %4112 = vmatmul.mubr.f32.gmra.mrb[0].mxu0 %v3505
        %v4113 = vpop.f32.mrb[0].mxu0
        %v4114 = vadd.f32 %v3954, %v4113
        %v4115 = vpop.f32.mrb[0].mxu0
        %4116 = vmatprep.mubr.f32.mxu0 %v3510
        %4117 = vmatmul.mubr.f32.gmra.mrb[0].mxu0 %v3509
        %v4118 = vpop.f32.mrb[0].mxu0
        %v4119 = vadd.f32 %v3959, %v4118
        %v4120 = vpop.f32.mrb[0].mxu0
        %4121 = vmatprep.mubr.f32.mxu0 %v3514
        %4122 = vmatmul.mubr.f32.gmra.mrb[0].mxu0 %v3513
        %v4123 = vpop.f32.mrb[0].mxu0
        %v4124 = vadd.f32 %v3964, %v4123
        %v4125 = vpop.f32.mrb[0].mxu0
        %4126 = vmatprep.mubr.f32.mxu0 %v3518
        %4127 = vmatmul.mubr.f32.gmra.mrb[0].mxu0 %v3517
        %v4128 = vpop.f32.mrb[0].mxu0
        %v4129 = vadd.f32 %v3969, %v4128
        %v4130 = vpop.f32.mrb[0].mxu0
        %4131 = vmatprep.mubr.f32.mxu0 %v3522
        %4132 = vmatmul.mubr.f32.gmra.mrb[0].mxu0 %v3521
        %v4133 = vpop.f32.mrb[0].mxu0
        %v4134 = vadd.f32 %v3974, %v4133
        %v4135 = vpop.f32.mrb[0].mxu0
        %4136 = vmatprep.mubr.f32.mxu0 %v3526
        %4137 = vmatmul.mubr.f32.gmra.mrb[0].mxu0 %v3525
        %v4138 = vpop.f32.mrb[0].mxu0
        %v4139 = vadd.f32 %v3979, %v4138
        %v4140 = vpop.f32.mrb[0].mxu0
        %4141 = vmatprep.mubr.f32.mxu0 %v3530
        %4142 = vmatmul.mubr.f32.gmra.mrb[0].mxu0 %v3529
        %v4143 = vpop.f32.mrb[0].mxu0
        %v4144 = vadd.f32 %v3984, %v4143
        %v4145 = vpop.f32.mrb[0].mxu0
        %4146 = vmatprep.mubr.f32.mxu0 %v3534
        %4147 = vmatmul.mubr.f32.gmra.mrb[0].mxu0 %v3533
        %v4148 = vpop.f32.mrb[0].mxu0
        %v4149 = vadd.f32 %v3989, %v4148
        %v4150 = vpop.f32.mrb[0].mxu0
        %4151 = vdwg.mxu0
        %4152 = vmatprep.subr.mxu0 0.0
        %4153 = vmatpush1.msra.mxu0 %v3633
        %4154 = vmatprep.subr.mxu0 0.0
        %4155 = vmatpush1.msra.mxu0 %v3634
        %4156 = vmatprep.subr.mxu0 0.0
        %4157 = vmatpush1.msra.mxu0 %v3635
        %4158 = vmatprep.subr.mxu0 0.0
        %4159 = vmatpush1.msra.mxu0 %v3636
        %4160 = vmatprep.subr.mxu0 0.0
        %4161 = vmatpush1.msra.mxu0 %v3637
        %4162 = vmatprep.subr.mxu0 0.0
        %4163 = vmatpush1.msra.mxu0 %v3638
        %4164 = vmatprep.subr.mxu0 0.0
        %4165 = vmatpush1.msra.mxu0 %v3639
        %4166 = vmatprep.subr.mxu0 0.0
        %4167 = vmatpush1.msra.mxu0 %v3640
        %4168 = vmatprep.subr.mxu0 0.0
        %4169 = vmatpush1.msra.mxu0 %v3641
        %4170 = vmatprep.subr.mxu0 0.0
        %4171 = vmatpush1.msra.mxu0 %v3642
        %4172 = vmatprep.subr.mxu0 0.0
        %4173 = vmatpush1.msra.mxu0 %v3643
        %4174 = vmatprep.subr.mxu0 0.0
        %4175 = vmatpush1.msra.mxu0 %v3644
        %4176 = vmatprep.subr.mxu0 0.0
        %4177 = vmatpush1.msra.mxu0 %v3645
        %4178 = vmatprep.subr.mxu0 0.0
        %4179 = vmatpush1.msra.mxu0 %v3646
        %4180 = vmatprep.subr.mxu0 0.0
        %4181 = vmatpush1.msra.mxu0 %v3647
        %4182 = vmatprep.subr.mxu0 0.0
        %4183 = vmatpush1.msra.mxu0 %v3648
        %4184 = vmatprep.subr.mxu0 0.0
        %4185 = vmatpush1.msra.mxu0 %v3649
        %4186 = vmatprep.subr.mxu0 0.0
        %4187 = vmatpush1.msra.mxu0 %v3650
        %4188 = vmatprep.subr.mxu0 0.0
        %4189 = vmatpush1.msra.mxu0 %v3651
        %4190 = vmatprep.subr.mxu0 0.0
        %4191 = vmatpush1.msra.mxu0 %v3652
        %4192 = vmatprep.subr.mxu0 0.0
        %4193 = vmatpush1.msra.mxu0 %v3653
        %4194 = vmatprep.subr.mxu0 0.0
        %4195 = vmatpush1.msra.mxu0 %v3654
        %4196 = vmatprep.subr.mxu0 0.0
        %4197 = vmatpush1.msra.mxu0 %v3655
        %4198 = vmatprep.subr.mxu0 0.0
        %4199 = vmatpush1.msra.mxu0 %v3656
        %4200 = vmatprep.subr.mxu0 0.0
        %4201 = vmatpush1.msra.mxu0 %v3657
        %4202 = vmatprep.subr.mxu0 0.0
        %4203 = vmatpush1.msra.mxu0 %v3658
        %4204 = vmatprep.subr.mxu0 0.0
        %4205 = vmatpush1.msra.mxu0 %v3659
        %4206 = vmatprep.subr.mxu0 0.0
        %4207 = vmatpush1.msra.mxu0 %v3660
        %4208 = vmatprep.subr.mxu0 0.0
        %4209 = vmatpush1.msra.mxu0 %v3661
        %4210 = vmatprep.subr.mxu0 0.0
        %4211 = vmatpush1.msra.mxu0 %v3662
        %4212 = vmatprep.subr.mxu0 0.0
        %4213 = vmatpush1.msra.mxu0 %v3663
        %4214 = vmatprep.subr.mxu0 0.0
        %4215 = vmatpush1.msra.mxu0 %v3664
        %4216 = vmatprep.mubr.f32.mxu0 %v3464
        %4217 = vmatmul.mubr.f32.gmra.mrb[0].mxu0 %v3463
        %v4218 = vpop.f32.mrb[0].mxu0
        %v4219 = vadd.f32 %v4059, %v4218
        %v4220 = vpop.f32.mrb[0].mxu0
        %4221 = vmatprep.mubr.f32.mxu0 %v3468
        %4222 = vmatmul.mubr.f32.gmra.mrb[0].mxu0 %v3467
        %v4223 = vpop.f32.mrb[0].mxu0
        %v4224 = vadd.f32 %v4064, %v4223
        %v4225 = vpop.f32.mrb[0].mxu0
        %4226 = vmatprep.mubr.f32.mxu0 %v3472
        %4227 = vmatmul.mubr.f32.gmra.mrb[0].mxu0 %v3471
        %v4228 = vpop.f32.mrb[0].mxu0
        %v4229 = vadd.f32 %v4069, %v4228
        %v4230 = vpop.f32.mrb[0].mxu0
        %4231 = vmatprep.mubr.f32.mxu0 %v3476
        %4232 = vmatmul.mubr.f32.gmra.mrb[0].mxu0 %v3475
        %v4233 = vpop.f32.mrb[0].mxu0
        %v4234 = vadd.f32 %v4074, %v4233
        %v4235 = vpop.f32.mrb[0].mxu0
        %4236 = vmatprep.mubr.f32.mxu0 %v3480
        %4237 = vmatmul.mubr.f32.gmra.mrb[0].mxu0 %v3479
        %v4238 = vpop.f32.mrb[0].mxu0
        %v4239 = vadd.f32 %v4079, %v4238
        %v4240 = vpop.f32.mrb[0].mxu0
        %4241 = vmatprep.mubr.f32.mxu0 %v3484
        %4242 = vmatmul.mubr.f32.gmra.mrb[0].mxu0 %v3483
        %v4243 = vpop.f32.mrb[0].mxu0
        %v4244 = vadd.f32 %v4084, %v4243
        %v4245 = vpop.f32.mrb[0].mxu0
        %4246 = vmatprep.mubr.f32.mxu0 %v3488
        %4247 = vmatmul.mubr.f32.gmra.mrb[0].mxu0 %v3487
        %v4248 = vpop.f32.mrb[0].mxu0
        %v4249 = vadd.f32 %v4089, %v4248
        %v4250 = vpop.f32.mrb[0].mxu0
        %4251 = vmatprep.mubr.f32.mxu0 %v3492
        %4252 = vmatmul.mubr.f32.gmra.mrb[0].mxu0 %v3491
        %v4253 = vpop.f32.mrb[0].mxu0
        %v4254 = vadd.f32 %v4094, %v4253
        %v4255 = vpop.f32.mrb[0].mxu0
        %4256 = vmatprep.mubr.f32.mxu0 %v3496
        %4257 = vmatmul.mubr.f32.gmra.mrb[0].mxu0 %v3495
        %v4258 = vpop.f32.mrb[0].mxu0
        %v4259 = vadd.f32 %v4099, %v4258
        %v4260 = vpop.f32.mrb[0].mxu0
        %4261 = vmatprep.mubr.f32.mxu0 %v3500
        %4262 = vmatmul.mubr.f32.gmra.mrb[0].mxu0 %v3499
        %v4263 = vpop.f32.mrb[0].mxu0
        %v4264 = vadd.f32 %v4104, %v4263
        %v4265 = vpop.f32.mrb[0].mxu0
        %4266 = vmatprep.mubr.f32.mxu0 %v3504
        %4267 = vmatmul.mubr.f32.gmra.mrb[0].mxu0 %v3503
        %v4268 = vpop.f32.mrb[0].mxu0
        %v4269 = vadd.f32 %v4109, %v4268
        %v4270 = vpop.f32.mrb[0].mxu0
        %4271 = vmatprep.mubr.f32.mxu0 %v3508
        %4272 = vmatmul.mubr.f32.gmra.mrb[0].mxu0 %v3507
        %v4273 = vpop.f32.mrb[0].mxu0
        %v4274 = vadd.f32 %v4114, %v4273
        %v4275 = vpop.f32.mrb[0].mxu0
        %4276 = vmatprep.mubr.f32.mxu0 %v3512
        %4277 = vmatmul.mubr.f32.gmra.mrb[0].mxu0 %v3511
        %v4278 = vpop.f32.mrb[0].mxu0
        %v4279 = vadd.f32 %v4119, %v4278
        %v4280 = vpop.f32.mrb[0].mxu0
        %4281 = vmatprep.mubr.f32.mxu0 %v3516
        %4282 = vmatmul.mubr.f32.gmra.mrb[0].mxu0 %v3515
        %v4283 = vpop.f32.mrb[0].mxu0
        %v4284 = vadd.f32 %v4124, %v4283
        %v4285 = vpop.f32.mrb[0].mxu0
        %4286 = vmatprep.mubr.f32.mxu0 %v3520
        %4287 = vmatmul.mubr.f32.gmra.mrb[0].mxu0 %v3519
        %v4288 = vpop.f32.mrb[0].mxu0
        %v4289 = vadd.f32 %v4129, %v4288
        %v4290 = vpop.f32.mrb[0].mxu0
        %4291 = vmatprep.mubr.f32.mxu0 %v3524
        %4292 = vmatmul.mubr.f32.gmra.mrb[0].mxu0 %v3523
        %v4293 = vpop.f32.mrb[0].mxu0
        %v4294 = vadd.f32 %v4134, %v4293
        %v4295 = vpop.f32.mrb[0].mxu0
        %4296 = vmatprep.mubr.f32.mxu0 %v3528
        %4297 = vmatmul.mubr.f32.gmra.mrb[0].mxu0 %v3527
        %v4298 = vpop.f32.mrb[0].mxu0
        %v4299 = vadd.f32 %v4139, %v4298
        %v4300 = vpop.f32.mrb[0].mxu0
        %4301 = vmatprep.mubr.f32.mxu0 %v3532
        %4302 = vmatmul.mubr.f32.gmra.mrb[0].mxu0 %v3531
        %v4303 = vpop.f32.mrb[0].mxu0
        %v4304 = vadd.f32 %v4144, %v4303
        %v4305 = vpop.f32.mrb[0].mxu0
        %4306 = vmatprep.mubr.f32.mxu0 %v3536
        %4307 = vmatmul.mubr.f32.gmra.mrb[0].mxu0 %v3535
        %v4308 = vpop.f32.mrb[0].mxu0
        %v4309 = vadd.f32 %v4149, %v4308
        %v4310 = vpop.f32.mrb[0].mxu0
        %4311 = vdwg.mxu0
        %4312 = vst [vmem:[%s370] sm:$0xff] %v4219
        %4313 = vst [vmem:[%s370 + $0x8] sm:$0xff] %v4224
        %4314 = vst [vmem:[%s370 + $0x10] sm:$0xff] %v4229
        %4315 = vst [vmem:[%s370 + $0x18] sm:$0xff] %v4234
        %4316 = vst [vmem:[%s370 + $0x20] sm:$0xff] %v4239
        %4317 = vst [vmem:[%s370 + $0x28] sm:$0xff] %v4244
        %4318 = vst [vmem:[%s370 + $0x30] sm:$0xff] %v4249
        %4319 = vst [vmem:[%s370 + $0x38] sm:$0xff] %v4254
        %4320 = vst [vmem:[%s370 + $0x40] sm:$0xff] %v4259
        %4321 = vst [vmem:[%s370 + $0x48] sm:$0xff] %v4264
        %4322 = vst [vmem:[%s370 + $0x50] sm:$0xff] %v4269
        %4323 = vst [vmem:[%s370 + $0x58] sm:$0xff] %v4274
        %4324 = vst [vmem:[%s370 + $0x60] sm:$0xff] %v4279
        %4325 = vst [vmem:[%s370 + $0x68] sm:$0xff] %v4284
        %4326 = vst [vmem:[%s370 + $0x70] sm:$0xff] %v4289
        %4327 = vst [vmem:[%s370 + $0x78] sm:$0xff] %v4294
        %4328 = vst [vmem:[%s370 + $0x80] sm:$0xff] %v4299
        %4329 = vst [vmem:[%s370 + $0x88] sm:$0xff] %v4304
        %4330 = vst [vmem:[%s370 + $0x90] sm:$0xff] %v4309
        %s4331 = sand.u32 %s227, 1
        %s4332 = scalar_lea.sflag [#allocation4], %s4331
        %s4333 = sand.u32 %s227, 1
        %s4334 = smul.addr %s4333, 152
        %s4335 = scalar_lea.vmem [#allocation8], %s4334
        // Predicated region
        $region69: #{tpu_custom_call.1} parent=55 // pred_check
          %p4336 = pneg %p237
        $region70: #{tpu_custom_call.1} parent=55 // pred_check_branch
          %4338 = sbr.rel (%p4336) target = $region72
        $region71: #{tpu_custom_call.1} parent=55 // pred_region
          %s4339 = smul.u32 19, %s25
          %s4341 = ssub.s32 2432, 2432
          %4342 = vsyncadd %s4332, %s4341
          %s4343 = smul.addr %s4339, 128
          %s4344 = scalar_lea.hbm %s9, %s4343
          %s4345 = sshll.u32 %s4335, 4
          %s4346 = int_to_ptr.vmem [resolvable:$true] %s4345
          %4351 = dma.vmem_to_hbm [thread:$0]  %s4346, 2432, %s4344, %s4332, 128, 128, 8
        $region72: #{tpu_custom_call.1} parent=55 // pred_fallthru
          _
      $region56: #{tpu_custom_call.1} parent=5 // pred_fallthru
        _
      %p4352 = scmp.le.s32.totalorder 2, %s20
      // Predicated region
      $region73: #{tpu_custom_call.1} parent=5 // pred_check
        %p4353 = pneg %p4352
      $region74: #{tpu_custom_call.1} parent=5 // pred_check_branch
        %4355 = sbr.rel (%p4353) target = $region76
      $region75: #{tpu_custom_call.1} parent=5 // pred_region
        %s4356 = ssub.s32 %s20, 2
        // Predicated region
        $region77: #{tpu_custom_call.1} parent=75 // pred_check
          %p4357 = pneg %p243
        $region78: #{tpu_custom_call.1} parent=75 // pred_check_branch
          %4359 = sbr.rel (%p4357) target = $region80
        $region79: #{tpu_custom_call.1} parent=75 // pred_region
          %s4360 = sand.u32 %s228, 1
          %s4361 = scalar_lea.sflag [#allocation4], %s4360
          %s4362 = sand.u32 %s228, 1
          %s4363 = smul.addr %s4362, 152
          %s4364 = scalar_lea.vmem [#allocation8], %s4363
          %4365 = dma.done %s4361, 2432
        $region80: #{tpu_custom_call.1} parent=75 // pred_fallthru
          _
      $region76: #{tpu_custom_call.1} parent=5 // pred_fallthru
        _
    $region6: #{tpu_custom_call.1} parent=1 // loop_footer
      %s24 = sadd.s32 1, %s20
    $region7: #{tpu_custom_call.1} parent=1 // loop_footer_branch
      %19 = sbr.rel target = $region3
    $region8: #{tpu_custom_call.1} parent=1 // loop_exit
      _
    %4366 = vsyncpa [#allocation3], 1
    %s4367 = scalar_lea.sflag [#allocation3], 1
    %4368 = vsyncpa %s4367, 1
    %4369 = vsyncpa [#allocation6], 1
    %4370 = vsyncpa [#allocation4], 1
    %s4371 = scalar_lea.sflag [#allocation4], 1
    %4372 = vsyncpa %s4371, 1

</llo_original>
